<compile_context>
chip_gen: v7x
topology: tpu7x:2x2x1
jax: 0.10.0
libtpu: 0.0.40
codegen_flags: <defaults>
</compile_context>

<pallas_src>
import functools

import jax
import jax.numpy as jnp
from jax import lax
from jax.experimental import pallas as pl
from jax.experimental.pallas import tpu as pltpu


# ----------------------------------------------------------------------------
# Fused flash-style kernel: projections + online-softmax attention + W_0.
# One grid step per (batch, q-tile, kv-tile).
# ----------------------------------------------------------------------------
def _fused_mha_kernel(q_ref, kv_ref, wq_ref, wkv_ref, w0_ref, o_ref,
                      qp_ref, m_ref, l_ref, acc_ref, *, heads, dim_head):
    j = pl.program_id(2)
    nj = pl.num_programs(2)
    cdt = wq_ref.dtype                       # MXU operand dtype
    _dim = heads * dim_head

    # ---- first KV step for this (batch, q-tile): init state, project Q once.
    @pl.when(j == 0)
    def _init():
        qp_ref[...] = jnp.dot(q_ref[0].astype(cdt), wq_ref[...],
                              preferred_element_type=jnp.float32
                              ).astype(qp_ref.dtype)        # scale folded in wq
        m_ref[...] = jnp.full(m_ref.shape, -jnp.inf, dtype=m_ref.dtype)
        l_ref[...] = jnp.zeros(l_ref.shape, dtype=l_ref.dtype)
        acc_ref[...] = jnp.zeros(acc_ref.shape, dtype=acc_ref.dtype)

    # ---- project this KV tile with the fused [K | V] weight: one wide matmul.
    kvp = jnp.dot(kv_ref[0].astype(cdt), wkv_ref[...],
                  preferred_element_type=jnp.float32).astype(cdt)  # (tkv, 2*_dim)

    # ---- per-head online softmax, deferred normalization (acc unnormalized).
    for h in range(heads):
        lo = h * dim_head
        qh = qp_ref[:, lo:lo + dim_head]                  # (tq, Dh)  cdt
        kh = kvp[:, lo:lo + dim_head]                     # (tkv, Dh) cdt
        vh = kvp[:, _dim + lo:_dim + lo + dim_head]       # (tkv, Dh) cdt

        # scores: '... i d , ... j d -> ... i j' (softmax scale already in wq)
        s = lax.dot_general(qh, kh, (((1,), (1,)), ((), ())),
                            preferred_element_type=jnp.float32)     # (tq, tkv)

        m_prev = m_ref[h]                                 # (tq, 1)
        m_new = jnp.maximum(m_prev, jnp.max(s, axis=-1, keepdims=True))
        alpha = jnp.exp(m_prev - m_new)                   # (tq, 1)
        p = jnp.exp(s - m_new)                            # (tq, tkv) f32

        l_ref[h] = alpha * l_ref[h] + jnp.sum(p, axis=-1, keepdims=True)
        acc_ref[:, lo:lo + dim_head] = (
            alpha * acc_ref[:, lo:lo + dim_head]
            + jnp.dot(p.astype(cdt), vh, preferred_element_type=jnp.float32))
        m_ref[h] = m_new

    # ---- last KV step: normalize per head, then ONE full-depth W_0 matmul.
    @pl.when(j == nj - 1)
    def _finalize():
        for h in range(heads):
            lo = h * dim_head
            inv = pl.reciprocal(l_ref[h], approx=True)    # (tq, 1), EUP slot
            acc_ref[:, lo:lo + dim_head] = acc_ref[:, lo:lo + dim_head] * inv
        o_ref[0] = jnp.dot(acc_ref[...].astype(cdt), w0_ref[...],
                           preferred_element_type=jnp.float32).astype(o_ref.dtype)


# ----------------------------------------------------------------------------
# Helpers
# ----------------------------------------------------------------------------
def _vmem_limit_bytes(headroom=16 * 1024 * 1024):
    """Explicit scoped-VMEM budget: physical capacity minus headroom
    (v5e/v6e: 128 MiB, v7x: 64 MiB).  Conservative fallback if query fails."""
    try:
        info = pltpu.get_tpu_info()
        cap = int(getattr(info, "vmem_capacity_bytes", 64 * 1024 * 1024))
    except Exception:
        cap = 64 * 1024 * 1024
    return max(cap - headroom, 32 * 1024 * 1024)


def _pick_tile(total, target, sublane):
    """Largest divisor of `total` <= target that is sublane-aligned; falls back
    to the full extent (a full-dim block is always a legal block shape)."""
    if total <= target:
        return total
    for t in range(target, sublane - 1, -1):
        if total % t == 0 and t % sublane == 0:
            return t
    return total


# ----------------------------------------------------------------------------
# One-time weight preparation (mirrors nn.Linear + the einops rearranges):
#   - to_q rows are ordered (d, h)   -> reorder to (h, d), transpose, fold scale
#   - to_kv rows are ordered (d, k, h)-> split k/v, reorder to (h, d), fuse [K|V]
#   - W_0 just transposed; its '(h d)' input order matches the kernel layout
# ----------------------------------------------------------------------------
def prepare_params(params, heads, dim_head, compute_dtype=jnp.float32):
    W_kv, W_q, W_0 = params["to_kv"], params["to_q"], params["W_0"]
    dim = W_q.shape[1]
    _dim = heads * dim_head
    scale = dim_head ** (-0.5)

    wq = jnp.transpose(W_q.reshape(dim_head, heads, dim), (1, 0, 2))
    wq = (wq.reshape(_dim, dim).T) * scale                           # (dim, _dim)

    wkv4 = W_kv.reshape(dim_head, 2, heads, dim)
    wk = jnp.transpose(wkv4[:, 0], (1, 0, 2)).reshape(_dim, dim).T   # (dim, _dim)
    wv = jnp.transpose(wkv4[:, 1], (1, 0, 2)).reshape(_dim, dim).T   # (dim, _dim)
    wkv = jnp.concatenate([wk, wv], axis=1)                          # (dim, 2*_dim)

    w0 = W_0.T                                                       # (_dim, dim)
    return (wq.astype(compute_dtype), wkv.astype(compute_dtype),
            w0.astype(compute_dtype))


# ----------------------------------------------------------------------------
# Forward pass (matches MultiHeadAttention.forward with mask=None, pe=None)
# ----------------------------------------------------------------------------
def multi_head_attention(q, kv, params, heads, dim_head,
                         compute_dtype=jnp.float32,
                         q_tile=128, kv_tile=512,
                         single_buffer_weights=True):
    B, Tq, dim = q.shape
    Tkv = kv.shape[1]
    _dim = heads * dim_head
    out_dtype = q.dtype

    wq, wkv, w0 = prepare_params(params, heads, dim_head, compute_dtype)

    # bf16 path: cast activations wrapper-side -> half the HBM->VMEM DMA bytes.
    if compute_dtype == jnp.bfloat16:
        q = q.astype(jnp.bfloat16)
        kv = kv.astype(jnp.bfloat16)

    sublane = 16 if compute_dtype == jnp.bfloat16 else 8
    tq = _pick_tile(Tq, q_tile, sublane)
    tkv = _pick_tile(Tkv, kv_tile, sublane)
    grid = (B, Tq // tq, Tkv // tkv)

    kern = functools.partial(_fused_mha_kernel, heads=heads, dim_head=dim_head)

    def build(single_buffer):
        def w_spec(shape):
            if single_buffer:
                # Constant index_map -> the default 2nd pipeline buffer is waste.
                return pl.BlockSpec(shape, lambda b, i, j: (0, 0),
                                    pipeline_mode=pl.Buffered(1))
            return pl.BlockSpec(shape, lambda b, i, j: (0, 0))

        return pl.pallas_call(
            kern,
            out_shape=jax.ShapeDtypeStruct((B, Tq, dim), out_dtype),
            grid=grid,
            in_specs=[
                pl.BlockSpec((1, tq, dim), lambda b, i, j: (b, i, 0)),   # q
                pl.BlockSpec((1, tkv, dim), lambda b, i, j: (b, j, 0)),  # kv
                w_spec((dim, _dim)),          # wq  (softmax scale folded in)
                w_spec((dim, 2 * _dim)),      # fused [K | V] projection weight
                w_spec((_dim, dim)),          # w0
            ],
            out_specs=pl.BlockSpec((1, tq, dim), lambda b, i, j: (b, i, 0)),
            scratch_shapes=[
                pltpu.VMEM((tq, _dim), compute_dtype),     # cached Q projection
                pltpu.VMEM((heads, tq, 1), jnp.float32),   # running max m
                pltpu.VMEM((heads, tq, 1), jnp.float32),   # running denom l
                pltpu.VMEM((tq, _dim), jnp.float32),       # unnormalized context
            ],
            compiler_params=pltpu.CompilerParams(
                dimension_semantics=("parallel", "parallel", "arbitrary"),
                vmem_limit_bytes=_vmem_limit_bytes()),
        )

    if single_buffer_weights:
        try:
            return build(True)(q, kv, wq, wkv, w0)
        except Exception:
            # Fallback for jax versions without BlockSpec.pipeline_mode support.
            pass
    return build(False)(q, kv, wq, wkv, w0)


# ----------------------------------------------------------------------------
# Pure-JAX reference (faithful mirror of the PyTorch module, for checking)
# ----------------------------------------------------------------------------
def reference_mha(q, kv, params, heads, dim_head):
    W_kv, W_q, W_0 = params["to_kv"], params["to_q"], params["W_0"]
    B, Tq, dim = q.shape
    Tkv = kv.shape[1]
    _dim = heads * dim_head
    scale = dim_head ** (-0.5)

    kv_p = (kv @ W_kv.T).reshape(B, Tkv, dim_head, 2, heads)
    k = jnp.transpose(kv_p[:, :, :, 0, :], (0, 3, 1, 2))
    v = jnp.transpose(kv_p[:, :, :, 1, :], (0, 3, 1, 2))
    qh = jnp.transpose((q @ W_q.T).reshape(B, Tq, dim_head, heads), (0, 3, 1, 2))

    s = jnp.einsum("bhid,bhjd->bhij", qh, k) * scale
    att = jax.nn.softmax(s, axis=-1)
    att = jnp.where(jnp.isnan(att), 0.0, att)
    out = jnp.einsum("bhij,bhjd->bhid", att, v)
    out = jnp.transpose(out, (0, 2, 1, 3)).reshape(B, Tq, _dim)
    return out @ W_0.T


if __name__ == "__main__":
    B, Tq, Tkv, dim, heads = 2, 8, 8, 32, 8
    dim_head = dim // heads          # module default dim_head
    _dim = dim_head * heads

    key = jax.random.PRNGKey(0)
    k1, k2, k3, k4, k5 = jax.random.split(key, 5)

    def init_linear(k, out_f, in_f):
        bound = 1.0 / (in_f ** 0.5)   # PyTorch nn.Linear default init range
        return jax.random.uniform(k, (out_f, in_f), jnp.float32, -bound, bound)

    params = {
        "to_kv": init_linear(k1, 2 * _dim, dim),
        "to_q": init_linear(k2, _dim, dim),
        "W_0": init_linear(k3, dim, _dim),
    }

    q = jax.random.normal(k4, (B, Tq, dim), jnp.float32)
    kv = jax.random.normal(k5, (B, Tkv, dim), jnp.float32)

    ref = reference_mha(q, kv, params, heads, dim_head)

    # f32 MXU operands (tight check; approx reciprocal ~1e-4 rel error)
    out_f32 = jax.block_until_ready(
        multi_head_attention(q, kv, params, heads, dim_head,
                             compute_dtype=jnp.float32))
    assert out_f32.shape == (B, Tq, dim)
    assert jnp.allclose(out_f32, ref, atol=5e-3, rtol=5e-3), "f32 mismatch"

    # bf16 MXU operands with f32 accumulation/softmax (looser check)
    out_bf16 = jax.block_until_ready(
        multi_head_attention(q, kv, params, heads, dim_head,
                             compute_dtype=jnp.bfloat16))
    assert jnp.allclose(out_bf16, ref, atol=5e-2, rtol=5e-2), "bf16 mismatch"

    print("KERNEL_OK")
</pallas_src>

<mosaic_0001>
module attributes {stable_mosaic.version = 11 : i64} {
  func.func @_fused_mha_kernel(%arg0: i32, %arg1: i32, %arg2: i32, %arg3: memref<1x8x32xf32, #tpu.memory_space<vmem>>, %arg4: memref<1x8x32xf32, #tpu.memory_space<vmem>>, %arg5: memref<32x32xf32, #tpu.memory_space<vmem>>, %arg6: memref<32x64xf32, #tpu.memory_space<vmem>>, %arg7: memref<32x32xf32, #tpu.memory_space<vmem>>, %arg8: memref<1x8x32xf32, #tpu.memory_space<vmem>>, %arg9: memref<8x32xf32, #tpu.memory_space<vmem>>, %arg10: memref<8x8x1xf32, #tpu.memory_space<vmem>>, %arg11: memref<8x8x1xf32, #tpu.memory_space<vmem>>, %arg12: memref<8x32xf32, #tpu.memory_space<vmem>>) attributes {dimension_semantics = [#tpu.dimension_semantics<parallel>, #tpu.dimension_semantics<parallel>, #tpu.dimension_semantics<arbitrary>], iteration_bounds = array<i64: 2, 1, 1>, scalar_prefetch = 0 : i64, scratch_operands = 4 : i64, tpu.core_type = #tpu.core_type<tc>, window_params = [{transform_indices = @transform_0, window_bounds = array<i64: 1, 8, 32>}, {transform_indices = @transform_1, window_bounds = array<i64: 1, 8, 32>}, {pipeline_mode = #tpu.pipeline_mode<synchronous>, transform_indices = @transform_2, window_bounds = array<i64: 32, 32>}, {pipeline_mode = #tpu.pipeline_mode<synchronous>, transform_indices = @transform_3, window_bounds = array<i64: 32, 64>}, {pipeline_mode = #tpu.pipeline_mode<synchronous>, transform_indices = @transform_4, window_bounds = array<i64: 32, 32>}, {transform_indices = @transform_5, window_bounds = array<i64: 1, 8, 32>}]} {
    %c0_i32 = arith.constant 0 : i32
    %0 = arith.cmpi eq, %arg2, %c0_i32 : i32
    %1 = arith.extui %0 : i1 to i32
    %c0_i32_0 = arith.constant 0 : i32
    %2 = arith.cmpi ne, %1, %c0_i32_0 : i32
    scf.if %2 {
      %c0_170 = arith.constant 0 : index
      %c0_171 = arith.constant 0 : index
      %c0_172 = arith.constant 0 : index
      %266 = vector.load %arg3[%c0_170, %c0_171, %c0_172] : memref<1x8x32xf32, #tpu.memory_space<vmem>>, vector<1x8x32xf32>
      %267 = vector.shape_cast %266 : vector<1x8x32xf32> to vector<8x32xf32>
      %c0_173 = arith.constant 0 : index
      %c0_174 = arith.constant 0 : index
      %268 = vector.load %arg5[%c0_173, %c0_174] : memref<32x32xf32, #tpu.memory_space<vmem>>, vector<32x32xf32>
      %cst_175 = arith.constant dense<0.000000e+00> : vector<8x32xf32>
      %269 = tpu.matmul %267, %268, %cst_175 {dimension_numbers = #tpu.dot_dimension_numbers<[1], [0], [0], [1], [0, 0, 1, 1], [], []>} : vector<8x32xf32>, vector<32x32xf32>, vector<8x32xf32> -> vector<8x32xf32>
      %c0_176 = arith.constant 0 : index
      %c0_177 = arith.constant 0 : index
      %270 = vector.load %arg9[%c0_176, %c0_177] : memref<8x32xf32, #tpu.memory_space<vmem>>, vector<8x32xf32>
      tpu.vector_store %arg9[%c0_176, %c0_177], %269 {strides = array<i32>} : memref<8x32xf32, #tpu.memory_space<vmem>>, vector<8x32xf32>,
      %cst_178 = arith.constant 0xFF800000 : f32
      %271 = vector.broadcast %cst_178 : f32 to vector<8x8x1xf32>
      %c0_179 = arith.constant 0 : index
      %c0_180 = arith.constant 0 : index
      %c0_181 = arith.constant 0 : index
      %272 = vector.load %arg10[%c0_179, %c0_180, %c0_181] : memref<8x8x1xf32, #tpu.memory_space<vmem>>, vector<8x8x1xf32>
      tpu.vector_store %arg10[%c0_179, %c0_180, %c0_181], %271 {strides = array<i32>} : memref<8x8x1xf32, #tpu.memory_space<vmem>>, vector<8x8x1xf32>,
      %cst_182 = arith.constant 0.000000e+00 : f32
      %273 = vector.broadcast %cst_182 : f32 to vector<8x8x1xf32>
      %c0_183 = arith.constant 0 : index
      %c0_184 = arith.constant 0 : index
      %c0_185 = arith.constant 0 : index
      %274 = vector.load %arg11[%c0_183, %c0_184, %c0_185] : memref<8x8x1xf32, #tpu.memory_space<vmem>>, vector<8x8x1xf32>
      tpu.vector_store %arg11[%c0_183, %c0_184, %c0_185], %273 {strides = array<i32>} : memref<8x8x1xf32, #tpu.memory_space<vmem>>, vector<8x8x1xf32>,
      %cst_186 = arith.constant 0.000000e+00 : f32
      %275 = vector.broadcast %cst_186 : f32 to vector<8x32xf32>
      %c0_187 = arith.constant 0 : index
      %c0_188 = arith.constant 0 : index
      %276 = vector.load %arg12[%c0_187, %c0_188] : memref<8x32xf32, #tpu.memory_space<vmem>>, vector<8x32xf32>
      tpu.vector_store %arg12[%c0_187, %c0_188], %275 {strides = array<i32>} : memref<8x32xf32, #tpu.memory_space<vmem>>, vector<8x32xf32>,
    } else {
    }
    %c0 = arith.constant 0 : index
    %c0_1 = arith.constant 0 : index
    %c0_2 = arith.constant 0 : index
    %3 = vector.load %arg4[%c0, %c0_1, %c0_2] : memref<1x8x32xf32, #tpu.memory_space<vmem>>, vector<1x8x32xf32>
    %4 = vector.shape_cast %3 : vector<1x8x32xf32> to vector<8x32xf32>
    %c0_3 = arith.constant 0 : index
    %c0_4 = arith.constant 0 : index
    %5 = vector.load %arg6[%c0_3, %c0_4] : memref<32x64xf32, #tpu.memory_space<vmem>>, vector<32x64xf32>
    %cst = arith.constant dense<0.000000e+00> : vector<8x64xf32>
    %6 = tpu.matmul %4, %5, %cst {dimension_numbers = #tpu.dot_dimension_numbers<[1], [0], [0], [1], [0, 0, 1, 1], [], []>} : vector<8x32xf32>, vector<32x64xf32>, vector<8x64xf32> -> vector<8x64xf32>
    %c0_5 = arith.constant 0 : index
    %c0_6 = arith.constant 0 : index
    %7 = vector.load %arg9[%c0_5, %c0_6] : memref<8x32xf32, #tpu.memory_space<vmem>>, vector<8x4xf32>
    %8 = vector.extract_strided_slice %6 {offsets = [0, 0], sizes = [8, 4], strides = [1, 1]} : vector<8x64xf32> to vector<8x4xf32>
    %9 = vector.extract_strided_slice %6 {offsets = [0, 32], sizes = [8, 4], strides = [1, 1]} : vector<8x64xf32> to vector<8x4xf32>
    %cst_7 = arith.constant dense<0.000000e+00> : vector<8x8xf32>
    %10 = tpu.matmul %7, %8, %cst_7 {dimension_numbers = #tpu.dot_dimension_numbers<[1], [1], [0], [0], [0, 0, 1, 0], [], []>} : vector<8x4xf32>, vector<8x4xf32>, vector<8x8xf32> -> vector<8x8xf32>
    %c0_8 = arith.constant 0 : index
    %c0_9 = arith.constant 0 : index
    %c0_10 = arith.constant 0 : index
    %11 = vector.load %arg10[%c0_8, %c0_9, %c0_10] : memref<8x8x1xf32, #tpu.memory_space<vmem>>, vector<1x8x1xf32>
    %12 = vector.shape_cast %11 : vector<1x8x1xf32> to vector<8x1xf32>
    %cst_11 = arith.constant dense<0xFF800000> : vector<8xf32>
    %13 = vector.multi_reduction <maximumf>, %10, %cst_11 [1] : vector<8x8xf32> to vector<8xf32>
    %14 = vector.shape_cast %13 : vector<8xf32> to vector<8x1xf32>
    %15 = arith.maximumf %12, %14 : vector<8x1xf32>
    %16 = arith.subf %12, %15 : vector<8x1xf32>
    %17 = math.exp %16 : vector<8x1xf32>
    %18 = vector.broadcast %15 : vector<8x1xf32> to vector<8x8xf32>
    %19 = arith.subf %10, %18 : vector<8x8xf32>
    %20 = math.exp %19 : vector<8x8xf32>
    %c0_12 = arith.constant 0 : index
    %c0_13 = arith.constant 0 : index
    %c0_14 = arith.constant 0 : index
    %21 = vector.load %arg11[%c0_12, %c0_13, %c0_14] : memref<8x8x1xf32, #tpu.memory_space<vmem>>, vector<1x8x1xf32>
    %22 = vector.shape_cast %21 : vector<1x8x1xf32> to vector<8x1xf32>
    %23 = arith.mulf %17, %22 : vector<8x1xf32>
    %cst_15 = arith.constant dense<0.000000e+00> : vector<8xf32>
    %24 = vector.multi_reduction <add>, %20, %cst_15 [1] : vector<8x8xf32> to vector<8xf32>
    %25 = vector.shape_cast %24 : vector<8xf32> to vector<8x1xf32>
    %26 = arith.addf %23, %25 : vector<8x1xf32>
    %c0_16 = arith.constant 0 : index
    %c0_17 = arith.constant 0 : index
    %c0_18 = arith.constant 0 : index
    %27 = vector.load %arg11[%c0_16, %c0_17, %c0_18] : memref<8x8x1xf32, #tpu.memory_space<vmem>>, vector<1x8x1xf32>
    %28 = vector.shape_cast %27 : vector<1x8x1xf32> to vector<8x1xf32>
    %29 = vector.shape_cast %26 : vector<8x1xf32> to vector<1x8x1xf32>
    tpu.vector_store %arg11[%c0_16, %c0_17, %c0_18], %29 {strides = array<i32>} : memref<8x8x1xf32, #tpu.memory_space<vmem>>, vector<1x8x1xf32>,
    %c0_19 = arith.constant 0 : index
    %c0_20 = arith.constant 0 : index
    %30 = vector.load %arg12[%c0_19, %c0_20] : memref<8x32xf32, #tpu.memory_space<vmem>>, vector<8x4xf32>
    %31 = vector.broadcast %17 : vector<8x1xf32> to vector<8x4xf32>
    %32 = arith.mulf %31, %30 : vector<8x4xf32>
    %cst_21 = arith.constant dense<0.000000e+00> : vector<8x4xf32>
    %33 = tpu.matmul %20, %9, %cst_21 {dimension_numbers = #tpu.dot_dimension_numbers<[1], [0], [0], [1], [0, 0, 1, 1], [], []>} : vector<8x8xf32>, vector<8x4xf32>, vector<8x4xf32> -> vector<8x4xf32>
    %34 = arith.addf %32, %33 : vector<8x4xf32>
    %c0_22 = arith.constant 0 : index
    %c0_23 = arith.constant 0 : index
    %35 = vector.load %arg12[%c0_22, %c0_23] : memref<8x32xf32, #tpu.memory_space<vmem>>, vector<8x4xf32>
    tpu.vector_store %arg12[%c0_22, %c0_23], %34 {strides = array<i32>} : memref<8x32xf32, #tpu.memory_space<vmem>>, vector<8x4xf32>,
    %c0_24 = arith.constant 0 : index
    %c0_25 = arith.constant 0 : index
    %c0_26 = arith.constant 0 : index
    %36 = vector.load %arg10[%c0_24, %c0_25, %c0_26] : memref<8x8x1xf32, #tpu.memory_space<vmem>>, vector<1x8x1xf32>
    %37 = vector.shape_cast %36 : vector<1x8x1xf32> to vector<8x1xf32>
    %38 = vector.shape_cast %15 : vector<8x1xf32> to vector<1x8x1xf32>
    tpu.vector_store %arg10[%c0_24, %c0_25, %c0_26], %38 {strides = array<i32>} : memref<8x8x1xf32, #tpu.memory_space<vmem>>, vector<1x8x1xf32>,
    %c0_27 = arith.constant 0 : index
    %c4 = arith.constant 4 : index
    %39 = vector.load %arg9[%c0_27, %c4] : memref<8x32xf32, #tpu.memory_space<vmem>>, vector<8x4xf32>
    %40 = vector.extract_strided_slice %6 {offsets = [0, 4], sizes = [8, 4], strides = [1, 1]} : vector<8x64xf32> to vector<8x4xf32>
    %41 = vector.extract_strided_slice %6 {offsets = [0, 36], sizes = [8, 4], strides = [1, 1]} : vector<8x64xf32> to vector<8x4xf32>
    %cst_28 = arith.constant dense<0.000000e+00> : vector<8x8xf32>
    %42 = tpu.matmul %39, %40, %cst_28 {dimension_numbers = #tpu.dot_dimension_numbers<[1], [1], [0], [0], [0, 0, 1, 0], [], []>} : vector<8x4xf32>, vector<8x4xf32>, vector<8x8xf32> -> vector<8x8xf32>
    %c1 = arith.constant 1 : index
    %c0_29 = arith.constant 0 : index
    %c0_30 = arith.constant 0 : index
    %43 = vector.load %arg10[%c1, %c0_29, %c0_30] : memref<8x8x1xf32, #tpu.memory_space<vmem>>, vector<1x8x1xf32>
    %44 = vector.shape_cast %43 : vector<1x8x1xf32> to vector<8x1xf32>
    %cst_31 = arith.constant dense<0xFF800000> : vector<8xf32>
    %45 = vector.multi_reduction <maximumf>, %42, %cst_31 [1] : vector<8x8xf32> to vector<8xf32>
    %46 = vector.shape_cast %45 : vector<8xf32> to vector<8x1xf32>
    %47 = arith.maximumf %44, %46 : vector<8x1xf32>
    %48 = arith.subf %44, %47 : vector<8x1xf32>
    %49 = math.exp %48 : vector<8x1xf32>
    %50 = vector.broadcast %47 : vector<8x1xf32> to vector<8x8xf32>
    %51 = arith.subf %42, %50 : vector<8x8xf32>
    %52 = math.exp %51 : vector<8x8xf32>
    %c1_32 = arith.constant 1 : index
    %c0_33 = arith.constant 0 : index
    %c0_34 = arith.constant 0 : index
    %53 = vector.load %arg11[%c1_32, %c0_33, %c0_34] : memref<8x8x1xf32, #tpu.memory_space<vmem>>, vector<1x8x1xf32>
    %54 = vector.shape_cast %53 : vector<1x8x1xf32> to vector<8x1xf32>
    %55 = arith.mulf %49, %54 : vector<8x1xf32>
    %cst_35 = arith.constant dense<0.000000e+00> : vector<8xf32>
    %56 = vector.multi_reduction <add>, %52, %cst_35 [1] : vector<8x8xf32> to vector<8xf32>
    %57 = vector.shape_cast %56 : vector<8xf32> to vector<8x1xf32>
    %58 = arith.addf %55, %57 : vector<8x1xf32>
    %c1_36 = arith.constant 1 : index
    %c0_37 = arith.constant 0 : index
    %c0_38 = arith.constant 0 : index
    %59 = vector.load %arg11[%c1_36, %c0_37, %c0_38] : memref<8x8x1xf32, #tpu.memory_space<vmem>>, vector<1x8x1xf32>
    %60 = vector.shape_cast %59 : vector<1x8x1xf32> to vector<8x1xf32>
    %61 = vector.shape_cast %58 : vector<8x1xf32> to vector<1x8x1xf32>
    tpu.vector_store %arg11[%c1_36, %c0_37, %c0_38], %61 {strides = array<i32>} : memref<8x8x1xf32, #tpu.memory_space<vmem>>, vector<1x8x1xf32>,
    %c0_39 = arith.constant 0 : index
    %c4_40 = arith.constant 4 : index
    %62 = vector.load %arg12[%c0_39, %c4_40] : memref<8x32xf32, #tpu.memory_space<vmem>>, vector<8x4xf32>
    %63 = vector.broadcast %49 : vector<8x1xf32> to vector<8x4xf32>
    %64 = arith.mulf %63, %62 : vector<8x4xf32>
    %cst_41 = arith.constant dense<0.000000e+00> : vector<8x4xf32>
    %65 = tpu.matmul %52, %41, %cst_41 {dimension_numbers = #tpu.dot_dimension_numbers<[1], [0], [0], [1], [0, 0, 1, 1], [], []>} : vector<8x8xf32>, vector<8x4xf32>, vector<8x4xf32> -> vector<8x4xf32>
    %66 = arith.addf %64, %65 : vector<8x4xf32>
    %c0_42 = arith.constant 0 : index
    %c4_43 = arith.constant 4 : index
    %67 = vector.load %arg12[%c0_42, %c4_43] : memref<8x32xf32, #tpu.memory_space<vmem>>, vector<8x4xf32>
    tpu.vector_store %arg12[%c0_42, %c4_43], %66 {strides = array<i32>} : memref<8x32xf32, #tpu.memory_space<vmem>>, vector<8x4xf32>,
    %c1_44 = arith.constant 1 : index
    %c0_45 = arith.constant 0 : index
    %c0_46 = arith.constant 0 : index
    %68 = vector.load %arg10[%c1_44, %c0_45, %c0_46] : memref<8x8x1xf32, #tpu.memory_space<vmem>>, vector<1x8x1xf32>
    %69 = vector.shape_cast %68 : vector<1x8x1xf32> to vector<8x1xf32>
    %70 = vector.shape_cast %47 : vector<8x1xf32> to vector<1x8x1xf32>
    tpu.vector_store %arg10[%c1_44, %c0_45, %c0_46], %70 {strides = array<i32>} : memref<8x8x1xf32, #tpu.memory_space<vmem>>, vector<1x8x1xf32>,
    %c0_47 = arith.constant 0 : index
    %c8 = arith.constant 8 : index
    %71 = vector.load %arg9[%c0_47, %c8] : memref<8x32xf32, #tpu.memory_space<vmem>>, vector<8x4xf32>
    %72 = vector.extract_strided_slice %6 {offsets = [0, 8], sizes = [8, 4], strides = [1, 1]} : vector<8x64xf32> to vector<8x4xf32>
    %73 = vector.extract_strided_slice %6 {offsets = [0, 40], sizes = [8, 4], strides = [1, 1]} : vector<8x64xf32> to vector<8x4xf32>
    %cst_48 = arith.constant dense<0.000000e+00> : vector<8x8xf32>
    %74 = tpu.matmul %71, %72, %cst_48 {dimension_numbers = #tpu.dot_dimension_numbers<[1], [1], [0], [0], [0, 0, 1, 0], [], []>} : vector<8x4xf32>, vector<8x4xf32>, vector<8x8xf32> -> vector<8x8xf32>
    %c2 = arith.constant 2 : index
    %c0_49 = arith.constant 0 : index
    %c0_50 = arith.constant 0 : index
    %75 = vector.load %arg10[%c2, %c0_49, %c0_50] : memref<8x8x1xf32, #tpu.memory_space<vmem>>, vector<1x8x1xf32>
    %76 = vector.shape_cast %75 : vector<1x8x1xf32> to vector<8x1xf32>
    %cst_51 = arith.constant dense<0xFF800000> : vector<8xf32>
    %77 = vector.multi_reduction <maximumf>, %74, %cst_51 [1] : vector<8x8xf32> to vector<8xf32>
    %78 = vector.shape_cast %77 : vector<8xf32> to vector<8x1xf32>
    %79 = arith.maximumf %76, %78 : vector<8x1xf32>
    %80 = arith.subf %76, %79 : vector<8x1xf32>
    %81 = math.exp %80 : vector<8x1xf32>
    %82 = vector.broadcast %79 : vector<8x1xf32> to vector<8x8xf32>
    %83 = arith.subf %74, %82 : vector<8x8xf32>
    %84 = math.exp %83 : vector<8x8xf32>
    %c2_52 = arith.constant 2 : index
    %c0_53 = arith.constant 0 : index
    %c0_54 = arith.constant 0 : index
    %85 = vector.load %arg11[%c2_52, %c0_53, %c0_54] : memref<8x8x1xf32, #tpu.memory_space<vmem>>, vector<1x8x1xf32>
    %86 = vector.shape_cast %85 : vector<1x8x1xf32> to vector<8x1xf32>
    %87 = arith.mulf %81, %86 : vector<8x1xf32>
    %cst_55 = arith.constant dense<0.000000e+00> : vector<8xf32>
    %88 = vector.multi_reduction <add>, %84, %cst_55 [1] : vector<8x8xf32> to vector<8xf32>
    %89 = vector.shape_cast %88 : vector<8xf32> to vector<8x1xf32>
    %90 = arith.addf %87, %89 : vector<8x1xf32>
    %c2_56 = arith.constant 2 : index
    %c0_57 = arith.constant 0 : index
    %c0_58 = arith.constant 0 : index
    %91 = vector.load %arg11[%c2_56, %c0_57, %c0_58] : memref<8x8x1xf32, #tpu.memory_space<vmem>>, vector<1x8x1xf32>
    %92 = vector.shape_cast %91 : vector<1x8x1xf32> to vector<8x1xf32>
    %93 = vector.shape_cast %90 : vector<8x1xf32> to vector<1x8x1xf32>
    tpu.vector_store %arg11[%c2_56, %c0_57, %c0_58], %93 {strides = array<i32>} : memref<8x8x1xf32, #tpu.memory_space<vmem>>, vector<1x8x1xf32>,
    %c0_59 = arith.constant 0 : index
    %c8_60 = arith.constant 8 : index
    %94 = vector.load %arg12[%c0_59, %c8_60] : memref<8x32xf32, #tpu.memory_space<vmem>>, vector<8x4xf32>
    %95 = vector.broadcast %81 : vector<8x1xf32> to vector<8x4xf32>
    %96 = arith.mulf %95, %94 : vector<8x4xf32>
    %cst_61 = arith.constant dense<0.000000e+00> : vector<8x4xf32>
    %97 = tpu.matmul %84, %73, %cst_61 {dimension_numbers = #tpu.dot_dimension_numbers<[1], [0], [0], [1], [0, 0, 1, 1], [], []>} : vector<8x8xf32>, vector<8x4xf32>, vector<8x4xf32> -> vector<8x4xf32>
    %98 = arith.addf %96, %97 : vector<8x4xf32>
    %c0_62 = arith.constant 0 : index
    %c8_63 = arith.constant 8 : index
    %99 = vector.load %arg12[%c0_62, %c8_63] : memref<8x32xf32, #tpu.memory_space<vmem>>, vector<8x4xf32>
    tpu.vector_store %arg12[%c0_62, %c8_63], %98 {strides = array<i32>} : memref<8x32xf32, #tpu.memory_space<vmem>>, vector<8x4xf32>,
    %c2_64 = arith.constant 2 : index
    %c0_65 = arith.constant 0 : index
    %c0_66 = arith.constant 0 : index
    %100 = vector.load %arg10[%c2_64, %c0_65, %c0_66] : memref<8x8x1xf32, #tpu.memory_space<vmem>>, vector<1x8x1xf32>
    %101 = vector.shape_cast %100 : vector<1x8x1xf32> to vector<8x1xf32>
    %102 = vector.shape_cast %79 : vector<8x1xf32> to vector<1x8x1xf32>
    tpu.vector_store %arg10[%c2_64, %c0_65, %c0_66], %102 {strides = array<i32>} : memref<8x8x1xf32, #tpu.memory_space<vmem>>, vector<1x8x1xf32>,
    %c0_67 = arith.constant 0 : index
    %c12 = arith.constant 12 : index
    %103 = vector.load %arg9[%c0_67, %c12] : memref<8x32xf32, #tpu.memory_space<vmem>>, vector<8x4xf32>
    %104 = vector.extract_strided_slice %6 {offsets = [0, 12], sizes = [8, 4], strides = [1, 1]} : vector<8x64xf32> to vector<8x4xf32>
    %105 = vector.extract_strided_slice %6 {offsets = [0, 44], sizes = [8, 4], strides = [1, 1]} : vector<8x64xf32> to vector<8x4xf32>
    %cst_68 = arith.constant dense<0.000000e+00> : vector<8x8xf32>
    %106 = tpu.matmul %103, %104, %cst_68 {dimension_numbers = #tpu.dot_dimension_numbers<[1], [1], [0], [0], [0, 0, 1, 0], [], []>} : vector<8x4xf32>, vector<8x4xf32>, vector<8x8xf32> -> vector<8x8xf32>
    %c3 = arith.constant 3 : index
    %c0_69 = arith.constant 0 : index
    %c0_70 = arith.constant 0 : index
    %107 = vector.load %arg10[%c3, %c0_69, %c0_70] : memref<8x8x1xf32, #tpu.memory_space<vmem>>, vector<1x8x1xf32>
    %108 = vector.shape_cast %107 : vector<1x8x1xf32> to vector<8x1xf32>
    %cst_71 = arith.constant dense<0xFF800000> : vector<8xf32>
    %109 = vector.multi_reduction <maximumf>, %106, %cst_71 [1] : vector<8x8xf32> to vector<8xf32>
    %110 = vector.shape_cast %109 : vector<8xf32> to vector<8x1xf32>
    %111 = arith.maximumf %108, %110 : vector<8x1xf32>
    %112 = arith.subf %108, %111 : vector<8x1xf32>
    %113 = math.exp %112 : vector<8x1xf32>
    %114 = vector.broadcast %111 : vector<8x1xf32> to vector<8x8xf32>
    %115 = arith.subf %106, %114 : vector<8x8xf32>
    %116 = math.exp %115 : vector<8x8xf32>
    %c3_72 = arith.constant 3 : index
    %c0_73 = arith.constant 0 : index
    %c0_74 = arith.constant 0 : index
    %117 = vector.load %arg11[%c3_72, %c0_73, %c0_74] : memref<8x8x1xf32, #tpu.memory_space<vmem>>, vector<1x8x1xf32>
    %118 = vector.shape_cast %117 : vector<1x8x1xf32> to vector<8x1xf32>
    %119 = arith.mulf %113, %118 : vector<8x1xf32>
    %cst_75 = arith.constant dense<0.000000e+00> : vector<8xf32>
    %120 = vector.multi_reduction <add>, %116, %cst_75 [1] : vector<8x8xf32> to vector<8xf32>
    %121 = vector.shape_cast %120 : vector<8xf32> to vector<8x1xf32>
    %122 = arith.addf %119, %121 : vector<8x1xf32>
    %c3_76 = arith.constant 3 : index
    %c0_77 = arith.constant 0 : index
    %c0_78 = arith.constant 0 : index
    %123 = vector.load %arg11[%c3_76, %c0_77, %c0_78] : memref<8x8x1xf32, #tpu.memory_space<vmem>>, vector<1x8x1xf32>
    %124 = vector.shape_cast %123 : vector<1x8x1xf32> to vector<8x1xf32>
    %125 = vector.shape_cast %122 : vector<8x1xf32> to vector<1x8x1xf32>
    tpu.vector_store %arg11[%c3_76, %c0_77, %c0_78], %125 {strides = array<i32>} : memref<8x8x1xf32, #tpu.memory_space<vmem>>, vector<1x8x1xf32>,
    %c0_79 = arith.constant 0 : index
    %c12_80 = arith.constant 12 : index
    %126 = vector.load %arg12[%c0_79, %c12_80] : memref<8x32xf32, #tpu.memory_space<vmem>>, vector<8x4xf32>
    %127 = vector.broadcast %113 : vector<8x1xf32> to vector<8x4xf32>
    %128 = arith.mulf %127, %126 : vector<8x4xf32>
    %cst_81 = arith.constant dense<0.000000e+00> : vector<8x4xf32>
    %129 = tpu.matmul %116, %105, %cst_81 {dimension_numbers = #tpu.dot_dimension_numbers<[1], [0], [0], [1], [0, 0, 1, 1], [], []>} : vector<8x8xf32>, vector<8x4xf32>, vector<8x4xf32> -> vector<8x4xf32>
    %130 = arith.addf %128, %129 : vector<8x4xf32>
    %c0_82 = arith.constant 0 : index
    %c12_83 = arith.constant 12 : index
    %131 = vector.load %arg12[%c0_82, %c12_83] : memref<8x32xf32, #tpu.memory_space<vmem>>, vector<8x4xf32>
    tpu.vector_store %arg12[%c0_82, %c12_83], %130 {strides = array<i32>} : memref<8x32xf32, #tpu.memory_space<vmem>>, vector<8x4xf32>,
    %c3_84 = arith.constant 3 : index
    %c0_85 = arith.constant 0 : index
    %c0_86 = arith.constant 0 : index
    %132 = vector.load %arg10[%c3_84, %c0_85, %c0_86] : memref<8x8x1xf32, #tpu.memory_space<vmem>>, vector<1x8x1xf32>
    %133 = vector.shape_cast %132 : vector<1x8x1xf32> to vector<8x1xf32>
    %134 = vector.shape_cast %111 : vector<8x1xf32> to vector<1x8x1xf32>
    tpu.vector_store %arg10[%c3_84, %c0_85, %c0_86], %134 {strides = array<i32>} : memref<8x8x1xf32, #tpu.memory_space<vmem>>, vector<1x8x1xf32>,
    %c0_87 = arith.constant 0 : index
    %c16 = arith.constant 16 : index
    %135 = vector.load %arg9[%c0_87, %c16] : memref<8x32xf32, #tpu.memory_space<vmem>>, vector<8x4xf32>
    %136 = vector.extract_strided_slice %6 {offsets = [0, 16], sizes = [8, 4], strides = [1, 1]} : vector<8x64xf32> to vector<8x4xf32>
    %137 = vector.extract_strided_slice %6 {offsets = [0, 48], sizes = [8, 4], strides = [1, 1]} : vector<8x64xf32> to vector<8x4xf32>
    %cst_88 = arith.constant dense<0.000000e+00> : vector<8x8xf32>
    %138 = tpu.matmul %135, %136, %cst_88 {dimension_numbers = #tpu.dot_dimension_numbers<[1], [1], [0], [0], [0, 0, 1, 0], [], []>} : vector<8x4xf32>, vector<8x4xf32>, vector<8x8xf32> -> vector<8x8xf32>
    %c4_89 = arith.constant 4 : index
    %c0_90 = arith.constant 0 : index
    %c0_91 = arith.constant 0 : index
    %139 = vector.load %arg10[%c4_89, %c0_90, %c0_91] : memref<8x8x1xf32, #tpu.memory_space<vmem>>, vector<1x8x1xf32>
    %140 = vector.shape_cast %139 : vector<1x8x1xf32> to vector<8x1xf32>
    %cst_92 = arith.constant dense<0xFF800000> : vector<8xf32>
    %141 = vector.multi_reduction <maximumf>, %138, %cst_92 [1] : vector<8x8xf32> to vector<8xf32>
    %142 = vector.shape_cast %141 : vector<8xf32> to vector<8x1xf32>
    %143 = arith.maximumf %140, %142 : vector<8x1xf32>
    %144 = arith.subf %140, %143 : vector<8x1xf32>
    %145 = math.exp %144 : vector<8x1xf32>
    %146 = vector.broadcast %143 : vector<8x1xf32> to vector<8x8xf32>
    %147 = arith.subf %138, %146 : vector<8x8xf32>
    %148 = math.exp %147 : vector<8x8xf32>
    %c4_93 = arith.constant 4 : index
    %c0_94 = arith.constant 0 : index
    %c0_95 = arith.constant 0 : index
    %149 = vector.load %arg11[%c4_93, %c0_94, %c0_95] : memref<8x8x1xf32, #tpu.memory_space<vmem>>, vector<1x8x1xf32>
    %150 = vector.shape_cast %149 : vector<1x8x1xf32> to vector<8x1xf32>
    %151 = arith.mulf %145, %150 : vector<8x1xf32>
    %cst_96 = arith.constant dense<0.000000e+00> : vector<8xf32>
    %152 = vector.multi_reduction <add>, %148, %cst_96 [1] : vector<8x8xf32> to vector<8xf32>
    %153 = vector.shape_cast %152 : vector<8xf32> to vector<8x1xf32>
    %154 = arith.addf %151, %153 : vector<8x1xf32>
    %c4_97 = arith.constant 4 : index
    %c0_98 = arith.constant 0 : index
    %c0_99 = arith.constant 0 : index
    %155 = vector.load %arg11[%c4_97, %c0_98, %c0_99] : memref<8x8x1xf32, #tpu.memory_space<vmem>>, vector<1x8x1xf32>
    %156 = vector.shape_cast %155 : vector<1x8x1xf32> to vector<8x1xf32>
    %157 = vector.shape_cast %154 : vector<8x1xf32> to vector<1x8x1xf32>
    tpu.vector_store %arg11[%c4_97, %c0_98, %c0_99], %157 {strides = array<i32>} : memref<8x8x1xf32, #tpu.memory_space<vmem>>, vector<1x8x1xf32>,
    %c0_100 = arith.constant 0 : index
    %c16_101 = arith.constant 16 : index
    %158 = vector.load %arg12[%c0_100, %c16_101] : memref<8x32xf32, #tpu.memory_space<vmem>>, vector<8x4xf32>
    %159 = vector.broadcast %145 : vector<8x1xf32> to vector<8x4xf32>
    %160 = arith.mulf %159, %158 : vector<8x4xf32>
    %cst_102 = arith.constant dense<0.000000e+00> : vector<8x4xf32>
    %161 = tpu.matmul %148, %137, %cst_102 {dimension_numbers = #tpu.dot_dimension_numbers<[1], [0], [0], [1], [0, 0, 1, 1], [], []>} : vector<8x8xf32>, vector<8x4xf32>, vector<8x4xf32> -> vector<8x4xf32>
    %162 = arith.addf %160, %161 : vector<8x4xf32>
    %c0_103 = arith.constant 0 : index
    %c16_104 = arith.constant 16 : index
    %163 = vector.load %arg12[%c0_103, %c16_104] : memref<8x32xf32, #tpu.memory_space<vmem>>, vector<8x4xf32>
    tpu.vector_store %arg12[%c0_103, %c16_104], %162 {strides = array<i32>} : memref<8x32xf32, #tpu.memory_space<vmem>>, vector<8x4xf32>,
    %c4_105 = arith.constant 4 : index
    %c0_106 = arith.constant 0 : index
    %c0_107 = arith.constant 0 : index
    %164 = vector.load %arg10[%c4_105, %c0_106, %c0_107] : memref<8x8x1xf32, #tpu.memory_space<vmem>>, vector<1x8x1xf32>
    %165 = vector.shape_cast %164 : vector<1x8x1xf32> to vector<8x1xf32>
    %166 = vector.shape_cast %143 : vector<8x1xf32> to vector<1x8x1xf32>
    tpu.vector_store %arg10[%c4_105, %c0_106, %c0_107], %166 {strides = array<i32>} : memref<8x8x1xf32, #tpu.memory_space<vmem>>, vector<1x8x1xf32>,
    %c0_108 = arith.constant 0 : index
    %c20 = arith.constant 20 : index
    %167 = vector.load %arg9[%c0_108, %c20] : memref<8x32xf32, #tpu.memory_space<vmem>>, vector<8x4xf32>
    %168 = vector.extract_strided_slice %6 {offsets = [0, 20], sizes = [8, 4], strides = [1, 1]} : vector<8x64xf32> to vector<8x4xf32>
    %169 = vector.extract_strided_slice %6 {offsets = [0, 52], sizes = [8, 4], strides = [1, 1]} : vector<8x64xf32> to vector<8x4xf32>
    %cst_109 = arith.constant dense<0.000000e+00> : vector<8x8xf32>
    %170 = tpu.matmul %167, %168, %cst_109 {dimension_numbers = #tpu.dot_dimension_numbers<[1], [1], [0], [0], [0, 0, 1, 0], [], []>} : vector<8x4xf32>, vector<8x4xf32>, vector<8x8xf32> -> vector<8x8xf32>
    %c5 = arith.constant 5 : index
    %c0_110 = arith.constant 0 : index
    %c0_111 = arith.constant 0 : index
    %171 = vector.load %arg10[%c5, %c0_110, %c0_111] : memref<8x8x1xf32, #tpu.memory_space<vmem>>, vector<1x8x1xf32>
    %172 = vector.shape_cast %171 : vector<1x8x1xf32> to vector<8x1xf32>
    %cst_112 = arith.constant dense<0xFF800000> : vector<8xf32>
    %173 = vector.multi_reduction <maximumf>, %170, %cst_112 [1] : vector<8x8xf32> to vector<8xf32>
    %174 = vector.shape_cast %173 : vector<8xf32> to vector<8x1xf32>
    %175 = arith.maximumf %172, %174 : vector<8x1xf32>
    %176 = arith.subf %172, %175 : vector<8x1xf32>
    %177 = math.exp %176 : vector<8x1xf32>
    %178 = vector.broadcast %175 : vector<8x1xf32> to vector<8x8xf32>
    %179 = arith.subf %170, %178 : vector<8x8xf32>
    %180 = math.exp %179 : vector<8x8xf32>
    %c5_113 = arith.constant 5 : index
    %c0_114 = arith.constant 0 : index
    %c0_115 = arith.constant 0 : index
    %181 = vector.load %arg11[%c5_113, %c0_114, %c0_115] : memref<8x8x1xf32, #tpu.memory_space<vmem>>, vector<1x8x1xf32>
    %182 = vector.shape_cast %181 : vector<1x8x1xf32> to vector<8x1xf32>
    %183 = arith.mulf %177, %182 : vector<8x1xf32>
    %cst_116 = arith.constant dense<0.000000e+00> : vector<8xf32>
    %184 = vector.multi_reduction <add>, %180, %cst_116 [1] : vector<8x8xf32> to vector<8xf32>
    %185 = vector.shape_cast %184 : vector<8xf32> to vector<8x1xf32>
    %186 = arith.addf %183, %185 : vector<8x1xf32>
    %c5_117 = arith.constant 5 : index
    %c0_118 = arith.constant 0 : index
    %c0_119 = arith.constant 0 : index
    %187 = vector.load %arg11[%c5_117, %c0_118, %c0_119] : memref<8x8x1xf32, #tpu.memory_space<vmem>>, vector<1x8x1xf32>
    %188 = vector.shape_cast %187 : vector<1x8x1xf32> to vector<8x1xf32>
    %189 = vector.shape_cast %186 : vector<8x1xf32> to vector<1x8x1xf32>
    tpu.vector_store %arg11[%c5_117, %c0_118, %c0_119], %189 {strides = array<i32>} : memref<8x8x1xf32, #tpu.memory_space<vmem>>, vector<1x8x1xf32>,
    %c0_120 = arith.constant 0 : index
    %c20_121 = arith.constant 20 : index
    %190 = vector.load %arg12[%c0_120, %c20_121] : memref<8x32xf32, #tpu.memory_space<vmem>>, vector<8x4xf32>
    %191 = vector.broadcast %177 : vector<8x1xf32> to vector<8x4xf32>
    %192 = arith.mulf %191, %190 : vector<8x4xf32>
    %cst_122 = arith.constant dense<0.000000e+00> : vector<8x4xf32>
    %193 = tpu.matmul %180, %169, %cst_122 {dimension_numbers = #tpu.dot_dimension_numbers<[1], [0], [0], [1], [0, 0, 1, 1], [], []>} : vector<8x8xf32>, vector<8x4xf32>, vector<8x4xf32> -> vector<8x4xf32>
    %194 = arith.addf %192, %193 : vector<8x4xf32>
    %c0_123 = arith.constant 0 : index
    %c20_124 = arith.constant 20 : index
    %195 = vector.load %arg12[%c0_123, %c20_124] : memref<8x32xf32, #tpu.memory_space<vmem>>, vector<8x4xf32>
    tpu.vector_store %arg12[%c0_123, %c20_124], %194 {strides = array<i32>} : memref<8x32xf32, #tpu.memory_space<vmem>>, vector<8x4xf32>,
    %c5_125 = arith.constant 5 : index
    %c0_126 = arith.constant 0 : index
    %c0_127 = arith.constant 0 : index
    %196 = vector.load %arg10[%c5_125, %c0_126, %c0_127] : memref<8x8x1xf32, #tpu.memory_space<vmem>>, vector<1x8x1xf32>
    %197 = vector.shape_cast %196 : vector<1x8x1xf32> to vector<8x1xf32>
    %198 = vector.shape_cast %175 : vector<8x1xf32> to vector<1x8x1xf32>
    tpu.vector_store %arg10[%c5_125, %c0_126, %c0_127], %198 {strides = array<i32>} : memref<8x8x1xf32, #tpu.memory_space<vmem>>, vector<1x8x1xf32>,
    %c0_128 = arith.constant 0 : index
    %c24 = arith.constant 24 : index
    %199 = vector.load %arg9[%c0_128, %c24] : memref<8x32xf32, #tpu.memory_space<vmem>>, vector<8x4xf32>
    %200 = vector.extract_strided_slice %6 {offsets = [0, 24], sizes = [8, 4], strides = [1, 1]} : vector<8x64xf32> to vector<8x4xf32>
    %201 = vector.extract_strided_slice %6 {offsets = [0, 56], sizes = [8, 4], strides = [1, 1]} : vector<8x64xf32> to vector<8x4xf32>
    %cst_129 = arith.constant dense<0.000000e+00> : vector<8x8xf32>
    %202 = tpu.matmul %199, %200, %cst_129 {dimension_numbers = #tpu.dot_dimension_numbers<[1], [1], [0], [0], [0, 0, 1, 0], [], []>} : vector<8x4xf32>, vector<8x4xf32>, vector<8x8xf32> -> vector<8x8xf32>
    %c6 = arith.constant 6 : index
    %c0_130 = arith.constant 0 : index
    %c0_131 = arith.constant 0 : index
    %203 = vector.load %arg10[%c6, %c0_130, %c0_131] : memref<8x8x1xf32, #tpu.memory_space<vmem>>, vector<1x8x1xf32>
    %204 = vector.shape_cast %203 : vector<1x8x1xf32> to vector<8x1xf32>
    %cst_132 = arith.constant dense<0xFF800000> : vector<8xf32>
    %205 = vector.multi_reduction <maximumf>, %202, %cst_132 [1] : vector<8x8xf32> to vector<8xf32>
    %206 = vector.shape_cast %205 : vector<8xf32> to vector<8x1xf32>
    %207 = arith.maximumf %204, %206 : vector<8x1xf32>
    %208 = arith.subf %204, %207 : vector<8x1xf32>
    %209 = math.exp %208 : vector<8x1xf32>
    %210 = vector.broadcast %207 : vector<8x1xf32> to vector<8x8xf32>
    %211 = arith.subf %202, %210 : vector<8x8xf32>
    %212 = math.exp %211 : vector<8x8xf32>
    %c6_133 = arith.constant 6 : index
    %c0_134 = arith.constant 0 : index
    %c0_135 = arith.constant 0 : index
    %213 = vector.load %arg11[%c6_133, %c0_134, %c0_135] : memref<8x8x1xf32, #tpu.memory_space<vmem>>, vector<1x8x1xf32>
    %214 = vector.shape_cast %213 : vector<1x8x1xf32> to vector<8x1xf32>
    %215 = arith.mulf %209, %214 : vector<8x1xf32>
    %cst_136 = arith.constant dense<0.000000e+00> : vector<8xf32>
    %216 = vector.multi_reduction <add>, %212, %cst_136 [1] : vector<8x8xf32> to vector<8xf32>
    %217 = vector.shape_cast %216 : vector<8xf32> to vector<8x1xf32>
    %218 = arith.addf %215, %217 : vector<8x1xf32>
    %c6_137 = arith.constant 6 : index
    %c0_138 = arith.constant 0 : index
    %c0_139 = arith.constant 0 : index
    %219 = vector.load %arg11[%c6_137, %c0_138, %c0_139] : memref<8x8x1xf32, #tpu.memory_space<vmem>>, vector<1x8x1xf32>
    %220 = vector.shape_cast %219 : vector<1x8x1xf32> to vector<8x1xf32>
    %221 = vector.shape_cast %218 : vector<8x1xf32> to vector<1x8x1xf32>
    tpu.vector_store %arg11[%c6_137, %c0_138, %c0_139], %221 {strides = array<i32>} : memref<8x8x1xf32, #tpu.memory_space<vmem>>, vector<1x8x1xf32>,
    %c0_140 = arith.constant 0 : index
    %c24_141 = arith.constant 24 : index
    %222 = vector.load %arg12[%c0_140, %c24_141] : memref<8x32xf32, #tpu.memory_space<vmem>>, vector<8x4xf32>
    %223 = vector.broadcast %209 : vector<8x1xf32> to vector<8x4xf32>
    %224 = arith.mulf %223, %222 : vector<8x4xf32>
    %cst_142 = arith.constant dense<0.000000e+00> : vector<8x4xf32>
    %225 = tpu.matmul %212, %201, %cst_142 {dimension_numbers = #tpu.dot_dimension_numbers<[1], [0], [0], [1], [0, 0, 1, 1], [], []>} : vector<8x8xf32>, vector<8x4xf32>, vector<8x4xf32> -> vector<8x4xf32>
    %226 = arith.addf %224, %225 : vector<8x4xf32>
    %c0_143 = arith.constant 0 : index
    %c24_144 = arith.constant 24 : index
    %227 = vector.load %arg12[%c0_143, %c24_144] : memref<8x32xf32, #tpu.memory_space<vmem>>, vector<8x4xf32>
    tpu.vector_store %arg12[%c0_143, %c24_144], %226 {strides = array<i32>} : memref<8x32xf32, #tpu.memory_space<vmem>>, vector<8x4xf32>,
    %c6_145 = arith.constant 6 : index
    %c0_146 = arith.constant 0 : index
    %c0_147 = arith.constant 0 : index
    %228 = vector.load %arg10[%c6_145, %c0_146, %c0_147] : memref<8x8x1xf32, #tpu.memory_space<vmem>>, vector<1x8x1xf32>
    %229 = vector.shape_cast %228 : vector<1x8x1xf32> to vector<8x1xf32>
    %230 = vector.shape_cast %207 : vector<8x1xf32> to vector<1x8x1xf32>
    tpu.vector_store %arg10[%c6_145, %c0_146, %c0_147], %230 {strides = array<i32>} : memref<8x8x1xf32, #tpu.memory_space<vmem>>, vector<1x8x1xf32>,
    %c0_148 = arith.constant 0 : index
    %c28 = arith.constant 28 : index
    %231 = vector.load %arg9[%c0_148, %c28] : memref<8x32xf32, #tpu.memory_space<vmem>>, vector<8x4xf32>
    %232 = vector.extract_strided_slice %6 {offsets = [0, 28], sizes = [8, 4], strides = [1, 1]} : vector<8x64xf32> to vector<8x4xf32>
    %233 = vector.extract_strided_slice %6 {offsets = [0, 60], sizes = [8, 4], strides = [1, 1]} : vector<8x64xf32> to vector<8x4xf32>
    %cst_149 = arith.constant dense<0.000000e+00> : vector<8x8xf32>
    %234 = tpu.matmul %231, %232, %cst_149 {dimension_numbers = #tpu.dot_dimension_numbers<[1], [1], [0], [0], [0, 0, 1, 0], [], []>} : vector<8x4xf32>, vector<8x4xf32>, vector<8x8xf32> -> vector<8x8xf32>
    %c7 = arith.constant 7 : index
    %c0_150 = arith.constant 0 : index
    %c0_151 = arith.constant 0 : index
    %235 = vector.load %arg10[%c7, %c0_150, %c0_151] : memref<8x8x1xf32, #tpu.memory_space<vmem>>, vector<1x8x1xf32>
    %236 = vector.shape_cast %235 : vector<1x8x1xf32> to vector<8x1xf32>
    %cst_152 = arith.constant dense<0xFF800000> : vector<8xf32>
    %237 = vector.multi_reduction <maximumf>, %234, %cst_152 [1] : vector<8x8xf32> to vector<8xf32>
    %238 = vector.shape_cast %237 : vector<8xf32> to vector<8x1xf32>
    %239 = arith.maximumf %236, %238 : vector<8x1xf32>
    %240 = arith.subf %236, %239 : vector<8x1xf32>
    %241 = math.exp %240 : vector<8x1xf32>
    %242 = vector.broadcast %239 : vector<8x1xf32> to vector<8x8xf32>
    %243 = arith.subf %234, %242 : vector<8x8xf32>
    %244 = math.exp %243 : vector<8x8xf32>
    %c7_153 = arith.constant 7 : index
    %c0_154 = arith.constant 0 : index
    %c0_155 = arith.constant 0 : index
    %245 = vector.load %arg11[%c7_153, %c0_154, %c0_155] : memref<8x8x1xf32, #tpu.memory_space<vmem>>, vector<1x8x1xf32>
    %246 = vector.shape_cast %245 : vector<1x8x1xf32> to vector<8x1xf32>
    %247 = arith.mulf %241, %246 : vector<8x1xf32>
    %cst_156 = arith.constant dense<0.000000e+00> : vector<8xf32>
    %248 = vector.multi_reduction <add>, %244, %cst_156 [1] : vector<8x8xf32> to vector<8xf32>
    %249 = vector.shape_cast %248 : vector<8xf32> to vector<8x1xf32>
    %250 = arith.addf %247, %249 : vector<8x1xf32>
    %c7_157 = arith.constant 7 : index
    %c0_158 = arith.constant 0 : index
    %c0_159 = arith.constant 0 : index
    %251 = vector.load %arg11[%c7_157, %c0_158, %c0_159] : memref<8x8x1xf32, #tpu.memory_space<vmem>>, vector<1x8x1xf32>
    %252 = vector.shape_cast %251 : vector<1x8x1xf32> to vector<8x1xf32>
    %253 = vector.shape_cast %250 : vector<8x1xf32> to vector<1x8x1xf32>
    tpu.vector_store %arg11[%c7_157, %c0_158, %c0_159], %253 {strides = array<i32>} : memref<8x8x1xf32, #tpu.memory_space<vmem>>, vector<1x8x1xf32>,
    %c0_160 = arith.constant 0 : index
    %c28_161 = arith.constant 28 : index
    %254 = vector.load %arg12[%c0_160, %c28_161] : memref<8x32xf32, #tpu.memory_space<vmem>>, vector<8x4xf32>
    %255 = vector.broadcast %241 : vector<8x1xf32> to vector<8x4xf32>
    %256 = arith.mulf %255, %254 : vector<8x4xf32>
    %cst_162 = arith.constant dense<0.000000e+00> : vector<8x4xf32>
    %257 = tpu.matmul %244, %233, %cst_162 {dimension_numbers = #tpu.dot_dimension_numbers<[1], [0], [0], [1], [0, 0, 1, 1], [], []>} : vector<8x8xf32>, vector<8x4xf32>, vector<8x4xf32> -> vector<8x4xf32>
    %258 = arith.addf %256, %257 : vector<8x4xf32>
    %c0_163 = arith.constant 0 : index
    %c28_164 = arith.constant 28 : index
    %259 = vector.load %arg12[%c0_163, %c28_164] : memref<8x32xf32, #tpu.memory_space<vmem>>, vector<8x4xf32>
    tpu.vector_store %arg12[%c0_163, %c28_164], %258 {strides = array<i32>} : memref<8x32xf32, #tpu.memory_space<vmem>>, vector<8x4xf32>,
    %c7_165 = arith.constant 7 : index
    %c0_166 = arith.constant 0 : index
    %c0_167 = arith.constant 0 : index
    %260 = vector.load %arg10[%c7_165, %c0_166, %c0_167] : memref<8x8x1xf32, #tpu.memory_space<vmem>>, vector<1x8x1xf32>
    %261 = vector.shape_cast %260 : vector<1x8x1xf32> to vector<8x1xf32>
    %262 = vector.shape_cast %239 : vector<8x1xf32> to vector<1x8x1xf32>
    tpu.vector_store %arg10[%c7_165, %c0_166, %c0_167], %262 {strides = array<i32>} : memref<8x8x1xf32, #tpu.memory_space<vmem>>, vector<1x8x1xf32>,
    %c0_i32_168 = arith.constant 0 : i32
    %263 = arith.cmpi eq, %arg2, %c0_i32_168 : i32
    %264 = arith.extui %263 : i1 to i32
    %c0_i32_169 = arith.constant 0 : i32
    %265 = arith.cmpi ne, %264, %c0_i32_169 : i32
    scf.if %265 {
      %c0_170 = arith.constant 0 : index
      %c0_171 = arith.constant 0 : index
      %c0_172 = arith.constant 0 : index
      %266 = vector.load %arg11[%c0_170, %c0_171, %c0_172] : memref<8x8x1xf32, #tpu.memory_space<vmem>>, vector<1x8x1xf32>
      %267 = vector.shape_cast %266 : vector<1x8x1xf32> to vector<8x1xf32>
      %268 = tpu.reciprocal %267 {approx = true} : vector<8x1xf32> -> vector<8x1xf32>
      %c0_173 = arith.constant 0 : index
      %c0_174 = arith.constant 0 : index
      %269 = vector.load %arg12[%c0_173, %c0_174] : memref<8x32xf32, #tpu.memory_space<vmem>>, vector<8x4xf32>
      %270 = vector.broadcast %268 : vector<8x1xf32> to vector<8x4xf32>
      %271 = arith.mulf %269, %270 : vector<8x4xf32>
      %c0_175 = arith.constant 0 : index
      %c0_176 = arith.constant 0 : index
      %272 = vector.load %arg12[%c0_175, %c0_176] : memref<8x32xf32, #tpu.memory_space<vmem>>, vector<8x4xf32>
      tpu.vector_store %arg12[%c0_175, %c0_176], %271 {strides = array<i32>} : memref<8x32xf32, #tpu.memory_space<vmem>>, vector<8x4xf32>,
      %c1_177 = arith.constant 1 : index
      %c0_178 = arith.constant 0 : index
      %c0_179 = arith.constant 0 : index
      %273 = vector.load %arg11[%c1_177, %c0_178, %c0_179] : memref<8x8x1xf32, #tpu.memory_space<vmem>>, vector<1x8x1xf32>
      %274 = vector.shape_cast %273 : vector<1x8x1xf32> to vector<8x1xf32>
      %275 = tpu.reciprocal %274 {approx = true} : vector<8x1xf32> -> vector<8x1xf32>
      %c0_180 = arith.constant 0 : index
      %c4_181 = arith.constant 4 : index
      %276 = vector.load %arg12[%c0_180, %c4_181] : memref<8x32xf32, #tpu.memory_space<vmem>>, vector<8x4xf32>
      %277 = vector.broadcast %275 : vector<8x1xf32> to vector<8x4xf32>
      %278 = arith.mulf %276, %277 : vector<8x4xf32>
      %c0_182 = arith.constant 0 : index
      %c4_183 = arith.constant 4 : index
      %279 = vector.load %arg12[%c0_182, %c4_183] : memref<8x32xf32, #tpu.memory_space<vmem>>, vector<8x4xf32>
      tpu.vector_store %arg12[%c0_182, %c4_183], %278 {strides = array<i32>} : memref<8x32xf32, #tpu.memory_space<vmem>>, vector<8x4xf32>,
      %c2_184 = arith.constant 2 : index
      %c0_185 = arith.constant 0 : index
      %c0_186 = arith.constant 0 : index
      %280 = vector.load %arg11[%c2_184, %c0_185, %c0_186] : memref<8x8x1xf32, #tpu.memory_space<vmem>>, vector<1x8x1xf32>
      %281 = vector.shape_cast %280 : vector<1x8x1xf32> to vector<8x1xf32>
      %282 = tpu.reciprocal %281 {approx = true} : vector<8x1xf32> -> vector<8x1xf32>
      %c0_187 = arith.constant 0 : index
      %c8_188 = arith.constant 8 : index
      %283 = vector.load %arg12[%c0_187, %c8_188] : memref<8x32xf32, #tpu.memory_space<vmem>>, vector<8x4xf32>
      %284 = vector.broadcast %282 : vector<8x1xf32> to vector<8x4xf32>
      %285 = arith.mulf %283, %284 : vector<8x4xf32>
      %c0_189 = arith.constant 0 : index
      %c8_190 = arith.constant 8 : index
      %286 = vector.load %arg12[%c0_189, %c8_190] : memref<8x32xf32, #tpu.memory_space<vmem>>, vector<8x4xf32>
      tpu.vector_store %arg12[%c0_189, %c8_190], %285 {strides = array<i32>} : memref<8x32xf32, #tpu.memory_space<vmem>>, vector<8x4xf32>,
      %c3_191 = arith.constant 3 : index
      %c0_192 = arith.constant 0 : index
      %c0_193 = arith.constant 0 : index
      %287 = vector.load %arg11[%c3_191, %c0_192, %c0_193] : memref<8x8x1xf32, #tpu.memory_space<vmem>>, vector<1x8x1xf32>
      %288 = vector.shape_cast %287 : vector<1x8x1xf32> to vector<8x1xf32>
      %289 = tpu.reciprocal %288 {approx = true} : vector<8x1xf32> -> vector<8x1xf32>
      %c0_194 = arith.constant 0 : index
      %c12_195 = arith.constant 12 : index
      %290 = vector.load %arg12[%c0_194, %c12_195] : memref<8x32xf32, #tpu.memory_space<vmem>>, vector<8x4xf32>
      %291 = vector.broadcast %289 : vector<8x1xf32> to vector<8x4xf32>
      %292 = arith.mulf %290, %291 : vector<8x4xf32>
      %c0_196 = arith.constant 0 : index
      %c12_197 = arith.constant 12 : index
      %293 = vector.load %arg12[%c0_196, %c12_197] : memref<8x32xf32, #tpu.memory_space<vmem>>, vector<8x4xf32>
      tpu.vector_store %arg12[%c0_196, %c12_197], %292 {strides = array<i32>} : memref<8x32xf32, #tpu.memory_space<vmem>>, vector<8x4xf32>,
      %c4_198 = arith.constant 4 : index
      %c0_199 = arith.constant 0 : index
      %c0_200 = arith.constant 0 : index
      %294 = vector.load %arg11[%c4_198, %c0_199, %c0_200] : memref<8x8x1xf32, #tpu.memory_space<vmem>>, vector<1x8x1xf32>
      %295 = vector.shape_cast %294 : vector<1x8x1xf32> to vector<8x1xf32>
      %296 = tpu.reciprocal %295 {approx = true} : vector<8x1xf32> -> vector<8x1xf32>
      %c0_201 = arith.constant 0 : index
      %c16_202 = arith.constant 16 : index
      %297 = vector.load %arg12[%c0_201, %c16_202] : memref<8x32xf32, #tpu.memory_space<vmem>>, vector<8x4xf32>
      %298 = vector.broadcast %296 : vector<8x1xf32> to vector<8x4xf32>
      %299 = arith.mulf %297, %298 : vector<8x4xf32>
      %c0_203 = arith.constant 0 : index
      %c16_204 = arith.constant 16 : index
      %300 = vector.load %arg12[%c0_203, %c16_204] : memref<8x32xf32, #tpu.memory_space<vmem>>, vector<8x4xf32>
      tpu.vector_store %arg12[%c0_203, %c16_204], %299 {strides = array<i32>} : memref<8x32xf32, #tpu.memory_space<vmem>>, vector<8x4xf32>,
      %c5_205 = arith.constant 5 : index
      %c0_206 = arith.constant 0 : index
      %c0_207 = arith.constant 0 : index
      %301 = vector.load %arg11[%c5_205, %c0_206, %c0_207] : memref<8x8x1xf32, #tpu.memory_space<vmem>>, vector<1x8x1xf32>
      %302 = vector.shape_cast %301 : vector<1x8x1xf32> to vector<8x1xf32>
      %303 = tpu.reciprocal %302 {approx = true} : vector<8x1xf32> -> vector<8x1xf32>
      %c0_208 = arith.constant 0 : index
      %c20_209 = arith.constant 20 : index
      %304 = vector.load %arg12[%c0_208, %c20_209] : memref<8x32xf32, #tpu.memory_space<vmem>>, vector<8x4xf32>
      %305 = vector.broadcast %303 : vector<8x1xf32> to vector<8x4xf32>
      %306 = arith.mulf %304, %305 : vector<8x4xf32>
      %c0_210 = arith.constant 0 : index
      %c20_211 = arith.constant 20 : index
      %307 = vector.load %arg12[%c0_210, %c20_211] : memref<8x32xf32, #tpu.memory_space<vmem>>, vector<8x4xf32>
      tpu.vector_store %arg12[%c0_210, %c20_211], %306 {strides = array<i32>} : memref<8x32xf32, #tpu.memory_space<vmem>>, vector<8x4xf32>,
      %c6_212 = arith.constant 6 : index
      %c0_213 = arith.constant 0 : index
      %c0_214 = arith.constant 0 : index
      %308 = vector.load %arg11[%c6_212, %c0_213, %c0_214] : memref<8x8x1xf32, #tpu.memory_space<vmem>>, vector<1x8x1xf32>
      %309 = vector.shape_cast %308 : vector<1x8x1xf32> to vector<8x1xf32>
      %310 = tpu.reciprocal %309 {approx = true} : vector<8x1xf32> -> vector<8x1xf32>
      %c0_215 = arith.constant 0 : index
      %c24_216 = arith.constant 24 : index
      %311 = vector.load %arg12[%c0_215, %c24_216] : memref<8x32xf32, #tpu.memory_space<vmem>>, vector<8x4xf32>
      %312 = vector.broadcast %310 : vector<8x1xf32> to vector<8x4xf32>
      %313 = arith.mulf %311, %312 : vector<8x4xf32>
      %c0_217 = arith.constant 0 : index
      %c24_218 = arith.constant 24 : index
      %314 = vector.load %arg12[%c0_217, %c24_218] : memref<8x32xf32, #tpu.memory_space<vmem>>, vector<8x4xf32>
      tpu.vector_store %arg12[%c0_217, %c24_218], %313 {strides = array<i32>} : memref<8x32xf32, #tpu.memory_space<vmem>>, vector<8x4xf32>,
      %c7_219 = arith.constant 7 : index
      %c0_220 = arith.constant 0 : index
      %c0_221 = arith.constant 0 : index
      %315 = vector.load %arg11[%c7_219, %c0_220, %c0_221] : memref<8x8x1xf32, #tpu.memory_space<vmem>>, vector<1x8x1xf32>
      %316 = vector.shape_cast %315 : vector<1x8x1xf32> to vector<8x1xf32>
      %317 = tpu.reciprocal %316 {approx = true} : vector<8x1xf32> -> vector<8x1xf32>
      %c0_222 = arith.constant 0 : index
      %c28_223 = arith.constant 28 : index
      %318 = vector.load %arg12[%c0_222, %c28_223] : memref<8x32xf32, #tpu.memory_space<vmem>>, vector<8x4xf32>
      %319 = vector.broadcast %317 : vector<8x1xf32> to vector<8x4xf32>
      %320 = arith.mulf %318, %319 : vector<8x4xf32>
      %c0_224 = arith.constant 0 : index
      %c28_225 = arith.constant 28 : index
      %321 = vector.load %arg12[%c0_224, %c28_225] : memref<8x32xf32, #tpu.memory_space<vmem>>, vector<8x4xf32>
      tpu.vector_store %arg12[%c0_224, %c28_225], %320 {strides = array<i32>} : memref<8x32xf32, #tpu.memory_space<vmem>>, vector<8x4xf32>,
      %c0_226 = arith.constant 0 : index
      %c0_227 = arith.constant 0 : index
      %322 = vector.load %arg12[%c0_226, %c0_227] : memref<8x32xf32, #tpu.memory_space<vmem>>, vector<8x32xf32>
      %c0_228 = arith.constant 0 : index
      %c0_229 = arith.constant 0 : index
      %323 = vector.load %arg7[%c0_228, %c0_229] : memref<32x32xf32, #tpu.memory_space<vmem>>, vector<32x32xf32>
      %cst_230 = arith.constant dense<0.000000e+00> : vector<8x32xf32>
      %324 = tpu.matmul %322, %323, %cst_230 {dimension_numbers = #tpu.dot_dimension_numbers<[1], [0], [0], [1], [0, 0, 1, 1], [], []>} : vector<8x32xf32>, vector<32x32xf32>, vector<8x32xf32> -> vector<8x32xf32>
      %c0_231 = arith.constant 0 : index
      %c0_232 = arith.constant 0 : index
      %c0_233 = arith.constant 0 : index
      %325 = vector.load %arg8[%c0_231, %c0_232, %c0_233] : memref<1x8x32xf32, #tpu.memory_space<vmem>>, vector<1x8x32xf32>
      %326 = vector.shape_cast %325 : vector<1x8x32xf32> to vector<8x32xf32>
      %327 = vector.shape_cast %324 : vector<8x32xf32> to vector<1x8x32xf32>
      tpu.vector_store %arg8[%c0_231, %c0_232, %c0_233], %327 {strides = array<i32>} : memref<1x8x32xf32, #tpu.memory_space<vmem>>, vector<1x8x32xf32>,
    } else {
    }
    return
  }
  func.func @transform_0(%arg0: i32, %arg1: i32, %arg2: i32) -> (i32, i32, i32) {
    %c0_i32 = arith.constant 0 : i32
    %c0_i32_0 = arith.constant 0 : i32
    return %arg0, %arg1, %c0_i32 : i32, i32, i32
  }
  func.func @transform_1(%arg0: i32, %arg1: i32, %arg2: i32) -> (i32, i32, i32) {
    %c0_i32 = arith.constant 0 : i32
    %c0_i32_0 = arith.constant 0 : i32
    return %arg0, %arg2, %c0_i32 : i32, i32, i32
  }
  func.func @transform_2(%arg0: i32, %arg1: i32, %arg2: i32) -> (i32, i32) {
    %c0_i32 = arith.constant 0 : i32
    %c0_i32_0 = arith.constant 0 : i32
    %c0_i32_1 = arith.constant 0 : i32
    return %c0_i32, %c0_i32_0 : i32, i32
  }
  func.func @transform_3(%arg0: i32, %arg1: i32, %arg2: i32) -> (i32, i32) {
    %c0_i32 = arith.constant 0 : i32
    %c0_i32_0 = arith.constant 0 : i32
    %c0_i32_1 = arith.constant 0 : i32
    return %c0_i32, %c0_i32_0 : i32, i32
  }
  func.func @transform_4(%arg0: i32, %arg1: i32, %arg2: i32) -> (i32, i32) {
    %c0_i32 = arith.constant 0 : i32
    %c0_i32_0 = arith.constant 0 : i32
    %c0_i32_1 = arith.constant 0 : i32
    return %c0_i32, %c0_i32_0 : i32, i32
  }
  func.func @transform_5(%arg0: i32, %arg1: i32, %arg2: i32) -> (i32, i32, i32) {
    %c0_i32 = arith.constant 0 : i32
    %c0_i32_0 = arith.constant 0 : i32
    return %arg0, %arg1, %c0_i32 : i32, i32, i32
  }
}

module attributes {stable_mosaic.version = 11 : i64} {
  func.func @_fused_mha_kernel(%arg0: i32, %arg1: i32, %arg2: i32, %arg3: memref<1x8x32xf32, #tpu.memory_space<vmem>>, %arg4: memref<1x8x32xf32, #tpu.memory_space<vmem>>, %arg5: memref<32x32xf32, #tpu.memory_space<vmem>>, %arg6: memref<32x64xf32, #tpu.memory_space<vmem>>, %arg7: memref<32x32xf32, #tpu.memory_space<vmem>>, %arg8: memref<1x8x32xf32, #tpu.memory_space<vmem>>, %arg9: memref<8x32xf32, #tpu.memory_space<vmem>>, %arg10: memref<8x8x1xf32, #tpu.memory_space<vmem>>, %arg11: memref<8x8x1xf32, #tpu.memory_space<vmem>>, %arg12: memref<8x32xf32, #tpu.memory_space<vmem>>) attributes {dimension_semantics = [#tpu.dimension_semantics<parallel>, #tpu.dimension_semantics<parallel>, #tpu.dimension_semantics<arbitrary>], iteration_bounds = array<i64: 2, 1, 1>, scalar_prefetch = 0 : i64, scratch_operands = 4 : i64, tpu.core_type = #tpu.core_type<tc>, window_params = [{transform_indices = @transform_0, window_bounds = array<i64: 1, 8, 32>}, {transform_indices = @transform_1, window_bounds = array<i64: 1, 8, 32>}, {pipeline_mode = #tpu.pipeline_mode<synchronous>, transform_indices = @transform_2, window_bounds = array<i64: 32, 32>}, {pipeline_mode = #tpu.pipeline_mode<synchronous>, transform_indices = @transform_3, window_bounds = array<i64: 32, 64>}, {pipeline_mode = #tpu.pipeline_mode<synchronous>, transform_indices = @transform_4, window_bounds = array<i64: 32, 32>}, {transform_indices = @transform_5, window_bounds = array<i64: 1, 8, 32>}]} {
    %c0_i32 = arith.constant 0 : i32
    %0 = arith.cmpi eq, %arg2, %c0_i32 : i32
    %1 = arith.extui %0 : i1 to i32
    %c0_i32_0 = arith.constant 0 : i32
    %2 = arith.cmpi ne, %1, %c0_i32_0 : i32
    scf.if %2 {
      %c0_170 = arith.constant 0 : index
      %c0_171 = arith.constant 0 : index
      %c0_172 = arith.constant 0 : index
      %266 = vector.load %arg3[%c0_170, %c0_171, %c0_172] : memref<1x8x32xf32, #tpu.memory_space<vmem>>, vector<1x8x32xf32>
      %267 = vector.shape_cast %266 : vector<1x8x32xf32> to vector<8x32xf32>
      %c0_173 = arith.constant 0 : index
      %c0_174 = arith.constant 0 : index
      %268 = vector.load %arg5[%c0_173, %c0_174] : memref<32x32xf32, #tpu.memory_space<vmem>>, vector<32x32xf32>
      %cst_175 = arith.constant dense<0.000000e+00> : vector<8x32xf32>
      %269 = tpu.matmul %267, %268, %cst_175 {dimension_numbers = #tpu.dot_dimension_numbers<[1], [0], [0], [1], [0, 0, 1, 1], [], []>} : vector<8x32xf32>, vector<32x32xf32>, vector<8x32xf32> -> vector<8x32xf32>
      %c0_176 = arith.constant 0 : index
      %c0_177 = arith.constant 0 : index
      %270 = vector.load %arg9[%c0_176, %c0_177] : memref<8x32xf32, #tpu.memory_space<vmem>>, vector<8x32xf32>
      tpu.vector_store %arg9[%c0_176, %c0_177], %269 {strides = array<i32>} : memref<8x32xf32, #tpu.memory_space<vmem>>, vector<8x32xf32>,
      %cst_178 = arith.constant 0xFF800000 : f32
      %271 = vector.broadcast %cst_178 : f32 to vector<8x8x1xf32>
      %c0_179 = arith.constant 0 : index
      %c0_180 = arith.constant 0 : index
      %c0_181 = arith.constant 0 : index
      %272 = vector.load %arg10[%c0_179, %c0_180, %c0_181] : memref<8x8x1xf32, #tpu.memory_space<vmem>>, vector<8x8x1xf32>
      tpu.vector_store %arg10[%c0_179, %c0_180, %c0_181], %271 {strides = array<i32>} : memref<8x8x1xf32, #tpu.memory_space<vmem>>, vector<8x8x1xf32>,
      %cst_182 = arith.constant 0.000000e+00 : f32
      %273 = vector.broadcast %cst_182 : f32 to vector<8x8x1xf32>
      %c0_183 = arith.constant 0 : index
      %c0_184 = arith.constant 0 : index
      %c0_185 = arith.constant 0 : index
      %274 = vector.load %arg11[%c0_183, %c0_184, %c0_185] : memref<8x8x1xf32, #tpu.memory_space<vmem>>, vector<8x8x1xf32>
      tpu.vector_store %arg11[%c0_183, %c0_184, %c0_185], %273 {strides = array<i32>} : memref<8x8x1xf32, #tpu.memory_space<vmem>>, vector<8x8x1xf32>,
      %cst_186 = arith.constant 0.000000e+00 : f32
      %275 = vector.broadcast %cst_186 : f32 to vector<8x32xf32>
      %c0_187 = arith.constant 0 : index
      %c0_188 = arith.constant 0 : index
      %276 = vector.load %arg12[%c0_187, %c0_188] : memref<8x32xf32, #tpu.memory_space<vmem>>, vector<8x32xf32>
      tpu.vector_store %arg12[%c0_187, %c0_188], %275 {strides = array<i32>} : memref<8x32xf32, #tpu.memory_space<vmem>>, vector<8x32xf32>,
    } else {
    }
    %c0 = arith.constant 0 : index
    %c0_1 = arith.constant 0 : index
    %c0_2 = arith.constant 0 : index
    %3 = vector.load %arg4[%c0, %c0_1, %c0_2] : memref<1x8x32xf32, #tpu.memory_space<vmem>>, vector<1x8x32xf32>
    %4 = vector.shape_cast %3 : vector<1x8x32xf32> to vector<8x32xf32>
    %c0_3 = arith.constant 0 : index
    %c0_4 = arith.constant 0 : index
    %5 = vector.load %arg6[%c0_3, %c0_4] : memref<32x64xf32, #tpu.memory_space<vmem>>, vector<32x64xf32>
    %cst = arith.constant dense<0.000000e+00> : vector<8x64xf32>
    %6 = tpu.matmul %4, %5, %cst {dimension_numbers = #tpu.dot_dimension_numbers<[1], [0], [0], [1], [0, 0, 1, 1], [], []>} : vector<8x32xf32>, vector<32x64xf32>, vector<8x64xf32> -> vector<8x64xf32>
    %c0_5 = arith.constant 0 : index
    %c0_6 = arith.constant 0 : index
    %7 = vector.load %arg9[%c0_5, %c0_6] : memref<8x32xf32, #tpu.memory_space<vmem>>, vector<8x4xf32>
    %8 = vector.extract_strided_slice %6 {offsets = [0, 0], sizes = [8, 4], strides = [1, 1]} : vector<8x64xf32> to vector<8x4xf32>
    %9 = vector.extract_strided_slice %6 {offsets = [0, 32], sizes = [8, 4], strides = [1, 1]} : vector<8x64xf32> to vector<8x4xf32>
    %cst_7 = arith.constant dense<0.000000e+00> : vector<8x8xf32>
    %10 = tpu.matmul %7, %8, %cst_7 {dimension_numbers = #tpu.dot_dimension_numbers<[1], [1], [0], [0], [0, 0, 1, 0], [], []>} : vector<8x4xf32>, vector<8x4xf32>, vector<8x8xf32> -> vector<8x8xf32>
    %c0_8 = arith.constant 0 : index
    %c0_9 = arith.constant 0 : index
    %c0_10 = arith.constant 0 : index
    %11 = vector.load %arg10[%c0_8, %c0_9, %c0_10] : memref<8x8x1xf32, #tpu.memory_space<vmem>>, vector<1x8x1xf32>
    %12 = vector.shape_cast %11 : vector<1x8x1xf32> to vector<8x1xf32>
    %cst_11 = arith.constant dense<0xFF800000> : vector<8xf32>
    %13 = vector.multi_reduction <maximumf>, %10, %cst_11 [1] : vector<8x8xf32> to vector<8xf32>
    %14 = vector.shape_cast %13 : vector<8xf32> to vector<8x1xf32>
    %15 = arith.maximumf %12, %14 : vector<8x1xf32>
    %16 = arith.subf %12, %15 : vector<8x1xf32>
    %17 = math.exp %16 : vector<8x1xf32>
    %18 = vector.broadcast %15 : vector<8x1xf32> to vector<8x8xf32>
    %19 = arith.subf %10, %18 : vector<8x8xf32>
    %20 = math.exp %19 : vector<8x8xf32>
    %c0_12 = arith.constant 0 : index
    %c0_13 = arith.constant 0 : index
    %c0_14 = arith.constant 0 : index
    %21 = vector.load %arg11[%c0_12, %c0_13, %c0_14] : memref<8x8x1xf32, #tpu.memory_space<vmem>>, vector<1x8x1xf32>
    %22 = vector.shape_cast %21 : vector<1x8x1xf32> to vector<8x1xf32>
    %23 = arith.mulf %17, %22 : vector<8x1xf32>
    %cst_15 = arith.constant dense<0.000000e+00> : vector<8xf32>
    %24 = vector.multi_reduction <add>, %20, %cst_15 [1] : vector<8x8xf32> to vector<8xf32>
    %25 = vector.shape_cast %24 : vector<8xf32> to vector<8x1xf32>
    %26 = arith.addf %23, %25 : vector<8x1xf32>
    %c0_16 = arith.constant 0 : index
    %c0_17 = arith.constant 0 : index
    %c0_18 = arith.constant 0 : index
    %27 = vector.load %arg11[%c0_16, %c0_17, %c0_18] : memref<8x8x1xf32, #tpu.memory_space<vmem>>, vector<1x8x1xf32>
    %28 = vector.shape_cast %27 : vector<1x8x1xf32> to vector<8x1xf32>
    %29 = vector.shape_cast %26 : vector<8x1xf32> to vector<1x8x1xf32>
    tpu.vector_store %arg11[%c0_16, %c0_17, %c0_18], %29 {strides = array<i32>} : memref<8x8x1xf32, #tpu.memory_space<vmem>>, vector<1x8x1xf32>,
    %c0_19 = arith.constant 0 : index
    %c0_20 = arith.constant 0 : index
    %30 = vector.load %arg12[%c0_19, %c0_20] : memref<8x32xf32, #tpu.memory_space<vmem>>, vector<8x4xf32>
    %31 = vector.broadcast %17 : vector<8x1xf32> to vector<8x4xf32>
    %32 = arith.mulf %31, %30 : vector<8x4xf32>
    %cst_21 = arith.constant dense<0.000000e+00> : vector<8x4xf32>
    %33 = tpu.matmul %20, %9, %cst_21 {dimension_numbers = #tpu.dot_dimension_numbers<[1], [0], [0], [1], [0, 0, 1, 1], [], []>} : vector<8x8xf32>, vector<8x4xf32>, vector<8x4xf32> -> vector<8x4xf32>
    %34 = arith.addf %32, %33 : vector<8x4xf32>
    %c0_22 = arith.constant 0 : index
    %c0_23 = arith.constant 0 : index
    %35 = vector.load %arg12[%c0_22, %c0_23] : memref<8x32xf32, #tpu.memory_space<vmem>>, vector<8x4xf32>
    tpu.vector_store %arg12[%c0_22, %c0_23], %34 {strides = array<i32>} : memref<8x32xf32, #tpu.memory_space<vmem>>, vector<8x4xf32>,
    %c0_24 = arith.constant 0 : index
    %c0_25 = arith.constant 0 : index
    %c0_26 = arith.constant 0 : index
    %36 = vector.load %arg10[%c0_24, %c0_25, %c0_26] : memref<8x8x1xf32, #tpu.memory_space<vmem>>, vector<1x8x1xf32>
    %37 = vector.shape_cast %36 : vector<1x8x1xf32> to vector<8x1xf32>
    %38 = vector.shape_cast %15 : vector<8x1xf32> to vector<1x8x1xf32>
    tpu.vector_store %arg10[%c0_24, %c0_25, %c0_26], %38 {strides = array<i32>} : memref<8x8x1xf32, #tpu.memory_space<vmem>>, vector<1x8x1xf32>,
    %c0_27 = arith.constant 0 : index
    %c4 = arith.constant 4 : index
    %39 = vector.load %arg9[%c0_27, %c4] : memref<8x32xf32, #tpu.memory_space<vmem>>, vector<8x4xf32>
    %40 = vector.extract_strided_slice %6 {offsets = [0, 4], sizes = [8, 4], strides = [1, 1]} : vector<8x64xf32> to vector<8x4xf32>
    %41 = vector.extract_strided_slice %6 {offsets = [0, 36], sizes = [8, 4], strides = [1, 1]} : vector<8x64xf32> to vector<8x4xf32>
    %cst_28 = arith.constant dense<0.000000e+00> : vector<8x8xf32>
    %42 = tpu.matmul %39, %40, %cst_28 {dimension_numbers = #tpu.dot_dimension_numbers<[1], [1], [0], [0], [0, 0, 1, 0], [], []>} : vector<8x4xf32>, vector<8x4xf32>, vector<8x8xf32> -> vector<8x8xf32>
    %c1 = arith.constant 1 : index
    %c0_29 = arith.constant 0 : index
    %c0_30 = arith.constant 0 : index
    %43 = vector.load %arg10[%c1, %c0_29, %c0_30] : memref<8x8x1xf32, #tpu.memory_space<vmem>>, vector<1x8x1xf32>
    %44 = vector.shape_cast %43 : vector<1x8x1xf32> to vector<8x1xf32>
    %cst_31 = arith.constant dense<0xFF800000> : vector<8xf32>
    %45 = vector.multi_reduction <maximumf>, %42, %cst_31 [1] : vector<8x8xf32> to vector<8xf32>
    %46 = vector.shape_cast %45 : vector<8xf32> to vector<8x1xf32>
    %47 = arith.maximumf %44, %46 : vector<8x1xf32>
    %48 = arith.subf %44, %47 : vector<8x1xf32>
    %49 = math.exp %48 : vector<8x1xf32>
    %50 = vector.broadcast %47 : vector<8x1xf32> to vector<8x8xf32>
    %51 = arith.subf %42, %50 : vector<8x8xf32>
    %52 = math.exp %51 : vector<8x8xf32>
    %c1_32 = arith.constant 1 : index
    %c0_33 = arith.constant 0 : index
    %c0_34 = arith.constant 0 : index
    %53 = vector.load %arg11[%c1_32, %c0_33, %c0_34] : memref<8x8x1xf32, #tpu.memory_space<vmem>>, vector<1x8x1xf32>
    %54 = vector.shape_cast %53 : vector<1x8x1xf32> to vector<8x1xf32>
    %55 = arith.mulf %49, %54 : vector<8x1xf32>
    %cst_35 = arith.constant dense<0.000000e+00> : vector<8xf32>
    %56 = vector.multi_reduction <add>, %52, %cst_35 [1] : vector<8x8xf32> to vector<8xf32>
    %57 = vector.shape_cast %56 : vector<8xf32> to vector<8x1xf32>
    %58 = arith.addf %55, %57 : vector<8x1xf32>
    %c1_36 = arith.constant 1 : index
    %c0_37 = arith.constant 0 : index
    %c0_38 = arith.constant 0 : index
    %59 = vector.load %arg11[%c1_36, %c0_37, %c0_38] : memref<8x8x1xf32, #tpu.memory_space<vmem>>, vector<1x8x1xf32>
    %60 = vector.shape_cast %59 : vector<1x8x1xf32> to vector<8x1xf32>
    %61 = vector.shape_cast %58 : vector<8x1xf32> to vector<1x8x1xf32>
    tpu.vector_store %arg11[%c1_36, %c0_37, %c0_38], %61 {strides = array<i32>} : memref<8x8x1xf32, #tpu.memory_space<vmem>>, vector<1x8x1xf32>,
    %c0_39 = arith.constant 0 : index
    %c4_40 = arith.constant 4 : index
    %62 = vector.load %arg12[%c0_39, %c4_40] : memref<8x32xf32, #tpu.memory_space<vmem>>, vector<8x4xf32>
    %63 = vector.broadcast %49 : vector<8x1xf32> to vector<8x4xf32>
    %64 = arith.mulf %63, %62 : vector<8x4xf32>
    %cst_41 = arith.constant dense<0.000000e+00> : vector<8x4xf32>
    %65 = tpu.matmul %52, %41, %cst_41 {dimension_numbers = #tpu.dot_dimension_numbers<[1], [0], [0], [1], [0, 0, 1, 1], [], []>} : vector<8x8xf32>, vector<8x4xf32>, vector<8x4xf32> -> vector<8x4xf32>
    %66 = arith.addf %64, %65 : vector<8x4xf32>
    %c0_42 = arith.constant 0 : index
    %c4_43 = arith.constant 4 : index
    %67 = vector.load %arg12[%c0_42, %c4_43] : memref<8x32xf32, #tpu.memory_space<vmem>>, vector<8x4xf32>
    tpu.vector_store %arg12[%c0_42, %c4_43], %66 {strides = array<i32>} : memref<8x32xf32, #tpu.memory_space<vmem>>, vector<8x4xf32>,
    %c1_44 = arith.constant 1 : index
    %c0_45 = arith.constant 0 : index
    %c0_46 = arith.constant 0 : index
    %68 = vector.load %arg10[%c1_44, %c0_45, %c0_46] : memref<8x8x1xf32, #tpu.memory_space<vmem>>, vector<1x8x1xf32>
    %69 = vector.shape_cast %68 : vector<1x8x1xf32> to vector<8x1xf32>
    %70 = vector.shape_cast %47 : vector<8x1xf32> to vector<1x8x1xf32>
    tpu.vector_store %arg10[%c1_44, %c0_45, %c0_46], %70 {strides = array<i32>} : memref<8x8x1xf32, #tpu.memory_space<vmem>>, vector<1x8x1xf32>,
    %c0_47 = arith.constant 0 : index
    %c8 = arith.constant 8 : index
    %71 = vector.load %arg9[%c0_47, %c8] : memref<8x32xf32, #tpu.memory_space<vmem>>, vector<8x4xf32>
    %72 = vector.extract_strided_slice %6 {offsets = [0, 8], sizes = [8, 4], strides = [1, 1]} : vector<8x64xf32> to vector<8x4xf32>
    %73 = vector.extract_strided_slice %6 {offsets = [0, 40], sizes = [8, 4], strides = [1, 1]} : vector<8x64xf32> to vector<8x4xf32>
    %cst_48 = arith.constant dense<0.000000e+00> : vector<8x8xf32>
    %74 = tpu.matmul %71, %72, %cst_48 {dimension_numbers = #tpu.dot_dimension_numbers<[1], [1], [0], [0], [0, 0, 1, 0], [], []>} : vector<8x4xf32>, vector<8x4xf32>, vector<8x8xf32> -> vector<8x8xf32>
    %c2 = arith.constant 2 : index
    %c0_49 = arith.constant 0 : index
    %c0_50 = arith.constant 0 : index
    %75 = vector.load %arg10[%c2, %c0_49, %c0_50] : memref<8x8x1xf32, #tpu.memory_space<vmem>>, vector<1x8x1xf32>
    %76 = vector.shape_cast %75 : vector<1x8x1xf32> to vector<8x1xf32>
    %cst_51 = arith.constant dense<0xFF800000> : vector<8xf32>
    %77 = vector.multi_reduction <maximumf>, %74, %cst_51 [1] : vector<8x8xf32> to vector<8xf32>
    %78 = vector.shape_cast %77 : vector<8xf32> to vector<8x1xf32>
    %79 = arith.maximumf %76, %78 : vector<8x1xf32>
    %80 = arith.subf %76, %79 : vector<8x1xf32>
    %81 = math.exp %80 : vector<8x1xf32>
    %82 = vector.broadcast %79 : vector<8x1xf32> to vector<8x8xf32>
    %83 = arith.subf %74, %82 : vector<8x8xf32>
    %84 = math.exp %83 : vector<8x8xf32>
    %c2_52 = arith.constant 2 : index
    %c0_53 = arith.constant 0 : index
    %c0_54 = arith.constant 0 : index
    %85 = vector.load %arg11[%c2_52, %c0_53, %c0_54] : memref<8x8x1xf32, #tpu.memory_space<vmem>>, vector<1x8x1xf32>
    %86 = vector.shape_cast %85 : vector<1x8x1xf32> to vector<8x1xf32>
    %87 = arith.mulf %81, %86 : vector<8x1xf32>
    %cst_55 = arith.constant dense<0.000000e+00> : vector<8xf32>
    %88 = vector.multi_reduction <add>, %84, %cst_55 [1] : vector<8x8xf32> to vector<8xf32>
    %89 = vector.shape_cast %88 : vector<8xf32> to vector<8x1xf32>
    %90 = arith.addf %87, %89 : vector<8x1xf32>
    %c2_56 = arith.constant 2 : index
    %c0_57 = arith.constant 0 : index
    %c0_58 = arith.constant 0 : index
    %91 = vector.load %arg11[%c2_56, %c0_57, %c0_58] : memref<8x8x1xf32, #tpu.memory_space<vmem>>, vector<1x8x1xf32>
    %92 = vector.shape_cast %91 : vector<1x8x1xf32> to vector<8x1xf32>
    %93 = vector.shape_cast %90 : vector<8x1xf32> to vector<1x8x1xf32>
    tpu.vector_store %arg11[%c2_56, %c0_57, %c0_58], %93 {strides = array<i32>} : memref<8x8x1xf32, #tpu.memory_space<vmem>>, vector<1x8x1xf32>,
    %c0_59 = arith.constant 0 : index
    %c8_60 = arith.constant 8 : index
    %94 = vector.load %arg12[%c0_59, %c8_60] : memref<8x32xf32, #tpu.memory_space<vmem>>, vector<8x4xf32>
    %95 = vector.broadcast %81 : vector<8x1xf32> to vector<8x4xf32>
    %96 = arith.mulf %95, %94 : vector<8x4xf32>
    %cst_61 = arith.constant dense<0.000000e+00> : vector<8x4xf32>
    %97 = tpu.matmul %84, %73, %cst_61 {dimension_numbers = #tpu.dot_dimension_numbers<[1], [0], [0], [1], [0, 0, 1, 1], [], []>} : vector<8x8xf32>, vector<8x4xf32>, vector<8x4xf32> -> vector<8x4xf32>
    %98 = arith.addf %96, %97 : vector<8x4xf32>
    %c0_62 = arith.constant 0 : index
    %c8_63 = arith.constant 8 : index
    %99 = vector.load %arg12[%c0_62, %c8_63] : memref<8x32xf32, #tpu.memory_space<vmem>>, vector<8x4xf32>
    tpu.vector_store %arg12[%c0_62, %c8_63], %98 {strides = array<i32>} : memref<8x32xf32, #tpu.memory_space<vmem>>, vector<8x4xf32>,
    %c2_64 = arith.constant 2 : index
    %c0_65 = arith.constant 0 : index
    %c0_66 = arith.constant 0 : index
    %100 = vector.load %arg10[%c2_64, %c0_65, %c0_66] : memref<8x8x1xf32, #tpu.memory_space<vmem>>, vector<1x8x1xf32>
    %101 = vector.shape_cast %100 : vector<1x8x1xf32> to vector<8x1xf32>
    %102 = vector.shape_cast %79 : vector<8x1xf32> to vector<1x8x1xf32>
    tpu.vector_store %arg10[%c2_64, %c0_65, %c0_66], %102 {strides = array<i32>} : memref<8x8x1xf32, #tpu.memory_space<vmem>>, vector<1x8x1xf32>,
    %c0_67 = arith.constant 0 : index
    %c12 = arith.constant 12 : index
    %103 = vector.load %arg9[%c0_67, %c12] : memref<8x32xf32, #tpu.memory_space<vmem>>, vector<8x4xf32>
    %104 = vector.extract_strided_slice %6 {offsets = [0, 12], sizes = [8, 4], strides = [1, 1]} : vector<8x64xf32> to vector<8x4xf32>
    %105 = vector.extract_strided_slice %6 {offsets = [0, 44], sizes = [8, 4], strides = [1, 1]} : vector<8x64xf32> to vector<8x4xf32>
    %cst_68 = arith.constant dense<0.000000e+00> : vector<8x8xf32>
    %106 = tpu.matmul %103, %104, %cst_68 {dimension_numbers = #tpu.dot_dimension_numbers<[1], [1], [0], [0], [0, 0, 1, 0], [], []>} : vector<8x4xf32>, vector<8x4xf32>, vector<8x8xf32> -> vector<8x8xf32>
    %c3 = arith.constant 3 : index
    %c0_69 = arith.constant 0 : index
    %c0_70 = arith.constant 0 : index
    %107 = vector.load %arg10[%c3, %c0_69, %c0_70] : memref<8x8x1xf32, #tpu.memory_space<vmem>>, vector<1x8x1xf32>
    %108 = vector.shape_cast %107 : vector<1x8x1xf32> to vector<8x1xf32>
    %cst_71 = arith.constant dense<0xFF800000> : vector<8xf32>
    %109 = vector.multi_reduction <maximumf>, %106, %cst_71 [1] : vector<8x8xf32> to vector<8xf32>
    %110 = vector.shape_cast %109 : vector<8xf32> to vector<8x1xf32>
    %111 = arith.maximumf %108, %110 : vector<8x1xf32>
    %112 = arith.subf %108, %111 : vector<8x1xf32>
    %113 = math.exp %112 : vector<8x1xf32>
    %114 = vector.broadcast %111 : vector<8x1xf32> to vector<8x8xf32>
    %115 = arith.subf %106, %114 : vector<8x8xf32>
    %116 = math.exp %115 : vector<8x8xf32>
    %c3_72 = arith.constant 3 : index
    %c0_73 = arith.constant 0 : index
    %c0_74 = arith.constant 0 : index
    %117 = vector.load %arg11[%c3_72, %c0_73, %c0_74] : memref<8x8x1xf32, #tpu.memory_space<vmem>>, vector<1x8x1xf32>
    %118 = vector.shape_cast %117 : vector<1x8x1xf32> to vector<8x1xf32>
    %119 = arith.mulf %113, %118 : vector<8x1xf32>
    %cst_75 = arith.constant dense<0.000000e+00> : vector<8xf32>
    %120 = vector.multi_reduction <add>, %116, %cst_75 [1] : vector<8x8xf32> to vector<8xf32>
    %121 = vector.shape_cast %120 : vector<8xf32> to vector<8x1xf32>
    %122 = arith.addf %119, %121 : vector<8x1xf32>
    %c3_76 = arith.constant 3 : index
    %c0_77 = arith.constant 0 : index
    %c0_78 = arith.constant 0 : index
    %123 = vector.load %arg11[%c3_76, %c0_77, %c0_78] : memref<8x8x1xf32, #tpu.memory_space<vmem>>, vector<1x8x1xf32>
    %124 = vector.shape_cast %123 : vector<1x8x1xf32> to vector<8x1xf32>
    %125 = vector.shape_cast %122 : vector<8x1xf32> to vector<1x8x1xf32>
    tpu.vector_store %arg11[%c3_76, %c0_77, %c0_78], %125 {strides = array<i32>} : memref<8x8x1xf32, #tpu.memory_space<vmem>>, vector<1x8x1xf32>,
    %c0_79 = arith.constant 0 : index
    %c12_80 = arith.constant 12 : index
    %126 = vector.load %arg12[%c0_79, %c12_80] : memref<8x32xf32, #tpu.memory_space<vmem>>, vector<8x4xf32>
    %127 = vector.broadcast %113 : vector<8x1xf32> to vector<8x4xf32>
    %128 = arith.mulf %127, %126 : vector<8x4xf32>
    %cst_81 = arith.constant dense<0.000000e+00> : vector<8x4xf32>
    %129 = tpu.matmul %116, %105, %cst_81 {dimension_numbers = #tpu.dot_dimension_numbers<[1], [0], [0], [1], [0, 0, 1, 1], [], []>} : vector<8x8xf32>, vector<8x4xf32>, vector<8x4xf32> -> vector<8x4xf32>
    %130 = arith.addf %128, %129 : vector<8x4xf32>
    %c0_82 = arith.constant 0 : index
    %c12_83 = arith.constant 12 : index
    %131 = vector.load %arg12[%c0_82, %c12_83] : memref<8x32xf32, #tpu.memory_space<vmem>>, vector<8x4xf32>
    tpu.vector_store %arg12[%c0_82, %c12_83], %130 {strides = array<i32>} : memref<8x32xf32, #tpu.memory_space<vmem>>, vector<8x4xf32>,
    %c3_84 = arith.constant 3 : index
    %c0_85 = arith.constant 0 : index
    %c0_86 = arith.constant 0 : index
    %132 = vector.load %arg10[%c3_84, %c0_85, %c0_86] : memref<8x8x1xf32, #tpu.memory_space<vmem>>, vector<1x8x1xf32>
    %133 = vector.shape_cast %132 : vector<1x8x1xf32> to vector<8x1xf32>
    %134 = vector.shape_cast %111 : vector<8x1xf32> to vector<1x8x1xf32>
    tpu.vector_store %arg10[%c3_84, %c0_85, %c0_86], %134 {strides = array<i32>} : memref<8x8x1xf32, #tpu.memory_space<vmem>>, vector<1x8x1xf32>,
    %c0_87 = arith.constant 0 : index
    %c16 = arith.constant 16 : index
    %135 = vector.load %arg9[%c0_87, %c16] : memref<8x32xf32, #tpu.memory_space<vmem>>, vector<8x4xf32>
    %136 = vector.extract_strided_slice %6 {offsets = [0, 16], sizes = [8, 4], strides = [1, 1]} : vector<8x64xf32> to vector<8x4xf32>
    %137 = vector.extract_strided_slice %6 {offsets = [0, 48], sizes = [8, 4], strides = [1, 1]} : vector<8x64xf32> to vector<8x4xf32>
    %cst_88 = arith.constant dense<0.000000e+00> : vector<8x8xf32>
    %138 = tpu.matmul %135, %136, %cst_88 {dimension_numbers = #tpu.dot_dimension_numbers<[1], [1], [0], [0], [0, 0, 1, 0], [], []>} : vector<8x4xf32>, vector<8x4xf32>, vector<8x8xf32> -> vector<8x8xf32>
    %c4_89 = arith.constant 4 : index
    %c0_90 = arith.constant 0 : index
    %c0_91 = arith.constant 0 : index
    %139 = vector.load %arg10[%c4_89, %c0_90, %c0_91] : memref<8x8x1xf32, #tpu.memory_space<vmem>>, vector<1x8x1xf32>
    %140 = vector.shape_cast %139 : vector<1x8x1xf32> to vector<8x1xf32>
    %cst_92 = arith.constant dense<0xFF800000> : vector<8xf32>
    %141 = vector.multi_reduction <maximumf>, %138, %cst_92 [1] : vector<8x8xf32> to vector<8xf32>
    %142 = vector.shape_cast %141 : vector<8xf32> to vector<8x1xf32>
    %143 = arith.maximumf %140, %142 : vector<8x1xf32>
    %144 = arith.subf %140, %143 : vector<8x1xf32>
    %145 = math.exp %144 : vector<8x1xf32>
    %146 = vector.broadcast %143 : vector<8x1xf32> to vector<8x8xf32>
    %147 = arith.subf %138, %146 : vector<8x8xf32>
    %148 = math.exp %147 : vector<8x8xf32>
    %c4_93 = arith.constant 4 : index
    %c0_94 = arith.constant 0 : index
    %c0_95 = arith.constant 0 : index
    %149 = vector.load %arg11[%c4_93, %c0_94, %c0_95] : memref<8x8x1xf32, #tpu.memory_space<vmem>>, vector<1x8x1xf32>
    %150 = vector.shape_cast %149 : vector<1x8x1xf32> to vector<8x1xf32>
    %151 = arith.mulf %145, %150 : vector<8x1xf32>
    %cst_96 = arith.constant dense<0.000000e+00> : vector<8xf32>
    %152 = vector.multi_reduction <add>, %148, %cst_96 [1] : vector<8x8xf32> to vector<8xf32>
    %153 = vector.shape_cast %152 : vector<8xf32> to vector<8x1xf32>
    %154 = arith.addf %151, %153 : vector<8x1xf32>
    %c4_97 = arith.constant 4 : index
    %c0_98 = arith.constant 0 : index
    %c0_99 = arith.constant 0 : index
    %155 = vector.load %arg11[%c4_97, %c0_98, %c0_99] : memref<8x8x1xf32, #tpu.memory_space<vmem>>, vector<1x8x1xf32>
    %156 = vector.shape_cast %155 : vector<1x8x1xf32> to vector<8x1xf32>
    %157 = vector.shape_cast %154 : vector<8x1xf32> to vector<1x8x1xf32>
    tpu.vector_store %arg11[%c4_97, %c0_98, %c0_99], %157 {strides = array<i32>} : memref<8x8x1xf32, #tpu.memory_space<vmem>>, vector<1x8x1xf32>,
    %c0_100 = arith.constant 0 : index
    %c16_101 = arith.constant 16 : index
    %158 = vector.load %arg12[%c0_100, %c16_101] : memref<8x32xf32, #tpu.memory_space<vmem>>, vector<8x4xf32>
    %159 = vector.broadcast %145 : vector<8x1xf32> to vector<8x4xf32>
    %160 = arith.mulf %159, %158 : vector<8x4xf32>
    %cst_102 = arith.constant dense<0.000000e+00> : vector<8x4xf32>
    %161 = tpu.matmul %148, %137, %cst_102 {dimension_numbers = #tpu.dot_dimension_numbers<[1], [0], [0], [1], [0, 0, 1, 1], [], []>} : vector<8x8xf32>, vector<8x4xf32>, vector<8x4xf32> -> vector<8x4xf32>
    %162 = arith.addf %160, %161 : vector<8x4xf32>
    %c0_103 = arith.constant 0 : index
    %c16_104 = arith.constant 16 : index
    %163 = vector.load %arg12[%c0_103, %c16_104] : memref<8x32xf32, #tpu.memory_space<vmem>>, vector<8x4xf32>
    tpu.vector_store %arg12[%c0_103, %c16_104], %162 {strides = array<i32>} : memref<8x32xf32, #tpu.memory_space<vmem>>, vector<8x4xf32>,
    %c4_105 = arith.constant 4 : index
    %c0_106 = arith.constant 0 : index
    %c0_107 = arith.constant 0 : index
    %164 = vector.load %arg10[%c4_105, %c0_106, %c0_107] : memref<8x8x1xf32, #tpu.memory_space<vmem>>, vector<1x8x1xf32>
    %165 = vector.shape_cast %164 : vector<1x8x1xf32> to vector<8x1xf32>
    %166 = vector.shape_cast %143 : vector<8x1xf32> to vector<1x8x1xf32>
    tpu.vector_store %arg10[%c4_105, %c0_106, %c0_107], %166 {strides = array<i32>} : memref<8x8x1xf32, #tpu.memory_space<vmem>>, vector<1x8x1xf32>,
    %c0_108 = arith.constant 0 : index
    %c20 = arith.constant 20 : index
    %167 = vector.load %arg9[%c0_108, %c20] : memref<8x32xf32, #tpu.memory_space<vmem>>, vector<8x4xf32>
    %168 = vector.extract_strided_slice %6 {offsets = [0, 20], sizes = [8, 4], strides = [1, 1]} : vector<8x64xf32> to vector<8x4xf32>
    %169 = vector.extract_strided_slice %6 {offsets = [0, 52], sizes = [8, 4], strides = [1, 1]} : vector<8x64xf32> to vector<8x4xf32>
    %cst_109 = arith.constant dense<0.000000e+00> : vector<8x8xf32>
    %170 = tpu.matmul %167, %168, %cst_109 {dimension_numbers = #tpu.dot_dimension_numbers<[1], [1], [0], [0], [0, 0, 1, 0], [], []>} : vector<8x4xf32>, vector<8x4xf32>, vector<8x8xf32> -> vector<8x8xf32>
    %c5 = arith.constant 5 : index
    %c0_110 = arith.constant 0 : index
    %c0_111 = arith.constant 0 : index
    %171 = vector.load %arg10[%c5, %c0_110, %c0_111] : memref<8x8x1xf32, #tpu.memory_space<vmem>>, vector<1x8x1xf32>
    %172 = vector.shape_cast %171 : vector<1x8x1xf32> to vector<8x1xf32>
    %cst_112 = arith.constant dense<0xFF800000> : vector<8xf32>
    %173 = vector.multi_reduction <maximumf>, %170, %cst_112 [1] : vector<8x8xf32> to vector<8xf32>
    %174 = vector.shape_cast %173 : vector<8xf32> to vector<8x1xf32>
    %175 = arith.maximumf %172, %174 : vector<8x1xf32>
    %176 = arith.subf %172, %175 : vector<8x1xf32>
    %177 = math.exp %176 : vector<8x1xf32>
    %178 = vector.broadcast %175 : vector<8x1xf32> to vector<8x8xf32>
    %179 = arith.subf %170, %178 : vector<8x8xf32>
    %180 = math.exp %179 : vector<8x8xf32>
    %c5_113 = arith.constant 5 : index
    %c0_114 = arith.constant 0 : index
    %c0_115 = arith.constant 0 : index
    %181 = vector.load %arg11[%c5_113, %c0_114, %c0_115] : memref<8x8x1xf32, #tpu.memory_space<vmem>>, vector<1x8x1xf32>
    %182 = vector.shape_cast %181 : vector<1x8x1xf32> to vector<8x1xf32>
    %183 = arith.mulf %177, %182 : vector<8x1xf32>
    %cst_116 = arith.constant dense<0.000000e+00> : vector<8xf32>
    %184 = vector.multi_reduction <add>, %180, %cst_116 [1] : vector<8x8xf32> to vector<8xf32>
    %185 = vector.shape_cast %184 : vector<8xf32> to vector<8x1xf32>
    %186 = arith.addf %183, %185 : vector<8x1xf32>
    %c5_117 = arith.constant 5 : index
    %c0_118 = arith.constant 0 : index
    %c0_119 = arith.constant 0 : index
    %187 = vector.load %arg11[%c5_117, %c0_118, %c0_119] : memref<8x8x1xf32, #tpu.memory_space<vmem>>, vector<1x8x1xf32>
    %188 = vector.shape_cast %187 : vector<1x8x1xf32> to vector<8x1xf32>
    %189 = vector.shape_cast %186 : vector<8x1xf32> to vector<1x8x1xf32>
    tpu.vector_store %arg11[%c5_117, %c0_118, %c0_119], %189 {strides = array<i32>} : memref<8x8x1xf32, #tpu.memory_space<vmem>>, vector<1x8x1xf32>,
    %c0_120 = arith.constant 0 : index
    %c20_121 = arith.constant 20 : index
    %190 = vector.load %arg12[%c0_120, %c20_121] : memref<8x32xf32, #tpu.memory_space<vmem>>, vector<8x4xf32>
    %191 = vector.broadcast %177 : vector<8x1xf32> to vector<8x4xf32>
    %192 = arith.mulf %191, %190 : vector<8x4xf32>
    %cst_122 = arith.constant dense<0.000000e+00> : vector<8x4xf32>
    %193 = tpu.matmul %180, %169, %cst_122 {dimension_numbers = #tpu.dot_dimension_numbers<[1], [0], [0], [1], [0, 0, 1, 1], [], []>} : vector<8x8xf32>, vector<8x4xf32>, vector<8x4xf32> -> vector<8x4xf32>
    %194 = arith.addf %192, %193 : vector<8x4xf32>
    %c0_123 = arith.constant 0 : index
    %c20_124 = arith.constant 20 : index
    %195 = vector.load %arg12[%c0_123, %c20_124] : memref<8x32xf32, #tpu.memory_space<vmem>>, vector<8x4xf32>
    tpu.vector_store %arg12[%c0_123, %c20_124], %194 {strides = array<i32>} : memref<8x32xf32, #tpu.memory_space<vmem>>, vector<8x4xf32>,
    %c5_125 = arith.constant 5 : index
    %c0_126 = arith.constant 0 : index
    %c0_127 = arith.constant 0 : index
    %196 = vector.load %arg10[%c5_125, %c0_126, %c0_127] : memref<8x8x1xf32, #tpu.memory_space<vmem>>, vector<1x8x1xf32>
    %197 = vector.shape_cast %196 : vector<1x8x1xf32> to vector<8x1xf32>
    %198 = vector.shape_cast %175 : vector<8x1xf32> to vector<1x8x1xf32>
    tpu.vector_store %arg10[%c5_125, %c0_126, %c0_127], %198 {strides = array<i32>} : memref<8x8x1xf32, #tpu.memory_space<vmem>>, vector<1x8x1xf32>,
    %c0_128 = arith.constant 0 : index
    %c24 = arith.constant 24 : index
    %199 = vector.load %arg9[%c0_128, %c24] : memref<8x32xf32, #tpu.memory_space<vmem>>, vector<8x4xf32>
    %200 = vector.extract_strided_slice %6 {offsets = [0, 24], sizes = [8, 4], strides = [1, 1]} : vector<8x64xf32> to vector<8x4xf32>
    %201 = vector.extract_strided_slice %6 {offsets = [0, 56], sizes = [8, 4], strides = [1, 1]} : vector<8x64xf32> to vector<8x4xf32>
    %cst_129 = arith.constant dense<0.000000e+00> : vector<8x8xf32>
    %202 = tpu.matmul %199, %200, %cst_129 {dimension_numbers = #tpu.dot_dimension_numbers<[1], [1], [0], [0], [0, 0, 1, 0], [], []>} : vector<8x4xf32>, vector<8x4xf32>, vector<8x8xf32> -> vector<8x8xf32>
    %c6 = arith.constant 6 : index
    %c0_130 = arith.constant 0 : index
    %c0_131 = arith.constant 0 : index
    %203 = vector.load %arg10[%c6, %c0_130, %c0_131] : memref<8x8x1xf32, #tpu.memory_space<vmem>>, vector<1x8x1xf32>
    %204 = vector.shape_cast %203 : vector<1x8x1xf32> to vector<8x1xf32>
    %cst_132 = arith.constant dense<0xFF800000> : vector<8xf32>
    %205 = vector.multi_reduction <maximumf>, %202, %cst_132 [1] : vector<8x8xf32> to vector<8xf32>
    %206 = vector.shape_cast %205 : vector<8xf32> to vector<8x1xf32>
    %207 = arith.maximumf %204, %206 : vector<8x1xf32>
    %208 = arith.subf %204, %207 : vector<8x1xf32>
    %209 = math.exp %208 : vector<8x1xf32>
    %210 = vector.broadcast %207 : vector<8x1xf32> to vector<8x8xf32>
    %211 = arith.subf %202, %210 : vector<8x8xf32>
    %212 = math.exp %211 : vector<8x8xf32>
    %c6_133 = arith.constant 6 : index
    %c0_134 = arith.constant 0 : index
    %c0_135 = arith.constant 0 : index
    %213 = vector.load %arg11[%c6_133, %c0_134, %c0_135] : memref<8x8x1xf32, #tpu.memory_space<vmem>>, vector<1x8x1xf32>
    %214 = vector.shape_cast %213 : vector<1x8x1xf32> to vector<8x1xf32>
    %215 = arith.mulf %209, %214 : vector<8x1xf32>
    %cst_136 = arith.constant dense<0.000000e+00> : vector<8xf32>
    %216 = vector.multi_reduction <add>, %212, %cst_136 [1] : vector<8x8xf32> to vector<8xf32>
    %217 = vector.shape_cast %216 : vector<8xf32> to vector<8x1xf32>
    %218 = arith.addf %215, %217 : vector<8x1xf32>
    %c6_137 = arith.constant 6 : index
    %c0_138 = arith.constant 0 : index
    %c0_139 = arith.constant 0 : index
    %219 = vector.load %arg11[%c6_137, %c0_138, %c0_139] : memref<8x8x1xf32, #tpu.memory_space<vmem>>, vector<1x8x1xf32>
    %220 = vector.shape_cast %219 : vector<1x8x1xf32> to vector<8x1xf32>
    %221 = vector.shape_cast %218 : vector<8x1xf32> to vector<1x8x1xf32>
    tpu.vector_store %arg11[%c6_137, %c0_138, %c0_139], %221 {strides = array<i32>} : memref<8x8x1xf32, #tpu.memory_space<vmem>>, vector<1x8x1xf32>,
    %c0_140 = arith.constant 0 : index
    %c24_141 = arith.constant 24 : index
    %222 = vector.load %arg12[%c0_140, %c24_141] : memref<8x32xf32, #tpu.memory_space<vmem>>, vector<8x4xf32>
    %223 = vector.broadcast %209 : vector<8x1xf32> to vector<8x4xf32>
    %224 = arith.mulf %223, %222 : vector<8x4xf32>
    %cst_142 = arith.constant dense<0.000000e+00> : vector<8x4xf32>
    %225 = tpu.matmul %212, %201, %cst_142 {dimension_numbers = #tpu.dot_dimension_numbers<[1], [0], [0], [1], [0, 0, 1, 1], [], []>} : vector<8x8xf32>, vector<8x4xf32>, vector<8x4xf32> -> vector<8x4xf32>
    %226 = arith.addf %224, %225 : vector<8x4xf32>
    %c0_143 = arith.constant 0 : index
    %c24_144 = arith.constant 24 : index
    %227 = vector.load %arg12[%c0_143, %c24_144] : memref<8x32xf32, #tpu.memory_space<vmem>>, vector<8x4xf32>
    tpu.vector_store %arg12[%c0_143, %c24_144], %226 {strides = array<i32>} : memref<8x32xf32, #tpu.memory_space<vmem>>, vector<8x4xf32>,
    %c6_145 = arith.constant 6 : index
    %c0_146 = arith.constant 0 : index
    %c0_147 = arith.constant 0 : index
    %228 = vector.load %arg10[%c6_145, %c0_146, %c0_147] : memref<8x8x1xf32, #tpu.memory_space<vmem>>, vector<1x8x1xf32>
    %229 = vector.shape_cast %228 : vector<1x8x1xf32> to vector<8x1xf32>
    %230 = vector.shape_cast %207 : vector<8x1xf32> to vector<1x8x1xf32>
    tpu.vector_store %arg10[%c6_145, %c0_146, %c0_147], %230 {strides = array<i32>} : memref<8x8x1xf32, #tpu.memory_space<vmem>>, vector<1x8x1xf32>,
    %c0_148 = arith.constant 0 : index
    %c28 = arith.constant 28 : index
    %231 = vector.load %arg9[%c0_148, %c28] : memref<8x32xf32, #tpu.memory_space<vmem>>, vector<8x4xf32>
    %232 = vector.extract_strided_slice %6 {offsets = [0, 28], sizes = [8, 4], strides = [1, 1]} : vector<8x64xf32> to vector<8x4xf32>
    %233 = vector.extract_strided_slice %6 {offsets = [0, 60], sizes = [8, 4], strides = [1, 1]} : vector<8x64xf32> to vector<8x4xf32>
    %cst_149 = arith.constant dense<0.000000e+00> : vector<8x8xf32>
    %234 = tpu.matmul %231, %232, %cst_149 {dimension_numbers = #tpu.dot_dimension_numbers<[1], [1], [0], [0], [0, 0, 1, 0], [], []>} : vector<8x4xf32>, vector<8x4xf32>, vector<8x8xf32> -> vector<8x8xf32>
    %c7 = arith.constant 7 : index
    %c0_150 = arith.constant 0 : index
    %c0_151 = arith.constant 0 : index
    %235 = vector.load %arg10[%c7, %c0_150, %c0_151] : memref<8x8x1xf32, #tpu.memory_space<vmem>>, vector<1x8x1xf32>
    %236 = vector.shape_cast %235 : vector<1x8x1xf32> to vector<8x1xf32>
    %cst_152 = arith.constant dense<0xFF800000> : vector<8xf32>
    %237 = vector.multi_reduction <maximumf>, %234, %cst_152 [1] : vector<8x8xf32> to vector<8xf32>
    %238 = vector.shape_cast %237 : vector<8xf32> to vector<8x1xf32>
    %239 = arith.maximumf %236, %238 : vector<8x1xf32>
    %240 = arith.subf %236, %239 : vector<8x1xf32>
    %241 = math.exp %240 : vector<8x1xf32>
    %242 = vector.broadcast %239 : vector<8x1xf32> to vector<8x8xf32>
    %243 = arith.subf %234, %242 : vector<8x8xf32>
    %244 = math.exp %243 : vector<8x8xf32>
    %c7_153 = arith.constant 7 : index
    %c0_154 = arith.constant 0 : index
    %c0_155 = arith.constant 0 : index
    %245 = vector.load %arg11[%c7_153, %c0_154, %c0_155] : memref<8x8x1xf32, #tpu.memory_space<vmem>>, vector<1x8x1xf32>
    %246 = vector.shape_cast %245 : vector<1x8x1xf32> to vector<8x1xf32>
    %247 = arith.mulf %241, %246 : vector<8x1xf32>
    %cst_156 = arith.constant dense<0.000000e+00> : vector<8xf32>
    %248 = vector.multi_reduction <add>, %244, %cst_156 [1] : vector<8x8xf32> to vector<8xf32>
    %249 = vector.shape_cast %248 : vector<8xf32> to vector<8x1xf32>
    %250 = arith.addf %247, %249 : vector<8x1xf32>
    %c7_157 = arith.constant 7 : index
    %c0_158 = arith.constant 0 : index
    %c0_159 = arith.constant 0 : index
    %251 = vector.load %arg11[%c7_157, %c0_158, %c0_159] : memref<8x8x1xf32, #tpu.memory_space<vmem>>, vector<1x8x1xf32>
    %252 = vector.shape_cast %251 : vector<1x8x1xf32> to vector<8x1xf32>
    %253 = vector.shape_cast %250 : vector<8x1xf32> to vector<1x8x1xf32>
    tpu.vector_store %arg11[%c7_157, %c0_158, %c0_159], %253 {strides = array<i32>} : memref<8x8x1xf32, #tpu.memory_space<vmem>>, vector<1x8x1xf32>,
    %c0_160 = arith.constant 0 : index
    %c28_161 = arith.constant 28 : index
    %254 = vector.load %arg12[%c0_160, %c28_161] : memref<8x32xf32, #tpu.memory_space<vmem>>, vector<8x4xf32>
    %255 = vector.broadcast %241 : vector<8x1xf32> to vector<8x4xf32>
    %256 = arith.mulf %255, %254 : vector<8x4xf32>
    %cst_162 = arith.constant dense<0.000000e+00> : vector<8x4xf32>
    %257 = tpu.matmul %244, %233, %cst_162 {dimension_numbers = #tpu.dot_dimension_numbers<[1], [0], [0], [1], [0, 0, 1, 1], [], []>} : vector<8x8xf32>, vector<8x4xf32>, vector<8x4xf32> -> vector<8x4xf32>
    %258 = arith.addf %256, %257 : vector<8x4xf32>
    %c0_163 = arith.constant 0 : index
    %c28_164 = arith.constant 28 : index
    %259 = vector.load %arg12[%c0_163, %c28_164] : memref<8x32xf32, #tpu.memory_space<vmem>>, vector<8x4xf32>
    tpu.vector_store %arg12[%c0_163, %c28_164], %258 {strides = array<i32>} : memref<8x32xf32, #tpu.memory_space<vmem>>, vector<8x4xf32>,
    %c7_165 = arith.constant 7 : index
    %c0_166 = arith.constant 0 : index
    %c0_167 = arith.constant 0 : index
    %260 = vector.load %arg10[%c7_165, %c0_166, %c0_167] : memref<8x8x1xf32, #tpu.memory_space<vmem>>, vector<1x8x1xf32>
    %261 = vector.shape_cast %260 : vector<1x8x1xf32> to vector<8x1xf32>
    %262 = vector.shape_cast %239 : vector<8x1xf32> to vector<1x8x1xf32>
    tpu.vector_store %arg10[%c7_165, %c0_166, %c0_167], %262 {strides = array<i32>} : memref<8x8x1xf32, #tpu.memory_space<vmem>>, vector<1x8x1xf32>,
    %c0_i32_168 = arith.constant 0 : i32
    %263 = arith.cmpi eq, %arg2, %c0_i32_168 : i32
    %264 = arith.extui %263 : i1 to i32
    %c0_i32_169 = arith.constant 0 : i32
    %265 = arith.cmpi ne, %264, %c0_i32_169 : i32
    scf.if %265 {
      %c0_170 = arith.constant 0 : index
      %c0_171 = arith.constant 0 : index
      %c0_172 = arith.constant 0 : index
      %266 = vector.load %arg11[%c0_170, %c0_171, %c0_172] : memref<8x8x1xf32, #tpu.memory_space<vmem>>, vector<1x8x1xf32>
      %267 = vector.shape_cast %266 : vector<1x8x1xf32> to vector<8x1xf32>
      %268 = tpu.reciprocal %267 {approx = true} : vector<8x1xf32> -> vector<8x1xf32>
      %c0_173 = arith.constant 0 : index
      %c0_174 = arith.constant 0 : index
      %269 = vector.load %arg12[%c0_173, %c0_174] : memref<8x32xf32, #tpu.memory_space<vmem>>, vector<8x4xf32>
      %270 = vector.broadcast %268 : vector<8x1xf32> to vector<8x4xf32>
      %271 = arith.mulf %269, %270 : vector<8x4xf32>
      %c0_175 = arith.constant 0 : index
      %c0_176 = arith.constant 0 : index
      %272 = vector.load %arg12[%c0_175, %c0_176] : memref<8x32xf32, #tpu.memory_space<vmem>>, vector<8x4xf32>
      tpu.vector_store %arg12[%c0_175, %c0_176], %271 {strides = array<i32>} : memref<8x32xf32, #tpu.memory_space<vmem>>, vector<8x4xf32>,
      %c1_177 = arith.constant 1 : index
      %c0_178 = arith.constant 0 : index
      %c0_179 = arith.constant 0 : index
      %273 = vector.load %arg11[%c1_177, %c0_178, %c0_179] : memref<8x8x1xf32, #tpu.memory_space<vmem>>, vector<1x8x1xf32>
      %274 = vector.shape_cast %273 : vector<1x8x1xf32> to vector<8x1xf32>
      %275 = tpu.reciprocal %274 {approx = true} : vector<8x1xf32> -> vector<8x1xf32>
      %c0_180 = arith.constant 0 : index
      %c4_181 = arith.constant 4 : index
      %276 = vector.load %arg12[%c0_180, %c4_181] : memref<8x32xf32, #tpu.memory_space<vmem>>, vector<8x4xf32>
      %277 = vector.broadcast %275 : vector<8x1xf32> to vector<8x4xf32>
      %278 = arith.mulf %276, %277 : vector<8x4xf32>
      %c0_182 = arith.constant 0 : index
      %c4_183 = arith.constant 4 : index
      %279 = vector.load %arg12[%c0_182, %c4_183] : memref<8x32xf32, #tpu.memory_space<vmem>>, vector<8x4xf32>
      tpu.vector_store %arg12[%c0_182, %c4_183], %278 {strides = array<i32>} : memref<8x32xf32, #tpu.memory_space<vmem>>, vector<8x4xf32>,
      %c2_184 = arith.constant 2 : index
      %c0_185 = arith.constant 0 : index
      %c0_186 = arith.constant 0 : index
      %280 = vector.load %arg11[%c2_184, %c0_185, %c0_186] : memref<8x8x1xf32, #tpu.memory_space<vmem>>, vector<1x8x1xf32>
      %281 = vector.shape_cast %280 : vector<1x8x1xf32> to vector<8x1xf32>
      %282 = tpu.reciprocal %281 {approx = true} : vector<8x1xf32> -> vector<8x1xf32>
      %c0_187 = arith.constant 0 : index
      %c8_188 = arith.constant 8 : index
      %283 = vector.load %arg12[%c0_187, %c8_188] : memref<8x32xf32, #tpu.memory_space<vmem>>, vector<8x4xf32>
      %284 = vector.broadcast %282 : vector<8x1xf32> to vector<8x4xf32>
      %285 = arith.mulf %283, %284 : vector<8x4xf32>
      %c0_189 = arith.constant 0 : index
      %c8_190 = arith.constant 8 : index
      %286 = vector.load %arg12[%c0_189, %c8_190] : memref<8x32xf32, #tpu.memory_space<vmem>>, vector<8x4xf32>
      tpu.vector_store %arg12[%c0_189, %c8_190], %285 {strides = array<i32>} : memref<8x32xf32, #tpu.memory_space<vmem>>, vector<8x4xf32>,
      %c3_191 = arith.constant 3 : index
      %c0_192 = arith.constant 0 : index
      %c0_193 = arith.constant 0 : index
      %287 = vector.load %arg11[%c3_191, %c0_192, %c0_193] : memref<8x8x1xf32, #tpu.memory_space<vmem>>, vector<1x8x1xf32>
      %288 = vector.shape_cast %287 : vector<1x8x1xf32> to vector<8x1xf32>
      %289 = tpu.reciprocal %288 {approx = true} : vector<8x1xf32> -> vector<8x1xf32>
      %c0_194 = arith.constant 0 : index
      %c12_195 = arith.constant 12 : index
      %290 = vector.load %arg12[%c0_194, %c12_195] : memref<8x32xf32, #tpu.memory_space<vmem>>, vector<8x4xf32>
      %291 = vector.broadcast %289 : vector<8x1xf32> to vector<8x4xf32>
      %292 = arith.mulf %290, %291 : vector<8x4xf32>
      %c0_196 = arith.constant 0 : index
      %c12_197 = arith.constant 12 : index
      %293 = vector.load %arg12[%c0_196, %c12_197] : memref<8x32xf32, #tpu.memory_space<vmem>>, vector<8x4xf32>
      tpu.vector_store %arg12[%c0_196, %c12_197], %292 {strides = array<i32>} : memref<8x32xf32, #tpu.memory_space<vmem>>, vector<8x4xf32>,
      %c4_198 = arith.constant 4 : index
      %c0_199 = arith.constant 0 : index
      %c0_200 = arith.constant 0 : index
      %294 = vector.load %arg11[%c4_198, %c0_199, %c0_200] : memref<8x8x1xf32, #tpu.memory_space<vmem>>, vector<1x8x1xf32>
      %295 = vector.shape_cast %294 : vector<1x8x1xf32> to vector<8x1xf32>
      %296 = tpu.reciprocal %295 {approx = true} : vector<8x1xf32> -> vector<8x1xf32>
      %c0_201 = arith.constant 0 : index
      %c16_202 = arith.constant 16 : index
      %297 = vector.load %arg12[%c0_201, %c16_202] : memref<8x32xf32, #tpu.memory_space<vmem>>, vector<8x4xf32>
      %298 = vector.broadcast %296 : vector<8x1xf32> to vector<8x4xf32>
      %299 = arith.mulf %297, %298 : vector<8x4xf32>
      %c0_203 = arith.constant 0 : index
      %c16_204 = arith.constant 16 : index
      %300 = vector.load %arg12[%c0_203, %c16_204] : memref<8x32xf32, #tpu.memory_space<vmem>>, vector<8x4xf32>
      tpu.vector_store %arg12[%c0_203, %c16_204], %299 {strides = array<i32>} : memref<8x32xf32, #tpu.memory_space<vmem>>, vector<8x4xf32>,
      %c5_205 = arith.constant 5 : index
      %c0_206 = arith.constant 0 : index
      %c0_207 = arith.constant 0 : index
      %301 = vector.load %arg11[%c5_205, %c0_206, %c0_207] : memref<8x8x1xf32, #tpu.memory_space<vmem>>, vector<1x8x1xf32>
      %302 = vector.shape_cast %301 : vector<1x8x1xf32> to vector<8x1xf32>
      %303 = tpu.reciprocal %302 {approx = true} : vector<8x1xf32> -> vector<8x1xf32>
      %c0_208 = arith.constant 0 : index
      %c20_209 = arith.constant 20 : index
      %304 = vector.load %arg12[%c0_208, %c20_209] : memref<8x32xf32, #tpu.memory_space<vmem>>, vector<8x4xf32>
      %305 = vector.broadcast %303 : vector<8x1xf32> to vector<8x4xf32>
      %306 = arith.mulf %304, %305 : vector<8x4xf32>
      %c0_210 = arith.constant 0 : index
      %c20_211 = arith.constant 20 : index
      %307 = vector.load %arg12[%c0_210, %c20_211] : memref<8x32xf32, #tpu.memory_space<vmem>>, vector<8x4xf32>
      tpu.vector_store %arg12[%c0_210, %c20_211], %306 {strides = array<i32>} : memref<8x32xf32, #tpu.memory_space<vmem>>, vector<8x4xf32>,
      %c6_212 = arith.constant 6 : index
      %c0_213 = arith.constant 0 : index
      %c0_214 = arith.constant 0 : index
      %308 = vector.load %arg11[%c6_212, %c0_213, %c0_214] : memref<8x8x1xf32, #tpu.memory_space<vmem>>, vector<1x8x1xf32>
      %309 = vector.shape_cast %308 : vector<1x8x1xf32> to vector<8x1xf32>
      %310 = tpu.reciprocal %309 {approx = true} : vector<8x1xf32> -> vector<8x1xf32>
      %c0_215 = arith.constant 0 : index
      %c24_216 = arith.constant 24 : index
      %311 = vector.load %arg12[%c0_215, %c24_216] : memref<8x32xf32, #tpu.memory_space<vmem>>, vector<8x4xf32>
      %312 = vector.broadcast %310 : vector<8x1xf32> to vector<8x4xf32>
      %313 = arith.mulf %311, %312 : vector<8x4xf32>
      %c0_217 = arith.constant 0 : index
      %c24_218 = arith.constant 24 : index
      %314 = vector.load %arg12[%c0_217, %c24_218] : memref<8x32xf32, #tpu.memory_space<vmem>>, vector<8x4xf32>
      tpu.vector_store %arg12[%c0_217, %c24_218], %313 {strides = array<i32>} : memref<8x32xf32, #tpu.memory_space<vmem>>, vector<8x4xf32>,
      %c7_219 = arith.constant 7 : index
      %c0_220 = arith.constant 0 : index
      %c0_221 = arith.constant 0 : index
      %315 = vector.load %arg11[%c7_219, %c0_220, %c0_221] : memref<8x8x1xf32, #tpu.memory_space<vmem>>, vector<1x8x1xf32>
      %316 = vector.shape_cast %315 : vector<1x8x1xf32> to vector<8x1xf32>
      %317 = tpu.reciprocal %316 {approx = true} : vector<8x1xf32> -> vector<8x1xf32>
      %c0_222 = arith.constant 0 : index
      %c28_223 = arith.constant 28 : index
      %318 = vector.load %arg12[%c0_222, %c28_223] : memref<8x32xf32, #tpu.memory_space<vmem>>, vector<8x4xf32>
      %319 = vector.broadcast %317 : vector<8x1xf32> to vector<8x4xf32>
      %320 = arith.mulf %318, %319 : vector<8x4xf32>
      %c0_224 = arith.constant 0 : index
      %c28_225 = arith.constant 28 : index
      %321 = vector.load %arg12[%c0_224, %c28_225] : memref<8x32xf32, #tpu.memory_space<vmem>>, vector<8x4xf32>
      tpu.vector_store %arg12[%c0_224, %c28_225], %320 {strides = array<i32>} : memref<8x32xf32, #tpu.memory_space<vmem>>, vector<8x4xf32>,
      %c0_226 = arith.constant 0 : index
      %c0_227 = arith.constant 0 : index
      %322 = vector.load %arg12[%c0_226, %c0_227] : memref<8x32xf32, #tpu.memory_space<vmem>>, vector<8x32xf32>
      %c0_228 = arith.constant 0 : index
      %c0_229 = arith.constant 0 : index
      %323 = vector.load %arg7[%c0_228, %c0_229] : memref<32x32xf32, #tpu.memory_space<vmem>>, vector<32x32xf32>
      %cst_230 = arith.constant dense<0.000000e+00> : vector<8x32xf32>
      %324 = tpu.matmul %322, %323, %cst_230 {dimension_numbers = #tpu.dot_dimension_numbers<[1], [0], [0], [1], [0, 0, 1, 1], [], []>} : vector<8x32xf32>, vector<32x32xf32>, vector<8x32xf32> -> vector<8x32xf32>
      %c0_231 = arith.constant 0 : index
      %c0_232 = arith.constant 0 : index
      %c0_233 = arith.constant 0 : index
      %325 = vector.load %arg8[%c0_231, %c0_232, %c0_233] : memref<1x8x32xf32, #tpu.memory_space<vmem>>, vector<1x8x32xf32>
      %326 = vector.shape_cast %325 : vector<1x8x32xf32> to vector<8x32xf32>
      %327 = vector.shape_cast %324 : vector<8x32xf32> to vector<1x8x32xf32>
      tpu.vector_store %arg8[%c0_231, %c0_232, %c0_233], %327 {strides = array<i32>} : memref<1x8x32xf32, #tpu.memory_space<vmem>>, vector<1x8x32xf32>,
    } else {
    }
    return
  }
  func.func @transform_0(%arg0: i32, %arg1: i32, %arg2: i32) -> (i32, i32, i32) {
    %c0_i32 = arith.constant 0 : i32
    %c0_i32_0 = arith.constant 0 : i32
    return %arg0, %arg1, %c0_i32 : i32, i32, i32
  }
  func.func @transform_1(%arg0: i32, %arg1: i32, %arg2: i32) -> (i32, i32, i32) {
    %c0_i32 = arith.constant 0 : i32
    %c0_i32_0 = arith.constant 0 : i32
    return %arg0, %arg2, %c0_i32 : i32, i32, i32
  }
  func.func @transform_2(%arg0: i32, %arg1: i32, %arg2: i32) -> (i32, i32) {
    %c0_i32 = arith.constant 0 : i32
    %c0_i32_0 = arith.constant 0 : i32
    %c0_i32_1 = arith.constant 0 : i32
    return %c0_i32, %c0_i32_0 : i32, i32
  }
  func.func @transform_3(%arg0: i32, %arg1: i32, %arg2: i32) -> (i32, i32) {
    %c0_i32 = arith.constant 0 : i32
    %c0_i32_0 = arith.constant 0 : i32
    %c0_i32_1 = arith.constant 0 : i32
    return %c0_i32, %c0_i32_0 : i32, i32
  }
  func.func @transform_4(%arg0: i32, %arg1: i32, %arg2: i32) -> (i32, i32) {
    %c0_i32 = arith.constant 0 : i32
    %c0_i32_0 = arith.constant 0 : i32
    %c0_i32_1 = arith.constant 0 : i32
    return %c0_i32, %c0_i32_0 : i32, i32
  }
  func.func @transform_5(%arg0: i32, %arg1: i32, %arg2: i32) -> (i32, i32, i32) {
    %c0_i32 = arith.constant 0 : i32
    %c0_i32_0 = arith.constant 0 : i32
    return %arg0, %arg1, %c0_i32 : i32, i32, i32
  }
}

</mosaic_0001>

<llo_original>
// kernel: tpu_custom_call.1
$region0: #{tpu_custom_call.1}
  #allocation0 [shape = 'u32[]', space=smem, size = 0x4, offset = 0x4, fixed_abs, tag = 'smem constant byte address 0x4 - core index']
  #allocation1 [shape = 'u32[144,128]{1,0:T(1,128)}', space=vmem, size = 0x12000, scoped, tag = 'internal scratch']
  #allocation2 [shape = 'f32[8,32]{1,0:T(8,128)}', space=vmem, size = 0x1000, scoped, tag = 'scratch operand']
  #allocation3 [shape = 'f32[8,8,1]{2,1,0:T(8,128)}', space=vmem, size = 0x8000, scoped, tag = 'scratch operand']
  #allocation4 [shape = 'f32[8,8,1]{2,1,0:T(8,128)}', space=vmem, size = 0x8000, scoped, tag = 'scratch operand']
  #allocation5 [shape = 'f32[8,32]{1,0:T(8,128)}', space=vmem, size = 0x1000, scoped, tag = 'scratch operand']
  %s0 = inlined_call_operand.hbm [shape: f32[2,8,32], index: 0, kind: input, shape index: {}]
  %s1 = inlined_call_operand.hbm [shape: f32[2,8,32], index: 1, kind: input, shape index: {}]
  %s2 = inlined_call_operand.hbm [shape: f32[32,32], index: 2, kind: input, shape index: {}]
  %s3 = inlined_call_operand.hbm [shape: f32[32,64], index: 3, kind: input, shape index: {}]
  %s4 = inlined_call_operand.hbm [shape: f32[32,32], index: 4, kind: input, shape index: {}]
  %s5 = inlined_call_operand.hbm [shape: f32[2,8,32], index: 5, kind: output, shape index: {}]
  %s6 = sld [smem:[#allocation0]]
  $region81: #{tpu_custom_call.1} parent=0
    _
  %s8 = ssub.s32 1, %s6
  %s9 = scalar_select 0, %s8, %s6
  $region1: #{tpu_custom_call.1} parent=0
    #allocation6 [shape = 'u8[8192]{0}', space=vmem, size = 0x2000, scoped, tag = 'input window, operand 0']
    #allocation7 [shape = 's32[2]{0}', space=sflag, size = 0x8, scoped, tag = 'scoped memory for tpu_custom_call.1']
    #allocation8 [shape = 's32[2]{0}', space=sflag, size = 0x8, scoped, tag = 'scoped memory for tpu_custom_call.1']
    #allocation9 [shape = 'u8[8192]{0}', space=vmem, size = 0x2000, scoped, tag = 'input window, operand 1']
    #allocation10 [shape = 's32[2]{0}', space=sflag, size = 0x8, scoped, tag = 'scoped memory for tpu_custom_call.1']
    #allocation11 [shape = 'u8[16384]{0}', space=vmem, size = 0x4000, scoped, tag = 'input window, operand 2, single buffered']
    #allocation12 [shape = 'u8[16384]{0}', space=vmem, size = 0x4000, scoped, tag = 'input window, operand 3, single buffered']
    #allocation13 [shape = 's32[1]{0}', space=sflag, size = 0x4, scoped, tag = 'scoped memory for tpu_custom_call.1']
    #allocation14 [shape = 'u8[16384]{0}', space=vmem, size = 0x4000, scoped, tag = 'input window, operand 4, single buffered']
    #allocation15 [shape = 'u8[8192]{0}', space=vmem, size = 0x2000, scoped, tag = 'output window, operand 0']
    %10 = vsyncpa [#allocation7], 0
    %s11 = scalar_lea.sflag [#allocation7], 1
    %12 = vsyncpa %s11, 0
    %13 = vsyncpa [#allocation10], 0
    %s14 = scalar_lea.sflag [#allocation10], 1
    %15 = vsyncpa %s14, 0
    %16 = vsyncpa [#allocation13], 0
    %17 = vsyncpa [#allocation8], 0
    %s18 = scalar_lea.sflag [#allocation8], 1
    %19 = vsyncpa %s18, 0
    loop: start=0, step=1, limit=4
    $region2: #{tpu_custom_call.1} parent=1 // loop_pre_header
      _
    $region3: #{tpu_custom_call.1} parent=1 // loop_header
      %s21 = sphi 0, %s25
      %p22 = scmp.ge.s32.totalorder %s21, 4
      %s28 = sphi 0, %s47
      %s29 = sphi 0, %s43
      %s30 = sphi 0, %s39
      %s31 = sphi 0, %s28
      %s32 = sphi 0, %s29
      %s33 = sphi 0, %s30
      %s34 = sphi 0, %s31
      %s35 = sphi 0, %s32
      %s36 = sphi 0, %s33
      %s52 = sphi 0, %s54
      %s55 = sphi 0, %s52
      %s56 = sphi 0, %s55
      %s72 = sphi 0, %s56
      %s80 = sphi 0, %s82
      %s83 = sphi 0, %s80
      %s84 = sphi 0, %s83
      %s100 = sphi 0, %s84
      %s104 = sphi 0, %s104
      %s106 = sphi 0, %s104
      %s107 = sphi 0, %s106
      %s121 = sphi 0, %s107
      %s125 = sphi 0, %s125
      %s127 = sphi 0, %s125
      %s128 = sphi 0, %s127
      %s142 = sphi 0, %s128
      %s146 = sphi 0, %s146
      %s148 = sphi 0, %s146
      %s149 = sphi 0, %s148
      %s163 = sphi 0, %s149
      %s171 = sphi 0, %s173
      %s174 = sphi 0, %s171
      %s175 = sphi 0, %s174
      %s191 = sphi 0, %s175
    $region4: #{tpu_custom_call.1} parent=1 // loop_header_branch
      %24 = sbr.rel (%p22) target = $region8
    $region5: #{tpu_custom_call.1} parent=1 // loop_body
      %s26 = ssub.s32 %s21, 1
      %s27 = ssub.s32 %s21, 2
      %s37 = sadd.s32 1, %s30
      %p38 = scmp.ge.s32.totalorder %s37, 1
      %s39 = scalar_select %p38, 0, %s37
      %s40 = sadd.s32 1, %s29
      %s41 = scalar_select %p38, %s40, %s29
      %p42 = scmp.ge.s32.totalorder %s41, 1
      %s43 = scalar_select %p42, 0, %s41
      %s44 = sadd.s32 1, %s28
      %s45 = scalar_select %p42, %s44, %s28
      %p46 = scmp.ge.s32.totalorder %s45, 2
      %s47 = scalar_select %p46, 0, %s45
      %s48 = ssub.s32 %s28, %s47
      %s49 = ssub.s32 %s29, %s43
      %s50 = sor.u32 %s48, %s49
      %p51 = scmp.eq.s32.totalorder %s50, 0
      %s53 = sadd.s32 %s52, 1
      %s54 = scalar_select %p51, %s52, %s53
      %p57 = pneg %p51
      %p58 = scmp.eq.s32.totalorder %s21, 1
      %p59 = por %p57, %p58
      %p60 = scmp.ne.s32.totalorder %s52, %s55
      %p61 = scmp.eq.s32.totalorder %s21, 0
      %p62 = por %p60, %p61
      %p63 = scmp.ne.s32.totalorder %s52, %s55
      %p64 = scmp.eq.s32.totalorder %s26, 1
      %p65 = por %p63, %p64
      %p66 = scmp.ne.s32.totalorder %s55, %s56
      %p67 = scmp.eq.s32.totalorder %s26, 0
      %p68 = por %p66, %p67
      %p69 = scmp.ne.s32.totalorder %s55, %s56
      %p70 = scmp.eq.s32.totalorder %s27, 1
      %p71 = por %p69, %p70
      %p73 = scmp.ne.s32.totalorder %s56, %s72
      %p74 = scmp.eq.s32.totalorder %s27, 0
      %p75 = por %p73, %p74
      %s76 = ssub.s32 %s28, %s47
      %s77 = ssub.s32 %s30, %s39
      %s78 = sor.u32 %s76, %s77
      %p79 = scmp.eq.s32.totalorder %s78, 0
      %s81 = sadd.s32 %s80, 1
      %s82 = scalar_select %p79, %s80, %s81
      %p85 = pneg %p79
      %p86 = scmp.eq.s32.totalorder %s21, 1
      %p87 = por %p85, %p86
      %p88 = scmp.ne.s32.totalorder %s80, %s83
      %p89 = scmp.eq.s32.totalorder %s21, 0
      %p90 = por %p88, %p89
      %p91 = scmp.ne.s32.totalorder %s80, %s83
      %p92 = scmp.eq.s32.totalorder %s26, 1
      %p93 = por %p91, %p92
      %p94 = scmp.ne.s32.totalorder %s83, %s84
      %p95 = scmp.eq.s32.totalorder %s26, 0
      %p96 = por %p94, %p95
      %p97 = scmp.ne.s32.totalorder %s83, %s84
      %p98 = scmp.eq.s32.totalorder %s27, 1
      %p99 = por %p97, %p98
      %p101 = scmp.ne.s32.totalorder %s84, %s100
      %p102 = scmp.eq.s32.totalorder %s27, 0
      %p103 = por %p101, %p102
      %s105 = sadd.s32 %s104, 1
      %p108 = scmp.eq.s32.totalorder %s21, 1
      %p109 = scmp.ne.s32.totalorder %s104, %s106
      %p110 = scmp.eq.s32.totalorder %s21, 0
      %p111 = por %p109, %p110
      %p112 = scmp.ne.s32.totalorder %s104, %s106
      %p113 = scmp.eq.s32.totalorder %s26, 1
      %p114 = por %p112, %p113
      %p115 = scmp.ne.s32.totalorder %s106, %s107
      %p116 = scmp.eq.s32.totalorder %s26, 0
      %p117 = por %p115, %p116
      %p118 = scmp.ne.s32.totalorder %s106, %s107
      %p119 = scmp.eq.s32.totalorder %s27, 1
      %p120 = por %p118, %p119
      %p122 = scmp.ne.s32.totalorder %s107, %s121
      %p123 = scmp.eq.s32.totalorder %s27, 0
      %p124 = por %p122, %p123
      %s126 = sadd.s32 %s125, 1
      %p129 = scmp.eq.s32.totalorder %s21, 1
      %p130 = scmp.ne.s32.totalorder %s125, %s127
      %p131 = scmp.eq.s32.totalorder %s21, 0
      %p132 = por %p130, %p131
      %p133 = scmp.ne.s32.totalorder %s125, %s127
      %p134 = scmp.eq.s32.totalorder %s26, 1
      %p135 = por %p133, %p134
      %p136 = scmp.ne.s32.totalorder %s127, %s128
      %p137 = scmp.eq.s32.totalorder %s26, 0
      %p138 = por %p136, %p137
      %p139 = scmp.ne.s32.totalorder %s127, %s128
      %p140 = scmp.eq.s32.totalorder %s27, 1
      %p141 = por %p139, %p140
      %p143 = scmp.ne.s32.totalorder %s128, %s142
      %p144 = scmp.eq.s32.totalorder %s27, 0
      %p145 = por %p143, %p144
      %s147 = sadd.s32 %s146, 1
      %p150 = scmp.eq.s32.totalorder %s21, 1
      %p151 = scmp.ne.s32.totalorder %s146, %s148
      %p152 = scmp.eq.s32.totalorder %s21, 0
      %p153 = por %p151, %p152
      %p154 = scmp.ne.s32.totalorder %s146, %s148
      %p155 = scmp.eq.s32.totalorder %s26, 1
      %p156 = por %p154, %p155
      %p157 = scmp.ne.s32.totalorder %s148, %s149
      %p158 = scmp.eq.s32.totalorder %s26, 0
      %p159 = por %p157, %p158
      %p160 = scmp.ne.s32.totalorder %s148, %s149
      %p161 = scmp.eq.s32.totalorder %s27, 1
      %p162 = por %p160, %p161
      %p164 = scmp.ne.s32.totalorder %s149, %s163
      %p165 = scmp.eq.s32.totalorder %s27, 0
      %p166 = por %p164, %p165
      %s167 = ssub.s32 %s28, %s47
      %s168 = ssub.s32 %s29, %s43
      %s169 = sor.u32 %s167, %s168
      %p170 = scmp.eq.s32.totalorder %s169, 0
      %s172 = sadd.s32 %s171, 1
      %s173 = scalar_select %p170, %s171, %s172
      %p176 = pneg %p170
      %p177 = scmp.eq.s32.totalorder %s21, 1
      %p178 = por %p176, %p177
      %p179 = scmp.ne.s32.totalorder %s171, %s174
      %p180 = scmp.eq.s32.totalorder %s21, 0
      %p181 = por %p179, %p180
      %p182 = scmp.ne.s32.totalorder %s171, %s174
      %p183 = scmp.eq.s32.totalorder %s26, 1
      %p184 = por %p182, %p183
      %p185 = scmp.ne.s32.totalorder %s174, %s175
      %p186 = scmp.eq.s32.totalorder %s26, 0
      %p187 = por %p185, %p186
      %p188 = scmp.ne.s32.totalorder %s174, %s175
      %p189 = scmp.eq.s32.totalorder %s27, 1
      %p190 = por %p188, %p189
      %p192 = scmp.ne.s32.totalorder %s175, %s191
      %p193 = scmp.eq.s32.totalorder %s27, 0
      %p194 = por %p192, %p193
      %p195 = scmp.le.s32.totalorder 1, %s21
      %p196 = scmp.lt.s32.totalorder %s21, 3
      %p197 = pnand %p195, %p196
      %p198 = pneg %p197
      // Predicated region
      $region9: #{tpu_custom_call.1} parent=5 // pred_check
        _
      $region10: #{tpu_custom_call.1} parent=5 // pred_check_branch
        %200 = sbr.rel (%p197) target = $region12
      $region11: #{tpu_custom_call.1} parent=5 // pred_region
        %s201 = ssub.s32 %s21, 1
        // Predicated region
        $region13: #{tpu_custom_call.1} parent=11 // pred_check
          %p202 = pneg %p117
        $region14: #{tpu_custom_call.1} parent=11 // pred_check_branch
          %204 = sbr.rel (%p202) target = $region16
        $region15: #{tpu_custom_call.1} parent=11 // pred_region
          %s206 = ssub.s32 512, 512
          %207 = vsyncadd [#allocation10], %s206
          %s208 = sshll.u32 [#allocation11], 4
          %s209 = int_to_ptr.vmem [resolvable:$true] %s208
          %214 = dma.hbm_to_vmem [thread:$0]  %s2, 512, %s209, [#allocation10], 128, 128, 8
        $region16: #{tpu_custom_call.1} parent=11 // pred_fallthru
          _
        // Predicated region
        $region17: #{tpu_custom_call.1} parent=11 // pred_check
          %p215 = pneg %p138
        $region18: #{tpu_custom_call.1} parent=11 // pred_check_branch
          %217 = sbr.rel (%p215) target = $region20
        $region19: #{tpu_custom_call.1} parent=11 // pred_region
          %s219 = ssub.s32 512, 512
          %220 = vsyncadd [#allocation13], %s219
          %s221 = sshll.u32 [#allocation12], 4
          %s222 = int_to_ptr.vmem [resolvable:$true] %s221
          %227 = dma.hbm_to_vmem [thread:$0]  %s3, 512, %s222, [#allocation13], 128, 128, 8
        $region20: #{tpu_custom_call.1} parent=11 // pred_fallthru
          _
        // Predicated region
        $region21: #{tpu_custom_call.1} parent=11 // pred_check
          %p228 = pneg %p159
        $region22: #{tpu_custom_call.1} parent=11 // pred_check_branch
          %230 = sbr.rel (%p228) target = $region24
        $region23: #{tpu_custom_call.1} parent=11 // pred_region
          %s232 = ssub.s32 512, 512
          %233 = vsyncadd [#allocation13], %s232
          %s234 = sshll.u32 [#allocation14], 4
          %s235 = int_to_ptr.vmem [resolvable:$true] %s234
          %240 = dma.hbm_to_vmem [thread:$0]  %s4, 512, %s235, [#allocation13], 128, 128, 8
        $region24: #{tpu_custom_call.1} parent=11 // pred_fallthru
          _
      $region12: #{tpu_custom_call.1} parent=5 // pred_fallthru
        _
      %p241 = scmp.lt.s32.totalorder %s21, 2
      // Predicated region
      $region25: #{tpu_custom_call.1} parent=5 // pred_check
        %p242 = pneg %p241
      $region26: #{tpu_custom_call.1} parent=5 // pred_check_branch
        %244 = sbr.rel (%p242) target = $region28
      $region27: #{tpu_custom_call.1} parent=5 // pred_region
        // Predicated region
        $region29: #{tpu_custom_call.1} parent=27 // pred_check
          %p245 = pneg %p62
        $region30: #{tpu_custom_call.1} parent=27 // pred_check_branch
          %247 = sbr.rel (%p245) target = $region32
        $region31: #{tpu_custom_call.1} parent=27 // pred_region
          %s248 = sand.u32 %s52, 1
          %s249 = scalar_lea.sflag [#allocation7], %s248
          %s250 = sand.u32 %s52, 1
          %s251 = smul.addr %s250, 8
          %s252 = scalar_lea.vmem [#allocation6], %s251
          %s254 = ssub.s32 128, 128
          %255 = vsyncadd %s249, %s254
          %s256 = sadd.s32 %s29, %s28
          %s257 = smul.addr %s256, 128
          %s258 = scalar_lea.hbm %s0, %s257
          %s260 = sshll.u32 %s252, 4
          %s261 = int_to_ptr.vmem [resolvable:$true] %s260
          %263 = dma.hbm_to_vmem [thread:$0]  %s258, 128, %s261, %s249
        $region32: #{tpu_custom_call.1} parent=27 // pred_fallthru
          _
        // Predicated region
        $region33: #{tpu_custom_call.1} parent=27 // pred_check
          %p264 = pneg %p90
        $region34: #{tpu_custom_call.1} parent=27 // pred_check_branch
          %266 = sbr.rel (%p264) target = $region36
        $region35: #{tpu_custom_call.1} parent=27 // pred_region
          %s267 = sand.u32 %s21, 1
          %s268 = scalar_lea.sflag [#allocation10], %s267
          %s269 = sand.u32 %s80, 1
          %s270 = smul.addr %s269, 8
          %s271 = scalar_lea.vmem [#allocation9], %s270
          %s273 = ssub.s32 128, 128
          %274 = vsyncadd %s268, %s273
          %s275 = sadd.s32 %s30, %s28
          %s276 = smul.addr %s275, 128
          %s277 = scalar_lea.hbm %s1, %s276
          %s279 = sshll.u32 %s271, 4
          %s280 = int_to_ptr.vmem [resolvable:$true] %s279
          %282 = dma.hbm_to_vmem [thread:$0]  %s277, 128, %s280, %s268
        $region36: #{tpu_custom_call.1} parent=27 // pred_fallthru
          _
      $region28: #{tpu_custom_call.1} parent=5 // pred_fallthru
        _
      %p283 = scmp.le.s32.totalorder 1, %s21
      %p284 = scmp.lt.s32.totalorder %s21, 3
      %p285 = pnand %p283, %p284
      %p286 = pneg %p285
      // Predicated region
      $region37: #{tpu_custom_call.1} parent=5 // pred_check
        _
      $region38: #{tpu_custom_call.1} parent=5 // pred_check_branch
        %288 = sbr.rel (%p285) target = $region40
      $region39: #{tpu_custom_call.1} parent=5 // pred_region
        %s289 = ssub.s32 %s21, 1
        %s290 = sand.u32 %s55, 1
        %s291 = scalar_lea.sflag [#allocation7], %s290
        %s292 = sand.u32 %s55, 1
        %s293 = smul.addr %s292, 8
        %s294 = scalar_lea.vmem [#allocation6], %s293
        // Predicated region
        $region41: #{tpu_custom_call.1} parent=39 // pred_check
          %p295 = pneg %p68
        $region42: #{tpu_custom_call.1} parent=39 // pred_check_branch
          %297 = sbr.rel (%p295) target = $region44
        $region43: #{tpu_custom_call.1} parent=39 // pred_region
          %298 = dma.done %s291, 128
        $region44: #{tpu_custom_call.1} parent=39 // pred_fallthru
          _
        %s299 = sand.u32 %s26, 1
        %s300 = scalar_lea.sflag [#allocation10], %s299
        %s301 = sand.u32 %s83, 1
        %s302 = smul.addr %s301, 8
        %s303 = scalar_lea.vmem [#allocation9], %s302
        // Predicated region
        $region45: #{tpu_custom_call.1} parent=39 // pred_check
          %p304 = pneg %p96
        $region46: #{tpu_custom_call.1} parent=39 // pred_check_branch
          %306 = sbr.rel (%p304) target = $region48
        $region47: #{tpu_custom_call.1} parent=39 // pred_region
          %307 = dma.done %s300, 128
        $region48: #{tpu_custom_call.1} parent=39 // pred_fallthru
          _
        // Predicated region
        $region49: #{tpu_custom_call.1} parent=39 // pred_check
          %p308 = pneg %p117
        $region50: #{tpu_custom_call.1} parent=39 // pred_check_branch
          %310 = sbr.rel (%p308) target = $region52
        $region51: #{tpu_custom_call.1} parent=39 // pred_region
          %311 = dma.done [#allocation10], 512
        $region52: #{tpu_custom_call.1} parent=39 // pred_fallthru
          _
        // Predicated region
        $region53: #{tpu_custom_call.1} parent=39 // pred_check
          %p312 = pneg %p138
        $region54: #{tpu_custom_call.1} parent=39 // pred_check_branch
          %314 = sbr.rel (%p312) target = $region56
        $region55: #{tpu_custom_call.1} parent=39 // pred_region
          %315 = dma.done [#allocation13], 512
        $region56: #{tpu_custom_call.1} parent=39 // pred_fallthru
          _
        // Predicated region
        $region57: #{tpu_custom_call.1} parent=39 // pred_check
          %p316 = pneg %p159
        $region58: #{tpu_custom_call.1} parent=39 // pred_check_branch
          %318 = sbr.rel (%p316) target = $region60
        $region59: #{tpu_custom_call.1} parent=39 // pred_region
          %319 = dma.done [#allocation13], 512
        $region60: #{tpu_custom_call.1} parent=39 // pred_fallthru
          _
        %s320 = sand.u32 %s55, 1
        %s321 = scalar_lea.sflag [#allocation7], %s320
        %s322 = sand.u32 %s55, 1
        %s323 = smul.addr %s322, 8
        %s324 = scalar_lea.vmem [#allocation6], %s323
        %p325 = pneg %p68
        %p326 = pneg %p65
        %s327 = sand.u32 %s26, 1
        %s328 = scalar_lea.sflag [#allocation10], %s327
        %s329 = sand.u32 %s83, 1
        %s330 = smul.addr %s329, 8
        %s331 = scalar_lea.vmem [#allocation9], %s330
        %p332 = pneg %p96
        %p333 = pneg %p93
        %p334 = pneg %p117
        %p335 = pneg %p114
        %p336 = pneg %p138
        %p337 = pneg %p135
        %p338 = pneg %p159
        %p339 = pneg %p156
        %p340 = pneg %p187
        %p341 = pneg %p184
        %s342 = sand.u32 %s174, 1
        %s343 = scalar_lea.sflag [#allocation8], %s342
        %s344 = sand.u32 %s174, 1
        %s345 = smul.addr %s344, 8
        %s346 = scalar_lea.vmem [#allocation15], %s345
        %p347 = scmp.eq.s32.totalorder %s33, 0
        // Predicated region
        $region61: #{tpu_custom_call.1} parent=39 // pred_check
          %p348 = pneg %p347
        $region62: #{tpu_custom_call.1} parent=39 // pred_check_branch
          %350 = sbr.rel (%p348) target = $region64
        $region63: #{tpu_custom_call.1} parent=39 // pred_region
          %v351 = vld [vmem:[%s294] sm:$0xff]
          %v352 = vld [vmem:[#allocation11] sm:$0xff]
          %v353 = vld [vmem:[#allocation11 + $0x8] sm:$0xff]
          %v354 = vld [vmem:[#allocation11 + $0x10] sm:$0xff]
          %v355 = vld [vmem:[#allocation11 + $0x18] sm:$0xff]
          %vm356 = vcmask 261120
          %v358 = vsel %vm356, %v351, 0
          %360 = vmatprep.subr.mxu0 0.0
          %361 = vmatpush1.msra.mxu0 %v352
          %362 = vmatprep.subr.mxu0 0.0
          %363 = vmatpush1.msra.mxu0 %v353
          %364 = vmatprep.subr.mxu0 0.0
          %365 = vmatpush1.msra.mxu0 %v354
          %366 = vmatprep.subr.mxu0 0.0
          %367 = vmatpush1.msra.mxu0 %v355
          %368 = vmatprep.subr.mxu0 0.0
          %369 = vmatpush1.msra.mxu0 0.0
          %370 = vmatprep.subr.mxu0 0.0
          %371 = vmatpush1.msra.mxu0 0.0
          %372 = vmatprep.subr.mxu0 0.0
          %373 = vmatpush1.msra.mxu0 0.0
          %374 = vmatprep.subr.mxu0 0.0
          %375 = vmatpush1.msra.mxu0 0.0
          %376 = vmatprep.subr.mxu0 0.0
          %377 = vmatpush1.msra.mxu0 0.0
          %378 = vmatprep.subr.mxu0 0.0
          %379 = vmatpush1.msra.mxu0 0.0
          %380 = vmatprep.subr.mxu0 0.0
          %381 = vmatpush1.msra.mxu0 0.0
          %382 = vmatprep.subr.mxu0 0.0
          %383 = vmatpush1.msra.mxu0 0.0
          %384 = vmatprep.subr.mxu0 0.0
          %385 = vmatpush1.msra.mxu0 0.0
          %386 = vmatprep.subr.mxu0 0.0
          %387 = vmatpush1.msra.mxu0 0.0
          %388 = vmatprep.subr.mxu0 0.0
          %389 = vmatpush1.msra.mxu0 0.0
          %390 = vmatprep.subr.mxu0 0.0
          %391 = vmatpush1.msra.mxu0 0.0
          %392 = vmatprep.subr.mxu0 0.0
          %393 = vmatpush1.msra.mxu0 0.0
          %394 = vmatprep.subr.mxu0 0.0
          %395 = vmatpush1.msra.mxu0 0.0
          %396 = vmatprep.subr.mxu0 0.0
          %397 = vmatpush1.msra.mxu0 0.0
          %398 = vmatprep.subr.mxu0 0.0
          %399 = vmatpush1.msra.mxu0 0.0
          %400 = vmatprep.subr.mxu0 0.0
          %401 = vmatpush1.msra.mxu0 0.0
          %402 = vmatprep.subr.mxu0 0.0
          %403 = vmatpush1.msra.mxu0 0.0
          %404 = vmatprep.subr.mxu0 0.0
          %405 = vmatpush1.msra.mxu0 0.0
          %406 = vmatprep.subr.mxu0 0.0
          %407 = vmatpush1.msra.mxu0 0.0
          %408 = vmatprep.subr.mxu0 0.0
          %409 = vmatpush1.msra.mxu0 0.0
          %410 = vmatprep.subr.mxu0 0.0
          %411 = vmatpush1.msra.mxu0 0.0
          %412 = vmatprep.subr.mxu0 0.0
          %413 = vmatpush1.msra.mxu0 0.0
          %414 = vmatprep.subr.mxu0 0.0
          %415 = vmatpush1.msra.mxu0 0.0
          %416 = vmatprep.subr.mxu0 0.0
          %417 = vmatpush1.msra.mxu0 0.0
          %418 = vmatprep.subr.mxu0 0.0
          %419 = vmatpush1.msra.mxu0 0.0
          %420 = vmatprep.subr.mxu0 0.0
          %421 = vmatpush1.msra.mxu0 0.0
          %422 = vmatprep.subr.mxu0 0.0
          %423 = vmatpush1.msra.mxu0 0.0
          %424 = vmatprep.mubr.f32.mxu0 0.0
          %425 = vmatmul.mubr.f32.gmra.mrb[0].mxu0 %v358
          %v426 = vpop.f32.mrb[0].mxu0
          %v427 = vadd.f32 0.0, %v426
          %v428 = vpop.f32.mrb[0].mxu0
          %429 = vdwg.mxu0
          %430 = vst.msk [vmem:[#allocation2] sm:$0xff] %vm356, %v427
          %vm431 = vcmask 7168
          %432 = vst.msk [vmem:[#allocation3] sm:$0xff] %vm431, -inf
          %433 = vst.msk [vmem:[#allocation3 + $0x8] sm:$0xff] %vm431, -inf
          %434 = vst.msk [vmem:[#allocation3 + $0x10] sm:$0xff] %vm431, -inf
          %435 = vst.msk [vmem:[#allocation3 + $0x18] sm:$0xff] %vm431, -inf
          %436 = vst.msk [vmem:[#allocation3 + $0x20] sm:$0xff] %vm431, -inf
          %437 = vst.msk [vmem:[#allocation3 + $0x28] sm:$0xff] %vm431, -inf
          %438 = vst.msk [vmem:[#allocation3 + $0x30] sm:$0xff] %vm431, -inf
          %439 = vst.msk [vmem:[#allocation3 + $0x38] sm:$0xff] %vm431, -inf
          %440 = vst.msk [vmem:[#allocation4] sm:$0xff] %vm431, 0.0
          %441 = vst.msk [vmem:[#allocation4 + $0x8] sm:$0xff] %vm431, 0.0
          %442 = vst.msk [vmem:[#allocation4 + $0x10] sm:$0xff] %vm431, 0.0
          %443 = vst.msk [vmem:[#allocation4 + $0x18] sm:$0xff] %vm431, 0.0
          %444 = vst.msk [vmem:[#allocation4 + $0x20] sm:$0xff] %vm431, 0.0
          %445 = vst.msk [vmem:[#allocation4 + $0x28] sm:$0xff] %vm431, 0.0
          %446 = vst.msk [vmem:[#allocation4 + $0x30] sm:$0xff] %vm431, 0.0
          %447 = vst.msk [vmem:[#allocation4 + $0x38] sm:$0xff] %vm431, 0.0
          %448 = vst.msk [vmem:[#allocation5] sm:$0xff] %vm356, 0.0
        $region64: #{tpu_custom_call.1} parent=39 // pred_fallthru
          _
        %v449 = vld [vmem:[%s303] sm:$0xff]
        %v450 = vld [vmem:[#allocation12] sm:$0xff]
        %v451 = vld [vmem:[#allocation12 + $0x8] sm:$0xff]
        %v452 = vld [vmem:[#allocation12 + $0x10] sm:$0xff]
        %v453 = vld [vmem:[#allocation12 + $0x18] sm:$0xff]
        %vm454 = vcmask 261120
        %v456 = vsel %vm454, %v449, 0
        %458 = vmatprep.subr.mxu0 0.0
        %459 = vmatpush1.msra.mxu0 %v450
        %460 = vmatprep.subr.mxu0 0.0
        %461 = vmatpush1.msra.mxu0 %v451
        %462 = vmatprep.subr.mxu0 0.0
        %463 = vmatpush1.msra.mxu0 %v452
        %464 = vmatprep.subr.mxu0 0.0
        %465 = vmatpush1.msra.mxu0 %v453
        %466 = vmatprep.subr.mxu0 0.0
        %467 = vmatpush1.msra.mxu0 0.0
        %468 = vmatprep.subr.mxu0 0.0
        %469 = vmatpush1.msra.mxu0 0.0
        %470 = vmatprep.subr.mxu0 0.0
        %471 = vmatpush1.msra.mxu0 0.0
        %472 = vmatprep.subr.mxu0 0.0
        %473 = vmatpush1.msra.mxu0 0.0
        %474 = vmatprep.subr.mxu0 0.0
        %475 = vmatpush1.msra.mxu0 0.0
        %476 = vmatprep.subr.mxu0 0.0
        %477 = vmatpush1.msra.mxu0 0.0
        %478 = vmatprep.subr.mxu0 0.0
        %479 = vmatpush1.msra.mxu0 0.0
        %480 = vmatprep.subr.mxu0 0.0
        %481 = vmatpush1.msra.mxu0 0.0
        %482 = vmatprep.subr.mxu0 0.0
        %483 = vmatpush1.msra.mxu0 0.0
        %484 = vmatprep.subr.mxu0 0.0
        %485 = vmatpush1.msra.mxu0 0.0
        %486 = vmatprep.subr.mxu0 0.0
        %487 = vmatpush1.msra.mxu0 0.0
        %488 = vmatprep.subr.mxu0 0.0
        %489 = vmatpush1.msra.mxu0 0.0
        %490 = vmatprep.subr.mxu0 0.0
        %491 = vmatpush1.msra.mxu0 0.0
        %492 = vmatprep.subr.mxu0 0.0
        %493 = vmatpush1.msra.mxu0 0.0
        %494 = vmatprep.subr.mxu0 0.0
        %495 = vmatpush1.msra.mxu0 0.0
        %496 = vmatprep.subr.mxu0 0.0
        %497 = vmatpush1.msra.mxu0 0.0
        %498 = vmatprep.subr.mxu0 0.0
        %499 = vmatpush1.msra.mxu0 0.0
        %500 = vmatprep.subr.mxu0 0.0
        %501 = vmatpush1.msra.mxu0 0.0
        %502 = vmatprep.subr.mxu0 0.0
        %503 = vmatpush1.msra.mxu0 0.0
        %504 = vmatprep.subr.mxu0 0.0
        %505 = vmatpush1.msra.mxu0 0.0
        %506 = vmatprep.subr.mxu0 0.0
        %507 = vmatpush1.msra.mxu0 0.0
        %508 = vmatprep.subr.mxu0 0.0
        %509 = vmatpush1.msra.mxu0 0.0
        %510 = vmatprep.subr.mxu0 0.0
        %511 = vmatpush1.msra.mxu0 0.0
        %512 = vmatprep.subr.mxu0 0.0
        %513 = vmatpush1.msra.mxu0 0.0
        %514 = vmatprep.subr.mxu0 0.0
        %515 = vmatpush1.msra.mxu0 0.0
        %516 = vmatprep.subr.mxu0 0.0
        %517 = vmatpush1.msra.mxu0 0.0
        %518 = vmatprep.subr.mxu0 0.0
        %519 = vmatpush1.msra.mxu0 0.0
        %520 = vmatprep.subr.mxu0 0.0
        %521 = vmatpush1.msra.mxu0 0.0
        %522 = vmatprep.mubr.f32.mxu0 0.0
        %523 = vmatmul.mubr.f32.gmra.mrb[0].mxu0 %v456
        %v524 = vpop.f32.mrb[0].mxu0
        %v525 = vadd.f32 0.0, %v524
        %v526 = vpop.f32.mrb[0].mxu0
        %527 = vdwg.mxu0
        %v528 = vld [vmem:[#allocation2] sm:$0xff]
        %vm529 = vcmask 31744
        %v531 = vsel %vm529, %v528, 0
        %v534 = vsel %vm529, %v525, 0
        %536 = vmatprep.subr.mxu0 0.0
        %537 = vmatpush1.xpose.msra.mxu0 %v534
        %538 = vmatprep.subr.mxu0 0.0
        %539 = vmatpush1.xpose.msra.mxu0 0.0
        %540 = vmatprep.subr.mxu0 0.0
        %541 = vmatpush1.xpose.msra.mxu0 0.0
        %542 = vmatprep.subr.mxu0 0.0
        %543 = vmatpush1.xpose.msra.mxu0 0.0
        %544 = vmatprep.subr.mxu0 0.0
        %545 = vmatpush1.xpose.msra.mxu0 0.0
        %546 = vmatprep.subr.mxu0 0.0
        %547 = vmatpush1.xpose.msra.mxu0 0.0
        %548 = vmatprep.subr.mxu0 0.0
        %549 = vmatpush1.xpose.msra.mxu0 0.0
        %550 = vmatprep.subr.mxu0 0.0
        %551 = vmatpush1.xpose.msra.mxu0 0.0
        %552 = vmatprep.subr.mxu0 0.0
        %553 = vmatpush1.xpose.msra.mxu0 0.0
        %554 = vmatprep.subr.mxu0 0.0
        %555 = vmatpush1.xpose.msra.mxu0 0.0
        %556 = vmatprep.subr.mxu0 0.0
        %557 = vmatpush1.xpose.msra.mxu0 0.0
        %558 = vmatprep.subr.mxu0 0.0
        %559 = vmatpush1.xpose.msra.mxu0 0.0
        %560 = vmatprep.subr.mxu0 0.0
        %561 = vmatpush1.xpose.msra.mxu0 0.0
        %562 = vmatprep.subr.mxu0 0.0
        %563 = vmatpush1.xpose.msra.mxu0 0.0
        %564 = vmatprep.subr.mxu0 0.0
        %565 = vmatpush1.xpose.msra.mxu0 0.0
        %566 = vmatprep.subr.mxu0 0.0
        %567 = vmatpush1.xpose.msra.mxu0 0.0
        %568 = vmatprep.subr.mxu0 0.0
        %569 = vmatpush1.xpose.msra.mxu0 0.0
        %570 = vmatprep.subr.mxu0 0.0
        %571 = vmatpush1.xpose.msra.mxu0 0.0
        %572 = vmatprep.subr.mxu0 0.0
        %573 = vmatpush1.xpose.msra.mxu0 0.0
        %574 = vmatprep.subr.mxu0 0.0
        %575 = vmatpush1.xpose.msra.mxu0 0.0
        %576 = vmatprep.subr.mxu0 0.0
        %577 = vmatpush1.xpose.msra.mxu0 0.0
        %578 = vmatprep.subr.mxu0 0.0
        %579 = vmatpush1.xpose.msra.mxu0 0.0
        %580 = vmatprep.subr.mxu0 0.0
        %581 = vmatpush1.xpose.msra.mxu0 0.0
        %582 = vmatprep.subr.mxu0 0.0
        %583 = vmatpush1.xpose.msra.mxu0 0.0
        %584 = vmatprep.subr.mxu0 0.0
        %585 = vmatpush1.xpose.msra.mxu0 0.0
        %586 = vmatprep.subr.mxu0 0.0
        %587 = vmatpush1.xpose.msra.mxu0 0.0
        %588 = vmatprep.subr.mxu0 0.0
        %589 = vmatpush1.xpose.msra.mxu0 0.0
        %590 = vmatprep.subr.mxu0 0.0
        %591 = vmatpush1.xpose.msra.mxu0 0.0
        %592 = vmatprep.subr.mxu0 0.0
        %593 = vmatpush1.xpose.msra.mxu0 0.0
        %594 = vmatprep.subr.mxu0 0.0
        %595 = vmatpush1.xpose.msra.mxu0 0.0
        %596 = vmatprep.subr.mxu0 0.0
        %597 = vmatpush1.xpose.msra.mxu0 0.0
        %598 = vmatprep.subr.mxu0 0.0
        %599 = vmatpush1.xpose.msra.mxu0 0.0
        %600 = vmatprep.mubr.f32.mxu0 0.0
        %601 = vmatmul.mubr.f32.gmra.mrb[0].mxu0 %v531
        %v602 = vpop.f32.mrb[0].mxu0
        %v603 = vadd.f32 0.0, %v602
        %v604 = vpop.f32.mrb[0].mxu0
        %605 = vdwg.mxu0
        %v606 = vld [vmem:[#allocation3] sm:$0xff]
        %vm607 = vcmask 64512
        %v608 = vsel %vm607, %v603, -inf
        %609 = vmax.xlane.f32.xlu0 %v608
        %v610 = vpop.xlane.xlu0 %609
        %v611 = vmax.f32 %v606, %v610
        %v612 = vsub.f32 %v606, %v611
        %v613 = vmul.f32 %v612, 1.442695
        %v614 = vpow.pop %v613
        %616 = vset.pattern.permute.xlu0 0
        %617 = vperm.xlu0 %616, %v611
        %v618 = vpop.permute.xlu0 %617
        %v620 = vsub.f32 %v603, %v618
        %v621 = vmul.f32 %v620, 1.442695
        %v622 = vpow.pop %v621
        %v623 = vld [vmem:[#allocation4] sm:$0xff]
        %v624 = vmul.f32 %v614, %v623
        %v625 = vsel %vm607, %v622, 0.0
        %626 = vadd.xlane.f32.xlu0 %v625
        %v627 = vpop.xlane.xlu0 %626
        %v628 = vadd.f32 %v624, %v627
        %vm629 = vcmask 7168
        %630 = vst.msk [vmem:[#allocation4] sm:$0xff] %vm629, %v628
        %v631 = vld [vmem:[#allocation5] sm:$0xff]
        %633 = vset.pattern.permute.xlu0 0
        %634 = vperm.xlu0 %633, %v614
        %v635 = vpop.permute.xlu0 %634
        %v637 = vmul.f32 %v635, %v631
        %638 = vrot.lane.b32.xlu0 %v525, 96
        %v639 = vpop.permute.xlu0 %638
        %v642 = vsel %vm607, %v622, 0
        %644 = vmatprep.subr.mxu0 0.0
        %645 = vmatpush1.msra.mxu0 %v639
        %646 = vmatprep.subr.mxu0 0.0
        %647 = vmatpush1.msra.mxu0 0.0
        %648 = vmatprep.subr.mxu0 0.0
        %649 = vmatpush1.msra.mxu0 0.0
        %650 = vmatprep.subr.mxu0 0.0
        %651 = vmatpush1.msra.mxu0 0.0
        %652 = vmatprep.subr.mxu0 0.0
        %653 = vmatpush1.msra.mxu0 0.0
        %654 = vmatprep.subr.mxu0 0.0
        %655 = vmatpush1.msra.mxu0 0.0
        %656 = vmatprep.subr.mxu0 0.0
        %657 = vmatpush1.msra.mxu0 0.0
        %658 = vmatprep.subr.mxu0 0.0
        %659 = vmatpush1.msra.mxu0 0.0
        %660 = vmatprep.subr.mxu0 0.0
        %661 = vmatpush1.msra.mxu0 0.0
        %662 = vmatprep.subr.mxu0 0.0
        %663 = vmatpush1.msra.mxu0 0.0
        %664 = vmatprep.subr.mxu0 0.0
        %665 = vmatpush1.msra.mxu0 0.0
        %666 = vmatprep.subr.mxu0 0.0
        %667 = vmatpush1.msra.mxu0 0.0
        %668 = vmatprep.subr.mxu0 0.0
        %669 = vmatpush1.msra.mxu0 0.0
        %670 = vmatprep.subr.mxu0 0.0
        %671 = vmatpush1.msra.mxu0 0.0
        %672 = vmatprep.subr.mxu0 0.0
        %673 = vmatpush1.msra.mxu0 0.0
        %674 = vmatprep.subr.mxu0 0.0
        %675 = vmatpush1.msra.mxu0 0.0
        %676 = vmatprep.subr.mxu0 0.0
        %677 = vmatpush1.msra.mxu0 0.0
        %678 = vmatprep.subr.mxu0 0.0
        %679 = vmatpush1.msra.mxu0 0.0
        %680 = vmatprep.subr.mxu0 0.0
        %681 = vmatpush1.msra.mxu0 0.0
        %682 = vmatprep.subr.mxu0 0.0
        %683 = vmatpush1.msra.mxu0 0.0
        %684 = vmatprep.subr.mxu0 0.0
        %685 = vmatpush1.msra.mxu0 0.0
        %686 = vmatprep.subr.mxu0 0.0
        %687 = vmatpush1.msra.mxu0 0.0
        %688 = vmatprep.subr.mxu0 0.0
        %689 = vmatpush1.msra.mxu0 0.0
        %690 = vmatprep.subr.mxu0 0.0
        %691 = vmatpush1.msra.mxu0 0.0
        %692 = vmatprep.subr.mxu0 0.0
        %693 = vmatpush1.msra.mxu0 0.0
        %694 = vmatprep.subr.mxu0 0.0
        %695 = vmatpush1.msra.mxu0 0.0
        %696 = vmatprep.subr.mxu0 0.0
        %697 = vmatpush1.msra.mxu0 0.0
        %698 = vmatprep.subr.mxu0 0.0
        %699 = vmatpush1.msra.mxu0 0.0
        %700 = vmatprep.subr.mxu0 0.0
        %701 = vmatpush1.msra.mxu0 0.0
        %702 = vmatprep.subr.mxu0 0.0
        %703 = vmatpush1.msra.mxu0 0.0
        %704 = vmatprep.subr.mxu0 0.0
        %705 = vmatpush1.msra.mxu0 0.0
        %706 = vmatprep.subr.mxu0 0.0
        %707 = vmatpush1.msra.mxu0 0.0
        %708 = vmatprep.mubr.f32.mxu0 0.0
        %709 = vmatmul.mubr.f32.gmra.mrb[0].mxu0 %v642
        %v710 = vpop.f32.mrb[0].mxu0
        %v711 = vadd.f32 0.0, %v710
        %v712 = vpop.f32.mrb[0].mxu0
        %713 = vdwg.mxu0
        %v714 = vadd.f32 %v637, %v711
        %715 = vst.msk [vmem:[#allocation5] sm:$0xff] %vm529, %v714
        %716 = vst.msk [vmem:[#allocation3] sm:$0xff] %vm629, %v611
        %v717 = vld [vmem:[#allocation2] sm:$0xff]
        %719 = vrot.lane.b32.xlu0 %v717, 124
        %v720 = vpop.permute.xlu0 %719
        %721 = vrot.lane.b32.xlu0 %v525, 124
        %v722 = vpop.permute.xlu0 %721
        %v723 = vsel %vm529, %v720, 0
        %v725 = vsel %vm529, %v722, 0
        %727 = vmatprep.subr.mxu0 0.0
        %728 = vmatpush1.xpose.msra.mxu0 %v725
        %729 = vmatprep.subr.mxu0 0.0
        %730 = vmatpush1.xpose.msra.mxu0 0.0
        %731 = vmatprep.subr.mxu0 0.0
        %732 = vmatpush1.xpose.msra.mxu0 0.0
        %733 = vmatprep.subr.mxu0 0.0
        %734 = vmatpush1.xpose.msra.mxu0 0.0
        %735 = vmatprep.subr.mxu0 0.0
        %736 = vmatpush1.xpose.msra.mxu0 0.0
        %737 = vmatprep.subr.mxu0 0.0
        %738 = vmatpush1.xpose.msra.mxu0 0.0
        %739 = vmatprep.subr.mxu0 0.0
        %740 = vmatpush1.xpose.msra.mxu0 0.0
        %741 = vmatprep.subr.mxu0 0.0
        %742 = vmatpush1.xpose.msra.mxu0 0.0
        %743 = vmatprep.subr.mxu0 0.0
        %744 = vmatpush1.xpose.msra.mxu0 0.0
        %745 = vmatprep.subr.mxu0 0.0
        %746 = vmatpush1.xpose.msra.mxu0 0.0
        %747 = vmatprep.subr.mxu0 0.0
        %748 = vmatpush1.xpose.msra.mxu0 0.0
        %749 = vmatprep.subr.mxu0 0.0
        %750 = vmatpush1.xpose.msra.mxu0 0.0
        %751 = vmatprep.subr.mxu0 0.0
        %752 = vmatpush1.xpose.msra.mxu0 0.0
        %753 = vmatprep.subr.mxu0 0.0
        %754 = vmatpush1.xpose.msra.mxu0 0.0
        %755 = vmatprep.subr.mxu0 0.0
        %756 = vmatpush1.xpose.msra.mxu0 0.0
        %757 = vmatprep.subr.mxu0 0.0
        %758 = vmatpush1.xpose.msra.mxu0 0.0
        %759 = vmatprep.subr.mxu0 0.0
        %760 = vmatpush1.xpose.msra.mxu0 0.0
        %761 = vmatprep.subr.mxu0 0.0
        %762 = vmatpush1.xpose.msra.mxu0 0.0
        %763 = vmatprep.subr.mxu0 0.0
        %764 = vmatpush1.xpose.msra.mxu0 0.0
        %765 = vmatprep.subr.mxu0 0.0
        %766 = vmatpush1.xpose.msra.mxu0 0.0
        %767 = vmatprep.subr.mxu0 0.0
        %768 = vmatpush1.xpose.msra.mxu0 0.0
        %769 = vmatprep.subr.mxu0 0.0
        %770 = vmatpush1.xpose.msra.mxu0 0.0
        %771 = vmatprep.subr.mxu0 0.0
        %772 = vmatpush1.xpose.msra.mxu0 0.0
        %773 = vmatprep.subr.mxu0 0.0
        %774 = vmatpush1.xpose.msra.mxu0 0.0
        %775 = vmatprep.subr.mxu0 0.0
        %776 = vmatpush1.xpose.msra.mxu0 0.0
        %777 = vmatprep.subr.mxu0 0.0
        %778 = vmatpush1.xpose.msra.mxu0 0.0
        %779 = vmatprep.subr.mxu0 0.0
        %780 = vmatpush1.xpose.msra.mxu0 0.0
        %781 = vmatprep.subr.mxu0 0.0
        %782 = vmatpush1.xpose.msra.mxu0 0.0
        %783 = vmatprep.subr.mxu0 0.0
        %784 = vmatpush1.xpose.msra.mxu0 0.0
        %785 = vmatprep.subr.mxu0 0.0
        %786 = vmatpush1.xpose.msra.mxu0 0.0
        %787 = vmatprep.subr.mxu0 0.0
        %788 = vmatpush1.xpose.msra.mxu0 0.0
        %789 = vmatprep.subr.mxu0 0.0
        %790 = vmatpush1.xpose.msra.mxu0 0.0
        %791 = vmatprep.mubr.f32.mxu0 0.0
        %792 = vmatmul.mubr.f32.gmra.mrb[0].mxu0 %v723
        %v793 = vpop.f32.mrb[0].mxu0
        %v794 = vadd.f32 0.0, %v793
        %v795 = vpop.f32.mrb[0].mxu0
        %796 = vdwg.mxu0
        %s797 = scalar_lea.vmem [#allocation3], 8
        %v798 = vld [vmem:[%s797] sm:$0xff]
        %v799 = vsel %vm607, %v794, -inf
        %800 = vmax.xlane.f32.xlu0 %v799
        %v801 = vpop.xlane.xlu0 %800
        %v802 = vmax.f32 %v798, %v801
        %v803 = vsub.f32 %v798, %v802
        %v804 = vmul.f32 %v803, 1.442695
        %v805 = vpow.pop %v804
        %807 = vset.pattern.permute.xlu0 0
        %808 = vperm.xlu0 %807, %v802
        %v809 = vpop.permute.xlu0 %808
        %v811 = vsub.f32 %v794, %v809
        %v812 = vmul.f32 %v811, 1.442695
        %v813 = vpow.pop %v812
        %s814 = scalar_lea.vmem [#allocation4], 8
        %v815 = vld [vmem:[%s814] sm:$0xff]
        %v816 = vmul.f32 %v805, %v815
        %v817 = vsel %vm607, %v813, 0.0
        %818 = vadd.xlane.f32.xlu0 %v817
        %v819 = vpop.xlane.xlu0 %818
        %v820 = vadd.f32 %v816, %v819
        %821 = vst.msk [vmem:[%s814] sm:$0xff] %vm629, %v820
        %v822 = vld [vmem:[#allocation5] sm:$0xff]
        %824 = vset.pattern.permute.xlu0 0
        %825 = vperm.xlu0 %824, %v805
        %v826 = vpop.permute.xlu0 %825
        %v828 = vmul.f32 %v826, %v822
        %829 = vrot.lane.b32.xlu0 %v525, 92
        %v830 = vpop.permute.xlu0 %829
        %v833 = vsel %vm607, %v813, 0
        %835 = vmatprep.subr.mxu0 0.0
        %836 = vmatpush1.msra.mxu0 %v830
        %837 = vmatprep.subr.mxu0 0.0
        %838 = vmatpush1.msra.mxu0 0.0
        %839 = vmatprep.subr.mxu0 0.0
        %840 = vmatpush1.msra.mxu0 0.0
        %841 = vmatprep.subr.mxu0 0.0
        %842 = vmatpush1.msra.mxu0 0.0
        %843 = vmatprep.subr.mxu0 0.0
        %844 = vmatpush1.msra.mxu0 0.0
        %845 = vmatprep.subr.mxu0 0.0
        %846 = vmatpush1.msra.mxu0 0.0
        %847 = vmatprep.subr.mxu0 0.0
        %848 = vmatpush1.msra.mxu0 0.0
        %849 = vmatprep.subr.mxu0 0.0
        %850 = vmatpush1.msra.mxu0 0.0
        %851 = vmatprep.subr.mxu0 0.0
        %852 = vmatpush1.msra.mxu0 0.0
        %853 = vmatprep.subr.mxu0 0.0
        %854 = vmatpush1.msra.mxu0 0.0
        %855 = vmatprep.subr.mxu0 0.0
        %856 = vmatpush1.msra.mxu0 0.0
        %857 = vmatprep.subr.mxu0 0.0
        %858 = vmatpush1.msra.mxu0 0.0
        %859 = vmatprep.subr.mxu0 0.0
        %860 = vmatpush1.msra.mxu0 0.0
        %861 = vmatprep.subr.mxu0 0.0
        %862 = vmatpush1.msra.mxu0 0.0
        %863 = vmatprep.subr.mxu0 0.0
        %864 = vmatpush1.msra.mxu0 0.0
        %865 = vmatprep.subr.mxu0 0.0
        %866 = vmatpush1.msra.mxu0 0.0
        %867 = vmatprep.subr.mxu0 0.0
        %868 = vmatpush1.msra.mxu0 0.0
        %869 = vmatprep.subr.mxu0 0.0
        %870 = vmatpush1.msra.mxu0 0.0
        %871 = vmatprep.subr.mxu0 0.0
        %872 = vmatpush1.msra.mxu0 0.0
        %873 = vmatprep.subr.mxu0 0.0
        %874 = vmatpush1.msra.mxu0 0.0
        %875 = vmatprep.subr.mxu0 0.0
        %876 = vmatpush1.msra.mxu0 0.0
        %877 = vmatprep.subr.mxu0 0.0
        %878 = vmatpush1.msra.mxu0 0.0
        %879 = vmatprep.subr.mxu0 0.0
        %880 = vmatpush1.msra.mxu0 0.0
        %881 = vmatprep.subr.mxu0 0.0
        %882 = vmatpush1.msra.mxu0 0.0
        %883 = vmatprep.subr.mxu0 0.0
        %884 = vmatpush1.msra.mxu0 0.0
        %885 = vmatprep.subr.mxu0 0.0
        %886 = vmatpush1.msra.mxu0 0.0
        %887 = vmatprep.subr.mxu0 0.0
        %888 = vmatpush1.msra.mxu0 0.0
        %889 = vmatprep.subr.mxu0 0.0
        %890 = vmatpush1.msra.mxu0 0.0
        %891 = vmatprep.subr.mxu0 0.0
        %892 = vmatpush1.msra.mxu0 0.0
        %893 = vmatprep.subr.mxu0 0.0
        %894 = vmatpush1.msra.mxu0 0.0
        %895 = vmatprep.subr.mxu0 0.0
        %896 = vmatpush1.msra.mxu0 0.0
        %897 = vmatprep.subr.mxu0 0.0
        %898 = vmatpush1.msra.mxu0 0.0
        %899 = vmatprep.mubr.f32.mxu0 0.0
        %900 = vmatmul.mubr.f32.gmra.mrb[0].mxu0 %v833
        %v901 = vpop.f32.mrb[0].mxu0
        %v902 = vadd.f32 0.0, %v901
        %v903 = vpop.f32.mrb[0].mxu0
        %904 = vdwg.mxu0
        %906 = vrot.lane.b32.xlu0 %v902, 4
        %v907 = vpop.permute.xlu0 %906
        %v909 = vadd.f32 %v828, %v907
        %vm910 = vcmask 64544
        %911 = vst.msk [vmem:[#allocation5] sm:$0xff] %vm910, %v909
        %912 = vst.msk [vmem:[%s797] sm:$0xff] %vm629, %v802
        %v913 = vld [vmem:[#allocation2] sm:$0xff]
        %915 = vrot.lane.b32.xlu0 %v913, 120
        %v916 = vpop.permute.xlu0 %915
        %917 = vrot.lane.b32.xlu0 %v525, 120
        %v918 = vpop.permute.xlu0 %917
        %v919 = vsel %vm529, %v916, 0
        %v921 = vsel %vm529, %v918, 0
        %923 = vmatprep.subr.mxu0 0.0
        %924 = vmatpush1.xpose.msra.mxu0 %v921
        %925 = vmatprep.subr.mxu0 0.0
        %926 = vmatpush1.xpose.msra.mxu0 0.0
        %927 = vmatprep.subr.mxu0 0.0
        %928 = vmatpush1.xpose.msra.mxu0 0.0
        %929 = vmatprep.subr.mxu0 0.0
        %930 = vmatpush1.xpose.msra.mxu0 0.0
        %931 = vmatprep.subr.mxu0 0.0
        %932 = vmatpush1.xpose.msra.mxu0 0.0
        %933 = vmatprep.subr.mxu0 0.0
        %934 = vmatpush1.xpose.msra.mxu0 0.0
        %935 = vmatprep.subr.mxu0 0.0
        %936 = vmatpush1.xpose.msra.mxu0 0.0
        %937 = vmatprep.subr.mxu0 0.0
        %938 = vmatpush1.xpose.msra.mxu0 0.0
        %939 = vmatprep.subr.mxu0 0.0
        %940 = vmatpush1.xpose.msra.mxu0 0.0
        %941 = vmatprep.subr.mxu0 0.0
        %942 = vmatpush1.xpose.msra.mxu0 0.0
        %943 = vmatprep.subr.mxu0 0.0
        %944 = vmatpush1.xpose.msra.mxu0 0.0
        %945 = vmatprep.subr.mxu0 0.0
        %946 = vmatpush1.xpose.msra.mxu0 0.0
        %947 = vmatprep.subr.mxu0 0.0
        %948 = vmatpush1.xpose.msra.mxu0 0.0
        %949 = vmatprep.subr.mxu0 0.0
        %950 = vmatpush1.xpose.msra.mxu0 0.0
        %951 = vmatprep.subr.mxu0 0.0
        %952 = vmatpush1.xpose.msra.mxu0 0.0
        %953 = vmatprep.subr.mxu0 0.0
        %954 = vmatpush1.xpose.msra.mxu0 0.0
        %955 = vmatprep.subr.mxu0 0.0
        %956 = vmatpush1.xpose.msra.mxu0 0.0
        %957 = vmatprep.subr.mxu0 0.0
        %958 = vmatpush1.xpose.msra.mxu0 0.0
        %959 = vmatprep.subr.mxu0 0.0
        %960 = vmatpush1.xpose.msra.mxu0 0.0
        %961 = vmatprep.subr.mxu0 0.0
        %962 = vmatpush1.xpose.msra.mxu0 0.0
        %963 = vmatprep.subr.mxu0 0.0
        %964 = vmatpush1.xpose.msra.mxu0 0.0
        %965 = vmatprep.subr.mxu0 0.0
        %966 = vmatpush1.xpose.msra.mxu0 0.0
        %967 = vmatprep.subr.mxu0 0.0
        %968 = vmatpush1.xpose.msra.mxu0 0.0
        %969 = vmatprep.subr.mxu0 0.0
        %970 = vmatpush1.xpose.msra.mxu0 0.0
        %971 = vmatprep.subr.mxu0 0.0
        %972 = vmatpush1.xpose.msra.mxu0 0.0
        %973 = vmatprep.subr.mxu0 0.0
        %974 = vmatpush1.xpose.msra.mxu0 0.0
        %975 = vmatprep.subr.mxu0 0.0
        %976 = vmatpush1.xpose.msra.mxu0 0.0
        %977 = vmatprep.subr.mxu0 0.0
        %978 = vmatpush1.xpose.msra.mxu0 0.0
        %979 = vmatprep.subr.mxu0 0.0
        %980 = vmatpush1.xpose.msra.mxu0 0.0
        %981 = vmatprep.subr.mxu0 0.0
        %982 = vmatpush1.xpose.msra.mxu0 0.0
        %983 = vmatprep.subr.mxu0 0.0
        %984 = vmatpush1.xpose.msra.mxu0 0.0
        %985 = vmatprep.subr.mxu0 0.0
        %986 = vmatpush1.xpose.msra.mxu0 0.0
        %987 = vmatprep.mubr.f32.mxu0 0.0
        %988 = vmatmul.mubr.f32.gmra.mrb[0].mxu0 %v919
        %v989 = vpop.f32.mrb[0].mxu0
        %v990 = vadd.f32 0.0, %v989
        %v991 = vpop.f32.mrb[0].mxu0
        %992 = vdwg.mxu0
        %s993 = scalar_lea.vmem [#allocation3], 16
        %v994 = vld [vmem:[%s993] sm:$0xff]
        %v995 = vsel %vm607, %v990, -inf
        %996 = vmax.xlane.f32.xlu0 %v995
        %v997 = vpop.xlane.xlu0 %996
        %v998 = vmax.f32 %v994, %v997
        %v999 = vsub.f32 %v994, %v998
        %v1000 = vmul.f32 %v999, 1.442695
        %v1001 = vpow.pop %v1000
        %1003 = vset.pattern.permute.xlu0 0
        %1004 = vperm.xlu0 %1003, %v998
        %v1005 = vpop.permute.xlu0 %1004
        %v1007 = vsub.f32 %v990, %v1005
        %v1008 = vmul.f32 %v1007, 1.442695
        %v1009 = vpow.pop %v1008
        %s1010 = scalar_lea.vmem [#allocation4], 16
        %v1011 = vld [vmem:[%s1010] sm:$0xff]
        %v1012 = vmul.f32 %v1001, %v1011
        %v1013 = vsel %vm607, %v1009, 0.0
        %1014 = vadd.xlane.f32.xlu0 %v1013
        %v1015 = vpop.xlane.xlu0 %1014
        %v1016 = vadd.f32 %v1012, %v1015
        %1017 = vst.msk [vmem:[%s1010] sm:$0xff] %vm629, %v1016
        %v1018 = vld [vmem:[#allocation5] sm:$0xff]
        %1020 = vset.pattern.permute.xlu0 0
        %1021 = vperm.xlu0 %1020, %v1001
        %v1022 = vpop.permute.xlu0 %1021
        %v1024 = vmul.f32 %v1022, %v1018
        %1025 = vrot.lane.b32.xlu0 %v525, 88
        %v1026 = vpop.permute.xlu0 %1025
        %v1029 = vsel %vm607, %v1009, 0
        %1031 = vmatprep.subr.mxu0 0.0
        %1032 = vmatpush1.msra.mxu0 %v1026
        %1033 = vmatprep.subr.mxu0 0.0
        %1034 = vmatpush1.msra.mxu0 0.0
        %1035 = vmatprep.subr.mxu0 0.0
        %1036 = vmatpush1.msra.mxu0 0.0
        %1037 = vmatprep.subr.mxu0 0.0
        %1038 = vmatpush1.msra.mxu0 0.0
        %1039 = vmatprep.subr.mxu0 0.0
        %1040 = vmatpush1.msra.mxu0 0.0
        %1041 = vmatprep.subr.mxu0 0.0
        %1042 = vmatpush1.msra.mxu0 0.0
        %1043 = vmatprep.subr.mxu0 0.0
        %1044 = vmatpush1.msra.mxu0 0.0
        %1045 = vmatprep.subr.mxu0 0.0
        %1046 = vmatpush1.msra.mxu0 0.0
        %1047 = vmatprep.subr.mxu0 0.0
        %1048 = vmatpush1.msra.mxu0 0.0
        %1049 = vmatprep.subr.mxu0 0.0
        %1050 = vmatpush1.msra.mxu0 0.0
        %1051 = vmatprep.subr.mxu0 0.0
        %1052 = vmatpush1.msra.mxu0 0.0
        %1053 = vmatprep.subr.mxu0 0.0
        %1054 = vmatpush1.msra.mxu0 0.0
        %1055 = vmatprep.subr.mxu0 0.0
        %1056 = vmatpush1.msra.mxu0 0.0
        %1057 = vmatprep.subr.mxu0 0.0
        %1058 = vmatpush1.msra.mxu0 0.0
        %1059 = vmatprep.subr.mxu0 0.0
        %1060 = vmatpush1.msra.mxu0 0.0
        %1061 = vmatprep.subr.mxu0 0.0
        %1062 = vmatpush1.msra.mxu0 0.0
        %1063 = vmatprep.subr.mxu0 0.0
        %1064 = vmatpush1.msra.mxu0 0.0
        %1065 = vmatprep.subr.mxu0 0.0
        %1066 = vmatpush1.msra.mxu0 0.0
        %1067 = vmatprep.subr.mxu0 0.0
        %1068 = vmatpush1.msra.mxu0 0.0
        %1069 = vmatprep.subr.mxu0 0.0
        %1070 = vmatpush1.msra.mxu0 0.0
        %1071 = vmatprep.subr.mxu0 0.0
        %1072 = vmatpush1.msra.mxu0 0.0
        %1073 = vmatprep.subr.mxu0 0.0
        %1074 = vmatpush1.msra.mxu0 0.0
        %1075 = vmatprep.subr.mxu0 0.0
        %1076 = vmatpush1.msra.mxu0 0.0
        %1077 = vmatprep.subr.mxu0 0.0
        %1078 = vmatpush1.msra.mxu0 0.0
        %1079 = vmatprep.subr.mxu0 0.0
        %1080 = vmatpush1.msra.mxu0 0.0
        %1081 = vmatprep.subr.mxu0 0.0
        %1082 = vmatpush1.msra.mxu0 0.0
        %1083 = vmatprep.subr.mxu0 0.0
        %1084 = vmatpush1.msra.mxu0 0.0
        %1085 = vmatprep.subr.mxu0 0.0
        %1086 = vmatpush1.msra.mxu0 0.0
        %1087 = vmatprep.subr.mxu0 0.0
        %1088 = vmatpush1.msra.mxu0 0.0
        %1089 = vmatprep.subr.mxu0 0.0
        %1090 = vmatpush1.msra.mxu0 0.0
        %1091 = vmatprep.subr.mxu0 0.0
        %1092 = vmatpush1.msra.mxu0 0.0
        %1093 = vmatprep.subr.mxu0 0.0
        %1094 = vmatpush1.msra.mxu0 0.0
        %1095 = vmatprep.mubr.f32.mxu0 0.0
        %1096 = vmatmul.mubr.f32.gmra.mrb[0].mxu0 %v1029
        %v1097 = vpop.f32.mrb[0].mxu0
        %v1098 = vadd.f32 0.0, %v1097
        %v1099 = vpop.f32.mrb[0].mxu0
        %1100 = vdwg.mxu0
        %1102 = vrot.lane.b32.xlu0 %v1098, 8
        %v1103 = vpop.permute.xlu0 %1102
        %v1105 = vadd.f32 %v1024, %v1103
        %vm1106 = vcmask 97344
        %1107 = vst.msk [vmem:[#allocation5] sm:$0xff] %vm1106, %v1105
        %1108 = vst.msk [vmem:[%s993] sm:$0xff] %vm629, %v998
        %v1109 = vld [vmem:[#allocation2] sm:$0xff]
        %1111 = vrot.lane.b32.xlu0 %v1109, 116
        %v1112 = vpop.permute.xlu0 %1111
        %1113 = vrot.lane.b32.xlu0 %v525, 116
        %v1114 = vpop.permute.xlu0 %1113
        %v1115 = vsel %vm529, %v1112, 0
        %v1117 = vsel %vm529, %v1114, 0
        %1119 = vmatprep.subr.mxu0 0.0
        %1120 = vmatpush1.xpose.msra.mxu0 %v1117
        %1121 = vmatprep.subr.mxu0 0.0
        %1122 = vmatpush1.xpose.msra.mxu0 0.0
        %1123 = vmatprep.subr.mxu0 0.0
        %1124 = vmatpush1.xpose.msra.mxu0 0.0
        %1125 = vmatprep.subr.mxu0 0.0
        %1126 = vmatpush1.xpose.msra.mxu0 0.0
        %1127 = vmatprep.subr.mxu0 0.0
        %1128 = vmatpush1.xpose.msra.mxu0 0.0
        %1129 = vmatprep.subr.mxu0 0.0
        %1130 = vmatpush1.xpose.msra.mxu0 0.0
        %1131 = vmatprep.subr.mxu0 0.0
        %1132 = vmatpush1.xpose.msra.mxu0 0.0
        %1133 = vmatprep.subr.mxu0 0.0
        %1134 = vmatpush1.xpose.msra.mxu0 0.0
        %1135 = vmatprep.subr.mxu0 0.0
        %1136 = vmatpush1.xpose.msra.mxu0 0.0
        %1137 = vmatprep.subr.mxu0 0.0
        %1138 = vmatpush1.xpose.msra.mxu0 0.0
        %1139 = vmatprep.subr.mxu0 0.0
        %1140 = vmatpush1.xpose.msra.mxu0 0.0
        %1141 = vmatprep.subr.mxu0 0.0
        %1142 = vmatpush1.xpose.msra.mxu0 0.0
        %1143 = vmatprep.subr.mxu0 0.0
        %1144 = vmatpush1.xpose.msra.mxu0 0.0
        %1145 = vmatprep.subr.mxu0 0.0
        %1146 = vmatpush1.xpose.msra.mxu0 0.0
        %1147 = vmatprep.subr.mxu0 0.0
        %1148 = vmatpush1.xpose.msra.mxu0 0.0
        %1149 = vmatprep.subr.mxu0 0.0
        %1150 = vmatpush1.xpose.msra.mxu0 0.0
        %1151 = vmatprep.subr.mxu0 0.0
        %1152 = vmatpush1.xpose.msra.mxu0 0.0
        %1153 = vmatprep.subr.mxu0 0.0
        %1154 = vmatpush1.xpose.msra.mxu0 0.0
        %1155 = vmatprep.subr.mxu0 0.0
        %1156 = vmatpush1.xpose.msra.mxu0 0.0
        %1157 = vmatprep.subr.mxu0 0.0
        %1158 = vmatpush1.xpose.msra.mxu0 0.0
        %1159 = vmatprep.subr.mxu0 0.0
        %1160 = vmatpush1.xpose.msra.mxu0 0.0
        %1161 = vmatprep.subr.mxu0 0.0
        %1162 = vmatpush1.xpose.msra.mxu0 0.0
        %1163 = vmatprep.subr.mxu0 0.0
        %1164 = vmatpush1.xpose.msra.mxu0 0.0
        %1165 = vmatprep.subr.mxu0 0.0
        %1166 = vmatpush1.xpose.msra.mxu0 0.0
        %1167 = vmatprep.subr.mxu0 0.0
        %1168 = vmatpush1.xpose.msra.mxu0 0.0
        %1169 = vmatprep.subr.mxu0 0.0
        %1170 = vmatpush1.xpose.msra.mxu0 0.0
        %1171 = vmatprep.subr.mxu0 0.0
        %1172 = vmatpush1.xpose.msra.mxu0 0.0
        %1173 = vmatprep.subr.mxu0 0.0
        %1174 = vmatpush1.xpose.msra.mxu0 0.0
        %1175 = vmatprep.subr.mxu0 0.0
        %1176 = vmatpush1.xpose.msra.mxu0 0.0
        %1177 = vmatprep.subr.mxu0 0.0
        %1178 = vmatpush1.xpose.msra.mxu0 0.0
        %1179 = vmatprep.subr.mxu0 0.0
        %1180 = vmatpush1.xpose.msra.mxu0 0.0
        %1181 = vmatprep.subr.mxu0 0.0
        %1182 = vmatpush1.xpose.msra.mxu0 0.0
        %1183 = vmatprep.mubr.f32.mxu0 0.0
        %1184 = vmatmul.mubr.f32.gmra.mrb[0].mxu0 %v1115
        %v1185 = vpop.f32.mrb[0].mxu0
        %v1186 = vadd.f32 0.0, %v1185
        %v1187 = vpop.f32.mrb[0].mxu0
        %1188 = vdwg.mxu0
        %s1189 = scalar_lea.vmem [#allocation3], 24
        %v1190 = vld [vmem:[%s1189] sm:$0xff]
        %v1191 = vsel %vm607, %v1186, -inf
        %1192 = vmax.xlane.f32.xlu0 %v1191
        %v1193 = vpop.xlane.xlu0 %1192
        %v1194 = vmax.f32 %v1190, %v1193
        %v1195 = vsub.f32 %v1190, %v1194
        %v1196 = vmul.f32 %v1195, 1.442695
        %v1197 = vpow.pop %v1196
        %1199 = vset.pattern.permute.xlu0 0
        %1200 = vperm.xlu0 %1199, %v1194
        %v1201 = vpop.permute.xlu0 %1200
        %v1203 = vsub.f32 %v1186, %v1201
        %v1204 = vmul.f32 %v1203, 1.442695
        %v1205 = vpow.pop %v1204
        %s1206 = scalar_lea.vmem [#allocation4], 24
        %v1207 = vld [vmem:[%s1206] sm:$0xff]
        %v1208 = vmul.f32 %v1197, %v1207
        %v1209 = vsel %vm607, %v1205, 0.0
        %1210 = vadd.xlane.f32.xlu0 %v1209
        %v1211 = vpop.xlane.xlu0 %1210
        %v1212 = vadd.f32 %v1208, %v1211
        %1213 = vst.msk [vmem:[%s1206] sm:$0xff] %vm629, %v1212
        %v1214 = vld [vmem:[#allocation5] sm:$0xff]
        %1216 = vset.pattern.permute.xlu0 0
        %1217 = vperm.xlu0 %1216, %v1197
        %v1218 = vpop.permute.xlu0 %1217
        %v1220 = vmul.f32 %v1218, %v1214
        %1221 = vrot.lane.b32.xlu0 %v525, 84
        %v1222 = vpop.permute.xlu0 %1221
        %v1225 = vsel %vm607, %v1205, 0
        %1227 = vmatprep.subr.mxu0 0.0
        %1228 = vmatpush1.msra.mxu0 %v1222
        %1229 = vmatprep.subr.mxu0 0.0
        %1230 = vmatpush1.msra.mxu0 0.0
        %1231 = vmatprep.subr.mxu0 0.0
        %1232 = vmatpush1.msra.mxu0 0.0
        %1233 = vmatprep.subr.mxu0 0.0
        %1234 = vmatpush1.msra.mxu0 0.0
        %1235 = vmatprep.subr.mxu0 0.0
        %1236 = vmatpush1.msra.mxu0 0.0
        %1237 = vmatprep.subr.mxu0 0.0
        %1238 = vmatpush1.msra.mxu0 0.0
        %1239 = vmatprep.subr.mxu0 0.0
        %1240 = vmatpush1.msra.mxu0 0.0
        %1241 = vmatprep.subr.mxu0 0.0
        %1242 = vmatpush1.msra.mxu0 0.0
        %1243 = vmatprep.subr.mxu0 0.0
        %1244 = vmatpush1.msra.mxu0 0.0
        %1245 = vmatprep.subr.mxu0 0.0
        %1246 = vmatpush1.msra.mxu0 0.0
        %1247 = vmatprep.subr.mxu0 0.0
        %1248 = vmatpush1.msra.mxu0 0.0
        %1249 = vmatprep.subr.mxu0 0.0
        %1250 = vmatpush1.msra.mxu0 0.0
        %1251 = vmatprep.subr.mxu0 0.0
        %1252 = vmatpush1.msra.mxu0 0.0
        %1253 = vmatprep.subr.mxu0 0.0
        %1254 = vmatpush1.msra.mxu0 0.0
        %1255 = vmatprep.subr.mxu0 0.0
        %1256 = vmatpush1.msra.mxu0 0.0
        %1257 = vmatprep.subr.mxu0 0.0
        %1258 = vmatpush1.msra.mxu0 0.0
        %1259 = vmatprep.subr.mxu0 0.0
        %1260 = vmatpush1.msra.mxu0 0.0
        %1261 = vmatprep.subr.mxu0 0.0
        %1262 = vmatpush1.msra.mxu0 0.0
        %1263 = vmatprep.subr.mxu0 0.0
        %1264 = vmatpush1.msra.mxu0 0.0
        %1265 = vmatprep.subr.mxu0 0.0
        %1266 = vmatpush1.msra.mxu0 0.0
        %1267 = vmatprep.subr.mxu0 0.0
        %1268 = vmatpush1.msra.mxu0 0.0
        %1269 = vmatprep.subr.mxu0 0.0
        %1270 = vmatpush1.msra.mxu0 0.0
        %1271 = vmatprep.subr.mxu0 0.0
        %1272 = vmatpush1.msra.mxu0 0.0
        %1273 = vmatprep.subr.mxu0 0.0
        %1274 = vmatpush1.msra.mxu0 0.0
        %1275 = vmatprep.subr.mxu0 0.0
        %1276 = vmatpush1.msra.mxu0 0.0
        %1277 = vmatprep.subr.mxu0 0.0
        %1278 = vmatpush1.msra.mxu0 0.0
        %1279 = vmatprep.subr.mxu0 0.0
        %1280 = vmatpush1.msra.mxu0 0.0
        %1281 = vmatprep.subr.mxu0 0.0
        %1282 = vmatpush1.msra.mxu0 0.0
        %1283 = vmatprep.subr.mxu0 0.0
        %1284 = vmatpush1.msra.mxu0 0.0
        %1285 = vmatprep.subr.mxu0 0.0
        %1286 = vmatpush1.msra.mxu0 0.0
        %1287 = vmatprep.subr.mxu0 0.0
        %1288 = vmatpush1.msra.mxu0 0.0
        %1289 = vmatprep.subr.mxu0 0.0
        %1290 = vmatpush1.msra.mxu0 0.0
        %1291 = vmatprep.mubr.f32.mxu0 0.0
        %1292 = vmatmul.mubr.f32.gmra.mrb[0].mxu0 %v1225
        %v1293 = vpop.f32.mrb[0].mxu0
        %v1294 = vadd.f32 0.0, %v1293
        %v1295 = vpop.f32.mrb[0].mxu0
        %1296 = vdwg.mxu0
        %1298 = vrot.lane.b32.xlu0 %v1294, 12
        %v1299 = vpop.permute.xlu0 %1298
        %v1301 = vadd.f32 %v1220, %v1299
        %vm1302 = vcmask 130144
        %1303 = vst.msk [vmem:[#allocation5] sm:$0xff] %vm1302, %v1301
        %1304 = vst.msk [vmem:[%s1189] sm:$0xff] %vm629, %v1194
        %v1305 = vld [vmem:[#allocation2] sm:$0xff]
        %1307 = vrot.lane.b32.xlu0 %v1305, 112
        %v1308 = vpop.permute.xlu0 %1307
        %1309 = vrot.lane.b32.xlu0 %v525, 112
        %v1310 = vpop.permute.xlu0 %1309
        %v1311 = vsel %vm529, %v1308, 0
        %v1313 = vsel %vm529, %v1310, 0
        %1315 = vmatprep.subr.mxu0 0.0
        %1316 = vmatpush1.xpose.msra.mxu0 %v1313
        %1317 = vmatprep.subr.mxu0 0.0
        %1318 = vmatpush1.xpose.msra.mxu0 0.0
        %1319 = vmatprep.subr.mxu0 0.0
        %1320 = vmatpush1.xpose.msra.mxu0 0.0
        %1321 = vmatprep.subr.mxu0 0.0
        %1322 = vmatpush1.xpose.msra.mxu0 0.0
        %1323 = vmatprep.subr.mxu0 0.0
        %1324 = vmatpush1.xpose.msra.mxu0 0.0
        %1325 = vmatprep.subr.mxu0 0.0
        %1326 = vmatpush1.xpose.msra.mxu0 0.0
        %1327 = vmatprep.subr.mxu0 0.0
        %1328 = vmatpush1.xpose.msra.mxu0 0.0
        %1329 = vmatprep.subr.mxu0 0.0
        %1330 = vmatpush1.xpose.msra.mxu0 0.0
        %1331 = vmatprep.subr.mxu0 0.0
        %1332 = vmatpush1.xpose.msra.mxu0 0.0
        %1333 = vmatprep.subr.mxu0 0.0
        %1334 = vmatpush1.xpose.msra.mxu0 0.0
        %1335 = vmatprep.subr.mxu0 0.0
        %1336 = vmatpush1.xpose.msra.mxu0 0.0
        %1337 = vmatprep.subr.mxu0 0.0
        %1338 = vmatpush1.xpose.msra.mxu0 0.0
        %1339 = vmatprep.subr.mxu0 0.0
        %1340 = vmatpush1.xpose.msra.mxu0 0.0
        %1341 = vmatprep.subr.mxu0 0.0
        %1342 = vmatpush1.xpose.msra.mxu0 0.0
        %1343 = vmatprep.subr.mxu0 0.0
        %1344 = vmatpush1.xpose.msra.mxu0 0.0
        %1345 = vmatprep.subr.mxu0 0.0
        %1346 = vmatpush1.xpose.msra.mxu0 0.0
        %1347 = vmatprep.subr.mxu0 0.0
        %1348 = vmatpush1.xpose.msra.mxu0 0.0
        %1349 = vmatprep.subr.mxu0 0.0
        %1350 = vmatpush1.xpose.msra.mxu0 0.0
        %1351 = vmatprep.subr.mxu0 0.0
        %1352 = vmatpush1.xpose.msra.mxu0 0.0
        %1353 = vmatprep.subr.mxu0 0.0
        %1354 = vmatpush1.xpose.msra.mxu0 0.0
        %1355 = vmatprep.subr.mxu0 0.0
        %1356 = vmatpush1.xpose.msra.mxu0 0.0
        %1357 = vmatprep.subr.mxu0 0.0
        %1358 = vmatpush1.xpose.msra.mxu0 0.0
        %1359 = vmatprep.subr.mxu0 0.0
        %1360 = vmatpush1.xpose.msra.mxu0 0.0
        %1361 = vmatprep.subr.mxu0 0.0
        %1362 = vmatpush1.xpose.msra.mxu0 0.0
        %1363 = vmatprep.subr.mxu0 0.0
        %1364 = vmatpush1.xpose.msra.mxu0 0.0
        %1365 = vmatprep.subr.mxu0 0.0
        %1366 = vmatpush1.xpose.msra.mxu0 0.0
        %1367 = vmatprep.subr.mxu0 0.0
        %1368 = vmatpush1.xpose.msra.mxu0 0.0
        %1369 = vmatprep.subr.mxu0 0.0
        %1370 = vmatpush1.xpose.msra.mxu0 0.0
        %1371 = vmatprep.subr.mxu0 0.0
        %1372 = vmatpush1.xpose.msra.mxu0 0.0
        %1373 = vmatprep.subr.mxu0 0.0
        %1374 = vmatpush1.xpose.msra.mxu0 0.0
        %1375 = vmatprep.subr.mxu0 0.0
        %1376 = vmatpush1.xpose.msra.mxu0 0.0
        %1377 = vmatprep.subr.mxu0 0.0
        %1378 = vmatpush1.xpose.msra.mxu0 0.0
        %1379 = vmatprep.mubr.f32.mxu0 0.0
        %1380 = vmatmul.mubr.f32.gmra.mrb[0].mxu0 %v1311
        %v1381 = vpop.f32.mrb[0].mxu0
        %v1382 = vadd.f32 0.0, %v1381
        %v1383 = vpop.f32.mrb[0].mxu0
        %1384 = vdwg.mxu0
        %s1385 = scalar_lea.vmem [#allocation3], 32
        %v1386 = vld [vmem:[%s1385] sm:$0xff]
        %v1387 = vsel %vm607, %v1382, -inf
        %1388 = vmax.xlane.f32.xlu0 %v1387
        %v1389 = vpop.xlane.xlu0 %1388
        %v1390 = vmax.f32 %v1386, %v1389
        %v1391 = vsub.f32 %v1386, %v1390
        %v1392 = vmul.f32 %v1391, 1.442695
        %v1393 = vpow.pop %v1392
        %1395 = vset.pattern.permute.xlu0 0
        %1396 = vperm.xlu0 %1395, %v1390
        %v1397 = vpop.permute.xlu0 %1396
        %v1399 = vsub.f32 %v1382, %v1397
        %v1400 = vmul.f32 %v1399, 1.442695
        %v1401 = vpow.pop %v1400
        %s1402 = scalar_lea.vmem [#allocation4], 32
        %v1403 = vld [vmem:[%s1402] sm:$0xff]
        %v1404 = vmul.f32 %v1393, %v1403
        %v1405 = vsel %vm607, %v1401, 0.0
        %1406 = vadd.xlane.f32.xlu0 %v1405
        %v1407 = vpop.xlane.xlu0 %1406
        %v1408 = vadd.f32 %v1404, %v1407
        %1409 = vst.msk [vmem:[%s1402] sm:$0xff] %vm629, %v1408
        %v1410 = vld [vmem:[#allocation5] sm:$0xff]
        %1412 = vset.pattern.permute.xlu0 0
        %1413 = vperm.xlu0 %1412, %v1393
        %v1414 = vpop.permute.xlu0 %1413
        %v1416 = vmul.f32 %v1414, %v1410
        %1417 = vrot.lane.b32.xlu0 %v525, 80
        %v1418 = vpop.permute.xlu0 %1417
        %v1421 = vsel %vm607, %v1401, 0
        %1423 = vmatprep.subr.mxu0 0.0
        %1424 = vmatpush1.msra.mxu0 %v1418
        %1425 = vmatprep.subr.mxu0 0.0
        %1426 = vmatpush1.msra.mxu0 0.0
        %1427 = vmatprep.subr.mxu0 0.0
        %1428 = vmatpush1.msra.mxu0 0.0
        %1429 = vmatprep.subr.mxu0 0.0
        %1430 = vmatpush1.msra.mxu0 0.0
        %1431 = vmatprep.subr.mxu0 0.0
        %1432 = vmatpush1.msra.mxu0 0.0
        %1433 = vmatprep.subr.mxu0 0.0
        %1434 = vmatpush1.msra.mxu0 0.0
        %1435 = vmatprep.subr.mxu0 0.0
        %1436 = vmatpush1.msra.mxu0 0.0
        %1437 = vmatprep.subr.mxu0 0.0
        %1438 = vmatpush1.msra.mxu0 0.0
        %1439 = vmatprep.subr.mxu0 0.0
        %1440 = vmatpush1.msra.mxu0 0.0
        %1441 = vmatprep.subr.mxu0 0.0
        %1442 = vmatpush1.msra.mxu0 0.0
        %1443 = vmatprep.subr.mxu0 0.0
        %1444 = vmatpush1.msra.mxu0 0.0
        %1445 = vmatprep.subr.mxu0 0.0
        %1446 = vmatpush1.msra.mxu0 0.0
        %1447 = vmatprep.subr.mxu0 0.0
        %1448 = vmatpush1.msra.mxu0 0.0
        %1449 = vmatprep.subr.mxu0 0.0
        %1450 = vmatpush1.msra.mxu0 0.0
        %1451 = vmatprep.subr.mxu0 0.0
        %1452 = vmatpush1.msra.mxu0 0.0
        %1453 = vmatprep.subr.mxu0 0.0
        %1454 = vmatpush1.msra.mxu0 0.0
        %1455 = vmatprep.subr.mxu0 0.0
        %1456 = vmatpush1.msra.mxu0 0.0
        %1457 = vmatprep.subr.mxu0 0.0
        %1458 = vmatpush1.msra.mxu0 0.0
        %1459 = vmatprep.subr.mxu0 0.0
        %1460 = vmatpush1.msra.mxu0 0.0
        %1461 = vmatprep.subr.mxu0 0.0
        %1462 = vmatpush1.msra.mxu0 0.0
        %1463 = vmatprep.subr.mxu0 0.0
        %1464 = vmatpush1.msra.mxu0 0.0
        %1465 = vmatprep.subr.mxu0 0.0
        %1466 = vmatpush1.msra.mxu0 0.0
        %1467 = vmatprep.subr.mxu0 0.0
        %1468 = vmatpush1.msra.mxu0 0.0
        %1469 = vmatprep.subr.mxu0 0.0
        %1470 = vmatpush1.msra.mxu0 0.0
        %1471 = vmatprep.subr.mxu0 0.0
        %1472 = vmatpush1.msra.mxu0 0.0
        %1473 = vmatprep.subr.mxu0 0.0
        %1474 = vmatpush1.msra.mxu0 0.0
        %1475 = vmatprep.subr.mxu0 0.0
        %1476 = vmatpush1.msra.mxu0 0.0
        %1477 = vmatprep.subr.mxu0 0.0
        %1478 = vmatpush1.msra.mxu0 0.0
        %1479 = vmatprep.subr.mxu0 0.0
        %1480 = vmatpush1.msra.mxu0 0.0
        %1481 = vmatprep.subr.mxu0 0.0
        %1482 = vmatpush1.msra.mxu0 0.0
        %1483 = vmatprep.subr.mxu0 0.0
        %1484 = vmatpush1.msra.mxu0 0.0
        %1485 = vmatprep.subr.mxu0 0.0
        %1486 = vmatpush1.msra.mxu0 0.0
        %1487 = vmatprep.mubr.f32.mxu0 0.0
        %1488 = vmatmul.mubr.f32.gmra.mrb[0].mxu0 %v1421
        %v1489 = vpop.f32.mrb[0].mxu0
        %v1490 = vadd.f32 0.0, %v1489
        %v1491 = vpop.f32.mrb[0].mxu0
        %1492 = vdwg.mxu0
        %1494 = vrot.lane.b32.xlu0 %v1490, 16
        %v1495 = vpop.permute.xlu0 %1494
        %v1497 = vadd.f32 %v1416, %v1495
        %vm1498 = vcmask 162944
        %1499 = vst.msk [vmem:[#allocation5] sm:$0xff] %vm1498, %v1497
        %1500 = vst.msk [vmem:[%s1385] sm:$0xff] %vm629, %v1390
        %v1501 = vld [vmem:[#allocation2] sm:$0xff]
        %1503 = vrot.lane.b32.xlu0 %v1501, 108
        %v1504 = vpop.permute.xlu0 %1503
        %1505 = vrot.lane.b32.xlu0 %v525, 108
        %v1506 = vpop.permute.xlu0 %1505
        %v1507 = vsel %vm529, %v1504, 0
        %v1509 = vsel %vm529, %v1506, 0
        %1511 = vmatprep.subr.mxu0 0.0
        %1512 = vmatpush1.xpose.msra.mxu0 %v1509
        %1513 = vmatprep.subr.mxu0 0.0
        %1514 = vmatpush1.xpose.msra.mxu0 0.0
        %1515 = vmatprep.subr.mxu0 0.0
        %1516 = vmatpush1.xpose.msra.mxu0 0.0
        %1517 = vmatprep.subr.mxu0 0.0
        %1518 = vmatpush1.xpose.msra.mxu0 0.0
        %1519 = vmatprep.subr.mxu0 0.0
        %1520 = vmatpush1.xpose.msra.mxu0 0.0
        %1521 = vmatprep.subr.mxu0 0.0
        %1522 = vmatpush1.xpose.msra.mxu0 0.0
        %1523 = vmatprep.subr.mxu0 0.0
        %1524 = vmatpush1.xpose.msra.mxu0 0.0
        %1525 = vmatprep.subr.mxu0 0.0
        %1526 = vmatpush1.xpose.msra.mxu0 0.0
        %1527 = vmatprep.subr.mxu0 0.0
        %1528 = vmatpush1.xpose.msra.mxu0 0.0
        %1529 = vmatprep.subr.mxu0 0.0
        %1530 = vmatpush1.xpose.msra.mxu0 0.0
        %1531 = vmatprep.subr.mxu0 0.0
        %1532 = vmatpush1.xpose.msra.mxu0 0.0
        %1533 = vmatprep.subr.mxu0 0.0
        %1534 = vmatpush1.xpose.msra.mxu0 0.0
        %1535 = vmatprep.subr.mxu0 0.0
        %1536 = vmatpush1.xpose.msra.mxu0 0.0
        %1537 = vmatprep.subr.mxu0 0.0
        %1538 = vmatpush1.xpose.msra.mxu0 0.0
        %1539 = vmatprep.subr.mxu0 0.0
        %1540 = vmatpush1.xpose.msra.mxu0 0.0
        %1541 = vmatprep.subr.mxu0 0.0
        %1542 = vmatpush1.xpose.msra.mxu0 0.0
        %1543 = vmatprep.subr.mxu0 0.0
        %1544 = vmatpush1.xpose.msra.mxu0 0.0
        %1545 = vmatprep.subr.mxu0 0.0
        %1546 = vmatpush1.xpose.msra.mxu0 0.0
        %1547 = vmatprep.subr.mxu0 0.0
        %1548 = vmatpush1.xpose.msra.mxu0 0.0
        %1549 = vmatprep.subr.mxu0 0.0
        %1550 = vmatpush1.xpose.msra.mxu0 0.0
        %1551 = vmatprep.subr.mxu0 0.0
        %1552 = vmatpush1.xpose.msra.mxu0 0.0
        %1553 = vmatprep.subr.mxu0 0.0
        %1554 = vmatpush1.xpose.msra.mxu0 0.0
        %1555 = vmatprep.subr.mxu0 0.0
        %1556 = vmatpush1.xpose.msra.mxu0 0.0
        %1557 = vmatprep.subr.mxu0 0.0
        %1558 = vmatpush1.xpose.msra.mxu0 0.0
        %1559 = vmatprep.subr.mxu0 0.0
        %1560 = vmatpush1.xpose.msra.mxu0 0.0
        %1561 = vmatprep.subr.mxu0 0.0
        %1562 = vmatpush1.xpose.msra.mxu0 0.0
        %1563 = vmatprep.subr.mxu0 0.0
        %1564 = vmatpush1.xpose.msra.mxu0 0.0
        %1565 = vmatprep.subr.mxu0 0.0
        %1566 = vmatpush1.xpose.msra.mxu0 0.0
        %1567 = vmatprep.subr.mxu0 0.0
        %1568 = vmatpush1.xpose.msra.mxu0 0.0
        %1569 = vmatprep.subr.mxu0 0.0
        %1570 = vmatpush1.xpose.msra.mxu0 0.0
        %1571 = vmatprep.subr.mxu0 0.0
        %1572 = vmatpush1.xpose.msra.mxu0 0.0
        %1573 = vmatprep.subr.mxu0 0.0
        %1574 = vmatpush1.xpose.msra.mxu0 0.0
        %1575 = vmatprep.mubr.f32.mxu0 0.0
        %1576 = vmatmul.mubr.f32.gmra.mrb[0].mxu0 %v1507
        %v1577 = vpop.f32.mrb[0].mxu0
        %v1578 = vadd.f32 0.0, %v1577
        %v1579 = vpop.f32.mrb[0].mxu0
        %1580 = vdwg.mxu0
        %s1581 = scalar_lea.vmem [#allocation3], 40
        %v1582 = vld [vmem:[%s1581] sm:$0xff]
        %v1583 = vsel %vm607, %v1578, -inf
        %1584 = vmax.xlane.f32.xlu0 %v1583
        %v1585 = vpop.xlane.xlu0 %1584
        %v1586 = vmax.f32 %v1582, %v1585
        %v1587 = vsub.f32 %v1582, %v1586
        %v1588 = vmul.f32 %v1587, 1.442695
        %v1589 = vpow.pop %v1588
        %1591 = vset.pattern.permute.xlu0 0
        %1592 = vperm.xlu0 %1591, %v1586
        %v1593 = vpop.permute.xlu0 %1592
        %v1595 = vsub.f32 %v1578, %v1593
        %v1596 = vmul.f32 %v1595, 1.442695
        %v1597 = vpow.pop %v1596
        %s1598 = scalar_lea.vmem [#allocation4], 40
        %v1599 = vld [vmem:[%s1598] sm:$0xff]
        %v1600 = vmul.f32 %v1589, %v1599
        %v1601 = vsel %vm607, %v1597, 0.0
        %1602 = vadd.xlane.f32.xlu0 %v1601
        %v1603 = vpop.xlane.xlu0 %1602
        %v1604 = vadd.f32 %v1600, %v1603
        %1605 = vst.msk [vmem:[%s1598] sm:$0xff] %vm629, %v1604
        %v1606 = vld [vmem:[#allocation5] sm:$0xff]
        %1608 = vset.pattern.permute.xlu0 0
        %1609 = vperm.xlu0 %1608, %v1589
        %v1610 = vpop.permute.xlu0 %1609
        %v1612 = vmul.f32 %v1610, %v1606
        %1613 = vrot.lane.b32.xlu0 %v525, 76
        %v1614 = vpop.permute.xlu0 %1613
        %v1617 = vsel %vm607, %v1597, 0
        %1619 = vmatprep.subr.mxu0 0.0
        %1620 = vmatpush1.msra.mxu0 %v1614
        %1621 = vmatprep.subr.mxu0 0.0
        %1622 = vmatpush1.msra.mxu0 0.0
        %1623 = vmatprep.subr.mxu0 0.0
        %1624 = vmatpush1.msra.mxu0 0.0
        %1625 = vmatprep.subr.mxu0 0.0
        %1626 = vmatpush1.msra.mxu0 0.0
        %1627 = vmatprep.subr.mxu0 0.0
        %1628 = vmatpush1.msra.mxu0 0.0
        %1629 = vmatprep.subr.mxu0 0.0
        %1630 = vmatpush1.msra.mxu0 0.0
        %1631 = vmatprep.subr.mxu0 0.0
        %1632 = vmatpush1.msra.mxu0 0.0
        %1633 = vmatprep.subr.mxu0 0.0
        %1634 = vmatpush1.msra.mxu0 0.0
        %1635 = vmatprep.subr.mxu0 0.0
        %1636 = vmatpush1.msra.mxu0 0.0
        %1637 = vmatprep.subr.mxu0 0.0
        %1638 = vmatpush1.msra.mxu0 0.0
        %1639 = vmatprep.subr.mxu0 0.0
        %1640 = vmatpush1.msra.mxu0 0.0
        %1641 = vmatprep.subr.mxu0 0.0
        %1642 = vmatpush1.msra.mxu0 0.0
        %1643 = vmatprep.subr.mxu0 0.0
        %1644 = vmatpush1.msra.mxu0 0.0
        %1645 = vmatprep.subr.mxu0 0.0
        %1646 = vmatpush1.msra.mxu0 0.0
        %1647 = vmatprep.subr.mxu0 0.0
        %1648 = vmatpush1.msra.mxu0 0.0
        %1649 = vmatprep.subr.mxu0 0.0
        %1650 = vmatpush1.msra.mxu0 0.0
        %1651 = vmatprep.subr.mxu0 0.0
        %1652 = vmatpush1.msra.mxu0 0.0
        %1653 = vmatprep.subr.mxu0 0.0
        %1654 = vmatpush1.msra.mxu0 0.0
        %1655 = vmatprep.subr.mxu0 0.0
        %1656 = vmatpush1.msra.mxu0 0.0
        %1657 = vmatprep.subr.mxu0 0.0
        %1658 = vmatpush1.msra.mxu0 0.0
        %1659 = vmatprep.subr.mxu0 0.0
        %1660 = vmatpush1.msra.mxu0 0.0
        %1661 = vmatprep.subr.mxu0 0.0
        %1662 = vmatpush1.msra.mxu0 0.0
        %1663 = vmatprep.subr.mxu0 0.0
        %1664 = vmatpush1.msra.mxu0 0.0
        %1665 = vmatprep.subr.mxu0 0.0
        %1666 = vmatpush1.msra.mxu0 0.0
        %1667 = vmatprep.subr.mxu0 0.0
        %1668 = vmatpush1.msra.mxu0 0.0
        %1669 = vmatprep.subr.mxu0 0.0
        %1670 = vmatpush1.msra.mxu0 0.0
        %1671 = vmatprep.subr.mxu0 0.0
        %1672 = vmatpush1.msra.mxu0 0.0
        %1673 = vmatprep.subr.mxu0 0.0
        %1674 = vmatpush1.msra.mxu0 0.0
        %1675 = vmatprep.subr.mxu0 0.0
        %1676 = vmatpush1.msra.mxu0 0.0
        %1677 = vmatprep.subr.mxu0 0.0
        %1678 = vmatpush1.msra.mxu0 0.0
        %1679 = vmatprep.subr.mxu0 0.0
        %1680 = vmatpush1.msra.mxu0 0.0
        %1681 = vmatprep.subr.mxu0 0.0
        %1682 = vmatpush1.msra.mxu0 0.0
        %1683 = vmatprep.mubr.f32.mxu0 0.0
        %1684 = vmatmul.mubr.f32.gmra.mrb[0].mxu0 %v1617
        %v1685 = vpop.f32.mrb[0].mxu0
        %v1686 = vadd.f32 0.0, %v1685
        %v1687 = vpop.f32.mrb[0].mxu0
        %1688 = vdwg.mxu0
        %1690 = vrot.lane.b32.xlu0 %v1686, 20
        %v1691 = vpop.permute.xlu0 %1690
        %v1693 = vadd.f32 %v1612, %v1691
        %vm1694 = vcmask 195744
        %1695 = vst.msk [vmem:[#allocation5] sm:$0xff] %vm1694, %v1693
        %1696 = vst.msk [vmem:[%s1581] sm:$0xff] %vm629, %v1586
        %v1697 = vld [vmem:[#allocation2] sm:$0xff]
        %1699 = vrot.lane.b32.xlu0 %v1697, 104
        %v1700 = vpop.permute.xlu0 %1699
        %1701 = vrot.lane.b32.xlu0 %v525, 104
        %v1702 = vpop.permute.xlu0 %1701
        %v1703 = vsel %vm529, %v1700, 0
        %v1705 = vsel %vm529, %v1702, 0
        %1707 = vmatprep.subr.mxu0 0.0
        %1708 = vmatpush1.xpose.msra.mxu0 %v1705
        %1709 = vmatprep.subr.mxu0 0.0
        %1710 = vmatpush1.xpose.msra.mxu0 0.0
        %1711 = vmatprep.subr.mxu0 0.0
        %1712 = vmatpush1.xpose.msra.mxu0 0.0
        %1713 = vmatprep.subr.mxu0 0.0
        %1714 = vmatpush1.xpose.msra.mxu0 0.0
        %1715 = vmatprep.subr.mxu0 0.0
        %1716 = vmatpush1.xpose.msra.mxu0 0.0
        %1717 = vmatprep.subr.mxu0 0.0
        %1718 = vmatpush1.xpose.msra.mxu0 0.0
        %1719 = vmatprep.subr.mxu0 0.0
        %1720 = vmatpush1.xpose.msra.mxu0 0.0
        %1721 = vmatprep.subr.mxu0 0.0
        %1722 = vmatpush1.xpose.msra.mxu0 0.0
        %1723 = vmatprep.subr.mxu0 0.0
        %1724 = vmatpush1.xpose.msra.mxu0 0.0
        %1725 = vmatprep.subr.mxu0 0.0
        %1726 = vmatpush1.xpose.msra.mxu0 0.0
        %1727 = vmatprep.subr.mxu0 0.0
        %1728 = vmatpush1.xpose.msra.mxu0 0.0
        %1729 = vmatprep.subr.mxu0 0.0
        %1730 = vmatpush1.xpose.msra.mxu0 0.0
        %1731 = vmatprep.subr.mxu0 0.0
        %1732 = vmatpush1.xpose.msra.mxu0 0.0
        %1733 = vmatprep.subr.mxu0 0.0
        %1734 = vmatpush1.xpose.msra.mxu0 0.0
        %1735 = vmatprep.subr.mxu0 0.0
        %1736 = vmatpush1.xpose.msra.mxu0 0.0
        %1737 = vmatprep.subr.mxu0 0.0
        %1738 = vmatpush1.xpose.msra.mxu0 0.0
        %1739 = vmatprep.subr.mxu0 0.0
        %1740 = vmatpush1.xpose.msra.mxu0 0.0
        %1741 = vmatprep.subr.mxu0 0.0
        %1742 = vmatpush1.xpose.msra.mxu0 0.0
        %1743 = vmatprep.subr.mxu0 0.0
        %1744 = vmatpush1.xpose.msra.mxu0 0.0
        %1745 = vmatprep.subr.mxu0 0.0
        %1746 = vmatpush1.xpose.msra.mxu0 0.0
        %1747 = vmatprep.subr.mxu0 0.0
        %1748 = vmatpush1.xpose.msra.mxu0 0.0
        %1749 = vmatprep.subr.mxu0 0.0
        %1750 = vmatpush1.xpose.msra.mxu0 0.0
        %1751 = vmatprep.subr.mxu0 0.0
        %1752 = vmatpush1.xpose.msra.mxu0 0.0
        %1753 = vmatprep.subr.mxu0 0.0
        %1754 = vmatpush1.xpose.msra.mxu0 0.0
        %1755 = vmatprep.subr.mxu0 0.0
        %1756 = vmatpush1.xpose.msra.mxu0 0.0
        %1757 = vmatprep.subr.mxu0 0.0
        %1758 = vmatpush1.xpose.msra.mxu0 0.0
        %1759 = vmatprep.subr.mxu0 0.0
        %1760 = vmatpush1.xpose.msra.mxu0 0.0
        %1761 = vmatprep.subr.mxu0 0.0
        %1762 = vmatpush1.xpose.msra.mxu0 0.0
        %1763 = vmatprep.subr.mxu0 0.0
        %1764 = vmatpush1.xpose.msra.mxu0 0.0
        %1765 = vmatprep.subr.mxu0 0.0
        %1766 = vmatpush1.xpose.msra.mxu0 0.0
        %1767 = vmatprep.subr.mxu0 0.0
        %1768 = vmatpush1.xpose.msra.mxu0 0.0
        %1769 = vmatprep.subr.mxu0 0.0
        %1770 = vmatpush1.xpose.msra.mxu0 0.0
        %1771 = vmatprep.mubr.f32.mxu0 0.0
        %1772 = vmatmul.mubr.f32.gmra.mrb[0].mxu0 %v1703
        %v1773 = vpop.f32.mrb[0].mxu0
        %v1774 = vadd.f32 0.0, %v1773
        %v1775 = vpop.f32.mrb[0].mxu0
        %1776 = vdwg.mxu0
        %s1777 = scalar_lea.vmem [#allocation3], 48
        %v1778 = vld [vmem:[%s1777] sm:$0xff]
        %v1779 = vsel %vm607, %v1774, -inf
        %1780 = vmax.xlane.f32.xlu0 %v1779
        %v1781 = vpop.xlane.xlu0 %1780
        %v1782 = vmax.f32 %v1778, %v1781
        %v1783 = vsub.f32 %v1778, %v1782
        %v1784 = vmul.f32 %v1783, 1.442695
        %v1785 = vpow.pop %v1784
        %1787 = vset.pattern.permute.xlu0 0
        %1788 = vperm.xlu0 %1787, %v1782
        %v1789 = vpop.permute.xlu0 %1788
        %v1791 = vsub.f32 %v1774, %v1789
        %v1792 = vmul.f32 %v1791, 1.442695
        %v1793 = vpow.pop %v1792
        %s1794 = scalar_lea.vmem [#allocation4], 48
        %v1795 = vld [vmem:[%s1794] sm:$0xff]
        %v1796 = vmul.f32 %v1785, %v1795
        %v1797 = vsel %vm607, %v1793, 0.0
        %1798 = vadd.xlane.f32.xlu0 %v1797
        %v1799 = vpop.xlane.xlu0 %1798
        %v1800 = vadd.f32 %v1796, %v1799
        %1801 = vst.msk [vmem:[%s1794] sm:$0xff] %vm629, %v1800
        %v1802 = vld [vmem:[#allocation5] sm:$0xff]
        %1804 = vset.pattern.permute.xlu0 0
        %1805 = vperm.xlu0 %1804, %v1785
        %v1806 = vpop.permute.xlu0 %1805
        %v1808 = vmul.f32 %v1806, %v1802
        %1809 = vrot.lane.b32.xlu0 %v525, 72
        %v1810 = vpop.permute.xlu0 %1809
        %v1813 = vsel %vm607, %v1793, 0
        %1815 = vmatprep.subr.mxu0 0.0
        %1816 = vmatpush1.msra.mxu0 %v1810
        %1817 = vmatprep.subr.mxu0 0.0
        %1818 = vmatpush1.msra.mxu0 0.0
        %1819 = vmatprep.subr.mxu0 0.0
        %1820 = vmatpush1.msra.mxu0 0.0
        %1821 = vmatprep.subr.mxu0 0.0
        %1822 = vmatpush1.msra.mxu0 0.0
        %1823 = vmatprep.subr.mxu0 0.0
        %1824 = vmatpush1.msra.mxu0 0.0
        %1825 = vmatprep.subr.mxu0 0.0
        %1826 = vmatpush1.msra.mxu0 0.0
        %1827 = vmatprep.subr.mxu0 0.0
        %1828 = vmatpush1.msra.mxu0 0.0
        %1829 = vmatprep.subr.mxu0 0.0
        %1830 = vmatpush1.msra.mxu0 0.0
        %1831 = vmatprep.subr.mxu0 0.0
        %1832 = vmatpush1.msra.mxu0 0.0
        %1833 = vmatprep.subr.mxu0 0.0
        %1834 = vmatpush1.msra.mxu0 0.0
        %1835 = vmatprep.subr.mxu0 0.0
        %1836 = vmatpush1.msra.mxu0 0.0
        %1837 = vmatprep.subr.mxu0 0.0
        %1838 = vmatpush1.msra.mxu0 0.0
        %1839 = vmatprep.subr.mxu0 0.0
        %1840 = vmatpush1.msra.mxu0 0.0
        %1841 = vmatprep.subr.mxu0 0.0
        %1842 = vmatpush1.msra.mxu0 0.0
        %1843 = vmatprep.subr.mxu0 0.0
        %1844 = vmatpush1.msra.mxu0 0.0
        %1845 = vmatprep.subr.mxu0 0.0
        %1846 = vmatpush1.msra.mxu0 0.0
        %1847 = vmatprep.subr.mxu0 0.0
        %1848 = vmatpush1.msra.mxu0 0.0
        %1849 = vmatprep.subr.mxu0 0.0
        %1850 = vmatpush1.msra.mxu0 0.0
        %1851 = vmatprep.subr.mxu0 0.0
        %1852 = vmatpush1.msra.mxu0 0.0
        %1853 = vmatprep.subr.mxu0 0.0
        %1854 = vmatpush1.msra.mxu0 0.0
        %1855 = vmatprep.subr.mxu0 0.0
        %1856 = vmatpush1.msra.mxu0 0.0
        %1857 = vmatprep.subr.mxu0 0.0
        %1858 = vmatpush1.msra.mxu0 0.0
        %1859 = vmatprep.subr.mxu0 0.0
        %1860 = vmatpush1.msra.mxu0 0.0
        %1861 = vmatprep.subr.mxu0 0.0
        %1862 = vmatpush1.msra.mxu0 0.0
        %1863 = vmatprep.subr.mxu0 0.0
        %1864 = vmatpush1.msra.mxu0 0.0
        %1865 = vmatprep.subr.mxu0 0.0
        %1866 = vmatpush1.msra.mxu0 0.0
        %1867 = vmatprep.subr.mxu0 0.0
        %1868 = vmatpush1.msra.mxu0 0.0
        %1869 = vmatprep.subr.mxu0 0.0
        %1870 = vmatpush1.msra.mxu0 0.0
        %1871 = vmatprep.subr.mxu0 0.0
        %1872 = vmatpush1.msra.mxu0 0.0
        %1873 = vmatprep.subr.mxu0 0.0
        %1874 = vmatpush1.msra.mxu0 0.0
        %1875 = vmatprep.subr.mxu0 0.0
        %1876 = vmatpush1.msra.mxu0 0.0
        %1877 = vmatprep.subr.mxu0 0.0
        %1878 = vmatpush1.msra.mxu0 0.0
        %1879 = vmatprep.mubr.f32.mxu0 0.0
        %1880 = vmatmul.mubr.f32.gmra.mrb[0].mxu0 %v1813
        %v1881 = vpop.f32.mrb[0].mxu0
        %v1882 = vadd.f32 0.0, %v1881
        %v1883 = vpop.f32.mrb[0].mxu0
        %1884 = vdwg.mxu0
        %1886 = vrot.lane.b32.xlu0 %v1882, 24
        %v1887 = vpop.permute.xlu0 %1886
        %v1889 = vadd.f32 %v1808, %v1887
        %vm1890 = vcmask 228544
        %1891 = vst.msk [vmem:[#allocation5] sm:$0xff] %vm1890, %v1889
        %1892 = vst.msk [vmem:[%s1777] sm:$0xff] %vm629, %v1782
        %v1893 = vld [vmem:[#allocation2] sm:$0xff]
        %1895 = vrot.lane.b32.xlu0 %v1893, 100
        %v1896 = vpop.permute.xlu0 %1895
        %1897 = vrot.lane.b32.xlu0 %v525, 100
        %v1898 = vpop.permute.xlu0 %1897
        %v1899 = vsel %vm529, %v1896, 0
        %v1901 = vsel %vm529, %v1898, 0
        %1903 = vmatprep.subr.mxu0 0.0
        %1904 = vmatpush1.xpose.msra.mxu0 %v1901
        %1905 = vmatprep.subr.mxu0 0.0
        %1906 = vmatpush1.xpose.msra.mxu0 0.0
        %1907 = vmatprep.subr.mxu0 0.0
        %1908 = vmatpush1.xpose.msra.mxu0 0.0
        %1909 = vmatprep.subr.mxu0 0.0
        %1910 = vmatpush1.xpose.msra.mxu0 0.0
        %1911 = vmatprep.subr.mxu0 0.0
        %1912 = vmatpush1.xpose.msra.mxu0 0.0
        %1913 = vmatprep.subr.mxu0 0.0
        %1914 = vmatpush1.xpose.msra.mxu0 0.0
        %1915 = vmatprep.subr.mxu0 0.0
        %1916 = vmatpush1.xpose.msra.mxu0 0.0
        %1917 = vmatprep.subr.mxu0 0.0
        %1918 = vmatpush1.xpose.msra.mxu0 0.0
        %1919 = vmatprep.subr.mxu0 0.0
        %1920 = vmatpush1.xpose.msra.mxu0 0.0
        %1921 = vmatprep.subr.mxu0 0.0
        %1922 = vmatpush1.xpose.msra.mxu0 0.0
        %1923 = vmatprep.subr.mxu0 0.0
        %1924 = vmatpush1.xpose.msra.mxu0 0.0
        %1925 = vmatprep.subr.mxu0 0.0
        %1926 = vmatpush1.xpose.msra.mxu0 0.0
        %1927 = vmatprep.subr.mxu0 0.0
        %1928 = vmatpush1.xpose.msra.mxu0 0.0
        %1929 = vmatprep.subr.mxu0 0.0
        %1930 = vmatpush1.xpose.msra.mxu0 0.0
        %1931 = vmatprep.subr.mxu0 0.0
        %1932 = vmatpush1.xpose.msra.mxu0 0.0
        %1933 = vmatprep.subr.mxu0 0.0
        %1934 = vmatpush1.xpose.msra.mxu0 0.0
        %1935 = vmatprep.subr.mxu0 0.0
        %1936 = vmatpush1.xpose.msra.mxu0 0.0
        %1937 = vmatprep.subr.mxu0 0.0
        %1938 = vmatpush1.xpose.msra.mxu0 0.0
        %1939 = vmatprep.subr.mxu0 0.0
        %1940 = vmatpush1.xpose.msra.mxu0 0.0
        %1941 = vmatprep.subr.mxu0 0.0
        %1942 = vmatpush1.xpose.msra.mxu0 0.0
        %1943 = vmatprep.subr.mxu0 0.0
        %1944 = vmatpush1.xpose.msra.mxu0 0.0
        %1945 = vmatprep.subr.mxu0 0.0
        %1946 = vmatpush1.xpose.msra.mxu0 0.0
        %1947 = vmatprep.subr.mxu0 0.0
        %1948 = vmatpush1.xpose.msra.mxu0 0.0
        %1949 = vmatprep.subr.mxu0 0.0
        %1950 = vmatpush1.xpose.msra.mxu0 0.0
        %1951 = vmatprep.subr.mxu0 0.0
        %1952 = vmatpush1.xpose.msra.mxu0 0.0
        %1953 = vmatprep.subr.mxu0 0.0
        %1954 = vmatpush1.xpose.msra.mxu0 0.0
        %1955 = vmatprep.subr.mxu0 0.0
        %1956 = vmatpush1.xpose.msra.mxu0 0.0
        %1957 = vmatprep.subr.mxu0 0.0
        %1958 = vmatpush1.xpose.msra.mxu0 0.0
        %1959 = vmatprep.subr.mxu0 0.0
        %1960 = vmatpush1.xpose.msra.mxu0 0.0
        %1961 = vmatprep.subr.mxu0 0.0
        %1962 = vmatpush1.xpose.msra.mxu0 0.0
        %1963 = vmatprep.subr.mxu0 0.0
        %1964 = vmatpush1.xpose.msra.mxu0 0.0
        %1965 = vmatprep.subr.mxu0 0.0
        %1966 = vmatpush1.xpose.msra.mxu0 0.0
        %1967 = vmatprep.mubr.f32.mxu0 0.0
        %1968 = vmatmul.mubr.f32.gmra.mrb[0].mxu0 %v1899
        %v1969 = vpop.f32.mrb[0].mxu0
        %v1970 = vadd.f32 0.0, %v1969
        %v1971 = vpop.f32.mrb[0].mxu0
        %1972 = vdwg.mxu0
        %s1973 = scalar_lea.vmem [#allocation3], 56
        %v1974 = vld [vmem:[%s1973] sm:$0xff]
        %v1975 = vsel %vm607, %v1970, -inf
        %1976 = vmax.xlane.f32.xlu0 %v1975
        %v1977 = vpop.xlane.xlu0 %1976
        %v1978 = vmax.f32 %v1974, %v1977
        %v1979 = vsub.f32 %v1974, %v1978
        %v1980 = vmul.f32 %v1979, 1.442695
        %v1981 = vpow.pop %v1980
        %1983 = vset.pattern.permute.xlu0 0
        %1984 = vperm.xlu0 %1983, %v1978
        %v1985 = vpop.permute.xlu0 %1984
        %v1987 = vsub.f32 %v1970, %v1985
        %v1988 = vmul.f32 %v1987, 1.442695
        %v1989 = vpow.pop %v1988
        %s1990 = scalar_lea.vmem [#allocation4], 56
        %v1991 = vld [vmem:[%s1990] sm:$0xff]
        %v1992 = vmul.f32 %v1981, %v1991
        %v1993 = vsel %vm607, %v1989, 0.0
        %1994 = vadd.xlane.f32.xlu0 %v1993
        %v1995 = vpop.xlane.xlu0 %1994
        %v1996 = vadd.f32 %v1992, %v1995
        %1997 = vst.msk [vmem:[%s1990] sm:$0xff] %vm629, %v1996
        %v1998 = vld [vmem:[#allocation5] sm:$0xff]
        %2000 = vset.pattern.permute.xlu0 0
        %2001 = vperm.xlu0 %2000, %v1981
        %v2002 = vpop.permute.xlu0 %2001
        %v2004 = vmul.f32 %v2002, %v1998
        %2005 = vrot.lane.b32.xlu0 %v525, 68
        %v2006 = vpop.permute.xlu0 %2005
        %v2009 = vsel %vm607, %v1989, 0
        %2011 = vmatprep.subr.mxu0 0.0
        %2012 = vmatpush1.msra.mxu0 %v2006
        %2013 = vmatprep.subr.mxu0 0.0
        %2014 = vmatpush1.msra.mxu0 0.0
        %2015 = vmatprep.subr.mxu0 0.0
        %2016 = vmatpush1.msra.mxu0 0.0
        %2017 = vmatprep.subr.mxu0 0.0
        %2018 = vmatpush1.msra.mxu0 0.0
        %2019 = vmatprep.subr.mxu0 0.0
        %2020 = vmatpush1.msra.mxu0 0.0
        %2021 = vmatprep.subr.mxu0 0.0
        %2022 = vmatpush1.msra.mxu0 0.0
        %2023 = vmatprep.subr.mxu0 0.0
        %2024 = vmatpush1.msra.mxu0 0.0
        %2025 = vmatprep.subr.mxu0 0.0
        %2026 = vmatpush1.msra.mxu0 0.0
        %2027 = vmatprep.subr.mxu0 0.0
        %2028 = vmatpush1.msra.mxu0 0.0
        %2029 = vmatprep.subr.mxu0 0.0
        %2030 = vmatpush1.msra.mxu0 0.0
        %2031 = vmatprep.subr.mxu0 0.0
        %2032 = vmatpush1.msra.mxu0 0.0
        %2033 = vmatprep.subr.mxu0 0.0
        %2034 = vmatpush1.msra.mxu0 0.0
        %2035 = vmatprep.subr.mxu0 0.0
        %2036 = vmatpush1.msra.mxu0 0.0
        %2037 = vmatprep.subr.mxu0 0.0
        %2038 = vmatpush1.msra.mxu0 0.0
        %2039 = vmatprep.subr.mxu0 0.0
        %2040 = vmatpush1.msra.mxu0 0.0
        %2041 = vmatprep.subr.mxu0 0.0
        %2042 = vmatpush1.msra.mxu0 0.0
        %2043 = vmatprep.subr.mxu0 0.0
        %2044 = vmatpush1.msra.mxu0 0.0
        %2045 = vmatprep.subr.mxu0 0.0
        %2046 = vmatpush1.msra.mxu0 0.0
        %2047 = vmatprep.subr.mxu0 0.0
        %2048 = vmatpush1.msra.mxu0 0.0
        %2049 = vmatprep.subr.mxu0 0.0
        %2050 = vmatpush1.msra.mxu0 0.0
        %2051 = vmatprep.subr.mxu0 0.0
        %2052 = vmatpush1.msra.mxu0 0.0
        %2053 = vmatprep.subr.mxu0 0.0
        %2054 = vmatpush1.msra.mxu0 0.0
        %2055 = vmatprep.subr.mxu0 0.0
        %2056 = vmatpush1.msra.mxu0 0.0
        %2057 = vmatprep.subr.mxu0 0.0
        %2058 = vmatpush1.msra.mxu0 0.0
        %2059 = vmatprep.subr.mxu0 0.0
        %2060 = vmatpush1.msra.mxu0 0.0
        %2061 = vmatprep.subr.mxu0 0.0
        %2062 = vmatpush1.msra.mxu0 0.0
        %2063 = vmatprep.subr.mxu0 0.0
        %2064 = vmatpush1.msra.mxu0 0.0
        %2065 = vmatprep.subr.mxu0 0.0
        %2066 = vmatpush1.msra.mxu0 0.0
        %2067 = vmatprep.subr.mxu0 0.0
        %2068 = vmatpush1.msra.mxu0 0.0
        %2069 = vmatprep.subr.mxu0 0.0
        %2070 = vmatpush1.msra.mxu0 0.0
        %2071 = vmatprep.subr.mxu0 0.0
        %2072 = vmatpush1.msra.mxu0 0.0
        %2073 = vmatprep.subr.mxu0 0.0
        %2074 = vmatpush1.msra.mxu0 0.0
        %2075 = vmatprep.mubr.f32.mxu0 0.0
        %2076 = vmatmul.mubr.f32.gmra.mrb[0].mxu0 %v2009
        %v2077 = vpop.f32.mrb[0].mxu0
        %v2078 = vadd.f32 0.0, %v2077
        %v2079 = vpop.f32.mrb[0].mxu0
        %2080 = vdwg.mxu0
        %2082 = vrot.lane.b32.xlu0 %v2078, 28
        %v2083 = vpop.permute.xlu0 %2082
        %v2085 = vadd.f32 %v2004, %v2083
        %vm2086 = vcmask 261344
        %2087 = vst.msk [vmem:[#allocation5] sm:$0xff] %vm2086, %v2085
        %2088 = vst.msk [vmem:[%s1973] sm:$0xff] %vm629, %v1978
        // Predicated region
        $region65: #{tpu_custom_call.1} parent=39 // pred_check
          %p2089 = pneg %p347
        $region66: #{tpu_custom_call.1} parent=39 // pred_check_branch
          %2091 = sbr.rel (%p2089) target = $region68
        $region67: #{tpu_custom_call.1} parent=39 // pred_region
          %v2092 = vld [vmem:[#allocation4] sm:$0xff]
          %v2093 = vrcp.pop %v2092
          %v2094 = vld [vmem:[#allocation5] sm:$0xff]
          %2096 = vset.pattern.permute.xlu0 0
          %2097 = vperm.xlu0 %2096, %v2093
          %v2098 = vpop.permute.xlu0 %2097
          %v2100 = vmul.f32 %v2094, %v2098
          %2101 = vst.msk [vmem:[#allocation5] sm:$0xff] %vm529, %v2100
          %v2102 = vld [vmem:[%s814] sm:$0xff]
          %v2103 = vrcp.pop %v2102
          %v2104 = vld [vmem:[#allocation5] sm:$0xff]
          %2106 = vset.pattern.permute.xlu0 0
          %2107 = vperm.xlu0 %2106, %v2103
          %v2108 = vpop.permute.xlu0 %2107
          %v2110 = vmul.f32 %v2104, %v2108
          %2111 = vst.msk [vmem:[#allocation5] sm:$0xff] %vm910, %v2110
          %v2112 = vld [vmem:[%s1010] sm:$0xff]
          %v2113 = vrcp.pop %v2112
          %v2114 = vld [vmem:[#allocation5] sm:$0xff]
          %2116 = vset.pattern.permute.xlu0 0
          %2117 = vperm.xlu0 %2116, %v2113
          %v2118 = vpop.permute.xlu0 %2117
          %v2120 = vmul.f32 %v2114, %v2118
          %2121 = vst.msk [vmem:[#allocation5] sm:$0xff] %vm1106, %v2120
          %v2122 = vld [vmem:[%s1206] sm:$0xff]
          %v2123 = vrcp.pop %v2122
          %v2124 = vld [vmem:[#allocation5] sm:$0xff]
          %2126 = vset.pattern.permute.xlu0 0
          %2127 = vperm.xlu0 %2126, %v2123
          %v2128 = vpop.permute.xlu0 %2127
          %v2130 = vmul.f32 %v2124, %v2128
          %2131 = vst.msk [vmem:[#allocation5] sm:$0xff] %vm1302, %v2130
          %v2132 = vld [vmem:[%s1402] sm:$0xff]
          %v2133 = vrcp.pop %v2132
          %v2134 = vld [vmem:[#allocation5] sm:$0xff]
          %2136 = vset.pattern.permute.xlu0 0
          %2137 = vperm.xlu0 %2136, %v2133
          %v2138 = vpop.permute.xlu0 %2137
          %v2140 = vmul.f32 %v2134, %v2138
          %2141 = vst.msk [vmem:[#allocation5] sm:$0xff] %vm1498, %v2140
          %v2142 = vld [vmem:[%s1598] sm:$0xff]
          %v2143 = vrcp.pop %v2142
          %v2144 = vld [vmem:[#allocation5] sm:$0xff]
          %2146 = vset.pattern.permute.xlu0 0
          %2147 = vperm.xlu0 %2146, %v2143
          %v2148 = vpop.permute.xlu0 %2147
          %v2150 = vmul.f32 %v2144, %v2148
          %2151 = vst.msk [vmem:[#allocation5] sm:$0xff] %vm1694, %v2150
          %v2152 = vld [vmem:[%s1794] sm:$0xff]
          %v2153 = vrcp.pop %v2152
          %v2154 = vld [vmem:[#allocation5] sm:$0xff]
          %2156 = vset.pattern.permute.xlu0 0
          %2157 = vperm.xlu0 %2156, %v2153
          %v2158 = vpop.permute.xlu0 %2157
          %v2160 = vmul.f32 %v2154, %v2158
          %2161 = vst.msk [vmem:[#allocation5] sm:$0xff] %vm1890, %v2160
          %v2162 = vld [vmem:[%s1990] sm:$0xff]
          %v2163 = vrcp.pop %v2162
          %v2164 = vld [vmem:[#allocation5] sm:$0xff]
          %2166 = vset.pattern.permute.xlu0 0
          %2167 = vperm.xlu0 %2166, %v2163
          %v2168 = vpop.permute.xlu0 %2167
          %v2170 = vmul.f32 %v2164, %v2168
          %2171 = vst.msk [vmem:[#allocation5] sm:$0xff] %vm2086, %v2170
          %v2172 = vld [vmem:[#allocation5] sm:$0xff]
          %v2173 = vld [vmem:[#allocation14] sm:$0xff]
          %v2174 = vld [vmem:[#allocation14 + $0x8] sm:$0xff]
          %v2175 = vld [vmem:[#allocation14 + $0x10] sm:$0xff]
          %v2176 = vld [vmem:[#allocation14 + $0x18] sm:$0xff]
          %v2178 = vsel %vm454, %v2172, 0
          %2180 = vmatprep.subr.mxu0 0.0
          %2181 = vmatpush1.msra.mxu0 %v2173
          %2182 = vmatprep.subr.mxu0 0.0
          %2183 = vmatpush1.msra.mxu0 %v2174
          %2184 = vmatprep.subr.mxu0 0.0
          %2185 = vmatpush1.msra.mxu0 %v2175
          %2186 = vmatprep.subr.mxu0 0.0
          %2187 = vmatpush1.msra.mxu0 %v2176
          %2188 = vmatprep.subr.mxu0 0.0
          %2189 = vmatpush1.msra.mxu0 0.0
          %2190 = vmatprep.subr.mxu0 0.0
          %2191 = vmatpush1.msra.mxu0 0.0
          %2192 = vmatprep.subr.mxu0 0.0
          %2193 = vmatpush1.msra.mxu0 0.0
          %2194 = vmatprep.subr.mxu0 0.0
          %2195 = vmatpush1.msra.mxu0 0.0
          %2196 = vmatprep.subr.mxu0 0.0
          %2197 = vmatpush1.msra.mxu0 0.0
          %2198 = vmatprep.subr.mxu0 0.0
          %2199 = vmatpush1.msra.mxu0 0.0
          %2200 = vmatprep.subr.mxu0 0.0
          %2201 = vmatpush1.msra.mxu0 0.0
          %2202 = vmatprep.subr.mxu0 0.0
          %2203 = vmatpush1.msra.mxu0 0.0
          %2204 = vmatprep.subr.mxu0 0.0
          %2205 = vmatpush1.msra.mxu0 0.0
          %2206 = vmatprep.subr.mxu0 0.0
          %2207 = vmatpush1.msra.mxu0 0.0
          %2208 = vmatprep.subr.mxu0 0.0
          %2209 = vmatpush1.msra.mxu0 0.0
          %2210 = vmatprep.subr.mxu0 0.0
          %2211 = vmatpush1.msra.mxu0 0.0
          %2212 = vmatprep.subr.mxu0 0.0
          %2213 = vmatpush1.msra.mxu0 0.0
          %2214 = vmatprep.subr.mxu0 0.0
          %2215 = vmatpush1.msra.mxu0 0.0
          %2216 = vmatprep.subr.mxu0 0.0
          %2217 = vmatpush1.msra.mxu0 0.0
          %2218 = vmatprep.subr.mxu0 0.0
          %2219 = vmatpush1.msra.mxu0 0.0
          %2220 = vmatprep.subr.mxu0 0.0
          %2221 = vmatpush1.msra.mxu0 0.0
          %2222 = vmatprep.subr.mxu0 0.0
          %2223 = vmatpush1.msra.mxu0 0.0
          %2224 = vmatprep.subr.mxu0 0.0
          %2225 = vmatpush1.msra.mxu0 0.0
          %2226 = vmatprep.subr.mxu0 0.0
          %2227 = vmatpush1.msra.mxu0 0.0
          %2228 = vmatprep.subr.mxu0 0.0
          %2229 = vmatpush1.msra.mxu0 0.0
          %2230 = vmatprep.subr.mxu0 0.0
          %2231 = vmatpush1.msra.mxu0 0.0
          %2232 = vmatprep.subr.mxu0 0.0
          %2233 = vmatpush1.msra.mxu0 0.0
          %2234 = vmatprep.subr.mxu0 0.0
          %2235 = vmatpush1.msra.mxu0 0.0
          %2236 = vmatprep.subr.mxu0 0.0
          %2237 = vmatpush1.msra.mxu0 0.0
          %2238 = vmatprep.subr.mxu0 0.0
          %2239 = vmatpush1.msra.mxu0 0.0
          %2240 = vmatprep.subr.mxu0 0.0
          %2241 = vmatpush1.msra.mxu0 0.0
          %2242 = vmatprep.subr.mxu0 0.0
          %2243 = vmatpush1.msra.mxu0 0.0
          %2244 = vmatprep.mubr.f32.mxu0 0.0
          %2245 = vmatmul.mubr.f32.gmra.mrb[0].mxu0 %v2178
          %v2246 = vpop.f32.mrb[0].mxu0
          %v2247 = vadd.f32 0.0, %v2246
          %v2248 = vpop.f32.mrb[0].mxu0
          %2249 = vdwg.mxu0
          %2250 = vst.msk [vmem:[%s346] sm:$0xff] %vm454, %v2247
        $region68: #{tpu_custom_call.1} parent=39 // pred_fallthru
          _
        %s2251 = sand.u32 %s174, 1
        %s2252 = scalar_lea.sflag [#allocation8], %s2251
        %s2253 = sand.u32 %s174, 1
        %s2254 = smul.addr %s2253, 8
        %s2255 = scalar_lea.vmem [#allocation15], %s2254
        // Predicated region
        $region69: #{tpu_custom_call.1} parent=39 // pred_check
          %p2256 = pneg %p184
        $region70: #{tpu_custom_call.1} parent=39 // pred_check_branch
          %2258 = sbr.rel (%p2256) target = $region72
        $region71: #{tpu_custom_call.1} parent=39 // pred_region
          %s2260 = ssub.s32 128, 128
          %2261 = vsyncadd %s2252, %s2260
          %s2262 = sadd.s32 %s32, %s31
          %s2263 = smul.addr %s2262, 128
          %s2264 = scalar_lea.hbm %s5, %s2263
          %s2266 = sshll.u32 %s2255, 4
          %s2267 = int_to_ptr.vmem [resolvable:$true] %s2266
          %2269 = dma.vmem_to_hbm [thread:$0]  %s2267, 128, %s2264, %s2252
        $region72: #{tpu_custom_call.1} parent=39 // pred_fallthru
          _
      $region40: #{tpu_custom_call.1} parent=5 // pred_fallthru
        _
      %p2270 = scmp.le.s32.totalorder 2, %s21
      // Predicated region
      $region73: #{tpu_custom_call.1} parent=5 // pred_check
        %p2271 = pneg %p2270
      $region74: #{tpu_custom_call.1} parent=5 // pred_check_branch
        %2273 = sbr.rel (%p2271) target = $region76
      $region75: #{tpu_custom_call.1} parent=5 // pred_region
        %s2274 = ssub.s32 %s21, 2
        // Predicated region
        $region77: #{tpu_custom_call.1} parent=75 // pred_check
          %p2275 = pneg %p190
        $region78: #{tpu_custom_call.1} parent=75 // pred_check_branch
          %2277 = sbr.rel (%p2275) target = $region80
        $region79: #{tpu_custom_call.1} parent=75 // pred_region
          %s2278 = sand.u32 %s175, 1
          %s2279 = scalar_lea.sflag [#allocation8], %s2278
          %s2280 = sand.u32 %s175, 1
          %s2281 = smul.addr %s2280, 8
          %s2282 = scalar_lea.vmem [#allocation15], %s2281
          %2283 = dma.done %s2279, 128
        $region80: #{tpu_custom_call.1} parent=75 // pred_fallthru
          _
      $region76: #{tpu_custom_call.1} parent=5 // pred_fallthru
        _
    $region6: #{tpu_custom_call.1} parent=1 // loop_footer
      %s25 = sadd.s32 1, %s21
    $region7: #{tpu_custom_call.1} parent=1 // loop_footer_branch
      %20 = sbr.rel target = $region3
    $region8: #{tpu_custom_call.1} parent=1 // loop_exit
      _
    %2284 = vsyncpa [#allocation7], 1
    %s2285 = scalar_lea.sflag [#allocation7], 1
    %2286 = vsyncpa %s2285, 1
    %2287 = vsyncpa [#allocation10], 1
    %s2288 = scalar_lea.sflag [#allocation10], 1
    %2289 = vsyncpa %s2288, 1
    %2290 = vsyncpa [#allocation13], 1
    %2291 = vsyncpa [#allocation8], 1
    %s2292 = scalar_lea.sflag [#allocation8], 1
    %2293 = vsyncpa %s2292, 1

// kernel: tpu_custom_call.1
$region0: #{tpu_custom_call.1}
  #allocation0 [shape = 'u32[]', space=smem, size = 0x4, offset = 0x4, fixed_abs, tag = 'smem constant byte address 0x4 - core index']
  #allocation1 [shape = 'u32[144,128]{1,0:T(1,128)}', space=vmem, size = 0x12000, scoped, tag = 'internal scratch']
  #allocation2 [shape = 'f32[8,32]{1,0:T(8,128)}', space=vmem, size = 0x1000, scoped, tag = 'scratch operand']
  #allocation3 [shape = 'f32[8,8,1]{2,1,0:T(8,128)}', space=vmem, size = 0x8000, scoped, tag = 'scratch operand']
  #allocation4 [shape = 'f32[8,8,1]{2,1,0:T(8,128)}', space=vmem, size = 0x8000, scoped, tag = 'scratch operand']
  #allocation5 [shape = 'f32[8,32]{1,0:T(8,128)}', space=vmem, size = 0x1000, scoped, tag = 'scratch operand']
  %s0 = inlined_call_operand.hbm [shape: f32[2,8,32], index: 0, kind: input, shape index: {}]
  %s1 = inlined_call_operand.hbm [shape: f32[2,8,32], index: 1, kind: input, shape index: {}]
  %s2 = inlined_call_operand.hbm [shape: f32[32,32], index: 2, kind: input, shape index: {}]
  %s3 = inlined_call_operand.hbm [shape: f32[32,64], index: 3, kind: input, shape index: {}]
  %s4 = inlined_call_operand.hbm [shape: f32[32,32], index: 4, kind: input, shape index: {}]
  %s5 = inlined_call_operand.hbm [shape: f32[2,8,32], index: 5, kind: output, shape index: {}]
  %s6 = sld [smem:[#allocation0]]
  $region81: #{tpu_custom_call.1} parent=0
    _
  %s8 = ssub.s32 1, %s6
  %s9 = scalar_select 0, %s8, %s6
  $region1: #{tpu_custom_call.1} parent=0
    #allocation6 [shape = 'u8[8192]{0}', space=vmem, size = 0x2000, scoped, tag = 'input window, operand 0']
    #allocation7 [shape = 's32[2]{0}', space=sflag, size = 0x8, scoped, tag = 'scoped memory for tpu_custom_call.1']
    #allocation8 [shape = 's32[2]{0}', space=sflag, size = 0x8, scoped, tag = 'scoped memory for tpu_custom_call.1']
    #allocation9 [shape = 'u8[8192]{0}', space=vmem, size = 0x2000, scoped, tag = 'input window, operand 1']
    #allocation10 [shape = 's32[2]{0}', space=sflag, size = 0x8, scoped, tag = 'scoped memory for tpu_custom_call.1']
    #allocation11 [shape = 'u8[16384]{0}', space=vmem, size = 0x4000, scoped, tag = 'input window, operand 2, single buffered']
    #allocation12 [shape = 'u8[16384]{0}', space=vmem, size = 0x4000, scoped, tag = 'input window, operand 3, single buffered']
    #allocation13 [shape = 's32[1]{0}', space=sflag, size = 0x4, scoped, tag = 'scoped memory for tpu_custom_call.1']
    #allocation14 [shape = 'u8[16384]{0}', space=vmem, size = 0x4000, scoped, tag = 'input window, operand 4, single buffered']
    #allocation15 [shape = 'u8[8192]{0}', space=vmem, size = 0x2000, scoped, tag = 'output window, operand 0']
    %10 = vsyncpa [#allocation7], 0
    %s11 = scalar_lea.sflag [#allocation7], 1
    %12 = vsyncpa %s11, 0
    %13 = vsyncpa [#allocation10], 0
    %s14 = scalar_lea.sflag [#allocation10], 1
    %15 = vsyncpa %s14, 0
    %16 = vsyncpa [#allocation13], 0
    %17 = vsyncpa [#allocation8], 0
    %s18 = scalar_lea.sflag [#allocation8], 1
    %19 = vsyncpa %s18, 0
    loop: start=0, step=1, limit=4
    $region2: #{tpu_custom_call.1} parent=1 // loop_pre_header
      _
    $region3: #{tpu_custom_call.1} parent=1 // loop_header
      %s21 = sphi 0, %s25
      %p22 = scmp.ge.s32.totalorder %s21, 4
      %s28 = sphi 0, %s47
      %s29 = sphi 0, %s43
      %s30 = sphi 0, %s39
      %s31 = sphi 0, %s28
      %s32 = sphi 0, %s29
      %s33 = sphi 0, %s30
      %s34 = sphi 0, %s31
      %s35 = sphi 0, %s32
      %s36 = sphi 0, %s33
      %s52 = sphi 0, %s54
      %s55 = sphi 0, %s52
      %s56 = sphi 0, %s55
      %s72 = sphi 0, %s56
      %s80 = sphi 0, %s82
      %s83 = sphi 0, %s80
      %s84 = sphi 0, %s83
      %s100 = sphi 0, %s84
      %s104 = sphi 0, %s104
      %s106 = sphi 0, %s104
      %s107 = sphi 0, %s106
      %s121 = sphi 0, %s107
      %s125 = sphi 0, %s125
      %s127 = sphi 0, %s125
      %s128 = sphi 0, %s127
      %s142 = sphi 0, %s128
      %s146 = sphi 0, %s146
      %s148 = sphi 0, %s146
      %s149 = sphi 0, %s148
      %s163 = sphi 0, %s149
      %s171 = sphi 0, %s173
      %s174 = sphi 0, %s171
      %s175 = sphi 0, %s174
      %s191 = sphi 0, %s175
    $region4: #{tpu_custom_call.1} parent=1 // loop_header_branch
      %24 = sbr.rel (%p22) target = $region8
    $region5: #{tpu_custom_call.1} parent=1 // loop_body
      %s26 = ssub.s32 %s21, 1
      %s27 = ssub.s32 %s21, 2
      %s37 = sadd.s32 1, %s30
      %p38 = scmp.ge.s32.totalorder %s37, 1
      %s39 = scalar_select %p38, 0, %s37
      %s40 = sadd.s32 1, %s29
      %s41 = scalar_select %p38, %s40, %s29
      %p42 = scmp.ge.s32.totalorder %s41, 1
      %s43 = scalar_select %p42, 0, %s41
      %s44 = sadd.s32 1, %s28
      %s45 = scalar_select %p42, %s44, %s28
      %p46 = scmp.ge.s32.totalorder %s45, 2
      %s47 = scalar_select %p46, 0, %s45
      %s48 = ssub.s32 %s28, %s47
      %s49 = ssub.s32 %s29, %s43
      %s50 = sor.u32 %s48, %s49
      %p51 = scmp.eq.s32.totalorder %s50, 0
      %s53 = sadd.s32 %s52, 1
      %s54 = scalar_select %p51, %s52, %s53
      %p57 = pneg %p51
      %p58 = scmp.eq.s32.totalorder %s21, 1
      %p59 = por %p57, %p58
      %p60 = scmp.ne.s32.totalorder %s52, %s55
      %p61 = scmp.eq.s32.totalorder %s21, 0
      %p62 = por %p60, %p61
      %p63 = scmp.ne.s32.totalorder %s52, %s55
      %p64 = scmp.eq.s32.totalorder %s26, 1
      %p65 = por %p63, %p64
      %p66 = scmp.ne.s32.totalorder %s55, %s56
      %p67 = scmp.eq.s32.totalorder %s26, 0
      %p68 = por %p66, %p67
      %p69 = scmp.ne.s32.totalorder %s55, %s56
      %p70 = scmp.eq.s32.totalorder %s27, 1
      %p71 = por %p69, %p70
      %p73 = scmp.ne.s32.totalorder %s56, %s72
      %p74 = scmp.eq.s32.totalorder %s27, 0
      %p75 = por %p73, %p74
      %s76 = ssub.s32 %s28, %s47
      %s77 = ssub.s32 %s30, %s39
      %s78 = sor.u32 %s76, %s77
      %p79 = scmp.eq.s32.totalorder %s78, 0
      %s81 = sadd.s32 %s80, 1
      %s82 = scalar_select %p79, %s80, %s81
      %p85 = pneg %p79
      %p86 = scmp.eq.s32.totalorder %s21, 1
      %p87 = por %p85, %p86
      %p88 = scmp.ne.s32.totalorder %s80, %s83
      %p89 = scmp.eq.s32.totalorder %s21, 0
      %p90 = por %p88, %p89
      %p91 = scmp.ne.s32.totalorder %s80, %s83
      %p92 = scmp.eq.s32.totalorder %s26, 1
      %p93 = por %p91, %p92
      %p94 = scmp.ne.s32.totalorder %s83, %s84
      %p95 = scmp.eq.s32.totalorder %s26, 0
      %p96 = por %p94, %p95
      %p97 = scmp.ne.s32.totalorder %s83, %s84
      %p98 = scmp.eq.s32.totalorder %s27, 1
      %p99 = por %p97, %p98
      %p101 = scmp.ne.s32.totalorder %s84, %s100
      %p102 = scmp.eq.s32.totalorder %s27, 0
      %p103 = por %p101, %p102
      %s105 = sadd.s32 %s104, 1
      %p108 = scmp.eq.s32.totalorder %s21, 1
      %p109 = scmp.ne.s32.totalorder %s104, %s106
      %p110 = scmp.eq.s32.totalorder %s21, 0
      %p111 = por %p109, %p110
      %p112 = scmp.ne.s32.totalorder %s104, %s106
      %p113 = scmp.eq.s32.totalorder %s26, 1
      %p114 = por %p112, %p113
      %p115 = scmp.ne.s32.totalorder %s106, %s107
      %p116 = scmp.eq.s32.totalorder %s26, 0
      %p117 = por %p115, %p116
      %p118 = scmp.ne.s32.totalorder %s106, %s107
      %p119 = scmp.eq.s32.totalorder %s27, 1
      %p120 = por %p118, %p119
      %p122 = scmp.ne.s32.totalorder %s107, %s121
      %p123 = scmp.eq.s32.totalorder %s27, 0
      %p124 = por %p122, %p123
      %s126 = sadd.s32 %s125, 1
      %p129 = scmp.eq.s32.totalorder %s21, 1
      %p130 = scmp.ne.s32.totalorder %s125, %s127
      %p131 = scmp.eq.s32.totalorder %s21, 0
      %p132 = por %p130, %p131
      %p133 = scmp.ne.s32.totalorder %s125, %s127
      %p134 = scmp.eq.s32.totalorder %s26, 1
      %p135 = por %p133, %p134
      %p136 = scmp.ne.s32.totalorder %s127, %s128
      %p137 = scmp.eq.s32.totalorder %s26, 0
      %p138 = por %p136, %p137
      %p139 = scmp.ne.s32.totalorder %s127, %s128
      %p140 = scmp.eq.s32.totalorder %s27, 1
      %p141 = por %p139, %p140
      %p143 = scmp.ne.s32.totalorder %s128, %s142
      %p144 = scmp.eq.s32.totalorder %s27, 0
      %p145 = por %p143, %p144
      %s147 = sadd.s32 %s146, 1
      %p150 = scmp.eq.s32.totalorder %s21, 1
      %p151 = scmp.ne.s32.totalorder %s146, %s148
      %p152 = scmp.eq.s32.totalorder %s21, 0
      %p153 = por %p151, %p152
      %p154 = scmp.ne.s32.totalorder %s146, %s148
      %p155 = scmp.eq.s32.totalorder %s26, 1
      %p156 = por %p154, %p155
      %p157 = scmp.ne.s32.totalorder %s148, %s149
      %p158 = scmp.eq.s32.totalorder %s26, 0
      %p159 = por %p157, %p158
      %p160 = scmp.ne.s32.totalorder %s148, %s149
      %p161 = scmp.eq.s32.totalorder %s27, 1
      %p162 = por %p160, %p161
      %p164 = scmp.ne.s32.totalorder %s149, %s163
      %p165 = scmp.eq.s32.totalorder %s27, 0
      %p166 = por %p164, %p165
      %s167 = ssub.s32 %s28, %s47
      %s168 = ssub.s32 %s29, %s43
      %s169 = sor.u32 %s167, %s168
      %p170 = scmp.eq.s32.totalorder %s169, 0
      %s172 = sadd.s32 %s171, 1
      %s173 = scalar_select %p170, %s171, %s172
      %p176 = pneg %p170
      %p177 = scmp.eq.s32.totalorder %s21, 1
      %p178 = por %p176, %p177
      %p179 = scmp.ne.s32.totalorder %s171, %s174
      %p180 = scmp.eq.s32.totalorder %s21, 0
      %p181 = por %p179, %p180
      %p182 = scmp.ne.s32.totalorder %s171, %s174
      %p183 = scmp.eq.s32.totalorder %s26, 1
      %p184 = por %p182, %p183
      %p185 = scmp.ne.s32.totalorder %s174, %s175
      %p186 = scmp.eq.s32.totalorder %s26, 0
      %p187 = por %p185, %p186
      %p188 = scmp.ne.s32.totalorder %s174, %s175
      %p189 = scmp.eq.s32.totalorder %s27, 1
      %p190 = por %p188, %p189
      %p192 = scmp.ne.s32.totalorder %s175, %s191
      %p193 = scmp.eq.s32.totalorder %s27, 0
      %p194 = por %p192, %p193
      %p195 = scmp.le.s32.totalorder 1, %s21
      %p196 = scmp.lt.s32.totalorder %s21, 3
      %p197 = pnand %p195, %p196
      %p198 = pneg %p197
      // Predicated region
      $region9: #{tpu_custom_call.1} parent=5 // pred_check
        _
      $region10: #{tpu_custom_call.1} parent=5 // pred_check_branch
        %200 = sbr.rel (%p197) target = $region12
      $region11: #{tpu_custom_call.1} parent=5 // pred_region
        %s201 = ssub.s32 %s21, 1
        // Predicated region
        $region13: #{tpu_custom_call.1} parent=11 // pred_check
          %p202 = pneg %p117
        $region14: #{tpu_custom_call.1} parent=11 // pred_check_branch
          %204 = sbr.rel (%p202) target = $region16
        $region15: #{tpu_custom_call.1} parent=11 // pred_region
          %s206 = ssub.s32 512, 512
          %207 = vsyncadd [#allocation10], %s206
          %s208 = sshll.u32 [#allocation11], 4
          %s209 = int_to_ptr.vmem [resolvable:$true] %s208
          %214 = dma.hbm_to_vmem [thread:$0]  %s2, 512, %s209, [#allocation10], 128, 128, 8
        $region16: #{tpu_custom_call.1} parent=11 // pred_fallthru
          _
        // Predicated region
        $region17: #{tpu_custom_call.1} parent=11 // pred_check
          %p215 = pneg %p138
        $region18: #{tpu_custom_call.1} parent=11 // pred_check_branch
          %217 = sbr.rel (%p215) target = $region20
        $region19: #{tpu_custom_call.1} parent=11 // pred_region
          %s219 = ssub.s32 512, 512
          %220 = vsyncadd [#allocation13], %s219
          %s221 = sshll.u32 [#allocation12], 4
          %s222 = int_to_ptr.vmem [resolvable:$true] %s221
          %227 = dma.hbm_to_vmem [thread:$0]  %s3, 512, %s222, [#allocation13], 128, 128, 8
        $region20: #{tpu_custom_call.1} parent=11 // pred_fallthru
          _
        // Predicated region
        $region21: #{tpu_custom_call.1} parent=11 // pred_check
          %p228 = pneg %p159
        $region22: #{tpu_custom_call.1} parent=11 // pred_check_branch
          %230 = sbr.rel (%p228) target = $region24
        $region23: #{tpu_custom_call.1} parent=11 // pred_region
          %s232 = ssub.s32 512, 512
          %233 = vsyncadd [#allocation13], %s232
          %s234 = sshll.u32 [#allocation14], 4
          %s235 = int_to_ptr.vmem [resolvable:$true] %s234
          %240 = dma.hbm_to_vmem [thread:$0]  %s4, 512, %s235, [#allocation13], 128, 128, 8
        $region24: #{tpu_custom_call.1} parent=11 // pred_fallthru
          _
      $region12: #{tpu_custom_call.1} parent=5 // pred_fallthru
        _
      %p241 = scmp.lt.s32.totalorder %s21, 2
      // Predicated region
      $region25: #{tpu_custom_call.1} parent=5 // pred_check
        %p242 = pneg %p241
      $region26: #{tpu_custom_call.1} parent=5 // pred_check_branch
        %244 = sbr.rel (%p242) target = $region28
      $region27: #{tpu_custom_call.1} parent=5 // pred_region
        // Predicated region
        $region29: #{tpu_custom_call.1} parent=27 // pred_check
          %p245 = pneg %p62
        $region30: #{tpu_custom_call.1} parent=27 // pred_check_branch
          %247 = sbr.rel (%p245) target = $region32
        $region31: #{tpu_custom_call.1} parent=27 // pred_region
          %s248 = sand.u32 %s52, 1
          %s249 = scalar_lea.sflag [#allocation7], %s248
          %s250 = sand.u32 %s52, 1
          %s251 = smul.addr %s250, 8
          %s252 = scalar_lea.vmem [#allocation6], %s251
          %s254 = ssub.s32 128, 128
          %255 = vsyncadd %s249, %s254
          %s256 = sadd.s32 %s29, %s28
          %s257 = smul.addr %s256, 128
          %s258 = scalar_lea.hbm %s0, %s257
          %s260 = sshll.u32 %s252, 4
          %s261 = int_to_ptr.vmem [resolvable:$true] %s260
          %263 = dma.hbm_to_vmem [thread:$0]  %s258, 128, %s261, %s249
        $region32: #{tpu_custom_call.1} parent=27 // pred_fallthru
          _
        // Predicated region
        $region33: #{tpu_custom_call.1} parent=27 // pred_check
          %p264 = pneg %p90
        $region34: #{tpu_custom_call.1} parent=27 // pred_check_branch
          %266 = sbr.rel (%p264) target = $region36
        $region35: #{tpu_custom_call.1} parent=27 // pred_region
          %s267 = sand.u32 %s21, 1
          %s268 = scalar_lea.sflag [#allocation10], %s267
          %s269 = sand.u32 %s80, 1
          %s270 = smul.addr %s269, 8
          %s271 = scalar_lea.vmem [#allocation9], %s270
          %s273 = ssub.s32 128, 128
          %274 = vsyncadd %s268, %s273
          %s275 = sadd.s32 %s30, %s28
          %s276 = smul.addr %s275, 128
          %s277 = scalar_lea.hbm %s1, %s276
          %s279 = sshll.u32 %s271, 4
          %s280 = int_to_ptr.vmem [resolvable:$true] %s279
          %282 = dma.hbm_to_vmem [thread:$0]  %s277, 128, %s280, %s268
        $region36: #{tpu_custom_call.1} parent=27 // pred_fallthru
          _
      $region28: #{tpu_custom_call.1} parent=5 // pred_fallthru
        _
      %p283 = scmp.le.s32.totalorder 1, %s21
      %p284 = scmp.lt.s32.totalorder %s21, 3
      %p285 = pnand %p283, %p284
      %p286 = pneg %p285
      // Predicated region
      $region37: #{tpu_custom_call.1} parent=5 // pred_check
        _
      $region38: #{tpu_custom_call.1} parent=5 // pred_check_branch
        %288 = sbr.rel (%p285) target = $region40
      $region39: #{tpu_custom_call.1} parent=5 // pred_region
        %s289 = ssub.s32 %s21, 1
        %s290 = sand.u32 %s55, 1
        %s291 = scalar_lea.sflag [#allocation7], %s290
        %s292 = sand.u32 %s55, 1
        %s293 = smul.addr %s292, 8
        %s294 = scalar_lea.vmem [#allocation6], %s293
        // Predicated region
        $region41: #{tpu_custom_call.1} parent=39 // pred_check
          %p295 = pneg %p68
        $region42: #{tpu_custom_call.1} parent=39 // pred_check_branch
          %297 = sbr.rel (%p295) target = $region44
        $region43: #{tpu_custom_call.1} parent=39 // pred_region
          %298 = dma.done %s291, 128
        $region44: #{tpu_custom_call.1} parent=39 // pred_fallthru
          _
        %s299 = sand.u32 %s26, 1
        %s300 = scalar_lea.sflag [#allocation10], %s299
        %s301 = sand.u32 %s83, 1
        %s302 = smul.addr %s301, 8
        %s303 = scalar_lea.vmem [#allocation9], %s302
        // Predicated region
        $region45: #{tpu_custom_call.1} parent=39 // pred_check
          %p304 = pneg %p96
        $region46: #{tpu_custom_call.1} parent=39 // pred_check_branch
          %306 = sbr.rel (%p304) target = $region48
        $region47: #{tpu_custom_call.1} parent=39 // pred_region
          %307 = dma.done %s300, 128
        $region48: #{tpu_custom_call.1} parent=39 // pred_fallthru
          _
        // Predicated region
        $region49: #{tpu_custom_call.1} parent=39 // pred_check
          %p308 = pneg %p117
        $region50: #{tpu_custom_call.1} parent=39 // pred_check_branch
          %310 = sbr.rel (%p308) target = $region52
        $region51: #{tpu_custom_call.1} parent=39 // pred_region
          %311 = dma.done [#allocation10], 512
        $region52: #{tpu_custom_call.1} parent=39 // pred_fallthru
          _
        // Predicated region
        $region53: #{tpu_custom_call.1} parent=39 // pred_check
          %p312 = pneg %p138
        $region54: #{tpu_custom_call.1} parent=39 // pred_check_branch
          %314 = sbr.rel (%p312) target = $region56
        $region55: #{tpu_custom_call.1} parent=39 // pred_region
          %315 = dma.done [#allocation13], 512
        $region56: #{tpu_custom_call.1} parent=39 // pred_fallthru
          _
        // Predicated region
        $region57: #{tpu_custom_call.1} parent=39 // pred_check
          %p316 = pneg %p159
        $region58: #{tpu_custom_call.1} parent=39 // pred_check_branch
          %318 = sbr.rel (%p316) target = $region60
        $region59: #{tpu_custom_call.1} parent=39 // pred_region
          %319 = dma.done [#allocation13], 512
        $region60: #{tpu_custom_call.1} parent=39 // pred_fallthru
          _
        %s320 = sand.u32 %s55, 1
        %s321 = scalar_lea.sflag [#allocation7], %s320
        %s322 = sand.u32 %s55, 1
        %s323 = smul.addr %s322, 8
        %s324 = scalar_lea.vmem [#allocation6], %s323
        %p325 = pneg %p68
        %p326 = pneg %p65
        %s327 = sand.u32 %s26, 1
        %s328 = scalar_lea.sflag [#allocation10], %s327
        %s329 = sand.u32 %s83, 1
        %s330 = smul.addr %s329, 8
        %s331 = scalar_lea.vmem [#allocation9], %s330
        %p332 = pneg %p96
        %p333 = pneg %p93
        %p334 = pneg %p117
        %p335 = pneg %p114
        %p336 = pneg %p138
        %p337 = pneg %p135
        %p338 = pneg %p159
        %p339 = pneg %p156
        %p340 = pneg %p187
        %p341 = pneg %p184
        %s342 = sand.u32 %s174, 1
        %s343 = scalar_lea.sflag [#allocation8], %s342
        %s344 = sand.u32 %s174, 1
        %s345 = smul.addr %s344, 8
        %s346 = scalar_lea.vmem [#allocation15], %s345
        %p347 = scmp.eq.s32.totalorder %s33, 0
        // Predicated region
        $region61: #{tpu_custom_call.1} parent=39 // pred_check
          %p348 = pneg %p347
        $region62: #{tpu_custom_call.1} parent=39 // pred_check_branch
          %350 = sbr.rel (%p348) target = $region64
        $region63: #{tpu_custom_call.1} parent=39 // pred_region
          %v351 = vld [vmem:[%s294] sm:$0xff]
          %v352 = vld [vmem:[#allocation11] sm:$0xff]
          %v353 = vld [vmem:[#allocation11 + $0x8] sm:$0xff]
          %v354 = vld [vmem:[#allocation11 + $0x10] sm:$0xff]
          %v355 = vld [vmem:[#allocation11 + $0x18] sm:$0xff]
          %vm356 = vcmask 261120
          %v358 = vsel %vm356, %v351, 0
          %360 = vmatprep.subr.mxu0 0.0
          %361 = vmatpush1.msra.mxu0 %v352
          %362 = vmatprep.subr.mxu0 0.0
          %363 = vmatpush1.msra.mxu0 %v353
          %364 = vmatprep.subr.mxu0 0.0
          %365 = vmatpush1.msra.mxu0 %v354
          %366 = vmatprep.subr.mxu0 0.0
          %367 = vmatpush1.msra.mxu0 %v355
          %368 = vmatprep.subr.mxu0 0.0
          %369 = vmatpush1.msra.mxu0 0.0
          %370 = vmatprep.subr.mxu0 0.0
          %371 = vmatpush1.msra.mxu0 0.0
          %372 = vmatprep.subr.mxu0 0.0
          %373 = vmatpush1.msra.mxu0 0.0
          %374 = vmatprep.subr.mxu0 0.0
          %375 = vmatpush1.msra.mxu0 0.0
          %376 = vmatprep.subr.mxu0 0.0
          %377 = vmatpush1.msra.mxu0 0.0
          %378 = vmatprep.subr.mxu0 0.0
          %379 = vmatpush1.msra.mxu0 0.0
          %380 = vmatprep.subr.mxu0 0.0
          %381 = vmatpush1.msra.mxu0 0.0
          %382 = vmatprep.subr.mxu0 0.0
          %383 = vmatpush1.msra.mxu0 0.0
          %384 = vmatprep.subr.mxu0 0.0
          %385 = vmatpush1.msra.mxu0 0.0
          %386 = vmatprep.subr.mxu0 0.0
          %387 = vmatpush1.msra.mxu0 0.0
          %388 = vmatprep.subr.mxu0 0.0
          %389 = vmatpush1.msra.mxu0 0.0
          %390 = vmatprep.subr.mxu0 0.0
          %391 = vmatpush1.msra.mxu0 0.0
          %392 = vmatprep.subr.mxu0 0.0
          %393 = vmatpush1.msra.mxu0 0.0
          %394 = vmatprep.subr.mxu0 0.0
          %395 = vmatpush1.msra.mxu0 0.0
          %396 = vmatprep.subr.mxu0 0.0
          %397 = vmatpush1.msra.mxu0 0.0
          %398 = vmatprep.subr.mxu0 0.0
          %399 = vmatpush1.msra.mxu0 0.0
          %400 = vmatprep.subr.mxu0 0.0
          %401 = vmatpush1.msra.mxu0 0.0
          %402 = vmatprep.subr.mxu0 0.0
          %403 = vmatpush1.msra.mxu0 0.0
          %404 = vmatprep.subr.mxu0 0.0
          %405 = vmatpush1.msra.mxu0 0.0
          %406 = vmatprep.subr.mxu0 0.0
          %407 = vmatpush1.msra.mxu0 0.0
          %408 = vmatprep.subr.mxu0 0.0
          %409 = vmatpush1.msra.mxu0 0.0
          %410 = vmatprep.subr.mxu0 0.0
          %411 = vmatpush1.msra.mxu0 0.0
          %412 = vmatprep.subr.mxu0 0.0
          %413 = vmatpush1.msra.mxu0 0.0
          %414 = vmatprep.subr.mxu0 0.0
          %415 = vmatpush1.msra.mxu0 0.0
          %416 = vmatprep.subr.mxu0 0.0
          %417 = vmatpush1.msra.mxu0 0.0
          %418 = vmatprep.subr.mxu0 0.0
          %419 = vmatpush1.msra.mxu0 0.0
          %420 = vmatprep.subr.mxu0 0.0
          %421 = vmatpush1.msra.mxu0 0.0
          %422 = vmatprep.subr.mxu0 0.0
          %423 = vmatpush1.msra.mxu0 0.0
          %424 = vmatprep.mubr.f32.mxu0 0.0
          %425 = vmatmul.mubr.f32.gmra.mrb[0].mxu0 %v358
          %v426 = vpop.f32.mrb[0].mxu0
          %v427 = vadd.f32 0.0, %v426
          %v428 = vpop.f32.mrb[0].mxu0
          %429 = vdwg.mxu0
          %430 = vst.msk [vmem:[#allocation2] sm:$0xff] %vm356, %v427
          %vm431 = vcmask 7168
          %432 = vst.msk [vmem:[#allocation3] sm:$0xff] %vm431, -inf
          %433 = vst.msk [vmem:[#allocation3 + $0x8] sm:$0xff] %vm431, -inf
          %434 = vst.msk [vmem:[#allocation3 + $0x10] sm:$0xff] %vm431, -inf
          %435 = vst.msk [vmem:[#allocation3 + $0x18] sm:$0xff] %vm431, -inf
          %436 = vst.msk [vmem:[#allocation3 + $0x20] sm:$0xff] %vm431, -inf
          %437 = vst.msk [vmem:[#allocation3 + $0x28] sm:$0xff] %vm431, -inf
          %438 = vst.msk [vmem:[#allocation3 + $0x30] sm:$0xff] %vm431, -inf
          %439 = vst.msk [vmem:[#allocation3 + $0x38] sm:$0xff] %vm431, -inf
          %440 = vst.msk [vmem:[#allocation4] sm:$0xff] %vm431, 0.0
          %441 = vst.msk [vmem:[#allocation4 + $0x8] sm:$0xff] %vm431, 0.0
          %442 = vst.msk [vmem:[#allocation4 + $0x10] sm:$0xff] %vm431, 0.0
          %443 = vst.msk [vmem:[#allocation4 + $0x18] sm:$0xff] %vm431, 0.0
          %444 = vst.msk [vmem:[#allocation4 + $0x20] sm:$0xff] %vm431, 0.0
          %445 = vst.msk [vmem:[#allocation4 + $0x28] sm:$0xff] %vm431, 0.0
          %446 = vst.msk [vmem:[#allocation4 + $0x30] sm:$0xff] %vm431, 0.0
          %447 = vst.msk [vmem:[#allocation4 + $0x38] sm:$0xff] %vm431, 0.0
          %448 = vst.msk [vmem:[#allocation5] sm:$0xff] %vm356, 0.0
        $region64: #{tpu_custom_call.1} parent=39 // pred_fallthru
          _
        %v449 = vld [vmem:[%s303] sm:$0xff]
        %v450 = vld [vmem:[#allocation12] sm:$0xff]
        %v451 = vld [vmem:[#allocation12 + $0x8] sm:$0xff]
        %v452 = vld [vmem:[#allocation12 + $0x10] sm:$0xff]
        %v453 = vld [vmem:[#allocation12 + $0x18] sm:$0xff]
        %vm454 = vcmask 261120
        %v456 = vsel %vm454, %v449, 0
        %458 = vmatprep.subr.mxu0 0.0
        %459 = vmatpush1.msra.mxu0 %v450
        %460 = vmatprep.subr.mxu0 0.0
        %461 = vmatpush1.msra.mxu0 %v451
        %462 = vmatprep.subr.mxu0 0.0
        %463 = vmatpush1.msra.mxu0 %v452
        %464 = vmatprep.subr.mxu0 0.0
        %465 = vmatpush1.msra.mxu0 %v453
        %466 = vmatprep.subr.mxu0 0.0
        %467 = vmatpush1.msra.mxu0 0.0
        %468 = vmatprep.subr.mxu0 0.0
        %469 = vmatpush1.msra.mxu0 0.0
        %470 = vmatprep.subr.mxu0 0.0
        %471 = vmatpush1.msra.mxu0 0.0
        %472 = vmatprep.subr.mxu0 0.0
        %473 = vmatpush1.msra.mxu0 0.0
        %474 = vmatprep.subr.mxu0 0.0
        %475 = vmatpush1.msra.mxu0 0.0
        %476 = vmatprep.subr.mxu0 0.0
        %477 = vmatpush1.msra.mxu0 0.0
        %478 = vmatprep.subr.mxu0 0.0
        %479 = vmatpush1.msra.mxu0 0.0
        %480 = vmatprep.subr.mxu0 0.0
        %481 = vmatpush1.msra.mxu0 0.0
        %482 = vmatprep.subr.mxu0 0.0
        %483 = vmatpush1.msra.mxu0 0.0
        %484 = vmatprep.subr.mxu0 0.0
        %485 = vmatpush1.msra.mxu0 0.0
        %486 = vmatprep.subr.mxu0 0.0
        %487 = vmatpush1.msra.mxu0 0.0
        %488 = vmatprep.subr.mxu0 0.0
        %489 = vmatpush1.msra.mxu0 0.0
        %490 = vmatprep.subr.mxu0 0.0
        %491 = vmatpush1.msra.mxu0 0.0
        %492 = vmatprep.subr.mxu0 0.0
        %493 = vmatpush1.msra.mxu0 0.0
        %494 = vmatprep.subr.mxu0 0.0
        %495 = vmatpush1.msra.mxu0 0.0
        %496 = vmatprep.subr.mxu0 0.0
        %497 = vmatpush1.msra.mxu0 0.0
        %498 = vmatprep.subr.mxu0 0.0
        %499 = vmatpush1.msra.mxu0 0.0
        %500 = vmatprep.subr.mxu0 0.0
        %501 = vmatpush1.msra.mxu0 0.0
        %502 = vmatprep.subr.mxu0 0.0
        %503 = vmatpush1.msra.mxu0 0.0
        %504 = vmatprep.subr.mxu0 0.0
        %505 = vmatpush1.msra.mxu0 0.0
        %506 = vmatprep.subr.mxu0 0.0
        %507 = vmatpush1.msra.mxu0 0.0
        %508 = vmatprep.subr.mxu0 0.0
        %509 = vmatpush1.msra.mxu0 0.0
        %510 = vmatprep.subr.mxu0 0.0
        %511 = vmatpush1.msra.mxu0 0.0
        %512 = vmatprep.subr.mxu0 0.0
        %513 = vmatpush1.msra.mxu0 0.0
        %514 = vmatprep.subr.mxu0 0.0
        %515 = vmatpush1.msra.mxu0 0.0
        %516 = vmatprep.subr.mxu0 0.0
        %517 = vmatpush1.msra.mxu0 0.0
        %518 = vmatprep.subr.mxu0 0.0
        %519 = vmatpush1.msra.mxu0 0.0
        %520 = vmatprep.subr.mxu0 0.0
        %521 = vmatpush1.msra.mxu0 0.0
        %522 = vmatprep.mubr.f32.mxu0 0.0
        %523 = vmatmul.mubr.f32.gmra.mrb[0].mxu0 %v456
        %v524 = vpop.f32.mrb[0].mxu0
        %v525 = vadd.f32 0.0, %v524
        %v526 = vpop.f32.mrb[0].mxu0
        %527 = vdwg.mxu0
        %v528 = vld [vmem:[#allocation2] sm:$0xff]
        %vm529 = vcmask 31744
        %v531 = vsel %vm529, %v528, 0
        %v534 = vsel %vm529, %v525, 0
        %536 = vmatprep.subr.mxu0 0.0
        %537 = vmatpush1.xpose.msra.mxu0 %v534
        %538 = vmatprep.subr.mxu0 0.0
        %539 = vmatpush1.xpose.msra.mxu0 0.0
        %540 = vmatprep.subr.mxu0 0.0
        %541 = vmatpush1.xpose.msra.mxu0 0.0
        %542 = vmatprep.subr.mxu0 0.0
        %543 = vmatpush1.xpose.msra.mxu0 0.0
        %544 = vmatprep.subr.mxu0 0.0
        %545 = vmatpush1.xpose.msra.mxu0 0.0
        %546 = vmatprep.subr.mxu0 0.0
        %547 = vmatpush1.xpose.msra.mxu0 0.0
        %548 = vmatprep.subr.mxu0 0.0
        %549 = vmatpush1.xpose.msra.mxu0 0.0
        %550 = vmatprep.subr.mxu0 0.0
        %551 = vmatpush1.xpose.msra.mxu0 0.0
        %552 = vmatprep.subr.mxu0 0.0
        %553 = vmatpush1.xpose.msra.mxu0 0.0
        %554 = vmatprep.subr.mxu0 0.0
        %555 = vmatpush1.xpose.msra.mxu0 0.0
        %556 = vmatprep.subr.mxu0 0.0
        %557 = vmatpush1.xpose.msra.mxu0 0.0
        %558 = vmatprep.subr.mxu0 0.0
        %559 = vmatpush1.xpose.msra.mxu0 0.0
        %560 = vmatprep.subr.mxu0 0.0
        %561 = vmatpush1.xpose.msra.mxu0 0.0
        %562 = vmatprep.subr.mxu0 0.0
        %563 = vmatpush1.xpose.msra.mxu0 0.0
        %564 = vmatprep.subr.mxu0 0.0
        %565 = vmatpush1.xpose.msra.mxu0 0.0
        %566 = vmatprep.subr.mxu0 0.0
        %567 = vmatpush1.xpose.msra.mxu0 0.0
        %568 = vmatprep.subr.mxu0 0.0
        %569 = vmatpush1.xpose.msra.mxu0 0.0
        %570 = vmatprep.subr.mxu0 0.0
        %571 = vmatpush1.xpose.msra.mxu0 0.0
        %572 = vmatprep.subr.mxu0 0.0
        %573 = vmatpush1.xpose.msra.mxu0 0.0
        %574 = vmatprep.subr.mxu0 0.0
        %575 = vmatpush1.xpose.msra.mxu0 0.0
        %576 = vmatprep.subr.mxu0 0.0
        %577 = vmatpush1.xpose.msra.mxu0 0.0
        %578 = vmatprep.subr.mxu0 0.0
        %579 = vmatpush1.xpose.msra.mxu0 0.0
        %580 = vmatprep.subr.mxu0 0.0
        %581 = vmatpush1.xpose.msra.mxu0 0.0
        %582 = vmatprep.subr.mxu0 0.0
        %583 = vmatpush1.xpose.msra.mxu0 0.0
        %584 = vmatprep.subr.mxu0 0.0
        %585 = vmatpush1.xpose.msra.mxu0 0.0
        %586 = vmatprep.subr.mxu0 0.0
        %587 = vmatpush1.xpose.msra.mxu0 0.0
        %588 = vmatprep.subr.mxu0 0.0
        %589 = vmatpush1.xpose.msra.mxu0 0.0
        %590 = vmatprep.subr.mxu0 0.0
        %591 = vmatpush1.xpose.msra.mxu0 0.0
        %592 = vmatprep.subr.mxu0 0.0
        %593 = vmatpush1.xpose.msra.mxu0 0.0
        %594 = vmatprep.subr.mxu0 0.0
        %595 = vmatpush1.xpose.msra.mxu0 0.0
        %596 = vmatprep.subr.mxu0 0.0
        %597 = vmatpush1.xpose.msra.mxu0 0.0
        %598 = vmatprep.subr.mxu0 0.0
        %599 = vmatpush1.xpose.msra.mxu0 0.0
        %600 = vmatprep.mubr.f32.mxu0 0.0
        %601 = vmatmul.mubr.f32.gmra.mrb[0].mxu0 %v531
        %v602 = vpop.f32.mrb[0].mxu0
        %v603 = vadd.f32 0.0, %v602
        %v604 = vpop.f32.mrb[0].mxu0
        %605 = vdwg.mxu0
        %v606 = vld [vmem:[#allocation3] sm:$0xff]
        %vm607 = vcmask 64512
        %v608 = vsel %vm607, %v603, -inf
        %609 = vmax.xlane.f32.xlu0 %v608
        %v610 = vpop.xlane.xlu0 %609
        %v611 = vmax.f32 %v606, %v610
        %v612 = vsub.f32 %v606, %v611
        %v613 = vmul.f32 %v612, 1.442695
        %v614 = vpow.pop %v613
        %616 = vset.pattern.permute.xlu0 0
        %617 = vperm.xlu0 %616, %v611
        %v618 = vpop.permute.xlu0 %617
        %v620 = vsub.f32 %v603, %v618
        %v621 = vmul.f32 %v620, 1.442695
        %v622 = vpow.pop %v621
        %v623 = vld [vmem:[#allocation4] sm:$0xff]
        %v624 = vmul.f32 %v614, %v623
        %v625 = vsel %vm607, %v622, 0.0
        %626 = vadd.xlane.f32.xlu0 %v625
        %v627 = vpop.xlane.xlu0 %626
        %v628 = vadd.f32 %v624, %v627
        %vm629 = vcmask 7168
        %630 = vst.msk [vmem:[#allocation4] sm:$0xff] %vm629, %v628
        %v631 = vld [vmem:[#allocation5] sm:$0xff]
        %633 = vset.pattern.permute.xlu0 0
        %634 = vperm.xlu0 %633, %v614
        %v635 = vpop.permute.xlu0 %634
        %v637 = vmul.f32 %v635, %v631
        %638 = vrot.lane.b32.xlu0 %v525, 96
        %v639 = vpop.permute.xlu0 %638
        %v642 = vsel %vm607, %v622, 0
        %644 = vmatprep.subr.mxu0 0.0
        %645 = vmatpush1.msra.mxu0 %v639
        %646 = vmatprep.subr.mxu0 0.0
        %647 = vmatpush1.msra.mxu0 0.0
        %648 = vmatprep.subr.mxu0 0.0
        %649 = vmatpush1.msra.mxu0 0.0
        %650 = vmatprep.subr.mxu0 0.0
        %651 = vmatpush1.msra.mxu0 0.0
        %652 = vmatprep.subr.mxu0 0.0
        %653 = vmatpush1.msra.mxu0 0.0
        %654 = vmatprep.subr.mxu0 0.0
        %655 = vmatpush1.msra.mxu0 0.0
        %656 = vmatprep.subr.mxu0 0.0
        %657 = vmatpush1.msra.mxu0 0.0
        %658 = vmatprep.subr.mxu0 0.0
        %659 = vmatpush1.msra.mxu0 0.0
        %660 = vmatprep.subr.mxu0 0.0
        %661 = vmatpush1.msra.mxu0 0.0
        %662 = vmatprep.subr.mxu0 0.0
        %663 = vmatpush1.msra.mxu0 0.0
        %664 = vmatprep.subr.mxu0 0.0
        %665 = vmatpush1.msra.mxu0 0.0
        %666 = vmatprep.subr.mxu0 0.0
        %667 = vmatpush1.msra.mxu0 0.0
        %668 = vmatprep.subr.mxu0 0.0
        %669 = vmatpush1.msra.mxu0 0.0
        %670 = vmatprep.subr.mxu0 0.0
        %671 = vmatpush1.msra.mxu0 0.0
        %672 = vmatprep.subr.mxu0 0.0
        %673 = vmatpush1.msra.mxu0 0.0
        %674 = vmatprep.subr.mxu0 0.0
        %675 = vmatpush1.msra.mxu0 0.0
        %676 = vmatprep.subr.mxu0 0.0
        %677 = vmatpush1.msra.mxu0 0.0
        %678 = vmatprep.subr.mxu0 0.0
        %679 = vmatpush1.msra.mxu0 0.0
        %680 = vmatprep.subr.mxu0 0.0
        %681 = vmatpush1.msra.mxu0 0.0
        %682 = vmatprep.subr.mxu0 0.0
        %683 = vmatpush1.msra.mxu0 0.0
        %684 = vmatprep.subr.mxu0 0.0
        %685 = vmatpush1.msra.mxu0 0.0
        %686 = vmatprep.subr.mxu0 0.0
        %687 = vmatpush1.msra.mxu0 0.0
        %688 = vmatprep.subr.mxu0 0.0
        %689 = vmatpush1.msra.mxu0 0.0
        %690 = vmatprep.subr.mxu0 0.0
        %691 = vmatpush1.msra.mxu0 0.0
        %692 = vmatprep.subr.mxu0 0.0
        %693 = vmatpush1.msra.mxu0 0.0
        %694 = vmatprep.subr.mxu0 0.0
        %695 = vmatpush1.msra.mxu0 0.0
        %696 = vmatprep.subr.mxu0 0.0
        %697 = vmatpush1.msra.mxu0 0.0
        %698 = vmatprep.subr.mxu0 0.0
        %699 = vmatpush1.msra.mxu0 0.0
        %700 = vmatprep.subr.mxu0 0.0
        %701 = vmatpush1.msra.mxu0 0.0
        %702 = vmatprep.subr.mxu0 0.0
        %703 = vmatpush1.msra.mxu0 0.0
        %704 = vmatprep.subr.mxu0 0.0
        %705 = vmatpush1.msra.mxu0 0.0
        %706 = vmatprep.subr.mxu0 0.0
        %707 = vmatpush1.msra.mxu0 0.0
        %708 = vmatprep.mubr.f32.mxu0 0.0
        %709 = vmatmul.mubr.f32.gmra.mrb[0].mxu0 %v642
        %v710 = vpop.f32.mrb[0].mxu0
        %v711 = vadd.f32 0.0, %v710
        %v712 = vpop.f32.mrb[0].mxu0
        %713 = vdwg.mxu0
        %v714 = vadd.f32 %v637, %v711
        %715 = vst.msk [vmem:[#allocation5] sm:$0xff] %vm529, %v714
        %716 = vst.msk [vmem:[#allocation3] sm:$0xff] %vm629, %v611
        %v717 = vld [vmem:[#allocation2] sm:$0xff]
        %719 = vrot.lane.b32.xlu0 %v717, 124
        %v720 = vpop.permute.xlu0 %719
        %721 = vrot.lane.b32.xlu0 %v525, 124
        %v722 = vpop.permute.xlu0 %721
        %v723 = vsel %vm529, %v720, 0
        %v725 = vsel %vm529, %v722, 0
        %727 = vmatprep.subr.mxu0 0.0
        %728 = vmatpush1.xpose.msra.mxu0 %v725
        %729 = vmatprep.subr.mxu0 0.0
        %730 = vmatpush1.xpose.msra.mxu0 0.0
        %731 = vmatprep.subr.mxu0 0.0
        %732 = vmatpush1.xpose.msra.mxu0 0.0
        %733 = vmatprep.subr.mxu0 0.0
        %734 = vmatpush1.xpose.msra.mxu0 0.0
        %735 = vmatprep.subr.mxu0 0.0
        %736 = vmatpush1.xpose.msra.mxu0 0.0
        %737 = vmatprep.subr.mxu0 0.0
        %738 = vmatpush1.xpose.msra.mxu0 0.0
        %739 = vmatprep.subr.mxu0 0.0
        %740 = vmatpush1.xpose.msra.mxu0 0.0
        %741 = vmatprep.subr.mxu0 0.0
        %742 = vmatpush1.xpose.msra.mxu0 0.0
        %743 = vmatprep.subr.mxu0 0.0
        %744 = vmatpush1.xpose.msra.mxu0 0.0
        %745 = vmatprep.subr.mxu0 0.0
        %746 = vmatpush1.xpose.msra.mxu0 0.0
        %747 = vmatprep.subr.mxu0 0.0
        %748 = vmatpush1.xpose.msra.mxu0 0.0
        %749 = vmatprep.subr.mxu0 0.0
        %750 = vmatpush1.xpose.msra.mxu0 0.0
        %751 = vmatprep.subr.mxu0 0.0
        %752 = vmatpush1.xpose.msra.mxu0 0.0
        %753 = vmatprep.subr.mxu0 0.0
        %754 = vmatpush1.xpose.msra.mxu0 0.0
        %755 = vmatprep.subr.mxu0 0.0
        %756 = vmatpush1.xpose.msra.mxu0 0.0
        %757 = vmatprep.subr.mxu0 0.0
        %758 = vmatpush1.xpose.msra.mxu0 0.0
        %759 = vmatprep.subr.mxu0 0.0
        %760 = vmatpush1.xpose.msra.mxu0 0.0
        %761 = vmatprep.subr.mxu0 0.0
        %762 = vmatpush1.xpose.msra.mxu0 0.0
        %763 = vmatprep.subr.mxu0 0.0
        %764 = vmatpush1.xpose.msra.mxu0 0.0
        %765 = vmatprep.subr.mxu0 0.0
        %766 = vmatpush1.xpose.msra.mxu0 0.0
        %767 = vmatprep.subr.mxu0 0.0
        %768 = vmatpush1.xpose.msra.mxu0 0.0
        %769 = vmatprep.subr.mxu0 0.0
        %770 = vmatpush1.xpose.msra.mxu0 0.0
        %771 = vmatprep.subr.mxu0 0.0
        %772 = vmatpush1.xpose.msra.mxu0 0.0
        %773 = vmatprep.subr.mxu0 0.0
        %774 = vmatpush1.xpose.msra.mxu0 0.0
        %775 = vmatprep.subr.mxu0 0.0
        %776 = vmatpush1.xpose.msra.mxu0 0.0
        %777 = vmatprep.subr.mxu0 0.0
        %778 = vmatpush1.xpose.msra.mxu0 0.0
        %779 = vmatprep.subr.mxu0 0.0
        %780 = vmatpush1.xpose.msra.mxu0 0.0
        %781 = vmatprep.subr.mxu0 0.0
        %782 = vmatpush1.xpose.msra.mxu0 0.0
        %783 = vmatprep.subr.mxu0 0.0
        %784 = vmatpush1.xpose.msra.mxu0 0.0
        %785 = vmatprep.subr.mxu0 0.0
        %786 = vmatpush1.xpose.msra.mxu0 0.0
        %787 = vmatprep.subr.mxu0 0.0
        %788 = vmatpush1.xpose.msra.mxu0 0.0
        %789 = vmatprep.subr.mxu0 0.0
        %790 = vmatpush1.xpose.msra.mxu0 0.0
        %791 = vmatprep.mubr.f32.mxu0 0.0
        %792 = vmatmul.mubr.f32.gmra.mrb[0].mxu0 %v723
        %v793 = vpop.f32.mrb[0].mxu0
        %v794 = vadd.f32 0.0, %v793
        %v795 = vpop.f32.mrb[0].mxu0
        %796 = vdwg.mxu0
        %s797 = scalar_lea.vmem [#allocation3], 8
        %v798 = vld [vmem:[%s797] sm:$0xff]
        %v799 = vsel %vm607, %v794, -inf
        %800 = vmax.xlane.f32.xlu0 %v799
        %v801 = vpop.xlane.xlu0 %800
        %v802 = vmax.f32 %v798, %v801
        %v803 = vsub.f32 %v798, %v802
        %v804 = vmul.f32 %v803, 1.442695
        %v805 = vpow.pop %v804
        %807 = vset.pattern.permute.xlu0 0
        %808 = vperm.xlu0 %807, %v802
        %v809 = vpop.permute.xlu0 %808
        %v811 = vsub.f32 %v794, %v809
        %v812 = vmul.f32 %v811, 1.442695
        %v813 = vpow.pop %v812
        %s814 = scalar_lea.vmem [#allocation4], 8
        %v815 = vld [vmem:[%s814] sm:$0xff]
        %v816 = vmul.f32 %v805, %v815
        %v817 = vsel %vm607, %v813, 0.0
        %818 = vadd.xlane.f32.xlu0 %v817
        %v819 = vpop.xlane.xlu0 %818
        %v820 = vadd.f32 %v816, %v819
        %821 = vst.msk [vmem:[%s814] sm:$0xff] %vm629, %v820
        %v822 = vld [vmem:[#allocation5] sm:$0xff]
        %824 = vset.pattern.permute.xlu0 0
        %825 = vperm.xlu0 %824, %v805
        %v826 = vpop.permute.xlu0 %825
        %v828 = vmul.f32 %v826, %v822
        %829 = vrot.lane.b32.xlu0 %v525, 92
        %v830 = vpop.permute.xlu0 %829
        %v833 = vsel %vm607, %v813, 0
        %835 = vmatprep.subr.mxu0 0.0
        %836 = vmatpush1.msra.mxu0 %v830
        %837 = vmatprep.subr.mxu0 0.0
        %838 = vmatpush1.msra.mxu0 0.0
        %839 = vmatprep.subr.mxu0 0.0
        %840 = vmatpush1.msra.mxu0 0.0
        %841 = vmatprep.subr.mxu0 0.0
        %842 = vmatpush1.msra.mxu0 0.0
        %843 = vmatprep.subr.mxu0 0.0
        %844 = vmatpush1.msra.mxu0 0.0
        %845 = vmatprep.subr.mxu0 0.0
        %846 = vmatpush1.msra.mxu0 0.0
        %847 = vmatprep.subr.mxu0 0.0
        %848 = vmatpush1.msra.mxu0 0.0
        %849 = vmatprep.subr.mxu0 0.0
        %850 = vmatpush1.msra.mxu0 0.0
        %851 = vmatprep.subr.mxu0 0.0
        %852 = vmatpush1.msra.mxu0 0.0
        %853 = vmatprep.subr.mxu0 0.0
        %854 = vmatpush1.msra.mxu0 0.0
        %855 = vmatprep.subr.mxu0 0.0
        %856 = vmatpush1.msra.mxu0 0.0
        %857 = vmatprep.subr.mxu0 0.0
        %858 = vmatpush1.msra.mxu0 0.0
        %859 = vmatprep.subr.mxu0 0.0
        %860 = vmatpush1.msra.mxu0 0.0
        %861 = vmatprep.subr.mxu0 0.0
        %862 = vmatpush1.msra.mxu0 0.0
        %863 = vmatprep.subr.mxu0 0.0
        %864 = vmatpush1.msra.mxu0 0.0
        %865 = vmatprep.subr.mxu0 0.0
        %866 = vmatpush1.msra.mxu0 0.0
        %867 = vmatprep.subr.mxu0 0.0
        %868 = vmatpush1.msra.mxu0 0.0
        %869 = vmatprep.subr.mxu0 0.0
        %870 = vmatpush1.msra.mxu0 0.0
        %871 = vmatprep.subr.mxu0 0.0
        %872 = vmatpush1.msra.mxu0 0.0
        %873 = vmatprep.subr.mxu0 0.0
        %874 = vmatpush1.msra.mxu0 0.0
        %875 = vmatprep.subr.mxu0 0.0
        %876 = vmatpush1.msra.mxu0 0.0
        %877 = vmatprep.subr.mxu0 0.0
        %878 = vmatpush1.msra.mxu0 0.0
        %879 = vmatprep.subr.mxu0 0.0
        %880 = vmatpush1.msra.mxu0 0.0
        %881 = vmatprep.subr.mxu0 0.0
        %882 = vmatpush1.msra.mxu0 0.0
        %883 = vmatprep.subr.mxu0 0.0
        %884 = vmatpush1.msra.mxu0 0.0
        %885 = vmatprep.subr.mxu0 0.0
        %886 = vmatpush1.msra.mxu0 0.0
        %887 = vmatprep.subr.mxu0 0.0
        %888 = vmatpush1.msra.mxu0 0.0
        %889 = vmatprep.subr.mxu0 0.0
        %890 = vmatpush1.msra.mxu0 0.0
        %891 = vmatprep.subr.mxu0 0.0
        %892 = vmatpush1.msra.mxu0 0.0
        %893 = vmatprep.subr.mxu0 0.0
        %894 = vmatpush1.msra.mxu0 0.0
        %895 = vmatprep.subr.mxu0 0.0
        %896 = vmatpush1.msra.mxu0 0.0
        %897 = vmatprep.subr.mxu0 0.0
        %898 = vmatpush1.msra.mxu0 0.0
        %899 = vmatprep.mubr.f32.mxu0 0.0
        %900 = vmatmul.mubr.f32.gmra.mrb[0].mxu0 %v833
        %v901 = vpop.f32.mrb[0].mxu0
        %v902 = vadd.f32 0.0, %v901
        %v903 = vpop.f32.mrb[0].mxu0
        %904 = vdwg.mxu0
        %906 = vrot.lane.b32.xlu0 %v902, 4
        %v907 = vpop.permute.xlu0 %906
        %v909 = vadd.f32 %v828, %v907
        %vm910 = vcmask 64544
        %911 = vst.msk [vmem:[#allocation5] sm:$0xff] %vm910, %v909
        %912 = vst.msk [vmem:[%s797] sm:$0xff] %vm629, %v802
        %v913 = vld [vmem:[#allocation2] sm:$0xff]
        %915 = vrot.lane.b32.xlu0 %v913, 120
        %v916 = vpop.permute.xlu0 %915
        %917 = vrot.lane.b32.xlu0 %v525, 120
        %v918 = vpop.permute.xlu0 %917
        %v919 = vsel %vm529, %v916, 0
        %v921 = vsel %vm529, %v918, 0
        %923 = vmatprep.subr.mxu0 0.0
        %924 = vmatpush1.xpose.msra.mxu0 %v921
        %925 = vmatprep.subr.mxu0 0.0
        %926 = vmatpush1.xpose.msra.mxu0 0.0
        %927 = vmatprep.subr.mxu0 0.0
        %928 = vmatpush1.xpose.msra.mxu0 0.0
        %929 = vmatprep.subr.mxu0 0.0
        %930 = vmatpush1.xpose.msra.mxu0 0.0
        %931 = vmatprep.subr.mxu0 0.0
        %932 = vmatpush1.xpose.msra.mxu0 0.0
        %933 = vmatprep.subr.mxu0 0.0
        %934 = vmatpush1.xpose.msra.mxu0 0.0
        %935 = vmatprep.subr.mxu0 0.0
        %936 = vmatpush1.xpose.msra.mxu0 0.0
        %937 = vmatprep.subr.mxu0 0.0
        %938 = vmatpush1.xpose.msra.mxu0 0.0
        %939 = vmatprep.subr.mxu0 0.0
        %940 = vmatpush1.xpose.msra.mxu0 0.0
        %941 = vmatprep.subr.mxu0 0.0
        %942 = vmatpush1.xpose.msra.mxu0 0.0
        %943 = vmatprep.subr.mxu0 0.0
        %944 = vmatpush1.xpose.msra.mxu0 0.0
        %945 = vmatprep.subr.mxu0 0.0
        %946 = vmatpush1.xpose.msra.mxu0 0.0
        %947 = vmatprep.subr.mxu0 0.0
        %948 = vmatpush1.xpose.msra.mxu0 0.0
        %949 = vmatprep.subr.mxu0 0.0
        %950 = vmatpush1.xpose.msra.mxu0 0.0
        %951 = vmatprep.subr.mxu0 0.0
        %952 = vmatpush1.xpose.msra.mxu0 0.0
        %953 = vmatprep.subr.mxu0 0.0
        %954 = vmatpush1.xpose.msra.mxu0 0.0
        %955 = vmatprep.subr.mxu0 0.0
        %956 = vmatpush1.xpose.msra.mxu0 0.0
        %957 = vmatprep.subr.mxu0 0.0
        %958 = vmatpush1.xpose.msra.mxu0 0.0
        %959 = vmatprep.subr.mxu0 0.0
        %960 = vmatpush1.xpose.msra.mxu0 0.0
        %961 = vmatprep.subr.mxu0 0.0
        %962 = vmatpush1.xpose.msra.mxu0 0.0
        %963 = vmatprep.subr.mxu0 0.0
        %964 = vmatpush1.xpose.msra.mxu0 0.0
        %965 = vmatprep.subr.mxu0 0.0
        %966 = vmatpush1.xpose.msra.mxu0 0.0
        %967 = vmatprep.subr.mxu0 0.0
        %968 = vmatpush1.xpose.msra.mxu0 0.0
        %969 = vmatprep.subr.mxu0 0.0
        %970 = vmatpush1.xpose.msra.mxu0 0.0
        %971 = vmatprep.subr.mxu0 0.0
        %972 = vmatpush1.xpose.msra.mxu0 0.0
        %973 = vmatprep.subr.mxu0 0.0
        %974 = vmatpush1.xpose.msra.mxu0 0.0
        %975 = vmatprep.subr.mxu0 0.0
        %976 = vmatpush1.xpose.msra.mxu0 0.0
        %977 = vmatprep.subr.mxu0 0.0
        %978 = vmatpush1.xpose.msra.mxu0 0.0
        %979 = vmatprep.subr.mxu0 0.0
        %980 = vmatpush1.xpose.msra.mxu0 0.0
        %981 = vmatprep.subr.mxu0 0.0
        %982 = vmatpush1.xpose.msra.mxu0 0.0
        %983 = vmatprep.subr.mxu0 0.0
        %984 = vmatpush1.xpose.msra.mxu0 0.0
        %985 = vmatprep.subr.mxu0 0.0
        %986 = vmatpush1.xpose.msra.mxu0 0.0
        %987 = vmatprep.mubr.f32.mxu0 0.0
        %988 = vmatmul.mubr.f32.gmra.mrb[0].mxu0 %v919
        %v989 = vpop.f32.mrb[0].mxu0
        %v990 = vadd.f32 0.0, %v989
        %v991 = vpop.f32.mrb[0].mxu0
        %992 = vdwg.mxu0
        %s993 = scalar_lea.vmem [#allocation3], 16
        %v994 = vld [vmem:[%s993] sm:$0xff]
        %v995 = vsel %vm607, %v990, -inf
        %996 = vmax.xlane.f32.xlu0 %v995
        %v997 = vpop.xlane.xlu0 %996
        %v998 = vmax.f32 %v994, %v997
        %v999 = vsub.f32 %v994, %v998
        %v1000 = vmul.f32 %v999, 1.442695
        %v1001 = vpow.pop %v1000
        %1003 = vset.pattern.permute.xlu0 0
        %1004 = vperm.xlu0 %1003, %v998
        %v1005 = vpop.permute.xlu0 %1004
        %v1007 = vsub.f32 %v990, %v1005
        %v1008 = vmul.f32 %v1007, 1.442695
        %v1009 = vpow.pop %v1008
        %s1010 = scalar_lea.vmem [#allocation4], 16
        %v1011 = vld [vmem:[%s1010] sm:$0xff]
        %v1012 = vmul.f32 %v1001, %v1011
        %v1013 = vsel %vm607, %v1009, 0.0
        %1014 = vadd.xlane.f32.xlu0 %v1013
        %v1015 = vpop.xlane.xlu0 %1014
        %v1016 = vadd.f32 %v1012, %v1015
        %1017 = vst.msk [vmem:[%s1010] sm:$0xff] %vm629, %v1016
        %v1018 = vld [vmem:[#allocation5] sm:$0xff]
        %1020 = vset.pattern.permute.xlu0 0
        %1021 = vperm.xlu0 %1020, %v1001
        %v1022 = vpop.permute.xlu0 %1021
        %v1024 = vmul.f32 %v1022, %v1018
        %1025 = vrot.lane.b32.xlu0 %v525, 88
        %v1026 = vpop.permute.xlu0 %1025
        %v1029 = vsel %vm607, %v1009, 0
        %1031 = vmatprep.subr.mxu0 0.0
        %1032 = vmatpush1.msra.mxu0 %v1026
        %1033 = vmatprep.subr.mxu0 0.0
        %1034 = vmatpush1.msra.mxu0 0.0
        %1035 = vmatprep.subr.mxu0 0.0
        %1036 = vmatpush1.msra.mxu0 0.0
        %1037 = vmatprep.subr.mxu0 0.0
        %1038 = vmatpush1.msra.mxu0 0.0
        %1039 = vmatprep.subr.mxu0 0.0
        %1040 = vmatpush1.msra.mxu0 0.0
        %1041 = vmatprep.subr.mxu0 0.0
        %1042 = vmatpush1.msra.mxu0 0.0
        %1043 = vmatprep.subr.mxu0 0.0
        %1044 = vmatpush1.msra.mxu0 0.0
        %1045 = vmatprep.subr.mxu0 0.0
        %1046 = vmatpush1.msra.mxu0 0.0
        %1047 = vmatprep.subr.mxu0 0.0
        %1048 = vmatpush1.msra.mxu0 0.0
        %1049 = vmatprep.subr.mxu0 0.0
        %1050 = vmatpush1.msra.mxu0 0.0
        %1051 = vmatprep.subr.mxu0 0.0
        %1052 = vmatpush1.msra.mxu0 0.0
        %1053 = vmatprep.subr.mxu0 0.0
        %1054 = vmatpush1.msra.mxu0 0.0
        %1055 = vmatprep.subr.mxu0 0.0
        %1056 = vmatpush1.msra.mxu0 0.0
        %1057 = vmatprep.subr.mxu0 0.0
        %1058 = vmatpush1.msra.mxu0 0.0
        %1059 = vmatprep.subr.mxu0 0.0
        %1060 = vmatpush1.msra.mxu0 0.0
        %1061 = vmatprep.subr.mxu0 0.0
        %1062 = vmatpush1.msra.mxu0 0.0
        %1063 = vmatprep.subr.mxu0 0.0
        %1064 = vmatpush1.msra.mxu0 0.0
        %1065 = vmatprep.subr.mxu0 0.0
        %1066 = vmatpush1.msra.mxu0 0.0
        %1067 = vmatprep.subr.mxu0 0.0
        %1068 = vmatpush1.msra.mxu0 0.0
        %1069 = vmatprep.subr.mxu0 0.0
        %1070 = vmatpush1.msra.mxu0 0.0
        %1071 = vmatprep.subr.mxu0 0.0
        %1072 = vmatpush1.msra.mxu0 0.0
        %1073 = vmatprep.subr.mxu0 0.0
        %1074 = vmatpush1.msra.mxu0 0.0
        %1075 = vmatprep.subr.mxu0 0.0
        %1076 = vmatpush1.msra.mxu0 0.0
        %1077 = vmatprep.subr.mxu0 0.0
        %1078 = vmatpush1.msra.mxu0 0.0
        %1079 = vmatprep.subr.mxu0 0.0
        %1080 = vmatpush1.msra.mxu0 0.0
        %1081 = vmatprep.subr.mxu0 0.0
        %1082 = vmatpush1.msra.mxu0 0.0
        %1083 = vmatprep.subr.mxu0 0.0
        %1084 = vmatpush1.msra.mxu0 0.0
        %1085 = vmatprep.subr.mxu0 0.0
        %1086 = vmatpush1.msra.mxu0 0.0
        %1087 = vmatprep.subr.mxu0 0.0
        %1088 = vmatpush1.msra.mxu0 0.0
        %1089 = vmatprep.subr.mxu0 0.0
        %1090 = vmatpush1.msra.mxu0 0.0
        %1091 = vmatprep.subr.mxu0 0.0
        %1092 = vmatpush1.msra.mxu0 0.0
        %1093 = vmatprep.subr.mxu0 0.0
        %1094 = vmatpush1.msra.mxu0 0.0
        %1095 = vmatprep.mubr.f32.mxu0 0.0
        %1096 = vmatmul.mubr.f32.gmra.mrb[0].mxu0 %v1029
        %v1097 = vpop.f32.mrb[0].mxu0
        %v1098 = vadd.f32 0.0, %v1097
        %v1099 = vpop.f32.mrb[0].mxu0
        %1100 = vdwg.mxu0
        %1102 = vrot.lane.b32.xlu0 %v1098, 8
        %v1103 = vpop.permute.xlu0 %1102
        %v1105 = vadd.f32 %v1024, %v1103
        %vm1106 = vcmask 97344
        %1107 = vst.msk [vmem:[#allocation5] sm:$0xff] %vm1106, %v1105
        %1108 = vst.msk [vmem:[%s993] sm:$0xff] %vm629, %v998
        %v1109 = vld [vmem:[#allocation2] sm:$0xff]
        %1111 = vrot.lane.b32.xlu0 %v1109, 116
        %v1112 = vpop.permute.xlu0 %1111
        %1113 = vrot.lane.b32.xlu0 %v525, 116
        %v1114 = vpop.permute.xlu0 %1113
        %v1115 = vsel %vm529, %v1112, 0
        %v1117 = vsel %vm529, %v1114, 0
        %1119 = vmatprep.subr.mxu0 0.0
        %1120 = vmatpush1.xpose.msra.mxu0 %v1117
        %1121 = vmatprep.subr.mxu0 0.0
        %1122 = vmatpush1.xpose.msra.mxu0 0.0
        %1123 = vmatprep.subr.mxu0 0.0
        %1124 = vmatpush1.xpose.msra.mxu0 0.0
        %1125 = vmatprep.subr.mxu0 0.0
        %1126 = vmatpush1.xpose.msra.mxu0 0.0
        %1127 = vmatprep.subr.mxu0 0.0
        %1128 = vmatpush1.xpose.msra.mxu0 0.0
        %1129 = vmatprep.subr.mxu0 0.0
        %1130 = vmatpush1.xpose.msra.mxu0 0.0
        %1131 = vmatprep.subr.mxu0 0.0
        %1132 = vmatpush1.xpose.msra.mxu0 0.0
        %1133 = vmatprep.subr.mxu0 0.0
        %1134 = vmatpush1.xpose.msra.mxu0 0.0
        %1135 = vmatprep.subr.mxu0 0.0
        %1136 = vmatpush1.xpose.msra.mxu0 0.0
        %1137 = vmatprep.subr.mxu0 0.0
        %1138 = vmatpush1.xpose.msra.mxu0 0.0
        %1139 = vmatprep.subr.mxu0 0.0
        %1140 = vmatpush1.xpose.msra.mxu0 0.0
        %1141 = vmatprep.subr.mxu0 0.0
        %1142 = vmatpush1.xpose.msra.mxu0 0.0
        %1143 = vmatprep.subr.mxu0 0.0
        %1144 = vmatpush1.xpose.msra.mxu0 0.0
        %1145 = vmatprep.subr.mxu0 0.0
        %1146 = vmatpush1.xpose.msra.mxu0 0.0
        %1147 = vmatprep.subr.mxu0 0.0
        %1148 = vmatpush1.xpose.msra.mxu0 0.0
        %1149 = vmatprep.subr.mxu0 0.0
        %1150 = vmatpush1.xpose.msra.mxu0 0.0
        %1151 = vmatprep.subr.mxu0 0.0
        %1152 = vmatpush1.xpose.msra.mxu0 0.0
        %1153 = vmatprep.subr.mxu0 0.0
        %1154 = vmatpush1.xpose.msra.mxu0 0.0
        %1155 = vmatprep.subr.mxu0 0.0
        %1156 = vmatpush1.xpose.msra.mxu0 0.0
        %1157 = vmatprep.subr.mxu0 0.0
        %1158 = vmatpush1.xpose.msra.mxu0 0.0
        %1159 = vmatprep.subr.mxu0 0.0
        %1160 = vmatpush1.xpose.msra.mxu0 0.0
        %1161 = vmatprep.subr.mxu0 0.0
        %1162 = vmatpush1.xpose.msra.mxu0 0.0
        %1163 = vmatprep.subr.mxu0 0.0
        %1164 = vmatpush1.xpose.msra.mxu0 0.0
        %1165 = vmatprep.subr.mxu0 0.0
        %1166 = vmatpush1.xpose.msra.mxu0 0.0
        %1167 = vmatprep.subr.mxu0 0.0
        %1168 = vmatpush1.xpose.msra.mxu0 0.0
        %1169 = vmatprep.subr.mxu0 0.0
        %1170 = vmatpush1.xpose.msra.mxu0 0.0
        %1171 = vmatprep.subr.mxu0 0.0
        %1172 = vmatpush1.xpose.msra.mxu0 0.0
        %1173 = vmatprep.subr.mxu0 0.0
        %1174 = vmatpush1.xpose.msra.mxu0 0.0
        %1175 = vmatprep.subr.mxu0 0.0
        %1176 = vmatpush1.xpose.msra.mxu0 0.0
        %1177 = vmatprep.subr.mxu0 0.0
        %1178 = vmatpush1.xpose.msra.mxu0 0.0
        %1179 = vmatprep.subr.mxu0 0.0
        %1180 = vmatpush1.xpose.msra.mxu0 0.0
        %1181 = vmatprep.subr.mxu0 0.0
        %1182 = vmatpush1.xpose.msra.mxu0 0.0
        %1183 = vmatprep.mubr.f32.mxu0 0.0
        %1184 = vmatmul.mubr.f32.gmra.mrb[0].mxu0 %v1115
        %v1185 = vpop.f32.mrb[0].mxu0
        %v1186 = vadd.f32 0.0, %v1185
        %v1187 = vpop.f32.mrb[0].mxu0
        %1188 = vdwg.mxu0
        %s1189 = scalar_lea.vmem [#allocation3], 24
        %v1190 = vld [vmem:[%s1189] sm:$0xff]
        %v1191 = vsel %vm607, %v1186, -inf
        %1192 = vmax.xlane.f32.xlu0 %v1191
        %v1193 = vpop.xlane.xlu0 %1192
        %v1194 = vmax.f32 %v1190, %v1193
        %v1195 = vsub.f32 %v1190, %v1194
        %v1196 = vmul.f32 %v1195, 1.442695
        %v1197 = vpow.pop %v1196
        %1199 = vset.pattern.permute.xlu0 0
        %1200 = vperm.xlu0 %1199, %v1194
        %v1201 = vpop.permute.xlu0 %1200
        %v1203 = vsub.f32 %v1186, %v1201
        %v1204 = vmul.f32 %v1203, 1.442695
        %v1205 = vpow.pop %v1204
        %s1206 = scalar_lea.vmem [#allocation4], 24
        %v1207 = vld [vmem:[%s1206] sm:$0xff]
        %v1208 = vmul.f32 %v1197, %v1207
        %v1209 = vsel %vm607, %v1205, 0.0
        %1210 = vadd.xlane.f32.xlu0 %v1209
        %v1211 = vpop.xlane.xlu0 %1210
        %v1212 = vadd.f32 %v1208, %v1211
        %1213 = vst.msk [vmem:[%s1206] sm:$0xff] %vm629, %v1212
        %v1214 = vld [vmem:[#allocation5] sm:$0xff]
        %1216 = vset.pattern.permute.xlu0 0
        %1217 = vperm.xlu0 %1216, %v1197
        %v1218 = vpop.permute.xlu0 %1217
        %v1220 = vmul.f32 %v1218, %v1214
        %1221 = vrot.lane.b32.xlu0 %v525, 84
        %v1222 = vpop.permute.xlu0 %1221
        %v1225 = vsel %vm607, %v1205, 0
        %1227 = vmatprep.subr.mxu0 0.0
        %1228 = vmatpush1.msra.mxu0 %v1222
        %1229 = vmatprep.subr.mxu0 0.0
        %1230 = vmatpush1.msra.mxu0 0.0
        %1231 = vmatprep.subr.mxu0 0.0
        %1232 = vmatpush1.msra.mxu0 0.0
        %1233 = vmatprep.subr.mxu0 0.0
        %1234 = vmatpush1.msra.mxu0 0.0
        %1235 = vmatprep.subr.mxu0 0.0
        %1236 = vmatpush1.msra.mxu0 0.0
        %1237 = vmatprep.subr.mxu0 0.0
        %1238 = vmatpush1.msra.mxu0 0.0
        %1239 = vmatprep.subr.mxu0 0.0
        %1240 = vmatpush1.msra.mxu0 0.0
        %1241 = vmatprep.subr.mxu0 0.0
        %1242 = vmatpush1.msra.mxu0 0.0
        %1243 = vmatprep.subr.mxu0 0.0
        %1244 = vmatpush1.msra.mxu0 0.0
        %1245 = vmatprep.subr.mxu0 0.0
        %1246 = vmatpush1.msra.mxu0 0.0
        %1247 = vmatprep.subr.mxu0 0.0
        %1248 = vmatpush1.msra.mxu0 0.0
        %1249 = vmatprep.subr.mxu0 0.0
        %1250 = vmatpush1.msra.mxu0 0.0
        %1251 = vmatprep.subr.mxu0 0.0
        %1252 = vmatpush1.msra.mxu0 0.0
        %1253 = vmatprep.subr.mxu0 0.0
        %1254 = vmatpush1.msra.mxu0 0.0
        %1255 = vmatprep.subr.mxu0 0.0
        %1256 = vmatpush1.msra.mxu0 0.0
        %1257 = vmatprep.subr.mxu0 0.0
        %1258 = vmatpush1.msra.mxu0 0.0
        %1259 = vmatprep.subr.mxu0 0.0
        %1260 = vmatpush1.msra.mxu0 0.0
        %1261 = vmatprep.subr.mxu0 0.0
        %1262 = vmatpush1.msra.mxu0 0.0
        %1263 = vmatprep.subr.mxu0 0.0
        %1264 = vmatpush1.msra.mxu0 0.0
        %1265 = vmatprep.subr.mxu0 0.0
        %1266 = vmatpush1.msra.mxu0 0.0
        %1267 = vmatprep.subr.mxu0 0.0
        %1268 = vmatpush1.msra.mxu0 0.0
        %1269 = vmatprep.subr.mxu0 0.0
        %1270 = vmatpush1.msra.mxu0 0.0
        %1271 = vmatprep.subr.mxu0 0.0
        %1272 = vmatpush1.msra.mxu0 0.0
        %1273 = vmatprep.subr.mxu0 0.0
        %1274 = vmatpush1.msra.mxu0 0.0
        %1275 = vmatprep.subr.mxu0 0.0
        %1276 = vmatpush1.msra.mxu0 0.0
        %1277 = vmatprep.subr.mxu0 0.0
        %1278 = vmatpush1.msra.mxu0 0.0
        %1279 = vmatprep.subr.mxu0 0.0
        %1280 = vmatpush1.msra.mxu0 0.0
        %1281 = vmatprep.subr.mxu0 0.0
        %1282 = vmatpush1.msra.mxu0 0.0
        %1283 = vmatprep.subr.mxu0 0.0
        %1284 = vmatpush1.msra.mxu0 0.0
        %1285 = vmatprep.subr.mxu0 0.0
        %1286 = vmatpush1.msra.mxu0 0.0
        %1287 = vmatprep.subr.mxu0 0.0
        %1288 = vmatpush1.msra.mxu0 0.0
        %1289 = vmatprep.subr.mxu0 0.0
        %1290 = vmatpush1.msra.mxu0 0.0
        %1291 = vmatprep.mubr.f32.mxu0 0.0
        %1292 = vmatmul.mubr.f32.gmra.mrb[0].mxu0 %v1225
        %v1293 = vpop.f32.mrb[0].mxu0
        %v1294 = vadd.f32 0.0, %v1293
        %v1295 = vpop.f32.mrb[0].mxu0
        %1296 = vdwg.mxu0
        %1298 = vrot.lane.b32.xlu0 %v1294, 12
        %v1299 = vpop.permute.xlu0 %1298
        %v1301 = vadd.f32 %v1220, %v1299
        %vm1302 = vcmask 130144
        %1303 = vst.msk [vmem:[#allocation5] sm:$0xff] %vm1302, %v1301
        %1304 = vst.msk [vmem:[%s1189] sm:$0xff] %vm629, %v1194
        %v1305 = vld [vmem:[#allocation2] sm:$0xff]
        %1307 = vrot.lane.b32.xlu0 %v1305, 112
        %v1308 = vpop.permute.xlu0 %1307
        %1309 = vrot.lane.b32.xlu0 %v525, 112
        %v1310 = vpop.permute.xlu0 %1309
        %v1311 = vsel %vm529, %v1308, 0
        %v1313 = vsel %vm529, %v1310, 0
        %1315 = vmatprep.subr.mxu0 0.0
        %1316 = vmatpush1.xpose.msra.mxu0 %v1313
        %1317 = vmatprep.subr.mxu0 0.0
        %1318 = vmatpush1.xpose.msra.mxu0 0.0
        %1319 = vmatprep.subr.mxu0 0.0
        %1320 = vmatpush1.xpose.msra.mxu0 0.0
        %1321 = vmatprep.subr.mxu0 0.0
        %1322 = vmatpush1.xpose.msra.mxu0 0.0
        %1323 = vmatprep.subr.mxu0 0.0
        %1324 = vmatpush1.xpose.msra.mxu0 0.0
        %1325 = vmatprep.subr.mxu0 0.0
        %1326 = vmatpush1.xpose.msra.mxu0 0.0
        %1327 = vmatprep.subr.mxu0 0.0
        %1328 = vmatpush1.xpose.msra.mxu0 0.0
        %1329 = vmatprep.subr.mxu0 0.0
        %1330 = vmatpush1.xpose.msra.mxu0 0.0
        %1331 = vmatprep.subr.mxu0 0.0
        %1332 = vmatpush1.xpose.msra.mxu0 0.0
        %1333 = vmatprep.subr.mxu0 0.0
        %1334 = vmatpush1.xpose.msra.mxu0 0.0
        %1335 = vmatprep.subr.mxu0 0.0
        %1336 = vmatpush1.xpose.msra.mxu0 0.0
        %1337 = vmatprep.subr.mxu0 0.0
        %1338 = vmatpush1.xpose.msra.mxu0 0.0
        %1339 = vmatprep.subr.mxu0 0.0
        %1340 = vmatpush1.xpose.msra.mxu0 0.0
        %1341 = vmatprep.subr.mxu0 0.0
        %1342 = vmatpush1.xpose.msra.mxu0 0.0
        %1343 = vmatprep.subr.mxu0 0.0
        %1344 = vmatpush1.xpose.msra.mxu0 0.0
        %1345 = vmatprep.subr.mxu0 0.0
        %1346 = vmatpush1.xpose.msra.mxu0 0.0
        %1347 = vmatprep.subr.mxu0 0.0
        %1348 = vmatpush1.xpose.msra.mxu0 0.0
        %1349 = vmatprep.subr.mxu0 0.0
        %1350 = vmatpush1.xpose.msra.mxu0 0.0
        %1351 = vmatprep.subr.mxu0 0.0
        %1352 = vmatpush1.xpose.msra.mxu0 0.0
        %1353 = vmatprep.subr.mxu0 0.0
        %1354 = vmatpush1.xpose.msra.mxu0 0.0
        %1355 = vmatprep.subr.mxu0 0.0
        %1356 = vmatpush1.xpose.msra.mxu0 0.0
        %1357 = vmatprep.subr.mxu0 0.0
        %1358 = vmatpush1.xpose.msra.mxu0 0.0
        %1359 = vmatprep.subr.mxu0 0.0
        %1360 = vmatpush1.xpose.msra.mxu0 0.0
        %1361 = vmatprep.subr.mxu0 0.0
        %1362 = vmatpush1.xpose.msra.mxu0 0.0
        %1363 = vmatprep.subr.mxu0 0.0
        %1364 = vmatpush1.xpose.msra.mxu0 0.0
        %1365 = vmatprep.subr.mxu0 0.0
        %1366 = vmatpush1.xpose.msra.mxu0 0.0
        %1367 = vmatprep.subr.mxu0 0.0
        %1368 = vmatpush1.xpose.msra.mxu0 0.0
        %1369 = vmatprep.subr.mxu0 0.0
        %1370 = vmatpush1.xpose.msra.mxu0 0.0
        %1371 = vmatprep.subr.mxu0 0.0
        %1372 = vmatpush1.xpose.msra.mxu0 0.0
        %1373 = vmatprep.subr.mxu0 0.0
        %1374 = vmatpush1.xpose.msra.mxu0 0.0
        %1375 = vmatprep.subr.mxu0 0.0
        %1376 = vmatpush1.xpose.msra.mxu0 0.0
        %1377 = vmatprep.subr.mxu0 0.0
        %1378 = vmatpush1.xpose.msra.mxu0 0.0
        %1379 = vmatprep.mubr.f32.mxu0 0.0
        %1380 = vmatmul.mubr.f32.gmra.mrb[0].mxu0 %v1311
        %v1381 = vpop.f32.mrb[0].mxu0
        %v1382 = vadd.f32 0.0, %v1381
        %v1383 = vpop.f32.mrb[0].mxu0
        %1384 = vdwg.mxu0
        %s1385 = scalar_lea.vmem [#allocation3], 32
        %v1386 = vld [vmem:[%s1385] sm:$0xff]
        %v1387 = vsel %vm607, %v1382, -inf
        %1388 = vmax.xlane.f32.xlu0 %v1387
        %v1389 = vpop.xlane.xlu0 %1388
        %v1390 = vmax.f32 %v1386, %v1389
        %v1391 = vsub.f32 %v1386, %v1390
        %v1392 = vmul.f32 %v1391, 1.442695
        %v1393 = vpow.pop %v1392
        %1395 = vset.pattern.permute.xlu0 0
        %1396 = vperm.xlu0 %1395, %v1390
        %v1397 = vpop.permute.xlu0 %1396
        %v1399 = vsub.f32 %v1382, %v1397
        %v1400 = vmul.f32 %v1399, 1.442695
        %v1401 = vpow.pop %v1400
        %s1402 = scalar_lea.vmem [#allocation4], 32
        %v1403 = vld [vmem:[%s1402] sm:$0xff]
        %v1404 = vmul.f32 %v1393, %v1403
        %v1405 = vsel %vm607, %v1401, 0.0
        %1406 = vadd.xlane.f32.xlu0 %v1405
        %v1407 = vpop.xlane.xlu0 %1406
        %v1408 = vadd.f32 %v1404, %v1407
        %1409 = vst.msk [vmem:[%s1402] sm:$0xff] %vm629, %v1408
        %v1410 = vld [vmem:[#allocation5] sm:$0xff]
        %1412 = vset.pattern.permute.xlu0 0
        %1413 = vperm.xlu0 %1412, %v1393
        %v1414 = vpop.permute.xlu0 %1413
        %v1416 = vmul.f32 %v1414, %v1410
        %1417 = vrot.lane.b32.xlu0 %v525, 80
        %v1418 = vpop.permute.xlu0 %1417
        %v1421 = vsel %vm607, %v1401, 0
        %1423 = vmatprep.subr.mxu0 0.0
        %1424 = vmatpush1.msra.mxu0 %v1418
        %1425 = vmatprep.subr.mxu0 0.0
        %1426 = vmatpush1.msra.mxu0 0.0
        %1427 = vmatprep.subr.mxu0 0.0
        %1428 = vmatpush1.msra.mxu0 0.0
        %1429 = vmatprep.subr.mxu0 0.0
        %1430 = vmatpush1.msra.mxu0 0.0
        %1431 = vmatprep.subr.mxu0 0.0
        %1432 = vmatpush1.msra.mxu0 0.0
        %1433 = vmatprep.subr.mxu0 0.0
        %1434 = vmatpush1.msra.mxu0 0.0
        %1435 = vmatprep.subr.mxu0 0.0
        %1436 = vmatpush1.msra.mxu0 0.0
        %1437 = vmatprep.subr.mxu0 0.0
        %1438 = vmatpush1.msra.mxu0 0.0
        %1439 = vmatprep.subr.mxu0 0.0
        %1440 = vmatpush1.msra.mxu0 0.0
        %1441 = vmatprep.subr.mxu0 0.0
        %1442 = vmatpush1.msra.mxu0 0.0
        %1443 = vmatprep.subr.mxu0 0.0
        %1444 = vmatpush1.msra.mxu0 0.0
        %1445 = vmatprep.subr.mxu0 0.0
        %1446 = vmatpush1.msra.mxu0 0.0
        %1447 = vmatprep.subr.mxu0 0.0
        %1448 = vmatpush1.msra.mxu0 0.0
        %1449 = vmatprep.subr.mxu0 0.0
        %1450 = vmatpush1.msra.mxu0 0.0
        %1451 = vmatprep.subr.mxu0 0.0
        %1452 = vmatpush1.msra.mxu0 0.0
        %1453 = vmatprep.subr.mxu0 0.0
        %1454 = vmatpush1.msra.mxu0 0.0
        %1455 = vmatprep.subr.mxu0 0.0
        %1456 = vmatpush1.msra.mxu0 0.0
        %1457 = vmatprep.subr.mxu0 0.0
        %1458 = vmatpush1.msra.mxu0 0.0
        %1459 = vmatprep.subr.mxu0 0.0
        %1460 = vmatpush1.msra.mxu0 0.0
        %1461 = vmatprep.subr.mxu0 0.0
        %1462 = vmatpush1.msra.mxu0 0.0
        %1463 = vmatprep.subr.mxu0 0.0
        %1464 = vmatpush1.msra.mxu0 0.0
        %1465 = vmatprep.subr.mxu0 0.0
        %1466 = vmatpush1.msra.mxu0 0.0
        %1467 = vmatprep.subr.mxu0 0.0
        %1468 = vmatpush1.msra.mxu0 0.0
        %1469 = vmatprep.subr.mxu0 0.0
        %1470 = vmatpush1.msra.mxu0 0.0
        %1471 = vmatprep.subr.mxu0 0.0
        %1472 = vmatpush1.msra.mxu0 0.0
        %1473 = vmatprep.subr.mxu0 0.0
        %1474 = vmatpush1.msra.mxu0 0.0
        %1475 = vmatprep.subr.mxu0 0.0
        %1476 = vmatpush1.msra.mxu0 0.0
        %1477 = vmatprep.subr.mxu0 0.0
        %1478 = vmatpush1.msra.mxu0 0.0
        %1479 = vmatprep.subr.mxu0 0.0
        %1480 = vmatpush1.msra.mxu0 0.0
        %1481 = vmatprep.subr.mxu0 0.0
        %1482 = vmatpush1.msra.mxu0 0.0
        %1483 = vmatprep.subr.mxu0 0.0
        %1484 = vmatpush1.msra.mxu0 0.0
        %1485 = vmatprep.subr.mxu0 0.0
        %1486 = vmatpush1.msra.mxu0 0.0
        %1487 = vmatprep.mubr.f32.mxu0 0.0
        %1488 = vmatmul.mubr.f32.gmra.mrb[0].mxu0 %v1421
        %v1489 = vpop.f32.mrb[0].mxu0
        %v1490 = vadd.f32 0.0, %v1489
        %v1491 = vpop.f32.mrb[0].mxu0
        %1492 = vdwg.mxu0
        %1494 = vrot.lane.b32.xlu0 %v1490, 16
        %v1495 = vpop.permute.xlu0 %1494
        %v1497 = vadd.f32 %v1416, %v1495
        %vm1498 = vcmask 162944
        %1499 = vst.msk [vmem:[#allocation5] sm:$0xff] %vm1498, %v1497
        %1500 = vst.msk [vmem:[%s1385] sm:$0xff] %vm629, %v1390
        %v1501 = vld [vmem:[#allocation2] sm:$0xff]
        %1503 = vrot.lane.b32.xlu0 %v1501, 108
        %v1504 = vpop.permute.xlu0 %1503
        %1505 = vrot.lane.b32.xlu0 %v525, 108
        %v1506 = vpop.permute.xlu0 %1505
        %v1507 = vsel %vm529, %v1504, 0
        %v1509 = vsel %vm529, %v1506, 0
        %1511 = vmatprep.subr.mxu0 0.0
        %1512 = vmatpush1.xpose.msra.mxu0 %v1509
        %1513 = vmatprep.subr.mxu0 0.0
        %1514 = vmatpush1.xpose.msra.mxu0 0.0
        %1515 = vmatprep.subr.mxu0 0.0
        %1516 = vmatpush1.xpose.msra.mxu0 0.0
        %1517 = vmatprep.subr.mxu0 0.0
        %1518 = vmatpush1.xpose.msra.mxu0 0.0
        %1519 = vmatprep.subr.mxu0 0.0
        %1520 = vmatpush1.xpose.msra.mxu0 0.0
        %1521 = vmatprep.subr.mxu0 0.0
        %1522 = vmatpush1.xpose.msra.mxu0 0.0
        %1523 = vmatprep.subr.mxu0 0.0
        %1524 = vmatpush1.xpose.msra.mxu0 0.0
        %1525 = vmatprep.subr.mxu0 0.0
        %1526 = vmatpush1.xpose.msra.mxu0 0.0
        %1527 = vmatprep.subr.mxu0 0.0
        %1528 = vmatpush1.xpose.msra.mxu0 0.0
        %1529 = vmatprep.subr.mxu0 0.0
        %1530 = vmatpush1.xpose.msra.mxu0 0.0
        %1531 = vmatprep.subr.mxu0 0.0
        %1532 = vmatpush1.xpose.msra.mxu0 0.0
        %1533 = vmatprep.subr.mxu0 0.0
        %1534 = vmatpush1.xpose.msra.mxu0 0.0
        %1535 = vmatprep.subr.mxu0 0.0
        %1536 = vmatpush1.xpose.msra.mxu0 0.0
        %1537 = vmatprep.subr.mxu0 0.0
        %1538 = vmatpush1.xpose.msra.mxu0 0.0
        %1539 = vmatprep.subr.mxu0 0.0
        %1540 = vmatpush1.xpose.msra.mxu0 0.0
        %1541 = vmatprep.subr.mxu0 0.0
        %1542 = vmatpush1.xpose.msra.mxu0 0.0
        %1543 = vmatprep.subr.mxu0 0.0
        %1544 = vmatpush1.xpose.msra.mxu0 0.0
        %1545 = vmatprep.subr.mxu0 0.0
        %1546 = vmatpush1.xpose.msra.mxu0 0.0
        %1547 = vmatprep.subr.mxu0 0.0
        %1548 = vmatpush1.xpose.msra.mxu0 0.0
        %1549 = vmatprep.subr.mxu0 0.0
        %1550 = vmatpush1.xpose.msra.mxu0 0.0
        %1551 = vmatprep.subr.mxu0 0.0
        %1552 = vmatpush1.xpose.msra.mxu0 0.0
        %1553 = vmatprep.subr.mxu0 0.0
        %1554 = vmatpush1.xpose.msra.mxu0 0.0
        %1555 = vmatprep.subr.mxu0 0.0
        %1556 = vmatpush1.xpose.msra.mxu0 0.0
        %1557 = vmatprep.subr.mxu0 0.0
        %1558 = vmatpush1.xpose.msra.mxu0 0.0
        %1559 = vmatprep.subr.mxu0 0.0
        %1560 = vmatpush1.xpose.msra.mxu0 0.0
        %1561 = vmatprep.subr.mxu0 0.0
        %1562 = vmatpush1.xpose.msra.mxu0 0.0
        %1563 = vmatprep.subr.mxu0 0.0
        %1564 = vmatpush1.xpose.msra.mxu0 0.0
        %1565 = vmatprep.subr.mxu0 0.0
        %1566 = vmatpush1.xpose.msra.mxu0 0.0
        %1567 = vmatprep.subr.mxu0 0.0
        %1568 = vmatpush1.xpose.msra.mxu0 0.0
        %1569 = vmatprep.subr.mxu0 0.0
        %1570 = vmatpush1.xpose.msra.mxu0 0.0
        %1571 = vmatprep.subr.mxu0 0.0
        %1572 = vmatpush1.xpose.msra.mxu0 0.0
        %1573 = vmatprep.subr.mxu0 0.0
        %1574 = vmatpush1.xpose.msra.mxu0 0.0
        %1575 = vmatprep.mubr.f32.mxu0 0.0
        %1576 = vmatmul.mubr.f32.gmra.mrb[0].mxu0 %v1507
        %v1577 = vpop.f32.mrb[0].mxu0
        %v1578 = vadd.f32 0.0, %v1577
        %v1579 = vpop.f32.mrb[0].mxu0
        %1580 = vdwg.mxu0
        %s1581 = scalar_lea.vmem [#allocation3], 40
        %v1582 = vld [vmem:[%s1581] sm:$0xff]
        %v1583 = vsel %vm607, %v1578, -inf
        %1584 = vmax.xlane.f32.xlu0 %v1583
        %v1585 = vpop.xlane.xlu0 %1584
        %v1586 = vmax.f32 %v1582, %v1585
        %v1587 = vsub.f32 %v1582, %v1586
        %v1588 = vmul.f32 %v1587, 1.442695
        %v1589 = vpow.pop %v1588
        %1591 = vset.pattern.permute.xlu0 0
        %1592 = vperm.xlu0 %1591, %v1586
        %v1593 = vpop.permute.xlu0 %1592
        %v1595 = vsub.f32 %v1578, %v1593
        %v1596 = vmul.f32 %v1595, 1.442695
        %v1597 = vpow.pop %v1596
        %s1598 = scalar_lea.vmem [#allocation4], 40
        %v1599 = vld [vmem:[%s1598] sm:$0xff]
        %v1600 = vmul.f32 %v1589, %v1599
        %v1601 = vsel %vm607, %v1597, 0.0
        %1602 = vadd.xlane.f32.xlu0 %v1601
        %v1603 = vpop.xlane.xlu0 %1602
        %v1604 = vadd.f32 %v1600, %v1603
        %1605 = vst.msk [vmem:[%s1598] sm:$0xff] %vm629, %v1604
        %v1606 = vld [vmem:[#allocation5] sm:$0xff]
        %1608 = vset.pattern.permute.xlu0 0
        %1609 = vperm.xlu0 %1608, %v1589
        %v1610 = vpop.permute.xlu0 %1609
        %v1612 = vmul.f32 %v1610, %v1606
        %1613 = vrot.lane.b32.xlu0 %v525, 76
        %v1614 = vpop.permute.xlu0 %1613
        %v1617 = vsel %vm607, %v1597, 0
        %1619 = vmatprep.subr.mxu0 0.0
        %1620 = vmatpush1.msra.mxu0 %v1614
        %1621 = vmatprep.subr.mxu0 0.0
        %1622 = vmatpush1.msra.mxu0 0.0
        %1623 = vmatprep.subr.mxu0 0.0
        %1624 = vmatpush1.msra.mxu0 0.0
        %1625 = vmatprep.subr.mxu0 0.0
        %1626 = vmatpush1.msra.mxu0 0.0
        %1627 = vmatprep.subr.mxu0 0.0
        %1628 = vmatpush1.msra.mxu0 0.0
        %1629 = vmatprep.subr.mxu0 0.0
        %1630 = vmatpush1.msra.mxu0 0.0
        %1631 = vmatprep.subr.mxu0 0.0
        %1632 = vmatpush1.msra.mxu0 0.0
        %1633 = vmatprep.subr.mxu0 0.0
        %1634 = vmatpush1.msra.mxu0 0.0
        %1635 = vmatprep.subr.mxu0 0.0
        %1636 = vmatpush1.msra.mxu0 0.0
        %1637 = vmatprep.subr.mxu0 0.0
        %1638 = vmatpush1.msra.mxu0 0.0
        %1639 = vmatprep.subr.mxu0 0.0
        %1640 = vmatpush1.msra.mxu0 0.0
        %1641 = vmatprep.subr.mxu0 0.0
        %1642 = vmatpush1.msra.mxu0 0.0
        %1643 = vmatprep.subr.mxu0 0.0
        %1644 = vmatpush1.msra.mxu0 0.0
        %1645 = vmatprep.subr.mxu0 0.0
        %1646 = vmatpush1.msra.mxu0 0.0
        %1647 = vmatprep.subr.mxu0 0.0
        %1648 = vmatpush1.msra.mxu0 0.0
        %1649 = vmatprep.subr.mxu0 0.0
        %1650 = vmatpush1.msra.mxu0 0.0
        %1651 = vmatprep.subr.mxu0 0.0
        %1652 = vmatpush1.msra.mxu0 0.0
        %1653 = vmatprep.subr.mxu0 0.0
        %1654 = vmatpush1.msra.mxu0 0.0
        %1655 = vmatprep.subr.mxu0 0.0
        %1656 = vmatpush1.msra.mxu0 0.0
        %1657 = vmatprep.subr.mxu0 0.0
        %1658 = vmatpush1.msra.mxu0 0.0
        %1659 = vmatprep.subr.mxu0 0.0
        %1660 = vmatpush1.msra.mxu0 0.0
        %1661 = vmatprep.subr.mxu0 0.0
        %1662 = vmatpush1.msra.mxu0 0.0
        %1663 = vmatprep.subr.mxu0 0.0
        %1664 = vmatpush1.msra.mxu0 0.0
        %1665 = vmatprep.subr.mxu0 0.0
        %1666 = vmatpush1.msra.mxu0 0.0
        %1667 = vmatprep.subr.mxu0 0.0
        %1668 = vmatpush1.msra.mxu0 0.0
        %1669 = vmatprep.subr.mxu0 0.0
        %1670 = vmatpush1.msra.mxu0 0.0
        %1671 = vmatprep.subr.mxu0 0.0
        %1672 = vmatpush1.msra.mxu0 0.0
        %1673 = vmatprep.subr.mxu0 0.0
        %1674 = vmatpush1.msra.mxu0 0.0
        %1675 = vmatprep.subr.mxu0 0.0
        %1676 = vmatpush1.msra.mxu0 0.0
        %1677 = vmatprep.subr.mxu0 0.0
        %1678 = vmatpush1.msra.mxu0 0.0
        %1679 = vmatprep.subr.mxu0 0.0
        %1680 = vmatpush1.msra.mxu0 0.0
        %1681 = vmatprep.subr.mxu0 0.0
        %1682 = vmatpush1.msra.mxu0 0.0
        %1683 = vmatprep.mubr.f32.mxu0 0.0
        %1684 = vmatmul.mubr.f32.gmra.mrb[0].mxu0 %v1617
        %v1685 = vpop.f32.mrb[0].mxu0
        %v1686 = vadd.f32 0.0, %v1685
        %v1687 = vpop.f32.mrb[0].mxu0
        %1688 = vdwg.mxu0
        %1690 = vrot.lane.b32.xlu0 %v1686, 20
        %v1691 = vpop.permute.xlu0 %1690
        %v1693 = vadd.f32 %v1612, %v1691
        %vm1694 = vcmask 195744
        %1695 = vst.msk [vmem:[#allocation5] sm:$0xff] %vm1694, %v1693
        %1696 = vst.msk [vmem:[%s1581] sm:$0xff] %vm629, %v1586
        %v1697 = vld [vmem:[#allocation2] sm:$0xff]
        %1699 = vrot.lane.b32.xlu0 %v1697, 104
        %v1700 = vpop.permute.xlu0 %1699
        %1701 = vrot.lane.b32.xlu0 %v525, 104
        %v1702 = vpop.permute.xlu0 %1701
        %v1703 = vsel %vm529, %v1700, 0
        %v1705 = vsel %vm529, %v1702, 0
        %1707 = vmatprep.subr.mxu0 0.0
        %1708 = vmatpush1.xpose.msra.mxu0 %v1705
        %1709 = vmatprep.subr.mxu0 0.0
        %1710 = vmatpush1.xpose.msra.mxu0 0.0
        %1711 = vmatprep.subr.mxu0 0.0
        %1712 = vmatpush1.xpose.msra.mxu0 0.0
        %1713 = vmatprep.subr.mxu0 0.0
        %1714 = vmatpush1.xpose.msra.mxu0 0.0
        %1715 = vmatprep.subr.mxu0 0.0
        %1716 = vmatpush1.xpose.msra.mxu0 0.0
        %1717 = vmatprep.subr.mxu0 0.0
        %1718 = vmatpush1.xpose.msra.mxu0 0.0
        %1719 = vmatprep.subr.mxu0 0.0
        %1720 = vmatpush1.xpose.msra.mxu0 0.0
        %1721 = vmatprep.subr.mxu0 0.0
        %1722 = vmatpush1.xpose.msra.mxu0 0.0
        %1723 = vmatprep.subr.mxu0 0.0
        %1724 = vmatpush1.xpose.msra.mxu0 0.0
        %1725 = vmatprep.subr.mxu0 0.0
        %1726 = vmatpush1.xpose.msra.mxu0 0.0
        %1727 = vmatprep.subr.mxu0 0.0
        %1728 = vmatpush1.xpose.msra.mxu0 0.0
        %1729 = vmatprep.subr.mxu0 0.0
        %1730 = vmatpush1.xpose.msra.mxu0 0.0
        %1731 = vmatprep.subr.mxu0 0.0
        %1732 = vmatpush1.xpose.msra.mxu0 0.0
        %1733 = vmatprep.subr.mxu0 0.0
        %1734 = vmatpush1.xpose.msra.mxu0 0.0
        %1735 = vmatprep.subr.mxu0 0.0
        %1736 = vmatpush1.xpose.msra.mxu0 0.0
        %1737 = vmatprep.subr.mxu0 0.0
        %1738 = vmatpush1.xpose.msra.mxu0 0.0
        %1739 = vmatprep.subr.mxu0 0.0
        %1740 = vmatpush1.xpose.msra.mxu0 0.0
        %1741 = vmatprep.subr.mxu0 0.0
        %1742 = vmatpush1.xpose.msra.mxu0 0.0
        %1743 = vmatprep.subr.mxu0 0.0
        %1744 = vmatpush1.xpose.msra.mxu0 0.0
        %1745 = vmatprep.subr.mxu0 0.0
        %1746 = vmatpush1.xpose.msra.mxu0 0.0
        %1747 = vmatprep.subr.mxu0 0.0
        %1748 = vmatpush1.xpose.msra.mxu0 0.0
        %1749 = vmatprep.subr.mxu0 0.0
        %1750 = vmatpush1.xpose.msra.mxu0 0.0
        %1751 = vmatprep.subr.mxu0 0.0
        %1752 = vmatpush1.xpose.msra.mxu0 0.0
        %1753 = vmatprep.subr.mxu0 0.0
        %1754 = vmatpush1.xpose.msra.mxu0 0.0
        %1755 = vmatprep.subr.mxu0 0.0
        %1756 = vmatpush1.xpose.msra.mxu0 0.0
        %1757 = vmatprep.subr.mxu0 0.0
        %1758 = vmatpush1.xpose.msra.mxu0 0.0
        %1759 = vmatprep.subr.mxu0 0.0
        %1760 = vmatpush1.xpose.msra.mxu0 0.0
        %1761 = vmatprep.subr.mxu0 0.0
        %1762 = vmatpush1.xpose.msra.mxu0 0.0
        %1763 = vmatprep.subr.mxu0 0.0
        %1764 = vmatpush1.xpose.msra.mxu0 0.0
        %1765 = vmatprep.subr.mxu0 0.0
        %1766 = vmatpush1.xpose.msra.mxu0 0.0
        %1767 = vmatprep.subr.mxu0 0.0
        %1768 = vmatpush1.xpose.msra.mxu0 0.0
        %1769 = vmatprep.subr.mxu0 0.0
        %1770 = vmatpush1.xpose.msra.mxu0 0.0
        %1771 = vmatprep.mubr.f32.mxu0 0.0
        %1772 = vmatmul.mubr.f32.gmra.mrb[0].mxu0 %v1703
        %v1773 = vpop.f32.mrb[0].mxu0
        %v1774 = vadd.f32 0.0, %v1773
        %v1775 = vpop.f32.mrb[0].mxu0
        %1776 = vdwg.mxu0
        %s1777 = scalar_lea.vmem [#allocation3], 48
        %v1778 = vld [vmem:[%s1777] sm:$0xff]
        %v1779 = vsel %vm607, %v1774, -inf
        %1780 = vmax.xlane.f32.xlu0 %v1779
        %v1781 = vpop.xlane.xlu0 %1780
        %v1782 = vmax.f32 %v1778, %v1781
        %v1783 = vsub.f32 %v1778, %v1782
        %v1784 = vmul.f32 %v1783, 1.442695
        %v1785 = vpow.pop %v1784
        %1787 = vset.pattern.permute.xlu0 0
        %1788 = vperm.xlu0 %1787, %v1782
        %v1789 = vpop.permute.xlu0 %1788
        %v1791 = vsub.f32 %v1774, %v1789
        %v1792 = vmul.f32 %v1791, 1.442695
        %v1793 = vpow.pop %v1792
        %s1794 = scalar_lea.vmem [#allocation4], 48
        %v1795 = vld [vmem:[%s1794] sm:$0xff]
        %v1796 = vmul.f32 %v1785, %v1795
        %v1797 = vsel %vm607, %v1793, 0.0
        %1798 = vadd.xlane.f32.xlu0 %v1797
        %v1799 = vpop.xlane.xlu0 %1798
        %v1800 = vadd.f32 %v1796, %v1799
        %1801 = vst.msk [vmem:[%s1794] sm:$0xff] %vm629, %v1800
        %v1802 = vld [vmem:[#allocation5] sm:$0xff]
        %1804 = vset.pattern.permute.xlu0 0
        %1805 = vperm.xlu0 %1804, %v1785
        %v1806 = vpop.permute.xlu0 %1805
        %v1808 = vmul.f32 %v1806, %v1802
        %1809 = vrot.lane.b32.xlu0 %v525, 72
        %v1810 = vpop.permute.xlu0 %1809
        %v1813 = vsel %vm607, %v1793, 0
        %1815 = vmatprep.subr.mxu0 0.0
        %1816 = vmatpush1.msra.mxu0 %v1810
        %1817 = vmatprep.subr.mxu0 0.0
        %1818 = vmatpush1.msra.mxu0 0.0
        %1819 = vmatprep.subr.mxu0 0.0
        %1820 = vmatpush1.msra.mxu0 0.0
        %1821 = vmatprep.subr.mxu0 0.0
        %1822 = vmatpush1.msra.mxu0 0.0
        %1823 = vmatprep.subr.mxu0 0.0
        %1824 = vmatpush1.msra.mxu0 0.0
        %1825 = vmatprep.subr.mxu0 0.0
        %1826 = vmatpush1.msra.mxu0 0.0
        %1827 = vmatprep.subr.mxu0 0.0
        %1828 = vmatpush1.msra.mxu0 0.0
        %1829 = vmatprep.subr.mxu0 0.0
        %1830 = vmatpush1.msra.mxu0 0.0
        %1831 = vmatprep.subr.mxu0 0.0
        %1832 = vmatpush1.msra.mxu0 0.0
        %1833 = vmatprep.subr.mxu0 0.0
        %1834 = vmatpush1.msra.mxu0 0.0
        %1835 = vmatprep.subr.mxu0 0.0
        %1836 = vmatpush1.msra.mxu0 0.0
        %1837 = vmatprep.subr.mxu0 0.0
        %1838 = vmatpush1.msra.mxu0 0.0
        %1839 = vmatprep.subr.mxu0 0.0
        %1840 = vmatpush1.msra.mxu0 0.0
        %1841 = vmatprep.subr.mxu0 0.0
        %1842 = vmatpush1.msra.mxu0 0.0
        %1843 = vmatprep.subr.mxu0 0.0
        %1844 = vmatpush1.msra.mxu0 0.0
        %1845 = vmatprep.subr.mxu0 0.0
        %1846 = vmatpush1.msra.mxu0 0.0
        %1847 = vmatprep.subr.mxu0 0.0
        %1848 = vmatpush1.msra.mxu0 0.0
        %1849 = vmatprep.subr.mxu0 0.0
        %1850 = vmatpush1.msra.mxu0 0.0
        %1851 = vmatprep.subr.mxu0 0.0
        %1852 = vmatpush1.msra.mxu0 0.0
        %1853 = vmatprep.subr.mxu0 0.0
        %1854 = vmatpush1.msra.mxu0 0.0
        %1855 = vmatprep.subr.mxu0 0.0
        %1856 = vmatpush1.msra.mxu0 0.0
        %1857 = vmatprep.subr.mxu0 0.0
        %1858 = vmatpush1.msra.mxu0 0.0
        %1859 = vmatprep.subr.mxu0 0.0
        %1860 = vmatpush1.msra.mxu0 0.0
        %1861 = vmatprep.subr.mxu0 0.0
        %1862 = vmatpush1.msra.mxu0 0.0
        %1863 = vmatprep.subr.mxu0 0.0
        %1864 = vmatpush1.msra.mxu0 0.0
        %1865 = vmatprep.subr.mxu0 0.0
        %1866 = vmatpush1.msra.mxu0 0.0
        %1867 = vmatprep.subr.mxu0 0.0
        %1868 = vmatpush1.msra.mxu0 0.0
        %1869 = vmatprep.subr.mxu0 0.0
        %1870 = vmatpush1.msra.mxu0 0.0
        %1871 = vmatprep.subr.mxu0 0.0
        %1872 = vmatpush1.msra.mxu0 0.0
        %1873 = vmatprep.subr.mxu0 0.0
        %1874 = vmatpush1.msra.mxu0 0.0
        %1875 = vmatprep.subr.mxu0 0.0
        %1876 = vmatpush1.msra.mxu0 0.0
        %1877 = vmatprep.subr.mxu0 0.0
        %1878 = vmatpush1.msra.mxu0 0.0
        %1879 = vmatprep.mubr.f32.mxu0 0.0
        %1880 = vmatmul.mubr.f32.gmra.mrb[0].mxu0 %v1813
        %v1881 = vpop.f32.mrb[0].mxu0
        %v1882 = vadd.f32 0.0, %v1881
        %v1883 = vpop.f32.mrb[0].mxu0
        %1884 = vdwg.mxu0
        %1886 = vrot.lane.b32.xlu0 %v1882, 24
        %v1887 = vpop.permute.xlu0 %1886
        %v1889 = vadd.f32 %v1808, %v1887
        %vm1890 = vcmask 228544
        %1891 = vst.msk [vmem:[#allocation5] sm:$0xff] %vm1890, %v1889
        %1892 = vst.msk [vmem:[%s1777] sm:$0xff] %vm629, %v1782
        %v1893 = vld [vmem:[#allocation2] sm:$0xff]
        %1895 = vrot.lane.b32.xlu0 %v1893, 100
        %v1896 = vpop.permute.xlu0 %1895
        %1897 = vrot.lane.b32.xlu0 %v525, 100
        %v1898 = vpop.permute.xlu0 %1897
        %v1899 = vsel %vm529, %v1896, 0
        %v1901 = vsel %vm529, %v1898, 0
        %1903 = vmatprep.subr.mxu0 0.0
        %1904 = vmatpush1.xpose.msra.mxu0 %v1901
        %1905 = vmatprep.subr.mxu0 0.0
        %1906 = vmatpush1.xpose.msra.mxu0 0.0
        %1907 = vmatprep.subr.mxu0 0.0
        %1908 = vmatpush1.xpose.msra.mxu0 0.0
        %1909 = vmatprep.subr.mxu0 0.0
        %1910 = vmatpush1.xpose.msra.mxu0 0.0
        %1911 = vmatprep.subr.mxu0 0.0
        %1912 = vmatpush1.xpose.msra.mxu0 0.0
        %1913 = vmatprep.subr.mxu0 0.0
        %1914 = vmatpush1.xpose.msra.mxu0 0.0
        %1915 = vmatprep.subr.mxu0 0.0
        %1916 = vmatpush1.xpose.msra.mxu0 0.0
        %1917 = vmatprep.subr.mxu0 0.0
        %1918 = vmatpush1.xpose.msra.mxu0 0.0
        %1919 = vmatprep.subr.mxu0 0.0
        %1920 = vmatpush1.xpose.msra.mxu0 0.0
        %1921 = vmatprep.subr.mxu0 0.0
        %1922 = vmatpush1.xpose.msra.mxu0 0.0
        %1923 = vmatprep.subr.mxu0 0.0
        %1924 = vmatpush1.xpose.msra.mxu0 0.0
        %1925 = vmatprep.subr.mxu0 0.0
        %1926 = vmatpush1.xpose.msra.mxu0 0.0
        %1927 = vmatprep.subr.mxu0 0.0
        %1928 = vmatpush1.xpose.msra.mxu0 0.0
        %1929 = vmatprep.subr.mxu0 0.0
        %1930 = vmatpush1.xpose.msra.mxu0 0.0
        %1931 = vmatprep.subr.mxu0 0.0
        %1932 = vmatpush1.xpose.msra.mxu0 0.0
        %1933 = vmatprep.subr.mxu0 0.0
        %1934 = vmatpush1.xpose.msra.mxu0 0.0
        %1935 = vmatprep.subr.mxu0 0.0
        %1936 = vmatpush1.xpose.msra.mxu0 0.0
        %1937 = vmatprep.subr.mxu0 0.0
        %1938 = vmatpush1.xpose.msra.mxu0 0.0
        %1939 = vmatprep.subr.mxu0 0.0
        %1940 = vmatpush1.xpose.msra.mxu0 0.0
        %1941 = vmatprep.subr.mxu0 0.0
        %1942 = vmatpush1.xpose.msra.mxu0 0.0
        %1943 = vmatprep.subr.mxu0 0.0
        %1944 = vmatpush1.xpose.msra.mxu0 0.0
        %1945 = vmatprep.subr.mxu0 0.0
        %1946 = vmatpush1.xpose.msra.mxu0 0.0
        %1947 = vmatprep.subr.mxu0 0.0
        %1948 = vmatpush1.xpose.msra.mxu0 0.0
        %1949 = vmatprep.subr.mxu0 0.0
        %1950 = vmatpush1.xpose.msra.mxu0 0.0
        %1951 = vmatprep.subr.mxu0 0.0
        %1952 = vmatpush1.xpose.msra.mxu0 0.0
        %1953 = vmatprep.subr.mxu0 0.0
        %1954 = vmatpush1.xpose.msra.mxu0 0.0
        %1955 = vmatprep.subr.mxu0 0.0
        %1956 = vmatpush1.xpose.msra.mxu0 0.0
        %1957 = vmatprep.subr.mxu0 0.0
        %1958 = vmatpush1.xpose.msra.mxu0 0.0
        %1959 = vmatprep.subr.mxu0 0.0
        %1960 = vmatpush1.xpose.msra.mxu0 0.0
        %1961 = vmatprep.subr.mxu0 0.0
        %1962 = vmatpush1.xpose.msra.mxu0 0.0
        %1963 = vmatprep.subr.mxu0 0.0
        %1964 = vmatpush1.xpose.msra.mxu0 0.0
        %1965 = vmatprep.subr.mxu0 0.0
        %1966 = vmatpush1.xpose.msra.mxu0 0.0
        %1967 = vmatprep.mubr.f32.mxu0 0.0
        %1968 = vmatmul.mubr.f32.gmra.mrb[0].mxu0 %v1899
        %v1969 = vpop.f32.mrb[0].mxu0
        %v1970 = vadd.f32 0.0, %v1969
        %v1971 = vpop.f32.mrb[0].mxu0
        %1972 = vdwg.mxu0
        %s1973 = scalar_lea.vmem [#allocation3], 56
        %v1974 = vld [vmem:[%s1973] sm:$0xff]
        %v1975 = vsel %vm607, %v1970, -inf
        %1976 = vmax.xlane.f32.xlu0 %v1975
        %v1977 = vpop.xlane.xlu0 %1976
        %v1978 = vmax.f32 %v1974, %v1977
        %v1979 = vsub.f32 %v1974, %v1978
        %v1980 = vmul.f32 %v1979, 1.442695
        %v1981 = vpow.pop %v1980
        %1983 = vset.pattern.permute.xlu0 0
        %1984 = vperm.xlu0 %1983, %v1978
        %v1985 = vpop.permute.xlu0 %1984
        %v1987 = vsub.f32 %v1970, %v1985
        %v1988 = vmul.f32 %v1987, 1.442695
        %v1989 = vpow.pop %v1988
        %s1990 = scalar_lea.vmem [#allocation4], 56
        %v1991 = vld [vmem:[%s1990] sm:$0xff]
        %v1992 = vmul.f32 %v1981, %v1991
        %v1993 = vsel %vm607, %v1989, 0.0
        %1994 = vadd.xlane.f32.xlu0 %v1993
        %v1995 = vpop.xlane.xlu0 %1994
        %v1996 = vadd.f32 %v1992, %v1995
        %1997 = vst.msk [vmem:[%s1990] sm:$0xff] %vm629, %v1996
        %v1998 = vld [vmem:[#allocation5] sm:$0xff]
        %2000 = vset.pattern.permute.xlu0 0
        %2001 = vperm.xlu0 %2000, %v1981
        %v2002 = vpop.permute.xlu0 %2001
        %v2004 = vmul.f32 %v2002, %v1998
        %2005 = vrot.lane.b32.xlu0 %v525, 68
        %v2006 = vpop.permute.xlu0 %2005
        %v2009 = vsel %vm607, %v1989, 0
        %2011 = vmatprep.subr.mxu0 0.0
        %2012 = vmatpush1.msra.mxu0 %v2006
        %2013 = vmatprep.subr.mxu0 0.0
        %2014 = vmatpush1.msra.mxu0 0.0
        %2015 = vmatprep.subr.mxu0 0.0
        %2016 = vmatpush1.msra.mxu0 0.0
        %2017 = vmatprep.subr.mxu0 0.0
        %2018 = vmatpush1.msra.mxu0 0.0
        %2019 = vmatprep.subr.mxu0 0.0
        %2020 = vmatpush1.msra.mxu0 0.0
        %2021 = vmatprep.subr.mxu0 0.0
        %2022 = vmatpush1.msra.mxu0 0.0
        %2023 = vmatprep.subr.mxu0 0.0
        %2024 = vmatpush1.msra.mxu0 0.0
        %2025 = vmatprep.subr.mxu0 0.0
        %2026 = vmatpush1.msra.mxu0 0.0
        %2027 = vmatprep.subr.mxu0 0.0
        %2028 = vmatpush1.msra.mxu0 0.0
        %2029 = vmatprep.subr.mxu0 0.0
        %2030 = vmatpush1.msra.mxu0 0.0
        %2031 = vmatprep.subr.mxu0 0.0
        %2032 = vmatpush1.msra.mxu0 0.0
        %2033 = vmatprep.subr.mxu0 0.0
        %2034 = vmatpush1.msra.mxu0 0.0
        %2035 = vmatprep.subr.mxu0 0.0
        %2036 = vmatpush1.msra.mxu0 0.0
        %2037 = vmatprep.subr.mxu0 0.0
        %2038 = vmatpush1.msra.mxu0 0.0
        %2039 = vmatprep.subr.mxu0 0.0
        %2040 = vmatpush1.msra.mxu0 0.0
        %2041 = vmatprep.subr.mxu0 0.0
        %2042 = vmatpush1.msra.mxu0 0.0
        %2043 = vmatprep.subr.mxu0 0.0
        %2044 = vmatpush1.msra.mxu0 0.0
        %2045 = vmatprep.subr.mxu0 0.0
        %2046 = vmatpush1.msra.mxu0 0.0
        %2047 = vmatprep.subr.mxu0 0.0
        %2048 = vmatpush1.msra.mxu0 0.0
        %2049 = vmatprep.subr.mxu0 0.0
        %2050 = vmatpush1.msra.mxu0 0.0
        %2051 = vmatprep.subr.mxu0 0.0
        %2052 = vmatpush1.msra.mxu0 0.0
        %2053 = vmatprep.subr.mxu0 0.0
        %2054 = vmatpush1.msra.mxu0 0.0
        %2055 = vmatprep.subr.mxu0 0.0
        %2056 = vmatpush1.msra.mxu0 0.0
        %2057 = vmatprep.subr.mxu0 0.0
        %2058 = vmatpush1.msra.mxu0 0.0
        %2059 = vmatprep.subr.mxu0 0.0
        %2060 = vmatpush1.msra.mxu0 0.0
        %2061 = vmatprep.subr.mxu0 0.0
        %2062 = vmatpush1.msra.mxu0 0.0
        %2063 = vmatprep.subr.mxu0 0.0
        %2064 = vmatpush1.msra.mxu0 0.0
        %2065 = vmatprep.subr.mxu0 0.0
        %2066 = vmatpush1.msra.mxu0 0.0
        %2067 = vmatprep.subr.mxu0 0.0
        %2068 = vmatpush1.msra.mxu0 0.0
        %2069 = vmatprep.subr.mxu0 0.0
        %2070 = vmatpush1.msra.mxu0 0.0
        %2071 = vmatprep.subr.mxu0 0.0
        %2072 = vmatpush1.msra.mxu0 0.0
        %2073 = vmatprep.subr.mxu0 0.0
        %2074 = vmatpush1.msra.mxu0 0.0
        %2075 = vmatprep.mubr.f32.mxu0 0.0
        %2076 = vmatmul.mubr.f32.gmra.mrb[0].mxu0 %v2009
        %v2077 = vpop.f32.mrb[0].mxu0
        %v2078 = vadd.f32 0.0, %v2077
        %v2079 = vpop.f32.mrb[0].mxu0
        %2080 = vdwg.mxu0
        %2082 = vrot.lane.b32.xlu0 %v2078, 28
        %v2083 = vpop.permute.xlu0 %2082
        %v2085 = vadd.f32 %v2004, %v2083
        %vm2086 = vcmask 261344
        %2087 = vst.msk [vmem:[#allocation5] sm:$0xff] %vm2086, %v2085
        %2088 = vst.msk [vmem:[%s1973] sm:$0xff] %vm629, %v1978
        // Predicated region
        $region65: #{tpu_custom_call.1} parent=39 // pred_check
          %p2089 = pneg %p347
        $region66: #{tpu_custom_call.1} parent=39 // pred_check_branch
          %2091 = sbr.rel (%p2089) target = $region68
        $region67: #{tpu_custom_call.1} parent=39 // pred_region
          %v2092 = vld [vmem:[#allocation4] sm:$0xff]
          %v2093 = vrcp.pop %v2092
          %v2094 = vld [vmem:[#allocation5] sm:$0xff]
          %2096 = vset.pattern.permute.xlu0 0
          %2097 = vperm.xlu0 %2096, %v2093
          %v2098 = vpop.permute.xlu0 %2097
          %v2100 = vmul.f32 %v2094, %v2098
          %2101 = vst.msk [vmem:[#allocation5] sm:$0xff] %vm529, %v2100
          %v2102 = vld [vmem:[%s814] sm:$0xff]
          %v2103 = vrcp.pop %v2102
          %v2104 = vld [vmem:[#allocation5] sm:$0xff]
          %2106 = vset.pattern.permute.xlu0 0
          %2107 = vperm.xlu0 %2106, %v2103
          %v2108 = vpop.permute.xlu0 %2107
          %v2110 = vmul.f32 %v2104, %v2108
          %2111 = vst.msk [vmem:[#allocation5] sm:$0xff] %vm910, %v2110
          %v2112 = vld [vmem:[%s1010] sm:$0xff]
          %v2113 = vrcp.pop %v2112
          %v2114 = vld [vmem:[#allocation5] sm:$0xff]
          %2116 = vset.pattern.permute.xlu0 0
          %2117 = vperm.xlu0 %2116, %v2113
          %v2118 = vpop.permute.xlu0 %2117
          %v2120 = vmul.f32 %v2114, %v2118
          %2121 = vst.msk [vmem:[#allocation5] sm:$0xff] %vm1106, %v2120
          %v2122 = vld [vmem:[%s1206] sm:$0xff]
          %v2123 = vrcp.pop %v2122
          %v2124 = vld [vmem:[#allocation5] sm:$0xff]
          %2126 = vset.pattern.permute.xlu0 0
          %2127 = vperm.xlu0 %2126, %v2123
          %v2128 = vpop.permute.xlu0 %2127
          %v2130 = vmul.f32 %v2124, %v2128
          %2131 = vst.msk [vmem:[#allocation5] sm:$0xff] %vm1302, %v2130
          %v2132 = vld [vmem:[%s1402] sm:$0xff]
          %v2133 = vrcp.pop %v2132
          %v2134 = vld [vmem:[#allocation5] sm:$0xff]
          %2136 = vset.pattern.permute.xlu0 0
          %2137 = vperm.xlu0 %2136, %v2133
          %v2138 = vpop.permute.xlu0 %2137
          %v2140 = vmul.f32 %v2134, %v2138
          %2141 = vst.msk [vmem:[#allocation5] sm:$0xff] %vm1498, %v2140
          %v2142 = vld [vmem:[%s1598] sm:$0xff]
          %v2143 = vrcp.pop %v2142
          %v2144 = vld [vmem:[#allocation5] sm:$0xff]
          %2146 = vset.pattern.permute.xlu0 0
          %2147 = vperm.xlu0 %2146, %v2143
          %v2148 = vpop.permute.xlu0 %2147
          %v2150 = vmul.f32 %v2144, %v2148
          %2151 = vst.msk [vmem:[#allocation5] sm:$0xff] %vm1694, %v2150
          %v2152 = vld [vmem:[%s1794] sm:$0xff]
          %v2153 = vrcp.pop %v2152
          %v2154 = vld [vmem:[#allocation5] sm:$0xff]
          %2156 = vset.pattern.permute.xlu0 0
          %2157 = vperm.xlu0 %2156, %v2153
          %v2158 = vpop.permute.xlu0 %2157
          %v2160 = vmul.f32 %v2154, %v2158
          %2161 = vst.msk [vmem:[#allocation5] sm:$0xff] %vm1890, %v2160
          %v2162 = vld [vmem:[%s1990] sm:$0xff]
          %v2163 = vrcp.pop %v2162
          %v2164 = vld [vmem:[#allocation5] sm:$0xff]
          %2166 = vset.pattern.permute.xlu0 0
          %2167 = vperm.xlu0 %2166, %v2163
          %v2168 = vpop.permute.xlu0 %2167
          %v2170 = vmul.f32 %v2164, %v2168
          %2171 = vst.msk [vmem:[#allocation5] sm:$0xff] %vm2086, %v2170
          %v2172 = vld [vmem:[#allocation5] sm:$0xff]
          %v2173 = vld [vmem:[#allocation14] sm:$0xff]
          %v2174 = vld [vmem:[#allocation14 + $0x8] sm:$0xff]
          %v2175 = vld [vmem:[#allocation14 + $0x10] sm:$0xff]
          %v2176 = vld [vmem:[#allocation14 + $0x18] sm:$0xff]
          %v2178 = vsel %vm454, %v2172, 0
          %2180 = vmatprep.subr.mxu0 0.0
          %2181 = vmatpush1.msra.mxu0 %v2173
          %2182 = vmatprep.subr.mxu0 0.0
          %2183 = vmatpush1.msra.mxu0 %v2174
          %2184 = vmatprep.subr.mxu0 0.0
          %2185 = vmatpush1.msra.mxu0 %v2175
          %2186 = vmatprep.subr.mxu0 0.0
          %2187 = vmatpush1.msra.mxu0 %v2176
          %2188 = vmatprep.subr.mxu0 0.0
          %2189 = vmatpush1.msra.mxu0 0.0
          %2190 = vmatprep.subr.mxu0 0.0
          %2191 = vmatpush1.msra.mxu0 0.0
          %2192 = vmatprep.subr.mxu0 0.0
          %2193 = vmatpush1.msra.mxu0 0.0
          %2194 = vmatprep.subr.mxu0 0.0
          %2195 = vmatpush1.msra.mxu0 0.0
          %2196 = vmatprep.subr.mxu0 0.0
          %2197 = vmatpush1.msra.mxu0 0.0
          %2198 = vmatprep.subr.mxu0 0.0
          %2199 = vmatpush1.msra.mxu0 0.0
          %2200 = vmatprep.subr.mxu0 0.0
          %2201 = vmatpush1.msra.mxu0 0.0
          %2202 = vmatprep.subr.mxu0 0.0
          %2203 = vmatpush1.msra.mxu0 0.0
          %2204 = vmatprep.subr.mxu0 0.0
          %2205 = vmatpush1.msra.mxu0 0.0
          %2206 = vmatprep.subr.mxu0 0.0
          %2207 = vmatpush1.msra.mxu0 0.0
          %2208 = vmatprep.subr.mxu0 0.0
          %2209 = vmatpush1.msra.mxu0 0.0
          %2210 = vmatprep.subr.mxu0 0.0
          %2211 = vmatpush1.msra.mxu0 0.0
          %2212 = vmatprep.subr.mxu0 0.0
          %2213 = vmatpush1.msra.mxu0 0.0
          %2214 = vmatprep.subr.mxu0 0.0
          %2215 = vmatpush1.msra.mxu0 0.0
          %2216 = vmatprep.subr.mxu0 0.0
          %2217 = vmatpush1.msra.mxu0 0.0
          %2218 = vmatprep.subr.mxu0 0.0
          %2219 = vmatpush1.msra.mxu0 0.0
          %2220 = vmatprep.subr.mxu0 0.0
          %2221 = vmatpush1.msra.mxu0 0.0
          %2222 = vmatprep.subr.mxu0 0.0
          %2223 = vmatpush1.msra.mxu0 0.0
          %2224 = vmatprep.subr.mxu0 0.0
          %2225 = vmatpush1.msra.mxu0 0.0
          %2226 = vmatprep.subr.mxu0 0.0
          %2227 = vmatpush1.msra.mxu0 0.0
          %2228 = vmatprep.subr.mxu0 0.0
          %2229 = vmatpush1.msra.mxu0 0.0
          %2230 = vmatprep.subr.mxu0 0.0
          %2231 = vmatpush1.msra.mxu0 0.0
          %2232 = vmatprep.subr.mxu0 0.0
          %2233 = vmatpush1.msra.mxu0 0.0
          %2234 = vmatprep.subr.mxu0 0.0
          %2235 = vmatpush1.msra.mxu0 0.0
          %2236 = vmatprep.subr.mxu0 0.0
          %2237 = vmatpush1.msra.mxu0 0.0
          %2238 = vmatprep.subr.mxu0 0.0
          %2239 = vmatpush1.msra.mxu0 0.0
          %2240 = vmatprep.subr.mxu0 0.0
          %2241 = vmatpush1.msra.mxu0 0.0
          %2242 = vmatprep.subr.mxu0 0.0
          %2243 = vmatpush1.msra.mxu0 0.0
          %2244 = vmatprep.mubr.f32.mxu0 0.0
          %2245 = vmatmul.mubr.f32.gmra.mrb[0].mxu0 %v2178
          %v2246 = vpop.f32.mrb[0].mxu0
          %v2247 = vadd.f32 0.0, %v2246
          %v2248 = vpop.f32.mrb[0].mxu0
          %2249 = vdwg.mxu0
          %2250 = vst.msk [vmem:[%s346] sm:$0xff] %vm454, %v2247
        $region68: #{tpu_custom_call.1} parent=39 // pred_fallthru
          _
        %s2251 = sand.u32 %s174, 1
        %s2252 = scalar_lea.sflag [#allocation8], %s2251
        %s2253 = sand.u32 %s174, 1
        %s2254 = smul.addr %s2253, 8
        %s2255 = scalar_lea.vmem [#allocation15], %s2254
        // Predicated region
        $region69: #{tpu_custom_call.1} parent=39 // pred_check
          %p2256 = pneg %p184
        $region70: #{tpu_custom_call.1} parent=39 // pred_check_branch
          %2258 = sbr.rel (%p2256) target = $region72
        $region71: #{tpu_custom_call.1} parent=39 // pred_region
          %s2260 = ssub.s32 128, 128
          %2261 = vsyncadd %s2252, %s2260
          %s2262 = sadd.s32 %s32, %s31
          %s2263 = smul.addr %s2262, 128
          %s2264 = scalar_lea.hbm %s5, %s2263
          %s2266 = sshll.u32 %s2255, 4
          %s2267 = int_to_ptr.vmem [resolvable:$true] %s2266
          %2269 = dma.vmem_to_hbm [thread:$0]  %s2267, 128, %s2264, %s2252
        $region72: #{tpu_custom_call.1} parent=39 // pred_fallthru
          _
      $region40: #{tpu_custom_call.1} parent=5 // pred_fallthru
        _
      %p2270 = scmp.le.s32.totalorder 2, %s21
      // Predicated region
      $region73: #{tpu_custom_call.1} parent=5 // pred_check
        %p2271 = pneg %p2270
      $region74: #{tpu_custom_call.1} parent=5 // pred_check_branch
        %2273 = sbr.rel (%p2271) target = $region76
      $region75: #{tpu_custom_call.1} parent=5 // pred_region
        %s2274 = ssub.s32 %s21, 2
        // Predicated region
        $region77: #{tpu_custom_call.1} parent=75 // pred_check
          %p2275 = pneg %p190
        $region78: #{tpu_custom_call.1} parent=75 // pred_check_branch
          %2277 = sbr.rel (%p2275) target = $region80
        $region79: #{tpu_custom_call.1} parent=75 // pred_region
          %s2278 = sand.u32 %s175, 1
          %s2279 = scalar_lea.sflag [#allocation8], %s2278
          %s2280 = sand.u32 %s175, 1
          %s2281 = smul.addr %s2280, 8
          %s2282 = scalar_lea.vmem [#allocation15], %s2281
          %2283 = dma.done %s2279, 128
        $region80: #{tpu_custom_call.1} parent=75 // pred_fallthru
          _
      $region76: #{tpu_custom_call.1} parent=5 // pred_fallthru
        _
    $region6: #{tpu_custom_call.1} parent=1 // loop_footer
      %s25 = sadd.s32 1, %s21
    $region7: #{tpu_custom_call.1} parent=1 // loop_footer_branch
      %20 = sbr.rel target = $region3
    $region8: #{tpu_custom_call.1} parent=1 // loop_exit
      _
    %2284 = vsyncpa [#allocation7], 1
    %s2285 = scalar_lea.sflag [#allocation7], 1
    %2286 = vsyncpa %s2285, 1
    %2287 = vsyncpa [#allocation10], 1
    %s2288 = scalar_lea.sflag [#allocation10], 1
    %2289 = vsyncpa %s2288, 1
    %2290 = vsyncpa [#allocation13], 1
    %2291 = vsyncpa [#allocation8], 1
    %s2292 = scalar_lea.sflag [#allocation8], 1
    %2293 = vsyncpa %s2292, 1

</llo_original>
